<compile_context>
chip_gen: v7x
topology: tpu7x:2x2x1
jax: 0.10.0
libtpu: 0.0.40
codegen_flags: <defaults>
</compile_context>

<pallas_src>
import jax
import jax.numpy as jnp
from jax.experimental import pallas as pl
from jax.experimental.pallas import tpu as pltpu

ACT_DTYPE = jnp.float32   # set to jnp.bfloat16 to halve activation HBM traffic (v6e/v7x)
GN_EPS = 1e-5             # torch.nn.GroupNorm default


# ----------------------------------------------------------------------------
# In-kernel math helpers
# ----------------------------------------------------------------------------
def _erf(x):
    # TODO(synk): Mosaic has no native erf lowering; Abramowitz & Stegun 7.1.26
    # polynomial (|abs err| <= 1.5e-7) keeps parity with PyTorch's exact GELU.
    a1, a2, a3, a4, a5 = 0.254829592, -0.284496736, 1.421413741, -1.453152027, 1.061405429
    p = 0.3275911
    sgn = jnp.where(x >= 0.0, 1.0, -1.0)
    ax = jnp.abs(x)
    t = pl.reciprocal(1.0 + p * ax, approx=True)      # EUP slot, frees VALU
    poly = ((((a5 * t + a4) * t + a3) * t + a2) * t + a1) * t
    return sgn * (1.0 - poly * jnp.exp(-ax * ax))


def _gelu(x):
    # exact GELU: 0.5 * x * (1 + erf(x / sqrt(2)))
    return 0.5 * x * (1.0 + _erf(x * 0.7071067811865476))


def _group_norm_affine(acc, gamma, beta, eps):
    """GroupNorm(num_groups=1) over the whole (H*W, C) sample, single pass."""
    n = float(acc.shape[0] * acc.shape[1])
    s = jnp.sum(acc, keepdims=True)                    # (1, 1)
    s2 = jnp.sum(acc * acc, keepdims=True)             # (1, 1)
    mean = s * (1.0 / n)
    var = jnp.maximum(s2 * (1.0 / n) - mean * mean, 0.0)   # clamp f32 cancellation
    y = (acc - mean) * jax.lax.rsqrt(var + eps)
    return y * gamma + beta                            # per-channel affine


# ----------------------------------------------------------------------------
# Fully fused Down kernel: one grid step == one batch sample.
#   maxpool(2) -> [conv3x3 -> GN -> GELU -> conv3x3 -> GN -> +x -> GELU]  (dc1)
#              -> [same residual DoubleConv]                               (dc2)
#              -> [conv3x3 -> GN -> GELU -> conv3x3 -> GN]                 (dc3)
# Intermediate activations stay in padded VMEM scratch; never touch HBM.
# ----------------------------------------------------------------------------
def _make_down_kernel(H, W, cin, cout, eps):
    HW = H * W

    def conv3x3(src_pad, w_ref):
        # src_pad: (H+2, W+2, Ci) f32 VALUE; w_ref: (9, Ci, Co) ref.
        # 9 accumulated (HW, Ci) @ (Ci, Co) MXU matmuls over shifted windows
        # sliced directly from the VMEM-resident padded sample.
        co = w_ref.shape[2]
        acc = jnp.zeros((HW, co), jnp.float32)
        k = 0
        for dy in range(3):
            for dx in range(3):
                tap = src_pad[dy:dy + H, dx:dx + W, :].reshape(HW, -1)
                acc = acc + jnp.dot(tap, w_ref[k], preferred_element_type=jnp.float32)
                k += 1
        return acc

    def kernel(x_ref,
               w11_ref, g11_ref, b11_ref, w12_ref, g12_ref, b12_ref,
               w21_ref, g21_ref, b21_ref, w22_ref, g22_ref, b22_ref,
               w31_ref, g31_ref, b31_ref, w32_ref, g32_ref, b32_ref,
               o_ref, pa_ref, pb_ref, pc_ref):
        # --- zero the padded scratch borders (interior always overwritten) ---
        pa_ref[...] = jnp.zeros_like(pa_ref)
        pb_ref[...] = jnp.zeros_like(pb_ref)
        pc_ref[...] = jnp.zeros_like(pc_ref)

        # --- MaxPool2d(2): input block is (1, H, 2, W, 2*cin) ---------------
        v = x_ref[0].astype(jnp.float32)                       # (H, 2, W, 2*cin)
        rows = jnp.maximum(v[:, 0], v[:, 1])                   # max over H pair
        pooled = jnp.maximum(rows[:, :, :cin], rows[:, :, cin:])  # max over W pair
        pa_ref[1:1 + H, 1:1 + W, :] = pooled                   # padded pooled sample

        # --- residual DoubleConv (cin -> cin), applied twice -----------------
        def dc_residual(w1_ref, g1, b1, w2_ref, g2, b2):
            x_pad = pa_ref[...]                                # (H+2, W+2, cin) value
            y1 = _gelu(_group_norm_affine(conv3x3(x_pad, w1_ref), g1, b1, eps))
            pb_ref[1:1 + H, 1:1 + W, :] = y1.reshape(H, W, cin)
            y2 = _group_norm_affine(conv3x3(pb_ref[...], w2_ref), g2, b2, eps)
            res = x_pad[1:1 + H, 1:1 + W, :].reshape(HW, cin)
            pa_ref[1:1 + H, 1:1 + W, :] = _gelu(res + y2).reshape(H, W, cin)

        dc_residual(w11_ref, g11_ref[...], b11_ref[...], w12_ref, g12_ref[...], b12_ref[...])
        dc_residual(w21_ref, g21_ref[...], b21_ref[...], w22_ref, g22_ref[...], b22_ref[...])

        # --- final DoubleConv (cin -> cout), no residual ----------------------
        x_pad = pa_ref[...]
        y1 = _gelu(_group_norm_affine(conv3x3(x_pad, w31_ref),
                                      g31_ref[...], b31_ref[...], eps))
        pc_ref[1:1 + H, 1:1 + W, :] = y1.reshape(H, W, cout)
        y2 = _group_norm_affine(conv3x3(pc_ref[...], w32_ref),
                                g32_ref[...], b32_ref[...], eps)
        o_ref[0] = y2.reshape(H, W, cout).astype(o_ref.dtype)

    return kernel


def _vmem_limit(H2, W2, cin, cout):
    """Scoped-VMEM request derived from the actual block sizes (with headroom)."""
    act = jnp.dtype(ACT_DTYPE).itemsize
    Hp, Wp = H2 + 2, W2 + 2
    HW = H2 * W2
    cmax = max(cin, cout)
    need = 2 * (H2 * 2 * W2 * 2 * cin) * act                         # in block (2x buffered)
    need += 2 * (H2 * W2 * cout) * act                               # out block (2x buffered)
    w_bytes = (2 * (2 * 9 * cin * cin + 4 * cin)                     # dc1 + dc2 weights/affine
               + 9 * cin * cout + 9 * cout * cout + 4 * cout) * 4    # dc3 weights/affine
    need += 2 * w_bytes
    need += Hp * Wp * (2 * cin + cout) * 4                           # padded VMEM scratches
    need += 8 * HW * cmax * 4                                        # acc / tap / epilogue temps
    return int(min(max(2 * need, 16 * 2 ** 20), 32 * 2 ** 20))       # safe on v5e/v6e/v7x


def down_pallas(x, p):
    """x: (N, H, W, Cin) NHWC -> (N, H//2, W//2, Cout). Entire Down block fused."""
    N, H, W, cin = x.shape
    H2, W2 = H // 2, W // 2                   # floor, like nn.MaxPool2d(2)
    cout = p["dc3_w1"].shape[2]
    x = x[:, :2 * H2, :2 * W2, :]             # guard odd H/W
    # free contiguous reshape: fold the 2x2 window partners into extra dims
    xr = x.reshape(N, H2, 2, W2, 2 * cin)

    def wspec(ci, co):
        return pl.BlockSpec((9, ci, co), lambda n: (0, 0, 0))

    def aspec(c):
        return pl.BlockSpec((1, c), lambda n: (0, 0))

    in_specs = [
        pl.BlockSpec((1, H2, 2, W2, 2 * cin), lambda n: (n, 0, 0, 0, 0)),
        wspec(cin, cin), aspec(cin), aspec(cin), wspec(cin, cin), aspec(cin), aspec(cin),
        wspec(cin, cin), aspec(cin), aspec(cin), wspec(cin, cin), aspec(cin), aspec(cin),
        wspec(cin, cout), aspec(cout), aspec(cout), wspec(cout, cout), aspec(cout), aspec(cout),
    ]

    return pl.pallas_call(
        _make_down_kernel(H2, W2, cin, cout, GN_EPS),
        out_shape=jax.ShapeDtypeStruct((N, H2, W2, cout), ACT_DTYPE),
        grid=(N,),
        in_specs=in_specs,
        out_specs=pl.BlockSpec((1, H2, W2, cout), lambda n: (n, 0, 0, 0)),
        scratch_shapes=[
            pltpu.VMEM((H2 + 2, W2 + 2, cin), jnp.float32),   # current padded activation
            pltpu.VMEM((H2 + 2, W2 + 2, cin), jnp.float32),   # dc1/dc2 mid activation
            pltpu.VMEM((H2 + 2, W2 + 2, cout), jnp.float32),  # dc3 mid activation
        ],
        compiler_params=pltpu.CompilerParams(
            dimension_semantics=("parallel",),                # shard the batch over TCs (v7x)
            vmem_limit_bytes=_vmem_limit(H2, W2, cin, cout)),
    )(xr,
      p["dc1_w1"], p["dc1_g1"], p["dc1_b1"], p["dc1_w2"], p["dc1_g2"], p["dc1_b2"],
      p["dc2_w1"], p["dc2_g1"], p["dc2_b1"], p["dc2_w2"], p["dc2_g2"], p["dc2_b2"],
      p["dc3_w1"], p["dc3_g1"], p["dc3_b1"], p["dc3_w2"], p["dc3_g2"], p["dc3_b2"])


# ----------------------------------------------------------------------------
# Down module forward: NCHW boundary (PyTorch convention); NHWC (lane dim = C)
# internally.
# ----------------------------------------------------------------------------
@jax.jit
def down_forward(x_nchw, params):
    x = jnp.transpose(x_nchw, (0, 2, 3, 1)).astype(ACT_DTYPE)
    y = down_pallas(x, params)
    return jnp.transpose(y, (0, 3, 1, 2)).astype(jnp.float32)   # -> NCHW


# ----------------------------------------------------------------------------
# Deterministic parameter init (shapes from Down.__init__ / DoubleConv.__init__)
# Conv weights stored as (9, Cin, Cout) <=> torch (Cout, Cin, 3, 3); all
# reshapes/casts are done once here (hoisted out of the forward pass).
# ----------------------------------------------------------------------------
def init_params(key, in_ch, out_ch):
    def conv_w(k, cin, cout):
        std = 1.0 / jnp.sqrt(9.0 * cin)
        return (std * jax.random.normal(k, (9, cin, cout))).astype(jnp.float32)

    def gn(k, c):
        kg, kb = jax.random.split(k)
        g = (1.0 + 0.1 * jax.random.normal(kg, (1, c))).astype(jnp.float32)
        b = (0.1 * jax.random.normal(kb, (1, c))).astype(jnp.float32)
        return g, b

    ks = jax.random.split(key, 12)
    p = {}
    # DoubleConv 1: in -> in (mid=in), residual
    p["dc1_w1"] = conv_w(ks[0], in_ch, in_ch); p["dc1_g1"], p["dc1_b1"] = gn(ks[1], in_ch)
    p["dc1_w2"] = conv_w(ks[2], in_ch, in_ch); p["dc1_g2"], p["dc1_b2"] = gn(ks[3], in_ch)
    # DoubleConv 2: in -> in (mid=in), residual
    p["dc2_w1"] = conv_w(ks[4], in_ch, in_ch); p["dc2_g1"], p["dc2_b1"] = gn(ks[5], in_ch)
    p["dc2_w2"] = conv_w(ks[6], in_ch, in_ch); p["dc2_g2"], p["dc2_b2"] = gn(ks[7], in_ch)
    # DoubleConv 3: in -> out (mid=out), no residual
    p["dc3_w1"] = conv_w(ks[8], in_ch, out_ch); p["dc3_g1"], p["dc3_b1"] = gn(ks[9], out_ch)
    p["dc3_w2"] = conv_w(ks[10], out_ch, out_ch); p["dc3_g2"], p["dc3_b2"] = gn(ks[11], out_ch)
    return p


if __name__ == "__main__":
    key = jax.random.PRNGKey(0)
    k_x, k_p = jax.random.split(key)

    N, in_ch, out_ch, H, W = 2, 4, 8, 16, 16
    x = jax.random.normal(k_x, (N, in_ch, H, W), jnp.float32)   # NCHW like PyTorch
    params = init_params(k_p, in_ch, out_ch)

    y = down_forward(x, params)
    jax.block_until_ready(y)

    assert y.shape == (N, out_ch, H // 2, W // 2), y.shape
    assert bool(jnp.all(jnp.isfinite(y)))
    print("KERNEL_OK")
</pallas_src>

<mosaic_0001>
module attributes {stable_mosaic.version = 11 : i64} {
  func.func @kernel(%arg0: i32, %arg1: memref<1x8x2x8x8xf32, #tpu.memory_space<vmem>>, %arg2: memref<9x4x4xf32, #tpu.memory_space<vmem>>, %arg3: memref<1x4xf32, #tpu.memory_space<vmem>>, %arg4: memref<1x4xf32, #tpu.memory_space<vmem>>, %arg5: memref<9x4x4xf32, #tpu.memory_space<vmem>>, %arg6: memref<1x4xf32, #tpu.memory_space<vmem>>, %arg7: memref<1x4xf32, #tpu.memory_space<vmem>>, %arg8: memref<9x4x4xf32, #tpu.memory_space<vmem>>, %arg9: memref<1x4xf32, #tpu.memory_space<vmem>>, %arg10: memref<1x4xf32, #tpu.memory_space<vmem>>, %arg11: memref<9x4x4xf32, #tpu.memory_space<vmem>>, %arg12: memref<1x4xf32, #tpu.memory_space<vmem>>, %arg13: memref<1x4xf32, #tpu.memory_space<vmem>>, %arg14: memref<9x4x8xf32, #tpu.memory_space<vmem>>, %arg15: memref<1x8xf32, #tpu.memory_space<vmem>>, %arg16: memref<1x8xf32, #tpu.memory_space<vmem>>, %arg17: memref<9x8x8xf32, #tpu.memory_space<vmem>>, %arg18: memref<1x8xf32, #tpu.memory_space<vmem>>, %arg19: memref<1x8xf32, #tpu.memory_space<vmem>>, %arg20: memref<1x8x8x8xf32, #tpu.memory_space<vmem>>, %arg21: memref<10x10x4xf32, #tpu.memory_space<vmem>>, %arg22: memref<10x10x4xf32, #tpu.memory_space<vmem>>, %arg23: memref<10x10x8xf32, #tpu.memory_space<vmem>>) attributes {dimension_semantics = [#tpu.dimension_semantics<parallel>], iteration_bounds = array<i64: 2>, scalar_prefetch = 0 : i64, scratch_operands = 3 : i64, tpu.core_type = #tpu.core_type<tc>, window_params = [{transform_indices = @transform_0, window_bounds = array<i64: 1, 8, 2, 8, 8>}, {pipeline_mode = #tpu.pipeline_mode<synchronous>, transform_indices = @transform_1, window_bounds = array<i64: 9, 4, 4>}, {pipeline_mode = #tpu.pipeline_mode<synchronous>, transform_indices = @transform_2, window_bounds = array<i64: 1, 4>}, {pipeline_mode = #tpu.pipeline_mode<synchronous>, transform_indices = @transform_3, window_bounds = array<i64: 1, 4>}, {pipeline_mode = #tpu.pipeline_mode<synchronous>, transform_indices = @transform_4, window_bounds = array<i64: 9, 4, 4>}, {pipeline_mode = #tpu.pipeline_mode<synchronous>, transform_indices = @transform_5, window_bounds = array<i64: 1, 4>}, {pipeline_mode = #tpu.pipeline_mode<synchronous>, transform_indices = @transform_6, window_bounds = array<i64: 1, 4>}, {pipeline_mode = #tpu.pipeline_mode<synchronous>, transform_indices = @transform_7, window_bounds = array<i64: 9, 4, 4>}, {pipeline_mode = #tpu.pipeline_mode<synchronous>, transform_indices = @transform_8, window_bounds = array<i64: 1, 4>}, {pipeline_mode = #tpu.pipeline_mode<synchronous>, transform_indices = @transform_9, window_bounds = array<i64: 1, 4>}, {pipeline_mode = #tpu.pipeline_mode<synchronous>, transform_indices = @transform_10, window_bounds = array<i64: 9, 4, 4>}, {pipeline_mode = #tpu.pipeline_mode<synchronous>, transform_indices = @transform_11, window_bounds = array<i64: 1, 4>}, {pipeline_mode = #tpu.pipeline_mode<synchronous>, transform_indices = @transform_12, window_bounds = array<i64: 1, 4>}, {pipeline_mode = #tpu.pipeline_mode<synchronous>, transform_indices = @transform_13, window_bounds = array<i64: 9, 4, 8>}, {pipeline_mode = #tpu.pipeline_mode<synchronous>, transform_indices = @transform_14, window_bounds = array<i64: 1, 8>}, {pipeline_mode = #tpu.pipeline_mode<synchronous>, transform_indices = @transform_15, window_bounds = array<i64: 1, 8>}, {pipeline_mode = #tpu.pipeline_mode<synchronous>, transform_indices = @transform_16, window_bounds = array<i64: 9, 8, 8>}, {pipeline_mode = #tpu.pipeline_mode<synchronous>, transform_indices = @transform_17, window_bounds = array<i64: 1, 8>}, {pipeline_mode = #tpu.pipeline_mode<synchronous>, transform_indices = @transform_18, window_bounds = array<i64: 1, 8>}, {transform_indices = @transform_19, window_bounds = array<i64: 1, 8, 8, 8>}]} {
    %cst = arith.constant 0.000000e+00 : f32
    %0 = vector.broadcast %cst : f32 to vector<10x10x4xf32>
    %c0 = arith.constant 0 : index
    %c0_0 = arith.constant 0 : index
    %c0_1 = arith.constant 0 : index
    %1 = vector.load %arg21[%c0, %c0_0, %c0_1] : memref<10x10x4xf32, #tpu.memory_space<vmem>>, vector<10x10x4xf32>
    tpu.vector_store %arg21[%c0, %c0_0, %c0_1], %0 {strides = array<i32>} : memref<10x10x4xf32, #tpu.memory_space<vmem>>, vector<10x10x4xf32>,
    %cst_2 = arith.constant 0.000000e+00 : f32
    %2 = vector.broadcast %cst_2 : f32 to vector<10x10x4xf32>
    %c0_3 = arith.constant 0 : index
    %c0_4 = arith.constant 0 : index
    %c0_5 = arith.constant 0 : index
    %3 = vector.load %arg22[%c0_3, %c0_4, %c0_5] : memref<10x10x4xf32, #tpu.memory_space<vmem>>, vector<10x10x4xf32>
    tpu.vector_store %arg22[%c0_3, %c0_4, %c0_5], %2 {strides = array<i32>} : memref<10x10x4xf32, #tpu.memory_space<vmem>>, vector<10x10x4xf32>,
    %cst_6 = arith.constant 0.000000e+00 : f32
    %4 = vector.broadcast %cst_6 : f32 to vector<10x10x8xf32>
    %c0_7 = arith.constant 0 : index
    %c0_8 = arith.constant 0 : index
    %c0_9 = arith.constant 0 : index
    %5 = vector.load %arg23[%c0_7, %c0_8, %c0_9] : memref<10x10x8xf32, #tpu.memory_space<vmem>>, vector<10x10x8xf32>
    tpu.vector_store %arg23[%c0_7, %c0_8, %c0_9], %4 {strides = array<i32>} : memref<10x10x8xf32, #tpu.memory_space<vmem>>, vector<10x10x8xf32>,
    %c0_10 = arith.constant 0 : index
    %c0_11 = arith.constant 0 : index
    %c0_12 = arith.constant 0 : index
    %c0_13 = arith.constant 0 : index
    %c0_14 = arith.constant 0 : index
    %6 = vector.load %arg1[%c0_10, %c0_11, %c0_12, %c0_13, %c0_14] : memref<1x8x2x8x8xf32, #tpu.memory_space<vmem>>, vector<1x8x2x8x8xf32>
    %7 = vector.shape_cast %6 : vector<1x8x2x8x8xf32> to vector<8x2x8x8xf32>
    %8 = vector.extract_strided_slice %7 {offsets = [0, 0, 0, 0], sizes = [8, 1, 8, 8], strides = [1, 1, 1, 1]} : vector<8x2x8x8xf32> to vector<8x1x8x8xf32>
    %9 = vector.shape_cast %8 : vector<8x1x8x8xf32> to vector<8x8x8xf32>
    %10 = vector.extract_strided_slice %7 {offsets = [0, 1, 0, 0], sizes = [8, 1, 8, 8], strides = [1, 1, 1, 1]} : vector<8x2x8x8xf32> to vector<8x1x8x8xf32>
    %11 = vector.shape_cast %10 : vector<8x1x8x8xf32> to vector<8x8x8xf32>
    %12 = arith.maximumf %9, %11 : vector<8x8x8xf32>
    %13 = vector.extract_strided_slice %12 {offsets = [0, 0, 0], sizes = [8, 8, 4], strides = [1, 1, 1]} : vector<8x8x8xf32> to vector<8x8x4xf32>
    %14 = vector.extract_strided_slice %12 {offsets = [0, 0, 4], sizes = [8, 8, 4], strides = [1, 1, 1]} : vector<8x8x8xf32> to vector<8x8x4xf32>
    %15 = arith.maximumf %13, %14 : vector<8x8x4xf32>
    %c1 = arith.constant 1 : index
    %c1_15 = arith.constant 1 : index
    %c0_16 = arith.constant 0 : index
    %16 = vector.load %arg21[%c1, %c1_15, %c0_16] : memref<10x10x4xf32, #tpu.memory_space<vmem>>, vector<8x8x4xf32>
    tpu.vector_store %arg21[%c1, %c1_15, %c0_16], %15 {strides = array<i32>} : memref<10x10x4xf32, #tpu.memory_space<vmem>>, vector<8x8x4xf32>,
    %c0_17 = arith.constant 0 : index
    %c0_18 = arith.constant 0 : index
    %17 = vector.load %arg3[%c0_17, %c0_18] : memref<1x4xf32, #tpu.memory_space<vmem>>, vector<1x4xf32>
    %c0_19 = arith.constant 0 : index
    %c0_20 = arith.constant 0 : index
    %18 = vector.load %arg4[%c0_19, %c0_20] : memref<1x4xf32, #tpu.memory_space<vmem>>, vector<1x4xf32>
    %c0_21 = arith.constant 0 : index
    %c0_22 = arith.constant 0 : index
    %19 = vector.load %arg6[%c0_21, %c0_22] : memref<1x4xf32, #tpu.memory_space<vmem>>, vector<1x4xf32>
    %c0_23 = arith.constant 0 : index
    %c0_24 = arith.constant 0 : index
    %20 = vector.load %arg7[%c0_23, %c0_24] : memref<1x4xf32, #tpu.memory_space<vmem>>, vector<1x4xf32>
    %c0_25 = arith.constant 0 : index
    %c0_26 = arith.constant 0 : index
    %c0_27 = arith.constant 0 : index
    %21 = vector.load %arg21[%c0_25, %c0_26, %c0_27] : memref<10x10x4xf32, #tpu.memory_space<vmem>>, vector<10x10x4xf32>
    %cst_28 = arith.constant 0.000000e+00 : f32
    %22 = vector.broadcast %cst_28 : f32 to vector<64x4xf32>
    %23 = vector.extract_strided_slice %21 {offsets = [0, 0, 0], sizes = [8, 8, 4], strides = [1, 1, 1]} : vector<10x10x4xf32> to vector<8x8x4xf32>
    %24 = vector.shape_cast %23 : vector<8x8x4xf32> to vector<64x4xf32>
    %c0_29 = arith.constant 0 : index
    %c0_30 = arith.constant 0 : index
    %c0_31 = arith.constant 0 : index
    %25 = vector.load %arg2[%c0_29, %c0_30, %c0_31] : memref<9x4x4xf32, #tpu.memory_space<vmem>>, vector<1x4x4xf32>
    %26 = vector.shape_cast %25 : vector<1x4x4xf32> to vector<4x4xf32>
    %cst_32 = arith.constant dense<0.000000e+00> : vector<64x4xf32>
    %27 = tpu.matmul %24, %26, %cst_32 {dimension_numbers = #tpu.dot_dimension_numbers<[1], [0], [0], [1], [0, 0, 1, 1], [], []>} : vector<64x4xf32>, vector<4x4xf32>, vector<64x4xf32> -> vector<64x4xf32>
    %28 = arith.addf %22, %27 : vector<64x4xf32>
    %29 = vector.extract_strided_slice %21 {offsets = [0, 1, 0], sizes = [8, 8, 4], strides = [1, 1, 1]} : vector<10x10x4xf32> to vector<8x8x4xf32>
    %30 = vector.shape_cast %29 : vector<8x8x4xf32> to vector<64x4xf32>
    %c1_33 = arith.constant 1 : index
    %c0_34 = arith.constant 0 : index
    %c0_35 = arith.constant 0 : index
    %31 = vector.load %arg2[%c1_33, %c0_34, %c0_35] : memref<9x4x4xf32, #tpu.memory_space<vmem>>, vector<1x4x4xf32>
    %32 = vector.shape_cast %31 : vector<1x4x4xf32> to vector<4x4xf32>
    %cst_36 = arith.constant dense<0.000000e+00> : vector<64x4xf32>
    %33 = tpu.matmul %30, %32, %cst_36 {dimension_numbers = #tpu.dot_dimension_numbers<[1], [0], [0], [1], [0, 0, 1, 1], [], []>} : vector<64x4xf32>, vector<4x4xf32>, vector<64x4xf32> -> vector<64x4xf32>
    %34 = arith.addf %28, %33 : vector<64x4xf32>
    %35 = vector.extract_strided_slice %21 {offsets = [0, 2, 0], sizes = [8, 8, 4], strides = [1, 1, 1]} : vector<10x10x4xf32> to vector<8x8x4xf32>
    %36 = vector.shape_cast %35 : vector<8x8x4xf32> to vector<64x4xf32>
    %c2 = arith.constant 2 : index
    %c0_37 = arith.constant 0 : index
    %c0_38 = arith.constant 0 : index
    %37 = vector.load %arg2[%c2, %c0_37, %c0_38] : memref<9x4x4xf32, #tpu.memory_space<vmem>>, vector<1x4x4xf32>
    %38 = vector.shape_cast %37 : vector<1x4x4xf32> to vector<4x4xf32>
    %cst_39 = arith.constant dense<0.000000e+00> : vector<64x4xf32>
    %39 = tpu.matmul %36, %38, %cst_39 {dimension_numbers = #tpu.dot_dimension_numbers<[1], [0], [0], [1], [0, 0, 1, 1], [], []>} : vector<64x4xf32>, vector<4x4xf32>, vector<64x4xf32> -> vector<64x4xf32>
    %40 = arith.addf %34, %39 : vector<64x4xf32>
    %41 = vector.extract_strided_slice %21 {offsets = [1, 0, 0], sizes = [8, 8, 4], strides = [1, 1, 1]} : vector<10x10x4xf32> to vector<8x8x4xf32>
    %42 = vector.shape_cast %41 : vector<8x8x4xf32> to vector<64x4xf32>
    %c3 = arith.constant 3 : index
    %c0_40 = arith.constant 0 : index
    %c0_41 = arith.constant 0 : index
    %43 = vector.load %arg2[%c3, %c0_40, %c0_41] : memref<9x4x4xf32, #tpu.memory_space<vmem>>, vector<1x4x4xf32>
    %44 = vector.shape_cast %43 : vector<1x4x4xf32> to vector<4x4xf32>
    %cst_42 = arith.constant dense<0.000000e+00> : vector<64x4xf32>
    %45 = tpu.matmul %42, %44, %cst_42 {dimension_numbers = #tpu.dot_dimension_numbers<[1], [0], [0], [1], [0, 0, 1, 1], [], []>} : vector<64x4xf32>, vector<4x4xf32>, vector<64x4xf32> -> vector<64x4xf32>
    %46 = arith.addf %40, %45 : vector<64x4xf32>
    %47 = vector.extract_strided_slice %21 {offsets = [1, 1, 0], sizes = [8, 8, 4], strides = [1, 1, 1]} : vector<10x10x4xf32> to vector<8x8x4xf32>
    %48 = vector.shape_cast %47 : vector<8x8x4xf32> to vector<64x4xf32>
    %c4 = arith.constant 4 : index
    %c0_43 = arith.constant 0 : index
    %c0_44 = arith.constant 0 : index
    %49 = vector.load %arg2[%c4, %c0_43, %c0_44] : memref<9x4x4xf32, #tpu.memory_space<vmem>>, vector<1x4x4xf32>
    %50 = vector.shape_cast %49 : vector<1x4x4xf32> to vector<4x4xf32>
    %cst_45 = arith.constant dense<0.000000e+00> : vector<64x4xf32>
    %51 = tpu.matmul %48, %50, %cst_45 {dimension_numbers = #tpu.dot_dimension_numbers<[1], [0], [0], [1], [0, 0, 1, 1], [], []>} : vector<64x4xf32>, vector<4x4xf32>, vector<64x4xf32> -> vector<64x4xf32>
    %52 = arith.addf %46, %51 : vector<64x4xf32>
    %53 = vector.extract_strided_slice %21 {offsets = [1, 2, 0], sizes = [8, 8, 4], strides = [1, 1, 1]} : vector<10x10x4xf32> to vector<8x8x4xf32>
    %54 = vector.shape_cast %53 : vector<8x8x4xf32> to vector<64x4xf32>
    %c5 = arith.constant 5 : index
    %c0_46 = arith.constant 0 : index
    %c0_47 = arith.constant 0 : index
    %55 = vector.load %arg2[%c5, %c0_46, %c0_47] : memref<9x4x4xf32, #tpu.memory_space<vmem>>, vector<1x4x4xf32>
    %56 = vector.shape_cast %55 : vector<1x4x4xf32> to vector<4x4xf32>
    %cst_48 = arith.constant dense<0.000000e+00> : vector<64x4xf32>
    %57 = tpu.matmul %54, %56, %cst_48 {dimension_numbers = #tpu.dot_dimension_numbers<[1], [0], [0], [1], [0, 0, 1, 1], [], []>} : vector<64x4xf32>, vector<4x4xf32>, vector<64x4xf32> -> vector<64x4xf32>
    %58 = arith.addf %52, %57 : vector<64x4xf32>
    %59 = vector.extract_strided_slice %21 {offsets = [2, 0, 0], sizes = [8, 8, 4], strides = [1, 1, 1]} : vector<10x10x4xf32> to vector<8x8x4xf32>
    %60 = vector.shape_cast %59 : vector<8x8x4xf32> to vector<64x4xf32>
    %c6 = arith.constant 6 : index
    %c0_49 = arith.constant 0 : index
    %c0_50 = arith.constant 0 : index
    %61 = vector.load %arg2[%c6, %c0_49, %c0_50] : memref<9x4x4xf32, #tpu.memory_space<vmem>>, vector<1x4x4xf32>
    %62 = vector.shape_cast %61 : vector<1x4x4xf32> to vector<4x4xf32>
    %cst_51 = arith.constant dense<0.000000e+00> : vector<64x4xf32>
    %63 = tpu.matmul %60, %62, %cst_51 {dimension_numbers = #tpu.dot_dimension_numbers<[1], [0], [0], [1], [0, 0, 1, 1], [], []>} : vector<64x4xf32>, vector<4x4xf32>, vector<64x4xf32> -> vector<64x4xf32>
    %64 = arith.addf %58, %63 : vector<64x4xf32>
    %65 = vector.extract_strided_slice %21 {offsets = [2, 1, 0], sizes = [8, 8, 4], strides = [1, 1, 1]} : vector<10x10x4xf32> to vector<8x8x4xf32>
    %66 = vector.shape_cast %65 : vector<8x8x4xf32> to vector<64x4xf32>
    %c7 = arith.constant 7 : index
    %c0_52 = arith.constant 0 : index
    %c0_53 = arith.constant 0 : index
    %67 = vector.load %arg2[%c7, %c0_52, %c0_53] : memref<9x4x4xf32, #tpu.memory_space<vmem>>, vector<1x4x4xf32>
    %68 = vector.shape_cast %67 : vector<1x4x4xf32> to vector<4x4xf32>
    %cst_54 = arith.constant dense<0.000000e+00> : vector<64x4xf32>
    %69 = tpu.matmul %66, %68, %cst_54 {dimension_numbers = #tpu.dot_dimension_numbers<[1], [0], [0], [1], [0, 0, 1, 1], [], []>} : vector<64x4xf32>, vector<4x4xf32>, vector<64x4xf32> -> vector<64x4xf32>
    %70 = arith.addf %64, %69 : vector<64x4xf32>
    %71 = vector.extract_strided_slice %21 {offsets = [2, 2, 0], sizes = [8, 8, 4], strides = [1, 1, 1]} : vector<10x10x4xf32> to vector<8x8x4xf32>
    %72 = vector.shape_cast %71 : vector<8x8x4xf32> to vector<64x4xf32>
    %c8 = arith.constant 8 : index
    %c0_55 = arith.constant 0 : index
    %c0_56 = arith.constant 0 : index
    %73 = vector.load %arg2[%c8, %c0_55, %c0_56] : memref<9x4x4xf32, #tpu.memory_space<vmem>>, vector<1x4x4xf32>
    %74 = vector.shape_cast %73 : vector<1x4x4xf32> to vector<4x4xf32>
    %cst_57 = arith.constant dense<0.000000e+00> : vector<64x4xf32>
    %75 = tpu.matmul %72, %74, %cst_57 {dimension_numbers = #tpu.dot_dimension_numbers<[1], [0], [0], [1], [0, 0, 1, 1], [], []>} : vector<64x4xf32>, vector<4x4xf32>, vector<64x4xf32> -> vector<64x4xf32>
    %76 = arith.addf %70, %75 : vector<64x4xf32>
    %77 = vector.shape_cast %76 : vector<64x4xf32> to vector<1x64x4xf32>
    %cst_58 = arith.constant dense<0.000000e+00> : vector<1xf32>
    %78 = vector.multi_reduction <add>, %77, %cst_58 [1, 2] : vector<1x64x4xf32> to vector<1xf32>
    %79 = vector.shape_cast %78 : vector<1xf32> to vector<1x1x1xf32>
    %80 = vector.extract %79[0, 0, 0] : f32 from vector<1x1x1xf32>
    %81 = vector.broadcast %80 : f32 to vector<1x1xf32>
    %82 = arith.mulf %76, %76 : vector<64x4xf32>
    %83 = vector.shape_cast %82 : vector<64x4xf32> to vector<1x64x4xf32>
    %cst_59 = arith.constant dense<0.000000e+00> : vector<1xf32>
    %84 = vector.multi_reduction <add>, %83, %cst_59 [1, 2] : vector<1x64x4xf32> to vector<1xf32>
    %85 = vector.shape_cast %84 : vector<1xf32> to vector<1x1x1xf32>
    %86 = vector.extract %85[0, 0, 0] : f32 from vector<1x1x1xf32>
    %87 = vector.broadcast %86 : f32 to vector<1x1xf32>
    %cst_60 = arith.constant 3.906250e-03 : f32
    %88 = vector.broadcast %cst_60 : f32 to vector<1x1xf32>
    %89 = arith.mulf %81, %88 : vector<1x1xf32>
    %cst_61 = arith.constant 3.906250e-03 : f32
    %90 = vector.broadcast %cst_61 : f32 to vector<1x1xf32>
    %91 = arith.mulf %87, %90 : vector<1x1xf32>
    %92 = arith.mulf %89, %89 : vector<1x1xf32>
    %93 = arith.subf %91, %92 : vector<1x1xf32>
    %cst_62 = arith.constant 0.000000e+00 : f32
    %94 = vector.broadcast %cst_62 : f32 to vector<1x1xf32>
    %95 = arith.maximumf %93, %94 : vector<1x1xf32>
    %96 = vector.broadcast %89 : vector<1x1xf32> to vector<64x4xf32>
    %97 = arith.subf %76, %96 : vector<64x4xf32>
    %cst_63 = arith.constant 9.99999974E-6 : f32
    %98 = vector.broadcast %cst_63 : f32 to vector<1x1xf32>
    %99 = arith.addf %95, %98 : vector<1x1xf32>
    %100 = math.rsqrt %99 : vector<1x1xf32>
    %101 = vector.broadcast %100 : vector<1x1xf32> to vector<64x4xf32>
    %102 = arith.mulf %97, %101 : vector<64x4xf32>
    %103 = vector.broadcast %17 : vector<1x4xf32> to vector<64x4xf32>
    %104 = arith.mulf %102, %103 : vector<64x4xf32>
    %105 = vector.broadcast %18 : vector<1x4xf32> to vector<64x4xf32>
    %106 = arith.addf %104, %105 : vector<64x4xf32>
    %cst_64 = arith.constant 5.000000e-01 : f32
    %107 = vector.broadcast %cst_64 : f32 to vector<64x4xf32>
    %108 = arith.mulf %107, %106 : vector<64x4xf32>
    %cst_65 = arith.constant 0.707106769 : f32
    %109 = vector.broadcast %cst_65 : f32 to vector<64x4xf32>
    %110 = arith.mulf %106, %109 : vector<64x4xf32>
    %cst_66 = arith.constant 0.000000e+00 : f32
    %111 = vector.broadcast %cst_66 : f32 to vector<64x4xf32>
    %112 = arith.cmpf oge, %110, %111 : vector<64x4xf32>
    %cst_67 = arith.constant 1.000000e+00 : f32
    %cst_68 = arith.constant -1.000000e+00 : f32
    %113 = vector.broadcast %cst_67 : f32 to vector<64x4xf32>
    %114 = vector.broadcast %cst_68 : f32 to vector<64x4xf32>
    %115 = arith.select %112, %113, %114 : vector<64x4xi1>, vector<64x4xf32>
    %116 = math.absf %110 : vector<64x4xf32>
    %cst_69 = arith.constant 0.327591091 : f32
    %117 = vector.broadcast %cst_69 : f32 to vector<64x4xf32>
    %118 = arith.mulf %117, %116 : vector<64x4xf32>
    %cst_70 = arith.constant 1.000000e+00 : f32
    %119 = vector.broadcast %cst_70 : f32 to vector<64x4xf32>
    %120 = arith.addf %119, %118 : vector<64x4xf32>
    %121 = tpu.reciprocal %120 {approx = true} : vector<64x4xf32> -> vector<64x4xf32>
    %cst_71 = arith.constant 1.06140542 : f32
    %122 = vector.broadcast %cst_71 : f32 to vector<64x4xf32>
    %123 = arith.mulf %122, %121 : vector<64x4xf32>
    %cst_72 = arith.constant -1.45315206 : f32
    %124 = vector.broadcast %cst_72 : f32 to vector<64x4xf32>
    %125 = arith.addf %123, %124 : vector<64x4xf32>
    %126 = arith.mulf %125, %121 : vector<64x4xf32>
    %cst_73 = arith.constant 1.42141378 : f32
    %127 = vector.broadcast %cst_73 : f32 to vector<64x4xf32>
    %128 = arith.addf %126, %127 : vector<64x4xf32>
    %129 = arith.mulf %128, %121 : vector<64x4xf32>
    %cst_74 = arith.constant -0.284496725 : f32
    %130 = vector.broadcast %cst_74 : f32 to vector<64x4xf32>
    %131 = arith.addf %129, %130 : vector<64x4xf32>
    %132 = arith.mulf %131, %121 : vector<64x4xf32>
    %cst_75 = arith.constant 0.254829586 : f32
    %133 = vector.broadcast %cst_75 : f32 to vector<64x4xf32>
    %134 = arith.addf %132, %133 : vector<64x4xf32>
    %135 = arith.mulf %134, %121 : vector<64x4xf32>
    %cst_76 = arith.constant 0.000000e+00 : f32
    %136 = vector.broadcast %cst_76 : f32 to vector<64x4xf32>
    %137 = arith.subf %136, %116 : vector<64x4xf32>
    %138 = arith.mulf %137, %116 : vector<64x4xf32>
    %139 = math.exp %138 : vector<64x4xf32>
    %140 = arith.mulf %135, %139 : vector<64x4xf32>
    %cst_77 = arith.constant 1.000000e+00 : f32
    %141 = vector.broadcast %cst_77 : f32 to vector<64x4xf32>
    %142 = arith.subf %141, %140 : vector<64x4xf32>
    %143 = arith.mulf %115, %142 : vector<64x4xf32>
    %cst_78 = arith.constant 1.000000e+00 : f32
    %144 = vector.broadcast %cst_78 : f32 to vector<64x4xf32>
    %145 = arith.addf %144, %143 : vector<64x4xf32>
    %146 = arith.mulf %108, %145 : vector<64x4xf32>
    %147 = vector.shape_cast %146 : vector<64x4xf32> to vector<8x8x4xf32>
    %c1_79 = arith.constant 1 : index
    %c1_80 = arith.constant 1 : index
    %c0_81 = arith.constant 0 : index
    %148 = vector.load %arg22[%c1_79, %c1_80, %c0_81] : memref<10x10x4xf32, #tpu.memory_space<vmem>>, vector<8x8x4xf32>
    tpu.vector_store %arg22[%c1_79, %c1_80, %c0_81], %147 {strides = array<i32>} : memref<10x10x4xf32, #tpu.memory_space<vmem>>, vector<8x8x4xf32>,
    %c0_82 = arith.constant 0 : index
    %c0_83 = arith.constant 0 : index
    %c0_84 = arith.constant 0 : index
    %149 = vector.load %arg22[%c0_82, %c0_83, %c0_84] : memref<10x10x4xf32, #tpu.memory_space<vmem>>, vector<10x10x4xf32>
    %cst_85 = arith.constant 0.000000e+00 : f32
    %150 = vector.broadcast %cst_85 : f32 to vector<64x4xf32>
    %151 = vector.extract_strided_slice %149 {offsets = [0, 0, 0], sizes = [8, 8, 4], strides = [1, 1, 1]} : vector<10x10x4xf32> to vector<8x8x4xf32>
    %152 = vector.shape_cast %151 : vector<8x8x4xf32> to vector<64x4xf32>
    %c0_86 = arith.constant 0 : index
    %c0_87 = arith.constant 0 : index
    %c0_88 = arith.constant 0 : index
    %153 = vector.load %arg5[%c0_86, %c0_87, %c0_88] : memref<9x4x4xf32, #tpu.memory_space<vmem>>, vector<1x4x4xf32>
    %154 = vector.shape_cast %153 : vector<1x4x4xf32> to vector<4x4xf32>
    %cst_89 = arith.constant dense<0.000000e+00> : vector<64x4xf32>
    %155 = tpu.matmul %152, %154, %cst_89 {dimension_numbers = #tpu.dot_dimension_numbers<[1], [0], [0], [1], [0, 0, 1, 1], [], []>} : vector<64x4xf32>, vector<4x4xf32>, vector<64x4xf32> -> vector<64x4xf32>
    %156 = arith.addf %150, %155 : vector<64x4xf32>
    %157 = vector.extract_strided_slice %149 {offsets = [0, 1, 0], sizes = [8, 8, 4], strides = [1, 1, 1]} : vector<10x10x4xf32> to vector<8x8x4xf32>
    %158 = vector.shape_cast %157 : vector<8x8x4xf32> to vector<64x4xf32>
    %c1_90 = arith.constant 1 : index
    %c0_91 = arith.constant 0 : index
    %c0_92 = arith.constant 0 : index
    %159 = vector.load %arg5[%c1_90, %c0_91, %c0_92] : memref<9x4x4xf32, #tpu.memory_space<vmem>>, vector<1x4x4xf32>
    %160 = vector.shape_cast %159 : vector<1x4x4xf32> to vector<4x4xf32>
    %cst_93 = arith.constant dense<0.000000e+00> : vector<64x4xf32>
    %161 = tpu.matmul %158, %160, %cst_93 {dimension_numbers = #tpu.dot_dimension_numbers<[1], [0], [0], [1], [0, 0, 1, 1], [], []>} : vector<64x4xf32>, vector<4x4xf32>, vector<64x4xf32> -> vector<64x4xf32>
    %162 = arith.addf %156, %161 : vector<64x4xf32>
    %163 = vector.extract_strided_slice %149 {offsets = [0, 2, 0], sizes = [8, 8, 4], strides = [1, 1, 1]} : vector<10x10x4xf32> to vector<8x8x4xf32>
    %164 = vector.shape_cast %163 : vector<8x8x4xf32> to vector<64x4xf32>
    %c2_94 = arith.constant 2 : index
    %c0_95 = arith.constant 0 : index
    %c0_96 = arith.constant 0 : index
    %165 = vector.load %arg5[%c2_94, %c0_95, %c0_96] : memref<9x4x4xf32, #tpu.memory_space<vmem>>, vector<1x4x4xf32>
    %166 = vector.shape_cast %165 : vector<1x4x4xf32> to vector<4x4xf32>
    %cst_97 = arith.constant dense<0.000000e+00> : vector<64x4xf32>
    %167 = tpu.matmul %164, %166, %cst_97 {dimension_numbers = #tpu.dot_dimension_numbers<[1], [0], [0], [1], [0, 0, 1, 1], [], []>} : vector<64x4xf32>, vector<4x4xf32>, vector<64x4xf32> -> vector<64x4xf32>
    %168 = arith.addf %162, %167 : vector<64x4xf32>
    %169 = vector.extract_strided_slice %149 {offsets = [1, 0, 0], sizes = [8, 8, 4], strides = [1, 1, 1]} : vector<10x10x4xf32> to vector<8x8x4xf32>
    %170 = vector.shape_cast %169 : vector<8x8x4xf32> to vector<64x4xf32>
    %c3_98 = arith.constant 3 : index
    %c0_99 = arith.constant 0 : index
    %c0_100 = arith.constant 0 : index
    %171 = vector.load %arg5[%c3_98, %c0_99, %c0_100] : memref<9x4x4xf32, #tpu.memory_space<vmem>>, vector<1x4x4xf32>
    %172 = vector.shape_cast %171 : vector<1x4x4xf32> to vector<4x4xf32>
    %cst_101 = arith.constant dense<0.000000e+00> : vector<64x4xf32>
    %173 = tpu.matmul %170, %172, %cst_101 {dimension_numbers = #tpu.dot_dimension_numbers<[1], [0], [0], [1], [0, 0, 1, 1], [], []>} : vector<64x4xf32>, vector<4x4xf32>, vector<64x4xf32> -> vector<64x4xf32>
    %174 = arith.addf %168, %173 : vector<64x4xf32>
    %175 = vector.extract_strided_slice %149 {offsets = [1, 1, 0], sizes = [8, 8, 4], strides = [1, 1, 1]} : vector<10x10x4xf32> to vector<8x8x4xf32>
    %176 = vector.shape_cast %175 : vector<8x8x4xf32> to vector<64x4xf32>
    %c4_102 = arith.constant 4 : index
    %c0_103 = arith.constant 0 : index
    %c0_104 = arith.constant 0 : index
    %177 = vector.load %arg5[%c4_102, %c0_103, %c0_104] : memref<9x4x4xf32, #tpu.memory_space<vmem>>, vector<1x4x4xf32>
    %178 = vector.shape_cast %177 : vector<1x4x4xf32> to vector<4x4xf32>
    %cst_105 = arith.constant dense<0.000000e+00> : vector<64x4xf32>
    %179 = tpu.matmul %176, %178, %cst_105 {dimension_numbers = #tpu.dot_dimension_numbers<[1], [0], [0], [1], [0, 0, 1, 1], [], []>} : vector<64x4xf32>, vector<4x4xf32>, vector<64x4xf32> -> vector<64x4xf32>
    %180 = arith.addf %174, %179 : vector<64x4xf32>
    %181 = vector.extract_strided_slice %149 {offsets = [1, 2, 0], sizes = [8, 8, 4], strides = [1, 1, 1]} : vector<10x10x4xf32> to vector<8x8x4xf32>
    %182 = vector.shape_cast %181 : vector<8x8x4xf32> to vector<64x4xf32>
    %c5_106 = arith.constant 5 : index
    %c0_107 = arith.constant 0 : index
    %c0_108 = arith.constant 0 : index
    %183 = vector.load %arg5[%c5_106, %c0_107, %c0_108] : memref<9x4x4xf32, #tpu.memory_space<vmem>>, vector<1x4x4xf32>
    %184 = vector.shape_cast %183 : vector<1x4x4xf32> to vector<4x4xf32>
    %cst_109 = arith.constant dense<0.000000e+00> : vector<64x4xf32>
    %185 = tpu.matmul %182, %184, %cst_109 {dimension_numbers = #tpu.dot_dimension_numbers<[1], [0], [0], [1], [0, 0, 1, 1], [], []>} : vector<64x4xf32>, vector<4x4xf32>, vector<64x4xf32> -> vector<64x4xf32>
    %186 = arith.addf %180, %185 : vector<64x4xf32>
    %187 = vector.extract_strided_slice %149 {offsets = [2, 0, 0], sizes = [8, 8, 4], strides = [1, 1, 1]} : vector<10x10x4xf32> to vector<8x8x4xf32>
    %188 = vector.shape_cast %187 : vector<8x8x4xf32> to vector<64x4xf32>
    %c6_110 = arith.constant 6 : index
    %c0_111 = arith.constant 0 : index
    %c0_112 = arith.constant 0 : index
    %189 = vector.load %arg5[%c6_110, %c0_111, %c0_112] : memref<9x4x4xf32, #tpu.memory_space<vmem>>, vector<1x4x4xf32>
    %190 = vector.shape_cast %189 : vector<1x4x4xf32> to vector<4x4xf32>
    %cst_113 = arith.constant dense<0.000000e+00> : vector<64x4xf32>
    %191 = tpu.matmul %188, %190, %cst_113 {dimension_numbers = #tpu.dot_dimension_numbers<[1], [0], [0], [1], [0, 0, 1, 1], [], []>} : vector<64x4xf32>, vector<4x4xf32>, vector<64x4xf32> -> vector<64x4xf32>
    %192 = arith.addf %186, %191 : vector<64x4xf32>
    %193 = vector.extract_strided_slice %149 {offsets = [2, 1, 0], sizes = [8, 8, 4], strides = [1, 1, 1]} : vector<10x10x4xf32> to vector<8x8x4xf32>
    %194 = vector.shape_cast %193 : vector<8x8x4xf32> to vector<64x4xf32>
    %c7_114 = arith.constant 7 : index
    %c0_115 = arith.constant 0 : index
    %c0_116 = arith.constant 0 : index
    %195 = vector.load %arg5[%c7_114, %c0_115, %c0_116] : memref<9x4x4xf32, #tpu.memory_space<vmem>>, vector<1x4x4xf32>
    %196 = vector.shape_cast %195 : vector<1x4x4xf32> to vector<4x4xf32>
    %cst_117 = arith.constant dense<0.000000e+00> : vector<64x4xf32>
    %197 = tpu.matmul %194, %196, %cst_117 {dimension_numbers = #tpu.dot_dimension_numbers<[1], [0], [0], [1], [0, 0, 1, 1], [], []>} : vector<64x4xf32>, vector<4x4xf32>, vector<64x4xf32> -> vector<64x4xf32>
    %198 = arith.addf %192, %197 : vector<64x4xf32>
    %199 = vector.extract_strided_slice %149 {offsets = [2, 2, 0], sizes = [8, 8, 4], strides = [1, 1, 1]} : vector<10x10x4xf32> to vector<8x8x4xf32>
    %200 = vector.shape_cast %199 : vector<8x8x4xf32> to vector<64x4xf32>
    %c8_118 = arith.constant 8 : index
    %c0_119 = arith.constant 0 : index
    %c0_120 = arith.constant 0 : index
    %201 = vector.load %arg5[%c8_118, %c0_119, %c0_120] : memref<9x4x4xf32, #tpu.memory_space<vmem>>, vector<1x4x4xf32>
    %202 = vector.shape_cast %201 : vector<1x4x4xf32> to vector<4x4xf32>
    %cst_121 = arith.constant dense<0.000000e+00> : vector<64x4xf32>
    %203 = tpu.matmul %200, %202, %cst_121 {dimension_numbers = #tpu.dot_dimension_numbers<[1], [0], [0], [1], [0, 0, 1, 1], [], []>} : vector<64x4xf32>, vector<4x4xf32>, vector<64x4xf32> -> vector<64x4xf32>
    %204 = arith.addf %198, %203 : vector<64x4xf32>
    %205 = vector.shape_cast %204 : vector<64x4xf32> to vector<1x64x4xf32>
    %cst_122 = arith.constant dense<0.000000e+00> : vector<1xf32>
    %206 = vector.multi_reduction <add>, %205, %cst_122 [1, 2] : vector<1x64x4xf32> to vector<1xf32>
    %207 = vector.shape_cast %206 : vector<1xf32> to vector<1x1x1xf32>
    %208 = vector.extract %207[0, 0, 0] : f32 from vector<1x1x1xf32>
    %209 = vector.broadcast %208 : f32 to vector<1x1xf32>
    %210 = arith.mulf %204, %204 : vector<64x4xf32>
    %211 = vector.shape_cast %210 : vector<64x4xf32> to vector<1x64x4xf32>
    %cst_123 = arith.constant dense<0.000000e+00> : vector<1xf32>
    %212 = vector.multi_reduction <add>, %211, %cst_123 [1, 2] : vector<1x64x4xf32> to vector<1xf32>
    %213 = vector.shape_cast %212 : vector<1xf32> to vector<1x1x1xf32>
    %214 = vector.extract %213[0, 0, 0] : f32 from vector<1x1x1xf32>
    %215 = vector.broadcast %214 : f32 to vector<1x1xf32>
    %cst_124 = arith.constant 3.906250e-03 : f32
    %216 = vector.broadcast %cst_124 : f32 to vector<1x1xf32>
    %217 = arith.mulf %209, %216 : vector<1x1xf32>
    %cst_125 = arith.constant 3.906250e-03 : f32
    %218 = vector.broadcast %cst_125 : f32 to vector<1x1xf32>
    %219 = arith.mulf %215, %218 : vector<1x1xf32>
    %220 = arith.mulf %217, %217 : vector<1x1xf32>
    %221 = arith.subf %219, %220 : vector<1x1xf32>
    %cst_126 = arith.constant 0.000000e+00 : f32
    %222 = vector.broadcast %cst_126 : f32 to vector<1x1xf32>
    %223 = arith.maximumf %221, %222 : vector<1x1xf32>
    %224 = vector.broadcast %217 : vector<1x1xf32> to vector<64x4xf32>
    %225 = arith.subf %204, %224 : vector<64x4xf32>
    %cst_127 = arith.constant 9.99999974E-6 : f32
    %226 = vector.broadcast %cst_127 : f32 to vector<1x1xf32>
    %227 = arith.addf %223, %226 : vector<1x1xf32>
    %228 = math.rsqrt %227 : vector<1x1xf32>
    %229 = vector.broadcast %228 : vector<1x1xf32> to vector<64x4xf32>
    %230 = arith.mulf %225, %229 : vector<64x4xf32>
    %231 = vector.broadcast %19 : vector<1x4xf32> to vector<64x4xf32>
    %232 = arith.mulf %230, %231 : vector<64x4xf32>
    %233 = vector.broadcast %20 : vector<1x4xf32> to vector<64x4xf32>
    %234 = arith.addf %232, %233 : vector<64x4xf32>
    %235 = vector.extract_strided_slice %21 {offsets = [1, 1, 0], sizes = [8, 8, 4], strides = [1, 1, 1]} : vector<10x10x4xf32> to vector<8x8x4xf32>
    %236 = vector.shape_cast %235 : vector<8x8x4xf32> to vector<64x4xf32>
    %237 = arith.addf %236, %234 : vector<64x4xf32>
    %cst_128 = arith.constant 5.000000e-01 : f32
    %238 = vector.broadcast %cst_128 : f32 to vector<64x4xf32>
    %239 = arith.mulf %238, %237 : vector<64x4xf32>
    %cst_129 = arith.constant 0.707106769 : f32
    %240 = vector.broadcast %cst_129 : f32 to vector<64x4xf32>
    %241 = arith.mulf %237, %240 : vector<64x4xf32>
    %cst_130 = arith.constant 0.000000e+00 : f32
    %242 = vector.broadcast %cst_130 : f32 to vector<64x4xf32>
    %243 = arith.cmpf oge, %241, %242 : vector<64x4xf32>
    %cst_131 = arith.constant 1.000000e+00 : f32
    %cst_132 = arith.constant -1.000000e+00 : f32
    %244 = vector.broadcast %cst_131 : f32 to vector<64x4xf32>
    %245 = vector.broadcast %cst_132 : f32 to vector<64x4xf32>
    %246 = arith.select %243, %244, %245 : vector<64x4xi1>, vector<64x4xf32>
    %247 = math.absf %241 : vector<64x4xf32>
    %cst_133 = arith.constant 0.327591091 : f32
    %248 = vector.broadcast %cst_133 : f32 to vector<64x4xf32>
    %249 = arith.mulf %248, %247 : vector<64x4xf32>
    %cst_134 = arith.constant 1.000000e+00 : f32
    %250 = vector.broadcast %cst_134 : f32 to vector<64x4xf32>
    %251 = arith.addf %250, %249 : vector<64x4xf32>
    %252 = tpu.reciprocal %251 {approx = true} : vector<64x4xf32> -> vector<64x4xf32>
    %cst_135 = arith.constant 1.06140542 : f32
    %253 = vector.broadcast %cst_135 : f32 to vector<64x4xf32>
    %254 = arith.mulf %253, %252 : vector<64x4xf32>
    %cst_136 = arith.constant -1.45315206 : f32
    %255 = vector.broadcast %cst_136 : f32 to vector<64x4xf32>
    %256 = arith.addf %254, %255 : vector<64x4xf32>
    %257 = arith.mulf %256, %252 : vector<64x4xf32>
    %cst_137 = arith.constant 1.42141378 : f32
    %258 = vector.broadcast %cst_137 : f32 to vector<64x4xf32>
    %259 = arith.addf %257, %258 : vector<64x4xf32>
    %260 = arith.mulf %259, %252 : vector<64x4xf32>
    %cst_138 = arith.constant -0.284496725 : f32
    %261 = vector.broadcast %cst_138 : f32 to vector<64x4xf32>
    %262 = arith.addf %260, %261 : vector<64x4xf32>
    %263 = arith.mulf %262, %252 : vector<64x4xf32>
    %cst_139 = arith.constant 0.254829586 : f32
    %264 = vector.broadcast %cst_139 : f32 to vector<64x4xf32>
    %265 = arith.addf %263, %264 : vector<64x4xf32>
    %266 = arith.mulf %265, %252 : vector<64x4xf32>
    %cst_140 = arith.constant 0.000000e+00 : f32
    %267 = vector.broadcast %cst_140 : f32 to vector<64x4xf32>
    %268 = arith.subf %267, %247 : vector<64x4xf32>
    %269 = arith.mulf %268, %247 : vector<64x4xf32>
    %270 = math.exp %269 : vector<64x4xf32>
    %271 = arith.mulf %266, %270 : vector<64x4xf32>
    %cst_141 = arith.constant 1.000000e+00 : f32
    %272 = vector.broadcast %cst_141 : f32 to vector<64x4xf32>
    %273 = arith.subf %272, %271 : vector<64x4xf32>
    %274 = arith.mulf %246, %273 : vector<64x4xf32>
    %cst_142 = arith.constant 1.000000e+00 : f32
    %275 = vector.broadcast %cst_142 : f32 to vector<64x4xf32>
    %276 = arith.addf %275, %274 : vector<64x4xf32>
    %277 = arith.mulf %239, %276 : vector<64x4xf32>
    %278 = vector.shape_cast %277 : vector<64x4xf32> to vector<8x8x4xf32>
    %c1_143 = arith.constant 1 : index
    %c1_144 = arith.constant 1 : index
    %c0_145 = arith.constant 0 : index
    %279 = vector.load %arg21[%c1_143, %c1_144, %c0_145] : memref<10x10x4xf32, #tpu.memory_space<vmem>>, vector<8x8x4xf32>
    tpu.vector_store %arg21[%c1_143, %c1_144, %c0_145], %278 {strides = array<i32>} : memref<10x10x4xf32, #tpu.memory_space<vmem>>, vector<8x8x4xf32>,
    %c0_146 = arith.constant 0 : index
    %c0_147 = arith.constant 0 : index
    %280 = vector.load %arg9[%c0_146, %c0_147] : memref<1x4xf32, #tpu.memory_space<vmem>>, vector<1x4xf32>
    %c0_148 = arith.constant 0 : index
    %c0_149 = arith.constant 0 : index
    %281 = vector.load %arg10[%c0_148, %c0_149] : memref<1x4xf32, #tpu.memory_space<vmem>>, vector<1x4xf32>
    %c0_150 = arith.constant 0 : index
    %c0_151 = arith.constant 0 : index
    %282 = vector.load %arg12[%c0_150, %c0_151] : memref<1x4xf32, #tpu.memory_space<vmem>>, vector<1x4xf32>
    %c0_152 = arith.constant 0 : index
    %c0_153 = arith.constant 0 : index
    %283 = vector.load %arg13[%c0_152, %c0_153] : memref<1x4xf32, #tpu.memory_space<vmem>>, vector<1x4xf32>
    %c0_154 = arith.constant 0 : index
    %c0_155 = arith.constant 0 : index
    %c0_156 = arith.constant 0 : index
    %284 = vector.load %arg21[%c0_154, %c0_155, %c0_156] : memref<10x10x4xf32, #tpu.memory_space<vmem>>, vector<10x10x4xf32>
    %cst_157 = arith.constant 0.000000e+00 : f32
    %285 = vector.broadcast %cst_157 : f32 to vector<64x4xf32>
    %286 = vector.extract_strided_slice %284 {offsets = [0, 0, 0], sizes = [8, 8, 4], strides = [1, 1, 1]} : vector<10x10x4xf32> to vector<8x8x4xf32>
    %287 = vector.shape_cast %286 : vector<8x8x4xf32> to vector<64x4xf32>
    %c0_158 = arith.constant 0 : index
    %c0_159 = arith.constant 0 : index
    %c0_160 = arith.constant 0 : index
    %288 = vector.load %arg8[%c0_158, %c0_159, %c0_160] : memref<9x4x4xf32, #tpu.memory_space<vmem>>, vector<1x4x4xf32>
    %289 = vector.shape_cast %288 : vector<1x4x4xf32> to vector<4x4xf32>
    %cst_161 = arith.constant dense<0.000000e+00> : vector<64x4xf32>
    %290 = tpu.matmul %287, %289, %cst_161 {dimension_numbers = #tpu.dot_dimension_numbers<[1], [0], [0], [1], [0, 0, 1, 1], [], []>} : vector<64x4xf32>, vector<4x4xf32>, vector<64x4xf32> -> vector<64x4xf32>
    %291 = arith.addf %285, %290 : vector<64x4xf32>
    %292 = vector.extract_strided_slice %284 {offsets = [0, 1, 0], sizes = [8, 8, 4], strides = [1, 1, 1]} : vector<10x10x4xf32> to vector<8x8x4xf32>
    %293 = vector.shape_cast %292 : vector<8x8x4xf32> to vector<64x4xf32>
    %c1_162 = arith.constant 1 : index
    %c0_163 = arith.constant 0 : index
    %c0_164 = arith.constant 0 : index
    %294 = vector.load %arg8[%c1_162, %c0_163, %c0_164] : memref<9x4x4xf32, #tpu.memory_space<vmem>>, vector<1x4x4xf32>
    %295 = vector.shape_cast %294 : vector<1x4x4xf32> to vector<4x4xf32>
    %cst_165 = arith.constant dense<0.000000e+00> : vector<64x4xf32>
    %296 = tpu.matmul %293, %295, %cst_165 {dimension_numbers = #tpu.dot_dimension_numbers<[1], [0], [0], [1], [0, 0, 1, 1], [], []>} : vector<64x4xf32>, vector<4x4xf32>, vector<64x4xf32> -> vector<64x4xf32>
    %297 = arith.addf %291, %296 : vector<64x4xf32>
    %298 = vector.extract_strided_slice %284 {offsets = [0, 2, 0], sizes = [8, 8, 4], strides = [1, 1, 1]} : vector<10x10x4xf32> to vector<8x8x4xf32>
    %299 = vector.shape_cast %298 : vector<8x8x4xf32> to vector<64x4xf32>
    %c2_166 = arith.constant 2 : index
    %c0_167 = arith.constant 0 : index
    %c0_168 = arith.constant 0 : index
    %300 = vector.load %arg8[%c2_166, %c0_167, %c0_168] : memref<9x4x4xf32, #tpu.memory_space<vmem>>, vector<1x4x4xf32>
    %301 = vector.shape_cast %300 : vector<1x4x4xf32> to vector<4x4xf32>
    %cst_169 = arith.constant dense<0.000000e+00> : vector<64x4xf32>
    %302 = tpu.matmul %299, %301, %cst_169 {dimension_numbers = #tpu.dot_dimension_numbers<[1], [0], [0], [1], [0, 0, 1, 1], [], []>} : vector<64x4xf32>, vector<4x4xf32>, vector<64x4xf32> -> vector<64x4xf32>
    %303 = arith.addf %297, %302 : vector<64x4xf32>
    %304 = vector.extract_strided_slice %284 {offsets = [1, 0, 0], sizes = [8, 8, 4], strides = [1, 1, 1]} : vector<10x10x4xf32> to vector<8x8x4xf32>
    %305 = vector.shape_cast %304 : vector<8x8x4xf32> to vector<64x4xf32>
    %c3_170 = arith.constant 3 : index
    %c0_171 = arith.constant 0 : index
    %c0_172 = arith.constant 0 : index
    %306 = vector.load %arg8[%c3_170, %c0_171, %c0_172] : memref<9x4x4xf32, #tpu.memory_space<vmem>>, vector<1x4x4xf32>
    %307 = vector.shape_cast %306 : vector<1x4x4xf32> to vector<4x4xf32>
    %cst_173 = arith.constant dense<0.000000e+00> : vector<64x4xf32>
    %308 = tpu.matmul %305, %307, %cst_173 {dimension_numbers = #tpu.dot_dimension_numbers<[1], [0], [0], [1], [0, 0, 1, 1], [], []>} : vector<64x4xf32>, vector<4x4xf32>, vector<64x4xf32> -> vector<64x4xf32>
    %309 = arith.addf %303, %308 : vector<64x4xf32>
    %310 = vector.extract_strided_slice %284 {offsets = [1, 1, 0], sizes = [8, 8, 4], strides = [1, 1, 1]} : vector<10x10x4xf32> to vector<8x8x4xf32>
    %311 = vector.shape_cast %310 : vector<8x8x4xf32> to vector<64x4xf32>
    %c4_174 = arith.constant 4 : index
    %c0_175 = arith.constant 0 : index
    %c0_176 = arith.constant 0 : index
    %312 = vector.load %arg8[%c4_174, %c0_175, %c0_176] : memref<9x4x4xf32, #tpu.memory_space<vmem>>, vector<1x4x4xf32>
    %313 = vector.shape_cast %312 : vector<1x4x4xf32> to vector<4x4xf32>
    %cst_177 = arith.constant dense<0.000000e+00> : vector<64x4xf32>
    %314 = tpu.matmul %311, %313, %cst_177 {dimension_numbers = #tpu.dot_dimension_numbers<[1], [0], [0], [1], [0, 0, 1, 1], [], []>} : vector<64x4xf32>, vector<4x4xf32>, vector<64x4xf32> -> vector<64x4xf32>
    %315 = arith.addf %309, %314 : vector<64x4xf32>
    %316 = vector.extract_strided_slice %284 {offsets = [1, 2, 0], sizes = [8, 8, 4], strides = [1, 1, 1]} : vector<10x10x4xf32> to vector<8x8x4xf32>
    %317 = vector.shape_cast %316 : vector<8x8x4xf32> to vector<64x4xf32>
    %c5_178 = arith.constant 5 : index
    %c0_179 = arith.constant 0 : index
    %c0_180 = arith.constant 0 : index
    %318 = vector.load %arg8[%c5_178, %c0_179, %c0_180] : memref<9x4x4xf32, #tpu.memory_space<vmem>>, vector<1x4x4xf32>
    %319 = vector.shape_cast %318 : vector<1x4x4xf32> to vector<4x4xf32>
    %cst_181 = arith.constant dense<0.000000e+00> : vector<64x4xf32>
    %320 = tpu.matmul %317, %319, %cst_181 {dimension_numbers = #tpu.dot_dimension_numbers<[1], [0], [0], [1], [0, 0, 1, 1], [], []>} : vector<64x4xf32>, vector<4x4xf32>, vector<64x4xf32> -> vector<64x4xf32>
    %321 = arith.addf %315, %320 : vector<64x4xf32>
    %322 = vector.extract_strided_slice %284 {offsets = [2, 0, 0], sizes = [8, 8, 4], strides = [1, 1, 1]} : vector<10x10x4xf32> to vector<8x8x4xf32>
    %323 = vector.shape_cast %322 : vector<8x8x4xf32> to vector<64x4xf32>
    %c6_182 = arith.constant 6 : index
    %c0_183 = arith.constant 0 : index
    %c0_184 = arith.constant 0 : index
    %324 = vector.load %arg8[%c6_182, %c0_183, %c0_184] : memref<9x4x4xf32, #tpu.memory_space<vmem>>, vector<1x4x4xf32>
    %325 = vector.shape_cast %324 : vector<1x4x4xf32> to vector<4x4xf32>
    %cst_185 = arith.constant dense<0.000000e+00> : vector<64x4xf32>
    %326 = tpu.matmul %323, %325, %cst_185 {dimension_numbers = #tpu.dot_dimension_numbers<[1], [0], [0], [1], [0, 0, 1, 1], [], []>} : vector<64x4xf32>, vector<4x4xf32>, vector<64x4xf32> -> vector<64x4xf32>
    %327 = arith.addf %321, %326 : vector<64x4xf32>
    %328 = vector.extract_strided_slice %284 {offsets = [2, 1, 0], sizes = [8, 8, 4], strides = [1, 1, 1]} : vector<10x10x4xf32> to vector<8x8x4xf32>
    %329 = vector.shape_cast %328 : vector<8x8x4xf32> to vector<64x4xf32>
    %c7_186 = arith.constant 7 : index
    %c0_187 = arith.constant 0 : index
    %c0_188 = arith.constant 0 : index
    %330 = vector.load %arg8[%c7_186, %c0_187, %c0_188] : memref<9x4x4xf32, #tpu.memory_space<vmem>>, vector<1x4x4xf32>
    %331 = vector.shape_cast %330 : vector<1x4x4xf32> to vector<4x4xf32>
    %cst_189 = arith.constant dense<0.000000e+00> : vector<64x4xf32>
    %332 = tpu.matmul %329, %331, %cst_189 {dimension_numbers = #tpu.dot_dimension_numbers<[1], [0], [0], [1], [0, 0, 1, 1], [], []>} : vector<64x4xf32>, vector<4x4xf32>, vector<64x4xf32> -> vector<64x4xf32>
    %333 = arith.addf %327, %332 : vector<64x4xf32>
    %334 = vector.extract_strided_slice %284 {offsets = [2, 2, 0], sizes = [8, 8, 4], strides = [1, 1, 1]} : vector<10x10x4xf32> to vector<8x8x4xf32>
    %335 = vector.shape_cast %334 : vector<8x8x4xf32> to vector<64x4xf32>
    %c8_190 = arith.constant 8 : index
    %c0_191 = arith.constant 0 : index
    %c0_192 = arith.constant 0 : index
    %336 = vector.load %arg8[%c8_190, %c0_191, %c0_192] : memref<9x4x4xf32, #tpu.memory_space<vmem>>, vector<1x4x4xf32>
    %337 = vector.shape_cast %336 : vector<1x4x4xf32> to vector<4x4xf32>
    %cst_193 = arith.constant dense<0.000000e+00> : vector<64x4xf32>
    %338 = tpu.matmul %335, %337, %cst_193 {dimension_numbers = #tpu.dot_dimension_numbers<[1], [0], [0], [1], [0, 0, 1, 1], [], []>} : vector<64x4xf32>, vector<4x4xf32>, vector<64x4xf32> -> vector<64x4xf32>
    %339 = arith.addf %333, %338 : vector<64x4xf32>
    %340 = vector.shape_cast %339 : vector<64x4xf32> to vector<1x64x4xf32>
    %cst_194 = arith.constant dense<0.000000e+00> : vector<1xf32>
    %341 = vector.multi_reduction <add>, %340, %cst_194 [1, 2] : vector<1x64x4xf32> to vector<1xf32>
    %342 = vector.shape_cast %341 : vector<1xf32> to vector<1x1x1xf32>
    %343 = vector.extract %342[0, 0, 0] : f32 from vector<1x1x1xf32>
    %344 = vector.broadcast %343 : f32 to vector<1x1xf32>
    %345 = arith.mulf %339, %339 : vector<64x4xf32>
    %346 = vector.shape_cast %345 : vector<64x4xf32> to vector<1x64x4xf32>
    %cst_195 = arith.constant dense<0.000000e+00> : vector<1xf32>
    %347 = vector.multi_reduction <add>, %346, %cst_195 [1, 2] : vector<1x64x4xf32> to vector<1xf32>
    %348 = vector.shape_cast %347 : vector<1xf32> to vector<1x1x1xf32>
    %349 = vector.extract %348[0, 0, 0] : f32 from vector<1x1x1xf32>
    %350 = vector.broadcast %349 : f32 to vector<1x1xf32>
    %cst_196 = arith.constant 3.906250e-03 : f32
    %351 = vector.broadcast %cst_196 : f32 to vector<1x1xf32>
    %352 = arith.mulf %344, %351 : vector<1x1xf32>
    %cst_197 = arith.constant 3.906250e-03 : f32
    %353 = vector.broadcast %cst_197 : f32 to vector<1x1xf32>
    %354 = arith.mulf %350, %353 : vector<1x1xf32>
    %355 = arith.mulf %352, %352 : vector<1x1xf32>
    %356 = arith.subf %354, %355 : vector<1x1xf32>
    %cst_198 = arith.constant 0.000000e+00 : f32
    %357 = vector.broadcast %cst_198 : f32 to vector<1x1xf32>
    %358 = arith.maximumf %356, %357 : vector<1x1xf32>
    %359 = vector.broadcast %352 : vector<1x1xf32> to vector<64x4xf32>
    %360 = arith.subf %339, %359 : vector<64x4xf32>
    %cst_199 = arith.constant 9.99999974E-6 : f32
    %361 = vector.broadcast %cst_199 : f32 to vector<1x1xf32>
    %362 = arith.addf %358, %361 : vector<1x1xf32>
    %363 = math.rsqrt %362 : vector<1x1xf32>
    %364 = vector.broadcast %363 : vector<1x1xf32> to vector<64x4xf32>
    %365 = arith.mulf %360, %364 : vector<64x4xf32>
    %366 = vector.broadcast %280 : vector<1x4xf32> to vector<64x4xf32>
    %367 = arith.mulf %365, %366 : vector<64x4xf32>
    %368 = vector.broadcast %281 : vector<1x4xf32> to vector<64x4xf32>
    %369 = arith.addf %367, %368 : vector<64x4xf32>
    %cst_200 = arith.constant 5.000000e-01 : f32
    %370 = vector.broadcast %cst_200 : f32 to vector<64x4xf32>
    %371 = arith.mulf %370, %369 : vector<64x4xf32>
    %cst_201 = arith.constant 0.707106769 : f32
    %372 = vector.broadcast %cst_201 : f32 to vector<64x4xf32>
    %373 = arith.mulf %369, %372 : vector<64x4xf32>
    %cst_202 = arith.constant 0.000000e+00 : f32
    %374 = vector.broadcast %cst_202 : f32 to vector<64x4xf32>
    %375 = arith.cmpf oge, %373, %374 : vector<64x4xf32>
    %cst_203 = arith.constant 1.000000e+00 : f32
    %cst_204 = arith.constant -1.000000e+00 : f32
    %376 = vector.broadcast %cst_203 : f32 to vector<64x4xf32>
    %377 = vector.broadcast %cst_204 : f32 to vector<64x4xf32>
    %378 = arith.select %375, %376, %377 : vector<64x4xi1>, vector<64x4xf32>
    %379 = math.absf %373 : vector<64x4xf32>
    %cst_205 = arith.constant 0.327591091 : f32
    %380 = vector.broadcast %cst_205 : f32 to vector<64x4xf32>
    %381 = arith.mulf %380, %379 : vector<64x4xf32>
    %cst_206 = arith.constant 1.000000e+00 : f32
    %382 = vector.broadcast %cst_206 : f32 to vector<64x4xf32>
    %383 = arith.addf %382, %381 : vector<64x4xf32>
    %384 = tpu.reciprocal %383 {approx = true} : vector<64x4xf32> -> vector<64x4xf32>
    %cst_207 = arith.constant 1.06140542 : f32
    %385 = vector.broadcast %cst_207 : f32 to vector<64x4xf32>
    %386 = arith.mulf %385, %384 : vector<64x4xf32>
    %cst_208 = arith.constant -1.45315206 : f32
    %387 = vector.broadcast %cst_208 : f32 to vector<64x4xf32>
    %388 = arith.addf %386, %387 : vector<64x4xf32>
    %389 = arith.mulf %388, %384 : vector<64x4xf32>
    %cst_209 = arith.constant 1.42141378 : f32
    %390 = vector.broadcast %cst_209 : f32 to vector<64x4xf32>
    %391 = arith.addf %389, %390 : vector<64x4xf32>
    %392 = arith.mulf %391, %384 : vector<64x4xf32>
    %cst_210 = arith.constant -0.284496725 : f32
    %393 = vector.broadcast %cst_210 : f32 to vector<64x4xf32>
    %394 = arith.addf %392, %393 : vector<64x4xf32>
    %395 = arith.mulf %394, %384 : vector<64x4xf32>
    %cst_211 = arith.constant 0.254829586 : f32
    %396 = vector.broadcast %cst_211 : f32 to vector<64x4xf32>
    %397 = arith.addf %395, %396 : vector<64x4xf32>
    %398 = arith.mulf %397, %384 : vector<64x4xf32>
    %cst_212 = arith.constant 0.000000e+00 : f32
    %399 = vector.broadcast %cst_212 : f32 to vector<64x4xf32>
    %400 = arith.subf %399, %379 : vector<64x4xf32>
    %401 = arith.mulf %400, %379 : vector<64x4xf32>
    %402 = math.exp %401 : vector<64x4xf32>
    %403 = arith.mulf %398, %402 : vector<64x4xf32>
    %cst_213 = arith.constant 1.000000e+00 : f32
    %404 = vector.broadcast %cst_213 : f32 to vector<64x4xf32>
    %405 = arith.subf %404, %403 : vector<64x4xf32>
    %406 = arith.mulf %378, %405 : vector<64x4xf32>
    %cst_214 = arith.constant 1.000000e+00 : f32
    %407 = vector.broadcast %cst_214 : f32 to vector<64x4xf32>
    %408 = arith.addf %407, %406 : vector<64x4xf32>
    %409 = arith.mulf %371, %408 : vector<64x4xf32>
    %410 = vector.shape_cast %409 : vector<64x4xf32> to vector<8x8x4xf32>
    %c1_215 = arith.constant 1 : index
    %c1_216 = arith.constant 1 : index
    %c0_217 = arith.constant 0 : index
    %411 = vector.load %arg22[%c1_215, %c1_216, %c0_217] : memref<10x10x4xf32, #tpu.memory_space<vmem>>, vector<8x8x4xf32>
    tpu.vector_store %arg22[%c1_215, %c1_216, %c0_217], %410 {strides = array<i32>} : memref<10x10x4xf32, #tpu.memory_space<vmem>>, vector<8x8x4xf32>,
    %c0_218 = arith.constant 0 : index
    %c0_219 = arith.constant 0 : index
    %c0_220 = arith.constant 0 : index
    %412 = vector.load %arg22[%c0_218, %c0_219, %c0_220] : memref<10x10x4xf32, #tpu.memory_space<vmem>>, vector<10x10x4xf32>
    %cst_221 = arith.constant 0.000000e+00 : f32
    %413 = vector.broadcast %cst_221 : f32 to vector<64x4xf32>
    %414 = vector.extract_strided_slice %412 {offsets = [0, 0, 0], sizes = [8, 8, 4], strides = [1, 1, 1]} : vector<10x10x4xf32> to vector<8x8x4xf32>
    %415 = vector.shape_cast %414 : vector<8x8x4xf32> to vector<64x4xf32>
    %c0_222 = arith.constant 0 : index
    %c0_223 = arith.constant 0 : index
    %c0_224 = arith.constant 0 : index
    %416 = vector.load %arg11[%c0_222, %c0_223, %c0_224] : memref<9x4x4xf32, #tpu.memory_space<vmem>>, vector<1x4x4xf32>
    %417 = vector.shape_cast %416 : vector<1x4x4xf32> to vector<4x4xf32>
    %cst_225 = arith.constant dense<0.000000e+00> : vector<64x4xf32>
    %418 = tpu.matmul %415, %417, %cst_225 {dimension_numbers = #tpu.dot_dimension_numbers<[1], [0], [0], [1], [0, 0, 1, 1], [], []>} : vector<64x4xf32>, vector<4x4xf32>, vector<64x4xf32> -> vector<64x4xf32>
    %419 = arith.addf %413, %418 : vector<64x4xf32>
    %420 = vector.extract_strided_slice %412 {offsets = [0, 1, 0], sizes = [8, 8, 4], strides = [1, 1, 1]} : vector<10x10x4xf32> to vector<8x8x4xf32>
    %421 = vector.shape_cast %420 : vector<8x8x4xf32> to vector<64x4xf32>
    %c1_226 = arith.constant 1 : index
    %c0_227 = arith.constant 0 : index
    %c0_228 = arith.constant 0 : index
    %422 = vector.load %arg11[%c1_226, %c0_227, %c0_228] : memref<9x4x4xf32, #tpu.memory_space<vmem>>, vector<1x4x4xf32>
    %423 = vector.shape_cast %422 : vector<1x4x4xf32> to vector<4x4xf32>
    %cst_229 = arith.constant dense<0.000000e+00> : vector<64x4xf32>
    %424 = tpu.matmul %421, %423, %cst_229 {dimension_numbers = #tpu.dot_dimension_numbers<[1], [0], [0], [1], [0, 0, 1, 1], [], []>} : vector<64x4xf32>, vector<4x4xf32>, vector<64x4xf32> -> vector<64x4xf32>
    %425 = arith.addf %419, %424 : vector<64x4xf32>
    %426 = vector.extract_strided_slice %412 {offsets = [0, 2, 0], sizes = [8, 8, 4], strides = [1, 1, 1]} : vector<10x10x4xf32> to vector<8x8x4xf32>
    %427 = vector.shape_cast %426 : vector<8x8x4xf32> to vector<64x4xf32>
    %c2_230 = arith.constant 2 : index
    %c0_231 = arith.constant 0 : index
    %c0_232 = arith.constant 0 : index
    %428 = vector.load %arg11[%c2_230, %c0_231, %c0_232] : memref<9x4x4xf32, #tpu.memory_space<vmem>>, vector<1x4x4xf32>
    %429 = vector.shape_cast %428 : vector<1x4x4xf32> to vector<4x4xf32>
    %cst_233 = arith.constant dense<0.000000e+00> : vector<64x4xf32>
    %430 = tpu.matmul %427, %429, %cst_233 {dimension_numbers = #tpu.dot_dimension_numbers<[1], [0], [0], [1], [0, 0, 1, 1], [], []>} : vector<64x4xf32>, vector<4x4xf32>, vector<64x4xf32> -> vector<64x4xf32>
    %431 = arith.addf %425, %430 : vector<64x4xf32>
    %432 = vector.extract_strided_slice %412 {offsets = [1, 0, 0], sizes = [8, 8, 4], strides = [1, 1, 1]} : vector<10x10x4xf32> to vector<8x8x4xf32>
    %433 = vector.shape_cast %432 : vector<8x8x4xf32> to vector<64x4xf32>
    %c3_234 = arith.constant 3 : index
    %c0_235 = arith.constant 0 : index
    %c0_236 = arith.constant 0 : index
    %434 = vector.load %arg11[%c3_234, %c0_235, %c0_236] : memref<9x4x4xf32, #tpu.memory_space<vmem>>, vector<1x4x4xf32>
    %435 = vector.shape_cast %434 : vector<1x4x4xf32> to vector<4x4xf32>
    %cst_237 = arith.constant dense<0.000000e+00> : vector<64x4xf32>
    %436 = tpu.matmul %433, %435, %cst_237 {dimension_numbers = #tpu.dot_dimension_numbers<[1], [0], [0], [1], [0, 0, 1, 1], [], []>} : vector<64x4xf32>, vector<4x4xf32>, vector<64x4xf32> -> vector<64x4xf32>
    %437 = arith.addf %431, %436 : vector<64x4xf32>
    %438 = vector.extract_strided_slice %412 {offsets = [1, 1, 0], sizes = [8, 8, 4], strides = [1, 1, 1]} : vector<10x10x4xf32> to vector<8x8x4xf32>
    %439 = vector.shape_cast %438 : vector<8x8x4xf32> to vector<64x4xf32>
    %c4_238 = arith.constant 4 : index
    %c0_239 = arith.constant 0 : index
    %c0_240 = arith.constant 0 : index
    %440 = vector.load %arg11[%c4_238, %c0_239, %c0_240] : memref<9x4x4xf32, #tpu.memory_space<vmem>>, vector<1x4x4xf32>
    %441 = vector.shape_cast %440 : vector<1x4x4xf32> to vector<4x4xf32>
    %cst_241 = arith.constant dense<0.000000e+00> : vector<64x4xf32>
    %442 = tpu.matmul %439, %441, %cst_241 {dimension_numbers = #tpu.dot_dimension_numbers<[1], [0], [0], [1], [0, 0, 1, 1], [], []>} : vector<64x4xf32>, vector<4x4xf32>, vector<64x4xf32> -> vector<64x4xf32>
    %443 = arith.addf %437, %442 : vector<64x4xf32>
    %444 = vector.extract_strided_slice %412 {offsets = [1, 2, 0], sizes = [8, 8, 4], strides = [1, 1, 1]} : vector<10x10x4xf32> to vector<8x8x4xf32>
    %445 = vector.shape_cast %444 : vector<8x8x4xf32> to vector<64x4xf32>
    %c5_242 = arith.constant 5 : index
    %c0_243 = arith.constant 0 : index
    %c0_244 = arith.constant 0 : index
    %446 = vector.load %arg11[%c5_242, %c0_243, %c0_244] : memref<9x4x4xf32, #tpu.memory_space<vmem>>, vector<1x4x4xf32>
    %447 = vector.shape_cast %446 : vector<1x4x4xf32> to vector<4x4xf32>
    %cst_245 = arith.constant dense<0.000000e+00> : vector<64x4xf32>
    %448 = tpu.matmul %445, %447, %cst_245 {dimension_numbers = #tpu.dot_dimension_numbers<[1], [0], [0], [1], [0, 0, 1, 1], [], []>} : vector<64x4xf32>, vector<4x4xf32>, vector<64x4xf32> -> vector<64x4xf32>
    %449 = arith.addf %443, %448 : vector<64x4xf32>
    %450 = vector.extract_strided_slice %412 {offsets = [2, 0, 0], sizes = [8, 8, 4], strides = [1, 1, 1]} : vector<10x10x4xf32> to vector<8x8x4xf32>
    %451 = vector.shape_cast %450 : vector<8x8x4xf32> to vector<64x4xf32>
    %c6_246 = arith.constant 6 : index
    %c0_247 = arith.constant 0 : index
    %c0_248 = arith.constant 0 : index
    %452 = vector.load %arg11[%c6_246, %c0_247, %c0_248] : memref<9x4x4xf32, #tpu.memory_space<vmem>>, vector<1x4x4xf32>
    %453 = vector.shape_cast %452 : vector<1x4x4xf32> to vector<4x4xf32>
    %cst_249 = arith.constant dense<0.000000e+00> : vector<64x4xf32>
    %454 = tpu.matmul %451, %453, %cst_249 {dimension_numbers = #tpu.dot_dimension_numbers<[1], [0], [0], [1], [0, 0, 1, 1], [], []>} : vector<64x4xf32>, vector<4x4xf32>, vector<64x4xf32> -> vector<64x4xf32>
    %455 = arith.addf %449, %454 : vector<64x4xf32>
    %456 = vector.extract_strided_slice %412 {offsets = [2, 1, 0], sizes = [8, 8, 4], strides = [1, 1, 1]} : vector<10x10x4xf32> to vector<8x8x4xf32>
    %457 = vector.shape_cast %456 : vector<8x8x4xf32> to vector<64x4xf32>
    %c7_250 = arith.constant 7 : index
    %c0_251 = arith.constant 0 : index
    %c0_252 = arith.constant 0 : index
    %458 = vector.load %arg11[%c7_250, %c0_251, %c0_252] : memref<9x4x4xf32, #tpu.memory_space<vmem>>, vector<1x4x4xf32>
    %459 = vector.shape_cast %458 : vector<1x4x4xf32> to vector<4x4xf32>
    %cst_253 = arith.constant dense<0.000000e+00> : vector<64x4xf32>
    %460 = tpu.matmul %457, %459, %cst_253 {dimension_numbers = #tpu.dot_dimension_numbers<[1], [0], [0], [1], [0, 0, 1, 1], [], []>} : vector<64x4xf32>, vector<4x4xf32>, vector<64x4xf32> -> vector<64x4xf32>
    %461 = arith.addf %455, %460 : vector<64x4xf32>
    %462 = vector.extract_strided_slice %412 {offsets = [2, 2, 0], sizes = [8, 8, 4], strides = [1, 1, 1]} : vector<10x10x4xf32> to vector<8x8x4xf32>
    %463 = vector.shape_cast %462 : vector<8x8x4xf32> to vector<64x4xf32>
    %c8_254 = arith.constant 8 : index
    %c0_255 = arith.constant 0 : index
    %c0_256 = arith.constant 0 : index
    %464 = vector.load %arg11[%c8_254, %c0_255, %c0_256] : memref<9x4x4xf32, #tpu.memory_space<vmem>>, vector<1x4x4xf32>
    %465 = vector.shape_cast %464 : vector<1x4x4xf32> to vector<4x4xf32>
    %cst_257 = arith.constant dense<0.000000e+00> : vector<64x4xf32>
    %466 = tpu.matmul %463, %465, %cst_257 {dimension_numbers = #tpu.dot_dimension_numbers<[1], [0], [0], [1], [0, 0, 1, 1], [], []>} : vector<64x4xf32>, vector<4x4xf32>, vector<64x4xf32> -> vector<64x4xf32>
    %467 = arith.addf %461, %466 : vector<64x4xf32>
    %468 = vector.shape_cast %467 : vector<64x4xf32> to vector<1x64x4xf32>
    %cst_258 = arith.constant dense<0.000000e+00> : vector<1xf32>
    %469 = vector.multi_reduction <add>, %468, %cst_258 [1, 2] : vector<1x64x4xf32> to vector<1xf32>
    %470 = vector.shape_cast %469 : vector<1xf32> to vector<1x1x1xf32>
    %471 = vector.extract %470[0, 0, 0] : f32 from vector<1x1x1xf32>
    %472 = vector.broadcast %471 : f32 to vector<1x1xf32>
    %473 = arith.mulf %467, %467 : vector<64x4xf32>
    %474 = vector.shape_cast %473 : vector<64x4xf32> to vector<1x64x4xf32>
    %cst_259 = arith.constant dense<0.000000e+00> : vector<1xf32>
    %475 = vector.multi_reduction <add>, %474, %cst_259 [1, 2] : vector<1x64x4xf32> to vector<1xf32>
    %476 = vector.shape_cast %475 : vector<1xf32> to vector<1x1x1xf32>
    %477 = vector.extract %476[0, 0, 0] : f32 from vector<1x1x1xf32>
    %478 = vector.broadcast %477 : f32 to vector<1x1xf32>
    %cst_260 = arith.constant 3.906250e-03 : f32
    %479 = vector.broadcast %cst_260 : f32 to vector<1x1xf32>
    %480 = arith.mulf %472, %479 : vector<1x1xf32>
    %cst_261 = arith.constant 3.906250e-03 : f32
    %481 = vector.broadcast %cst_261 : f32 to vector<1x1xf32>
    %482 = arith.mulf %478, %481 : vector<1x1xf32>
    %483 = arith.mulf %480, %480 : vector<1x1xf32>
    %484 = arith.subf %482, %483 : vector<1x1xf32>
    %cst_262 = arith.constant 0.000000e+00 : f32
    %485 = vector.broadcast %cst_262 : f32 to vector<1x1xf32>
    %486 = arith.maximumf %484, %485 : vector<1x1xf32>
    %487 = vector.broadcast %480 : vector<1x1xf32> to vector<64x4xf32>
    %488 = arith.subf %467, %487 : vector<64x4xf32>
    %cst_263 = arith.constant 9.99999974E-6 : f32
    %489 = vector.broadcast %cst_263 : f32 to vector<1x1xf32>
    %490 = arith.addf %486, %489 : vector<1x1xf32>
    %491 = math.rsqrt %490 : vector<1x1xf32>
    %492 = vector.broadcast %491 : vector<1x1xf32> to vector<64x4xf32>
    %493 = arith.mulf %488, %492 : vector<64x4xf32>
    %494 = vector.broadcast %282 : vector<1x4xf32> to vector<64x4xf32>
    %495 = arith.mulf %493, %494 : vector<64x4xf32>
    %496 = vector.broadcast %283 : vector<1x4xf32> to vector<64x4xf32>
    %497 = arith.addf %495, %496 : vector<64x4xf32>
    %498 = vector.extract_strided_slice %284 {offsets = [1, 1, 0], sizes = [8, 8, 4], strides = [1, 1, 1]} : vector<10x10x4xf32> to vector<8x8x4xf32>
    %499 = vector.shape_cast %498 : vector<8x8x4xf32> to vector<64x4xf32>
    %500 = arith.addf %499, %497 : vector<64x4xf32>
    %cst_264 = arith.constant 5.000000e-01 : f32
    %501 = vector.broadcast %cst_264 : f32 to vector<64x4xf32>
    %502 = arith.mulf %501, %500 : vector<64x4xf32>
    %cst_265 = arith.constant 0.707106769 : f32
    %503 = vector.broadcast %cst_265 : f32 to vector<64x4xf32>
    %504 = arith.mulf %500, %503 : vector<64x4xf32>
    %cst_266 = arith.constant 0.000000e+00 : f32
    %505 = vector.broadcast %cst_266 : f32 to vector<64x4xf32>
    %506 = arith.cmpf oge, %504, %505 : vector<64x4xf32>
    %cst_267 = arith.constant 1.000000e+00 : f32
    %cst_268 = arith.constant -1.000000e+00 : f32
    %507 = vector.broadcast %cst_267 : f32 to vector<64x4xf32>
    %508 = vector.broadcast %cst_268 : f32 to vector<64x4xf32>
    %509 = arith.select %506, %507, %508 : vector<64x4xi1>, vector<64x4xf32>
    %510 = math.absf %504 : vector<64x4xf32>
    %cst_269 = arith.constant 0.327591091 : f32
    %511 = vector.broadcast %cst_269 : f32 to vector<64x4xf32>
    %512 = arith.mulf %511, %510 : vector<64x4xf32>
    %cst_270 = arith.constant 1.000000e+00 : f32
    %513 = vector.broadcast %cst_270 : f32 to vector<64x4xf32>
    %514 = arith.addf %513, %512 : vector<64x4xf32>
    %515 = tpu.reciprocal %514 {approx = true} : vector<64x4xf32> -> vector<64x4xf32>
    %cst_271 = arith.constant 1.06140542 : f32
    %516 = vector.broadcast %cst_271 : f32 to vector<64x4xf32>
    %517 = arith.mulf %516, %515 : vector<64x4xf32>
    %cst_272 = arith.constant -1.45315206 : f32
    %518 = vector.broadcast %cst_272 : f32 to vector<64x4xf32>
    %519 = arith.addf %517, %518 : vector<64x4xf32>
    %520 = arith.mulf %519, %515 : vector<64x4xf32>
    %cst_273 = arith.constant 1.42141378 : f32
    %521 = vector.broadcast %cst_273 : f32 to vector<64x4xf32>
    %522 = arith.addf %520, %521 : vector<64x4xf32>
    %523 = arith.mulf %522, %515 : vector<64x4xf32>
    %cst_274 = arith.constant -0.284496725 : f32
    %524 = vector.broadcast %cst_274 : f32 to vector<64x4xf32>
    %525 = arith.addf %523, %524 : vector<64x4xf32>
    %526 = arith.mulf %525, %515 : vector<64x4xf32>
    %cst_275 = arith.constant 0.254829586 : f32
    %527 = vector.broadcast %cst_275 : f32 to vector<64x4xf32>
    %528 = arith.addf %526, %527 : vector<64x4xf32>
    %529 = arith.mulf %528, %515 : vector<64x4xf32>
    %cst_276 = arith.constant 0.000000e+00 : f32
    %530 = vector.broadcast %cst_276 : f32 to vector<64x4xf32>
    %531 = arith.subf %530, %510 : vector<64x4xf32>
    %532 = arith.mulf %531, %510 : vector<64x4xf32>
    %533 = math.exp %532 : vector<64x4xf32>
    %534 = arith.mulf %529, %533 : vector<64x4xf32>
    %cst_277 = arith.constant 1.000000e+00 : f32
    %535 = vector.broadcast %cst_277 : f32 to vector<64x4xf32>
    %536 = arith.subf %535, %534 : vector<64x4xf32>
    %537 = arith.mulf %509, %536 : vector<64x4xf32>
    %cst_278 = arith.constant 1.000000e+00 : f32
    %538 = vector.broadcast %cst_278 : f32 to vector<64x4xf32>
    %539 = arith.addf %538, %537 : vector<64x4xf32>
    %540 = arith.mulf %502, %539 : vector<64x4xf32>
    %541 = vector.shape_cast %540 : vector<64x4xf32> to vector<8x8x4xf32>
    %c1_279 = arith.constant 1 : index
    %c1_280 = arith.constant 1 : index
    %c0_281 = arith.constant 0 : index
    %542 = vector.load %arg21[%c1_279, %c1_280, %c0_281] : memref<10x10x4xf32, #tpu.memory_space<vmem>>, vector<8x8x4xf32>
    tpu.vector_store %arg21[%c1_279, %c1_280, %c0_281], %541 {strides = array<i32>} : memref<10x10x4xf32, #tpu.memory_space<vmem>>, vector<8x8x4xf32>,
    %c0_282 = arith.constant 0 : index
    %c0_283 = arith.constant 0 : index
    %c0_284 = arith.constant 0 : index
    %543 = vector.load %arg21[%c0_282, %c0_283, %c0_284] : memref<10x10x4xf32, #tpu.memory_space<vmem>>, vector<10x10x4xf32>
    %cst_285 = arith.constant 0.000000e+00 : f32
    %544 = vector.broadcast %cst_285 : f32 to vector<64x8xf32>
    %545 = vector.extract_strided_slice %543 {offsets = [0, 0, 0], sizes = [8, 8, 4], strides = [1, 1, 1]} : vector<10x10x4xf32> to vector<8x8x4xf32>
    %546 = vector.shape_cast %545 : vector<8x8x4xf32> to vector<64x4xf32>
    %c0_286 = arith.constant 0 : index
    %c0_287 = arith.constant 0 : index
    %c0_288 = arith.constant 0 : index
    %547 = vector.load %arg14[%c0_286, %c0_287, %c0_288] : memref<9x4x8xf32, #tpu.memory_space<vmem>>, vector<1x4x8xf32>
    %548 = vector.shape_cast %547 : vector<1x4x8xf32> to vector<4x8xf32>
    %cst_289 = arith.constant dense<0.000000e+00> : vector<64x8xf32>
    %549 = tpu.matmul %546, %548, %cst_289 {dimension_numbers = #tpu.dot_dimension_numbers<[1], [0], [0], [1], [0, 0, 1, 1], [], []>} : vector<64x4xf32>, vector<4x8xf32>, vector<64x8xf32> -> vector<64x8xf32>
    %550 = arith.addf %544, %549 : vector<64x8xf32>
    %551 = vector.extract_strided_slice %543 {offsets = [0, 1, 0], sizes = [8, 8, 4], strides = [1, 1, 1]} : vector<10x10x4xf32> to vector<8x8x4xf32>
    %552 = vector.shape_cast %551 : vector<8x8x4xf32> to vector<64x4xf32>
    %c1_290 = arith.constant 1 : index
    %c0_291 = arith.constant 0 : index
    %c0_292 = arith.constant 0 : index
    %553 = vector.load %arg14[%c1_290, %c0_291, %c0_292] : memref<9x4x8xf32, #tpu.memory_space<vmem>>, vector<1x4x8xf32>
    %554 = vector.shape_cast %553 : vector<1x4x8xf32> to vector<4x8xf32>
    %cst_293 = arith.constant dense<0.000000e+00> : vector<64x8xf32>
    %555 = tpu.matmul %552, %554, %cst_293 {dimension_numbers = #tpu.dot_dimension_numbers<[1], [0], [0], [1], [0, 0, 1, 1], [], []>} : vector<64x4xf32>, vector<4x8xf32>, vector<64x8xf32> -> vector<64x8xf32>
    %556 = arith.addf %550, %555 : vector<64x8xf32>
    %557 = vector.extract_strided_slice %543 {offsets = [0, 2, 0], sizes = [8, 8, 4], strides = [1, 1, 1]} : vector<10x10x4xf32> to vector<8x8x4xf32>
    %558 = vector.shape_cast %557 : vector<8x8x4xf32> to vector<64x4xf32>
    %c2_294 = arith.constant 2 : index
    %c0_295 = arith.constant 0 : index
    %c0_296 = arith.constant 0 : index
    %559 = vector.load %arg14[%c2_294, %c0_295, %c0_296] : memref<9x4x8xf32, #tpu.memory_space<vmem>>, vector<1x4x8xf32>
    %560 = vector.shape_cast %559 : vector<1x4x8xf32> to vector<4x8xf32>
    %cst_297 = arith.constant dense<0.000000e+00> : vector<64x8xf32>
    %561 = tpu.matmul %558, %560, %cst_297 {dimension_numbers = #tpu.dot_dimension_numbers<[1], [0], [0], [1], [0, 0, 1, 1], [], []>} : vector<64x4xf32>, vector<4x8xf32>, vector<64x8xf32> -> vector<64x8xf32>
    %562 = arith.addf %556, %561 : vector<64x8xf32>
    %563 = vector.extract_strided_slice %543 {offsets = [1, 0, 0], sizes = [8, 8, 4], strides = [1, 1, 1]} : vector<10x10x4xf32> to vector<8x8x4xf32>
    %564 = vector.shape_cast %563 : vector<8x8x4xf32> to vector<64x4xf32>
    %c3_298 = arith.constant 3 : index
    %c0_299 = arith.constant 0 : index
    %c0_300 = arith.constant 0 : index
    %565 = vector.load %arg14[%c3_298, %c0_299, %c0_300] : memref<9x4x8xf32, #tpu.memory_space<vmem>>, vector<1x4x8xf32>
    %566 = vector.shape_cast %565 : vector<1x4x8xf32> to vector<4x8xf32>
    %cst_301 = arith.constant dense<0.000000e+00> : vector<64x8xf32>
    %567 = tpu.matmul %564, %566, %cst_301 {dimension_numbers = #tpu.dot_dimension_numbers<[1], [0], [0], [1], [0, 0, 1, 1], [], []>} : vector<64x4xf32>, vector<4x8xf32>, vector<64x8xf32> -> vector<64x8xf32>
    %568 = arith.addf %562, %567 : vector<64x8xf32>
    %569 = vector.extract_strided_slice %543 {offsets = [1, 1, 0], sizes = [8, 8, 4], strides = [1, 1, 1]} : vector<10x10x4xf32> to vector<8x8x4xf32>
    %570 = vector.shape_cast %569 : vector<8x8x4xf32> to vector<64x4xf32>
    %c4_302 = arith.constant 4 : index
    %c0_303 = arith.constant 0 : index
    %c0_304 = arith.constant 0 : index
    %571 = vector.load %arg14[%c4_302, %c0_303, %c0_304] : memref<9x4x8xf32, #tpu.memory_space<vmem>>, vector<1x4x8xf32>
    %572 = vector.shape_cast %571 : vector<1x4x8xf32> to vector<4x8xf32>
    %cst_305 = arith.constant dense<0.000000e+00> : vector<64x8xf32>
    %573 = tpu.matmul %570, %572, %cst_305 {dimension_numbers = #tpu.dot_dimension_numbers<[1], [0], [0], [1], [0, 0, 1, 1], [], []>} : vector<64x4xf32>, vector<4x8xf32>, vector<64x8xf32> -> vector<64x8xf32>
    %574 = arith.addf %568, %573 : vector<64x8xf32>
    %575 = vector.extract_strided_slice %543 {offsets = [1, 2, 0], sizes = [8, 8, 4], strides = [1, 1, 1]} : vector<10x10x4xf32> to vector<8x8x4xf32>
    %576 = vector.shape_cast %575 : vector<8x8x4xf32> to vector<64x4xf32>
    %c5_306 = arith.constant 5 : index
    %c0_307 = arith.constant 0 : index
    %c0_308 = arith.constant 0 : index
    %577 = vector.load %arg14[%c5_306, %c0_307, %c0_308] : memref<9x4x8xf32, #tpu.memory_space<vmem>>, vector<1x4x8xf32>
    %578 = vector.shape_cast %577 : vector<1x4x8xf32> to vector<4x8xf32>
    %cst_309 = arith.constant dense<0.000000e+00> : vector<64x8xf32>
    %579 = tpu.matmul %576, %578, %cst_309 {dimension_numbers = #tpu.dot_dimension_numbers<[1], [0], [0], [1], [0, 0, 1, 1], [], []>} : vector<64x4xf32>, vector<4x8xf32>, vector<64x8xf32> -> vector<64x8xf32>
    %580 = arith.addf %574, %579 : vector<64x8xf32>
    %581 = vector.extract_strided_slice %543 {offsets = [2, 0, 0], sizes = [8, 8, 4], strides = [1, 1, 1]} : vector<10x10x4xf32> to vector<8x8x4xf32>
    %582 = vector.shape_cast %581 : vector<8x8x4xf32> to vector<64x4xf32>
    %c6_310 = arith.constant 6 : index
    %c0_311 = arith.constant 0 : index
    %c0_312 = arith.constant 0 : index
    %583 = vector.load %arg14[%c6_310, %c0_311, %c0_312] : memref<9x4x8xf32, #tpu.memory_space<vmem>>, vector<1x4x8xf32>
    %584 = vector.shape_cast %583 : vector<1x4x8xf32> to vector<4x8xf32>
    %cst_313 = arith.constant dense<0.000000e+00> : vector<64x8xf32>
    %585 = tpu.matmul %582, %584, %cst_313 {dimension_numbers = #tpu.dot_dimension_numbers<[1], [0], [0], [1], [0, 0, 1, 1], [], []>} : vector<64x4xf32>, vector<4x8xf32>, vector<64x8xf32> -> vector<64x8xf32>
    %586 = arith.addf %580, %585 : vector<64x8xf32>
    %587 = vector.extract_strided_slice %543 {offsets = [2, 1, 0], sizes = [8, 8, 4], strides = [1, 1, 1]} : vector<10x10x4xf32> to vector<8x8x4xf32>
    %588 = vector.shape_cast %587 : vector<8x8x4xf32> to vector<64x4xf32>
    %c7_314 = arith.constant 7 : index
    %c0_315 = arith.constant 0 : index
    %c0_316 = arith.constant 0 : index
    %589 = vector.load %arg14[%c7_314, %c0_315, %c0_316] : memref<9x4x8xf32, #tpu.memory_space<vmem>>, vector<1x4x8xf32>
    %590 = vector.shape_cast %589 : vector<1x4x8xf32> to vector<4x8xf32>
    %cst_317 = arith.constant dense<0.000000e+00> : vector<64x8xf32>
    %591 = tpu.matmul %588, %590, %cst_317 {dimension_numbers = #tpu.dot_dimension_numbers<[1], [0], [0], [1], [0, 0, 1, 1], [], []>} : vector<64x4xf32>, vector<4x8xf32>, vector<64x8xf32> -> vector<64x8xf32>
    %592 = arith.addf %586, %591 : vector<64x8xf32>
    %593 = vector.extract_strided_slice %543 {offsets = [2, 2, 0], sizes = [8, 8, 4], strides = [1, 1, 1]} : vector<10x10x4xf32> to vector<8x8x4xf32>
    %594 = vector.shape_cast %593 : vector<8x8x4xf32> to vector<64x4xf32>
    %c8_318 = arith.constant 8 : index
    %c0_319 = arith.constant 0 : index
    %c0_320 = arith.constant 0 : index
    %595 = vector.load %arg14[%c8_318, %c0_319, %c0_320] : memref<9x4x8xf32, #tpu.memory_space<vmem>>, vector<1x4x8xf32>
    %596 = vector.shape_cast %595 : vector<1x4x8xf32> to vector<4x8xf32>
    %cst_321 = arith.constant dense<0.000000e+00> : vector<64x8xf32>
    %597 = tpu.matmul %594, %596, %cst_321 {dimension_numbers = #tpu.dot_dimension_numbers<[1], [0], [0], [1], [0, 0, 1, 1], [], []>} : vector<64x4xf32>, vector<4x8xf32>, vector<64x8xf32> -> vector<64x8xf32>
    %598 = arith.addf %592, %597 : vector<64x8xf32>
    %c0_322 = arith.constant 0 : index
    %c0_323 = arith.constant 0 : index
    %599 = vector.load %arg15[%c0_322, %c0_323] : memref<1x8xf32, #tpu.memory_space<vmem>>, vector<1x8xf32>
    %c0_324 = arith.constant 0 : index
    %c0_325 = arith.constant 0 : index
    %600 = vector.load %arg16[%c0_324, %c0_325] : memref<1x8xf32, #tpu.memory_space<vmem>>, vector<1x8xf32>
    %601 = vector.shape_cast %598 : vector<64x8xf32> to vector<1x64x8xf32>
    %cst_326 = arith.constant dense<0.000000e+00> : vector<1xf32>
    %602 = vector.multi_reduction <add>, %601, %cst_326 [1, 2] : vector<1x64x8xf32> to vector<1xf32>
    %603 = vector.shape_cast %602 : vector<1xf32> to vector<1x1x1xf32>
    %604 = vector.extract %603[0, 0, 0] : f32 from vector<1x1x1xf32>
    %605 = vector.broadcast %604 : f32 to vector<1x1xf32>
    %606 = arith.mulf %598, %598 : vector<64x8xf32>
    %607 = vector.shape_cast %606 : vector<64x8xf32> to vector<1x64x8xf32>
    %cst_327 = arith.constant dense<0.000000e+00> : vector<1xf32>
    %608 = vector.multi_reduction <add>, %607, %cst_327 [1, 2] : vector<1x64x8xf32> to vector<1xf32>
    %609 = vector.shape_cast %608 : vector<1xf32> to vector<1x1x1xf32>
    %610 = vector.extract %609[0, 0, 0] : f32 from vector<1x1x1xf32>
    %611 = vector.broadcast %610 : f32 to vector<1x1xf32>
    %cst_328 = arith.constant 0.001953125 : f32
    %612 = vector.broadcast %cst_328 : f32 to vector<1x1xf32>
    %613 = arith.mulf %605, %612 : vector<1x1xf32>
    %cst_329 = arith.constant 0.001953125 : f32
    %614 = vector.broadcast %cst_329 : f32 to vector<1x1xf32>
    %615 = arith.mulf %611, %614 : vector<1x1xf32>
    %616 = arith.mulf %613, %613 : vector<1x1xf32>
    %617 = arith.subf %615, %616 : vector<1x1xf32>
    %cst_330 = arith.constant 0.000000e+00 : f32
    %618 = vector.broadcast %cst_330 : f32 to vector<1x1xf32>
    %619 = arith.maximumf %617, %618 : vector<1x1xf32>
    %620 = vector.broadcast %613 : vector<1x1xf32> to vector<64x8xf32>
    %621 = arith.subf %598, %620 : vector<64x8xf32>
    %cst_331 = arith.constant 9.99999974E-6 : f32
    %622 = vector.broadcast %cst_331 : f32 to vector<1x1xf32>
    %623 = arith.addf %619, %622 : vector<1x1xf32>
    %624 = math.rsqrt %623 : vector<1x1xf32>
    %625 = vector.broadcast %624 : vector<1x1xf32> to vector<64x8xf32>
    %626 = arith.mulf %621, %625 : vector<64x8xf32>
    %627 = vector.broadcast %599 : vector<1x8xf32> to vector<64x8xf32>
    %628 = arith.mulf %626, %627 : vector<64x8xf32>
    %629 = vector.broadcast %600 : vector<1x8xf32> to vector<64x8xf32>
    %630 = arith.addf %628, %629 : vector<64x8xf32>
    %cst_332 = arith.constant 5.000000e-01 : f32
    %631 = vector.broadcast %cst_332 : f32 to vector<64x8xf32>
    %632 = arith.mulf %631, %630 : vector<64x8xf32>
    %cst_333 = arith.constant 0.707106769 : f32
    %633 = vector.broadcast %cst_333 : f32 to vector<64x8xf32>
    %634 = arith.mulf %630, %633 : vector<64x8xf32>
    %cst_334 = arith.constant 0.000000e+00 : f32
    %635 = vector.broadcast %cst_334 : f32 to vector<64x8xf32>
    %636 = arith.cmpf oge, %634, %635 : vector<64x8xf32>
    %cst_335 = arith.constant 1.000000e+00 : f32
    %cst_336 = arith.constant -1.000000e+00 : f32
    %637 = vector.broadcast %cst_335 : f32 to vector<64x8xf32>
    %638 = vector.broadcast %cst_336 : f32 to vector<64x8xf32>
    %639 = arith.select %636, %637, %638 : vector<64x8xi1>, vector<64x8xf32>
    %640 = math.absf %634 : vector<64x8xf32>
    %cst_337 = arith.constant 0.327591091 : f32
    %641 = vector.broadcast %cst_337 : f32 to vector<64x8xf32>
    %642 = arith.mulf %641, %640 : vector<64x8xf32>
    %cst_338 = arith.constant 1.000000e+00 : f32
    %643 = vector.broadcast %cst_338 : f32 to vector<64x8xf32>
    %644 = arith.addf %643, %642 : vector<64x8xf32>
    %645 = tpu.reciprocal %644 {approx = true} : vector<64x8xf32> -> vector<64x8xf32>
    %cst_339 = arith.constant 1.06140542 : f32
    %646 = vector.broadcast %cst_339 : f32 to vector<64x8xf32>
    %647 = arith.mulf %646, %645 : vector<64x8xf32>
    %cst_340 = arith.constant -1.45315206 : f32
    %648 = vector.broadcast %cst_340 : f32 to vector<64x8xf32>
    %649 = arith.addf %647, %648 : vector<64x8xf32>
    %650 = arith.mulf %649, %645 : vector<64x8xf32>
    %cst_341 = arith.constant 1.42141378 : f32
    %651 = vector.broadcast %cst_341 : f32 to vector<64x8xf32>
    %652 = arith.addf %650, %651 : vector<64x8xf32>
    %653 = arith.mulf %652, %645 : vector<64x8xf32>
    %cst_342 = arith.constant -0.284496725 : f32
    %654 = vector.broadcast %cst_342 : f32 to vector<64x8xf32>
    %655 = arith.addf %653, %654 : vector<64x8xf32>
    %656 = arith.mulf %655, %645 : vector<64x8xf32>
    %cst_343 = arith.constant 0.254829586 : f32
    %657 = vector.broadcast %cst_343 : f32 to vector<64x8xf32>
    %658 = arith.addf %656, %657 : vector<64x8xf32>
    %659 = arith.mulf %658, %645 : vector<64x8xf32>
    %cst_344 = arith.constant 0.000000e+00 : f32
    %660 = vector.broadcast %cst_344 : f32 to vector<64x8xf32>
    %661 = arith.subf %660, %640 : vector<64x8xf32>
    %662 = arith.mulf %661, %640 : vector<64x8xf32>
    %663 = math.exp %662 : vector<64x8xf32>
    %664 = arith.mulf %659, %663 : vector<64x8xf32>
    %cst_345 = arith.constant 1.000000e+00 : f32
    %665 = vector.broadcast %cst_345 : f32 to vector<64x8xf32>
    %666 = arith.subf %665, %664 : vector<64x8xf32>
    %667 = arith.mulf %639, %666 : vector<64x8xf32>
    %cst_346 = arith.constant 1.000000e+00 : f32
    %668 = vector.broadcast %cst_346 : f32 to vector<64x8xf32>
    %669 = arith.addf %668, %667 : vector<64x8xf32>
    %670 = arith.mulf %632, %669 : vector<64x8xf32>
    %671 = vector.shape_cast %670 : vector<64x8xf32> to vector<8x8x8xf32>
    %c1_347 = arith.constant 1 : index
    %c1_348 = arith.constant 1 : index
    %c0_349 = arith.constant 0 : index
    %672 = vector.load %arg23[%c1_347, %c1_348, %c0_349] : memref<10x10x8xf32, #tpu.memory_space<vmem>>, vector<8x8x8xf32>
    tpu.vector_store %arg23[%c1_347, %c1_348, %c0_349], %671 {strides = array<i32>} : memref<10x10x8xf32, #tpu.memory_space<vmem>>, vector<8x8x8xf32>,
    %c0_350 = arith.constant 0 : index
    %c0_351 = arith.constant 0 : index
    %c0_352 = arith.constant 0 : index
    %673 = vector.load %arg23[%c0_350, %c0_351, %c0_352] : memref<10x10x8xf32, #tpu.memory_space<vmem>>, vector<10x10x8xf32>
    %cst_353 = arith.constant 0.000000e+00 : f32
    %674 = vector.broadcast %cst_353 : f32 to vector<64x8xf32>
    %675 = vector.extract_strided_slice %673 {offsets = [0, 0, 0], sizes = [8, 8, 8], strides = [1, 1, 1]} : vector<10x10x8xf32> to vector<8x8x8xf32>
    %676 = vector.shape_cast %675 : vector<8x8x8xf32> to vector<64x8xf32>
    %c0_354 = arith.constant 0 : index
    %c0_355 = arith.constant 0 : index
    %c0_356 = arith.constant 0 : index
    %677 = vector.load %arg17[%c0_354, %c0_355, %c0_356] : memref<9x8x8xf32, #tpu.memory_space<vmem>>, vector<1x8x8xf32>
    %678 = vector.shape_cast %677 : vector<1x8x8xf32> to vector<8x8xf32>
    %cst_357 = arith.constant dense<0.000000e+00> : vector<64x8xf32>
    %679 = tpu.matmul %676, %678, %cst_357 {dimension_numbers = #tpu.dot_dimension_numbers<[1], [0], [0], [1], [0, 0, 1, 1], [], []>} : vector<64x8xf32>, vector<8x8xf32>, vector<64x8xf32> -> vector<64x8xf32>
    %680 = arith.addf %674, %679 : vector<64x8xf32>
    %681 = vector.extract_strided_slice %673 {offsets = [0, 1, 0], sizes = [8, 8, 8], strides = [1, 1, 1]} : vector<10x10x8xf32> to vector<8x8x8xf32>
    %682 = vector.shape_cast %681 : vector<8x8x8xf32> to vector<64x8xf32>
    %c1_358 = arith.constant 1 : index
    %c0_359 = arith.constant 0 : index
    %c0_360 = arith.constant 0 : index
    %683 = vector.load %arg17[%c1_358, %c0_359, %c0_360] : memref<9x8x8xf32, #tpu.memory_space<vmem>>, vector<1x8x8xf32>
    %684 = vector.shape_cast %683 : vector<1x8x8xf32> to vector<8x8xf32>
    %cst_361 = arith.constant dense<0.000000e+00> : vector<64x8xf32>
    %685 = tpu.matmul %682, %684, %cst_361 {dimension_numbers = #tpu.dot_dimension_numbers<[1], [0], [0], [1], [0, 0, 1, 1], [], []>} : vector<64x8xf32>, vector<8x8xf32>, vector<64x8xf32> -> vector<64x8xf32>
    %686 = arith.addf %680, %685 : vector<64x8xf32>
    %687 = vector.extract_strided_slice %673 {offsets = [0, 2, 0], sizes = [8, 8, 8], strides = [1, 1, 1]} : vector<10x10x8xf32> to vector<8x8x8xf32>
    %688 = vector.shape_cast %687 : vector<8x8x8xf32> to vector<64x8xf32>
    %c2_362 = arith.constant 2 : index
    %c0_363 = arith.constant 0 : index
    %c0_364 = arith.constant 0 : index
    %689 = vector.load %arg17[%c2_362, %c0_363, %c0_364] : memref<9x8x8xf32, #tpu.memory_space<vmem>>, vector<1x8x8xf32>
    %690 = vector.shape_cast %689 : vector<1x8x8xf32> to vector<8x8xf32>
    %cst_365 = arith.constant dense<0.000000e+00> : vector<64x8xf32>
    %691 = tpu.matmul %688, %690, %cst_365 {dimension_numbers = #tpu.dot_dimension_numbers<[1], [0], [0], [1], [0, 0, 1, 1], [], []>} : vector<64x8xf32>, vector<8x8xf32>, vector<64x8xf32> -> vector<64x8xf32>
    %692 = arith.addf %686, %691 : vector<64x8xf32>
    %693 = vector.extract_strided_slice %673 {offsets = [1, 0, 0], sizes = [8, 8, 8], strides = [1, 1, 1]} : vector<10x10x8xf32> to vector<8x8x8xf32>
    %694 = vector.shape_cast %693 : vector<8x8x8xf32> to vector<64x8xf32>
    %c3_366 = arith.constant 3 : index
    %c0_367 = arith.constant 0 : index
    %c0_368 = arith.constant 0 : index
    %695 = vector.load %arg17[%c3_366, %c0_367, %c0_368] : memref<9x8x8xf32, #tpu.memory_space<vmem>>, vector<1x8x8xf32>
    %696 = vector.shape_cast %695 : vector<1x8x8xf32> to vector<8x8xf32>
    %cst_369 = arith.constant dense<0.000000e+00> : vector<64x8xf32>
    %697 = tpu.matmul %694, %696, %cst_369 {dimension_numbers = #tpu.dot_dimension_numbers<[1], [0], [0], [1], [0, 0, 1, 1], [], []>} : vector<64x8xf32>, vector<8x8xf32>, vector<64x8xf32> -> vector<64x8xf32>
    %698 = arith.addf %692, %697 : vector<64x8xf32>
    %699 = vector.extract_strided_slice %673 {offsets = [1, 1, 0], sizes = [8, 8, 8], strides = [1, 1, 1]} : vector<10x10x8xf32> to vector<8x8x8xf32>
    %700 = vector.shape_cast %699 : vector<8x8x8xf32> to vector<64x8xf32>
    %c4_370 = arith.constant 4 : index
    %c0_371 = arith.constant 0 : index
    %c0_372 = arith.constant 0 : index
    %701 = vector.load %arg17[%c4_370, %c0_371, %c0_372] : memref<9x8x8xf32, #tpu.memory_space<vmem>>, vector<1x8x8xf32>
    %702 = vector.shape_cast %701 : vector<1x8x8xf32> to vector<8x8xf32>
    %cst_373 = arith.constant dense<0.000000e+00> : vector<64x8xf32>
    %703 = tpu.matmul %700, %702, %cst_373 {dimension_numbers = #tpu.dot_dimension_numbers<[1], [0], [0], [1], [0, 0, 1, 1], [], []>} : vector<64x8xf32>, vector<8x8xf32>, vector<64x8xf32> -> vector<64x8xf32>
    %704 = arith.addf %698, %703 : vector<64x8xf32>
    %705 = vector.extract_strided_slice %673 {offsets = [1, 2, 0], sizes = [8, 8, 8], strides = [1, 1, 1]} : vector<10x10x8xf32> to vector<8x8x8xf32>
    %706 = vector.shape_cast %705 : vector<8x8x8xf32> to vector<64x8xf32>
    %c5_374 = arith.constant 5 : index
    %c0_375 = arith.constant 0 : index
    %c0_376 = arith.constant 0 : index
    %707 = vector.load %arg17[%c5_374, %c0_375, %c0_376] : memref<9x8x8xf32, #tpu.memory_space<vmem>>, vector<1x8x8xf32>
    %708 = vector.shape_cast %707 : vector<1x8x8xf32> to vector<8x8xf32>
    %cst_377 = arith.constant dense<0.000000e+00> : vector<64x8xf32>
    %709 = tpu.matmul %706, %708, %cst_377 {dimension_numbers = #tpu.dot_dimension_numbers<[1], [0], [0], [1], [0, 0, 1, 1], [], []>} : vector<64x8xf32>, vector<8x8xf32>, vector<64x8xf32> -> vector<64x8xf32>
    %710 = arith.addf %704, %709 : vector<64x8xf32>
    %711 = vector.extract_strided_slice %673 {offsets = [2, 0, 0], sizes = [8, 8, 8], strides = [1, 1, 1]} : vector<10x10x8xf32> to vector<8x8x8xf32>
    %712 = vector.shape_cast %711 : vector<8x8x8xf32> to vector<64x8xf32>
    %c6_378 = arith.constant 6 : index
    %c0_379 = arith.constant 0 : index
    %c0_380 = arith.constant 0 : index
    %713 = vector.load %arg17[%c6_378, %c0_379, %c0_380] : memref<9x8x8xf32, #tpu.memory_space<vmem>>, vector<1x8x8xf32>
    %714 = vector.shape_cast %713 : vector<1x8x8xf32> to vector<8x8xf32>
    %cst_381 = arith.constant dense<0.000000e+00> : vector<64x8xf32>
    %715 = tpu.matmul %712, %714, %cst_381 {dimension_numbers = #tpu.dot_dimension_numbers<[1], [0], [0], [1], [0, 0, 1, 1], [], []>} : vector<64x8xf32>, vector<8x8xf32>, vector<64x8xf32> -> vector<64x8xf32>
    %716 = arith.addf %710, %715 : vector<64x8xf32>
    %717 = vector.extract_strided_slice %673 {offsets = [2, 1, 0], sizes = [8, 8, 8], strides = [1, 1, 1]} : vector<10x10x8xf32> to vector<8x8x8xf32>
    %718 = vector.shape_cast %717 : vector<8x8x8xf32> to vector<64x8xf32>
    %c7_382 = arith.constant 7 : index
    %c0_383 = arith.constant 0 : index
    %c0_384 = arith.constant 0 : index
    %719 = vector.load %arg17[%c7_382, %c0_383, %c0_384] : memref<9x8x8xf32, #tpu.memory_space<vmem>>, vector<1x8x8xf32>
    %720 = vector.shape_cast %719 : vector<1x8x8xf32> to vector<8x8xf32>
    %cst_385 = arith.constant dense<0.000000e+00> : vector<64x8xf32>
    %721 = tpu.matmul %718, %720, %cst_385 {dimension_numbers = #tpu.dot_dimension_numbers<[1], [0], [0], [1], [0, 0, 1, 1], [], []>} : vector<64x8xf32>, vector<8x8xf32>, vector<64x8xf32> -> vector<64x8xf32>
    %722 = arith.addf %716, %721 : vector<64x8xf32>
    %723 = vector.extract_strided_slice %673 {offsets = [2, 2, 0], sizes = [8, 8, 8], strides = [1, 1, 1]} : vector<10x10x8xf32> to vector<8x8x8xf32>
    %724 = vector.shape_cast %723 : vector<8x8x8xf32> to vector<64x8xf32>
    %c8_386 = arith.constant 8 : index
    %c0_387 = arith.constant 0 : index
    %c0_388 = arith.constant 0 : index
    %725 = vector.load %arg17[%c8_386, %c0_387, %c0_388] : memref<9x8x8xf32, #tpu.memory_space<vmem>>, vector<1x8x8xf32>
    %726 = vector.shape_cast %725 : vector<1x8x8xf32> to vector<8x8xf32>
    %cst_389 = arith.constant dense<0.000000e+00> : vector<64x8xf32>
    %727 = tpu.matmul %724, %726, %cst_389 {dimension_numbers = #tpu.dot_dimension_numbers<[1], [0], [0], [1], [0, 0, 1, 1], [], []>} : vector<64x8xf32>, vector<8x8xf32>, vector<64x8xf32> -> vector<64x8xf32>
    %728 = arith.addf %722, %727 : vector<64x8xf32>
    %c0_390 = arith.constant 0 : index
    %c0_391 = arith.constant 0 : index
    %729 = vector.load %arg18[%c0_390, %c0_391] : memref<1x8xf32, #tpu.memory_space<vmem>>, vector<1x8xf32>
    %c0_392 = arith.constant 0 : index
    %c0_393 = arith.constant 0 : index
    %730 = vector.load %arg19[%c0_392, %c0_393] : memref<1x8xf32, #tpu.memory_space<vmem>>, vector<1x8xf32>
    %731 = vector.shape_cast %728 : vector<64x8xf32> to vector<1x64x8xf32>
    %cst_394 = arith.constant dense<0.000000e+00> : vector<1xf32>
    %732 = vector.multi_reduction <add>, %731, %cst_394 [1, 2] : vector<1x64x8xf32> to vector<1xf32>
    %733 = vector.shape_cast %732 : vector<1xf32> to vector<1x1x1xf32>
    %734 = vector.extract %733[0, 0, 0] : f32 from vector<1x1x1xf32>
    %735 = vector.broadcast %734 : f32 to vector<1x1xf32>
    %736 = arith.mulf %728, %728 : vector<64x8xf32>
    %737 = vector.shape_cast %736 : vector<64x8xf32> to vector<1x64x8xf32>
    %cst_395 = arith.constant dense<0.000000e+00> : vector<1xf32>
    %738 = vector.multi_reduction <add>, %737, %cst_395 [1, 2] : vector<1x64x8xf32> to vector<1xf32>
    %739 = vector.shape_cast %738 : vector<1xf32> to vector<1x1x1xf32>
    %740 = vector.extract %739[0, 0, 0] : f32 from vector<1x1x1xf32>
    %741 = vector.broadcast %740 : f32 to vector<1x1xf32>
    %cst_396 = arith.constant 0.001953125 : f32
    %742 = vector.broadcast %cst_396 : f32 to vector<1x1xf32>
    %743 = arith.mulf %735, %742 : vector<1x1xf32>
    %cst_397 = arith.constant 0.001953125 : f32
    %744 = vector.broadcast %cst_397 : f32 to vector<1x1xf32>
    %745 = arith.mulf %741, %744 : vector<1x1xf32>
    %746 = arith.mulf %743, %743 : vector<1x1xf32>
    %747 = arith.subf %745, %746 : vector<1x1xf32>
    %cst_398 = arith.constant 0.000000e+00 : f32
    %748 = vector.broadcast %cst_398 : f32 to vector<1x1xf32>
    %749 = arith.maximumf %747, %748 : vector<1x1xf32>
    %750 = vector.broadcast %743 : vector<1x1xf32> to vector<64x8xf32>
    %751 = arith.subf %728, %750 : vector<64x8xf32>
    %cst_399 = arith.constant 9.99999974E-6 : f32
    %752 = vector.broadcast %cst_399 : f32 to vector<1x1xf32>
    %753 = arith.addf %749, %752 : vector<1x1xf32>
    %754 = math.rsqrt %753 : vector<1x1xf32>
    %755 = vector.broadcast %754 : vector<1x1xf32> to vector<64x8xf32>
    %756 = arith.mulf %751, %755 : vector<64x8xf32>
    %757 = vector.broadcast %729 : vector<1x8xf32> to vector<64x8xf32>
    %758 = arith.mulf %756, %757 : vector<64x8xf32>
    %759 = vector.broadcast %730 : vector<1x8xf32> to vector<64x8xf32>
    %760 = arith.addf %758, %759 : vector<64x8xf32>
    %761 = vector.shape_cast %760 : vector<64x8xf32> to vector<8x8x8xf32>
    %c0_400 = arith.constant 0 : index
    %c0_401 = arith.constant 0 : index
    %c0_402 = arith.constant 0 : index
    %c0_403 = arith.constant 0 : index
    %762 = vector.load %arg20[%c0_400, %c0_401, %c0_402, %c0_403] : memref<1x8x8x8xf32, #tpu.memory_space<vmem>>, vector<1x8x8x8xf32>
    %763 = vector.shape_cast %762 : vector<1x8x8x8xf32> to vector<8x8x8xf32>
    %764 = vector.shape_cast %761 : vector<8x8x8xf32> to vector<1x8x8x8xf32>
    tpu.vector_store %arg20[%c0_400, %c0_401, %c0_402, %c0_403], %764 {strides = array<i32>} : memref<1x8x8x8xf32, #tpu.memory_space<vmem>>, vector<1x8x8x8xf32>,
    return
  }
  func.func @transform_0(%arg0: i32) -> (i32, i32, i32, i32, i32) {
    %c0_i32 = arith.constant 0 : i32
    %c0_i32_0 = arith.constant 0 : i32
    %c0_i32_1 = arith.constant 0 : i32
    %c0_i32_2 = arith.constant 0 : i32
    %c0_i32_3 = arith.constant 0 : i32
    return %arg0, %c0_i32, %c0_i32_0, %c0_i32_1, %c0_i32_2 : i32, i32, i32, i32, i32
  }
  func.func @transform_1(%arg0: i32) -> (i32, i32, i32) {
    %c0_i32 = arith.constant 0 : i32
    %c0_i32_0 = arith.constant 0 : i32
    %c0_i32_1 = arith.constant 0 : i32
    %c0_i32_2 = arith.constant 0 : i32
    return %c0_i32, %c0_i32_0, %c0_i32_1 : i32, i32, i32
  }
  func.func @transform_2(%arg0: i32) -> (i32, i32) {
    %c0_i32 = arith.constant 0 : i32
    %c0_i32_0 = arith.constant 0 : i32
    %c0_i32_1 = arith.constant 0 : i32
    return %c0_i32, %c0_i32_0 : i32, i32
  }
  func.func @transform_3(%arg0: i32) -> (i32, i32) {
    %c0_i32 = arith.constant 0 : i32
    %c0_i32_0 = arith.constant 0 : i32
    %c0_i32_1 = arith.constant 0 : i32
    return %c0_i32, %c0_i32_0 : i32, i32
  }
  func.func @transform_4(%arg0: i32) -> (i32, i32, i32) {
    %c0_i32 = arith.constant 0 : i32
    %c0_i32_0 = arith.constant 0 : i32
    %c0_i32_1 = arith.constant 0 : i32
    %c0_i32_2 = arith.constant 0 : i32
    return %c0_i32, %c0_i32_0, %c0_i32_1 : i32, i32, i32
  }
  func.func @transform_5(%arg0: i32) -> (i32, i32) {
    %c0_i32 = arith.constant 0 : i32
    %c0_i32_0 = arith.constant 0 : i32
    %c0_i32_1 = arith.constant 0 : i32
    return %c0_i32, %c0_i32_0 : i32, i32
  }
  func.func @transform_6(%arg0: i32) -> (i32, i32) {
    %c0_i32 = arith.constant 0 : i32
    %c0_i32_0 = arith.constant 0 : i32
    %c0_i32_1 = arith.constant 0 : i32
    return %c0_i32, %c0_i32_0 : i32, i32
  }
  func.func @transform_7(%arg0: i32) -> (i32, i32, i32) {
    %c0_i32 = arith.constant 0 : i32
    %c0_i32_0 = arith.constant 0 : i32
    %c0_i32_1 = arith.constant 0 : i32
    %c0_i32_2 = arith.constant 0 : i32
    return %c0_i32, %c0_i32_0, %c0_i32_1 : i32, i32, i32
  }
  func.func @transform_8(%arg0: i32) -> (i32, i32) {
    %c0_i32 = arith.constant 0 : i32
    %c0_i32_0 = arith.constant 0 : i32
    %c0_i32_1 = arith.constant 0 : i32
    return %c0_i32, %c0_i32_0 : i32, i32
  }
  func.func @transform_9(%arg0: i32) -> (i32, i32) {
    %c0_i32 = arith.constant 0 : i32
    %c0_i32_0 = arith.constant 0 : i32
    %c0_i32_1 = arith.constant 0 : i32
    return %c0_i32, %c0_i32_0 : i32, i32
  }
  func.func @transform_10(%arg0: i32) -> (i32, i32, i32) {
    %c0_i32 = arith.constant 0 : i32
    %c0_i32_0 = arith.constant 0 : i32
    %c0_i32_1 = arith.constant 0 : i32
    %c0_i32_2 = arith.constant 0 : i32
    return %c0_i32, %c0_i32_0, %c0_i32_1 : i32, i32, i32
  }
  func.func @transform_11(%arg0: i32) -> (i32, i32) {
    %c0_i32 = arith.constant 0 : i32
    %c0_i32_0 = arith.constant 0 : i32
    %c0_i32_1 = arith.constant 0 : i32
    return %c0_i32, %c0_i32_0 : i32, i32
  }
  func.func @transform_12(%arg0: i32) -> (i32, i32) {
    %c0_i32 = arith.constant 0 : i32
    %c0_i32_0 = arith.constant 0 : i32
    %c0_i32_1 = arith.constant 0 : i32
    return %c0_i32, %c0_i32_0 : i32, i32
  }
  func.func @transform_13(%arg0: i32) -> (i32, i32, i32) {
    %c0_i32 = arith.constant 0 : i32
    %c0_i32_0 = arith.constant 0 : i32
    %c0_i32_1 = arith.constant 0 : i32
    %c0_i32_2 = arith.constant 0 : i32
    return %c0_i32, %c0_i32_0, %c0_i32_1 : i32, i32, i32
  }
  func.func @transform_14(%arg0: i32) -> (i32, i32) {
    %c0_i32 = arith.constant 0 : i32
    %c0_i32_0 = arith.constant 0 : i32
    %c0_i32_1 = arith.constant 0 : i32
    return %c0_i32, %c0_i32_0 : i32, i32
  }
  func.func @transform_15(%arg0: i32) -> (i32, i32) {
    %c0_i32 = arith.constant 0 : i32
    %c0_i32_0 = arith.constant 0 : i32
    %c0_i32_1 = arith.constant 0 : i32
    return %c0_i32, %c0_i32_0 : i32, i32
  }
  func.func @transform_16(%arg0: i32) -> (i32, i32, i32) {
    %c0_i32 = arith.constant 0 : i32
    %c0_i32_0 = arith.constant 0 : i32
    %c0_i32_1 = arith.constant 0 : i32
    %c0_i32_2 = arith.constant 0 : i32
    return %c0_i32, %c0_i32_0, %c0_i32_1 : i32, i32, i32
  }
  func.func @transform_17(%arg0: i32) -> (i32, i32) {
    %c0_i32 = arith.constant 0 : i32
    %c0_i32_0 = arith.constant 0 : i32
    %c0_i32_1 = arith.constant 0 : i32
    return %c0_i32, %c0_i32_0 : i32, i32
  }
  func.func @transform_18(%arg0: i32) -> (i32, i32) {
    %c0_i32 = arith.constant 0 : i32
    %c0_i32_0 = arith.constant 0 : i32
    %c0_i32_1 = arith.constant 0 : i32
    return %c0_i32, %c0_i32_0 : i32, i32
  }
  func.func @transform_19(%arg0: i32) -> (i32, i32, i32, i32) {
    %c0_i32 = arith.constant 0 : i32
    %c0_i32_0 = arith.constant 0 : i32
    %c0_i32_1 = arith.constant 0 : i32
    %c0_i32_2 = arith.constant 0 : i32
    return %arg0, %c0_i32, %c0_i32_0, %c0_i32_1 : i32, i32, i32, i32
  }
}

</mosaic_0001>

<llo_original>
// kernel: down_forward.1
$region0: #{down_forward.1}
  #allocation0 [shape = 'u32[]', space=smem, size = 0x4, offset = 0x4, fixed_abs, tag = 'smem constant byte address 0x4 - core index']
  #allocation1 [shape = 'u32[144,128]{1,0:T(1,128)}', space=vmem, size = 0x12000, scoped, tag = 'internal scratch']
  #allocation2 [shape = 'f32[10,10,4]{2,1,0:T(8,128)}', space=vmem, size = 0x14000, scoped, tag = 'scratch operand']
  #allocation3 [shape = 'f32[10,10,4]{2,1,0:T(8,128)}', space=vmem, size = 0x14000, scoped, tag = 'scratch operand']
  #allocation4 [shape = 'f32[10,10,8]{2,1,0:T(8,128)}', space=vmem, size = 0x14000, scoped, tag = 'scratch operand']
  %s0 = inlined_call_operand.vmem [shape: f32[2,8,2,8,8], index: 0, kind: input, shape index: {}]
  %s1 = inlined_call_operand.vmem [shape: f32[9,4,4], index: 1, kind: input, shape index: {}]
  %s2 = inlined_call_operand.vmem [shape: f32[1,4], index: 2, kind: input, shape index: {}]
  %s3 = inlined_call_operand.vmem [shape: f32[1,4], index: 3, kind: input, shape index: {}]
  %s4 = inlined_call_operand.vmem [shape: f32[9,4,4], index: 4, kind: input, shape index: {}]
  %s5 = inlined_call_operand.vmem [shape: f32[1,4], index: 5, kind: input, shape index: {}]
  %s6 = inlined_call_operand.vmem [shape: f32[1,4], index: 6, kind: input, shape index: {}]
  %s7 = inlined_call_operand.vmem [shape: f32[9,4,4], index: 7, kind: input, shape index: {}]
  %s8 = inlined_call_operand.vmem [shape: f32[1,4], index: 8, kind: input, shape index: {}]
  %s9 = inlined_call_operand.vmem [shape: f32[1,4], index: 9, kind: input, shape index: {}]
  %s10 = inlined_call_operand.vmem [shape: f32[9,4,4], index: 10, kind: input, shape index: {}]
  %s11 = inlined_call_operand.vmem [shape: f32[1,4], index: 11, kind: input, shape index: {}]
  %s12 = inlined_call_operand.vmem [shape: f32[1,4], index: 12, kind: input, shape index: {}]
  %s13 = inlined_call_operand.vmem [shape: f32[9,4,8], index: 13, kind: input, shape index: {}]
  %s14 = inlined_call_operand.vmem [shape: f32[1,8], index: 14, kind: input, shape index: {}]
  %s15 = inlined_call_operand.vmem [shape: f32[1,8], index: 15, kind: input, shape index: {}]
  %s16 = inlined_call_operand.vmem [shape: f32[9,8,8], index: 16, kind: input, shape index: {}]
  %s17 = inlined_call_operand.vmem [shape: f32[1,8], index: 17, kind: input, shape index: {}]
  %s18 = inlined_call_operand.vmem [shape: f32[1,8], index: 18, kind: input, shape index: {}]
  %s19 = inlined_call_operand.vmem [shape: f32[2,8,8,8], index: 19, kind: output, shape index: {}]
  %s20 = sld [smem:[#allocation0]]
  $region109: #{down_forward.1} parent=0
    _
  %s22 = ssub.s32 1, %s20
  %s23 = scalar_select 0, %s22, %s20
  loop: start=0, step=1, limit=4
  $region2: #{down_forward.1} parent=0 // loop_pre_header
    _
  $region3: #{down_forward.1} parent=0 // loop_header
    %s25 = sphi 0, %s29
    %p26 = scmp.ge.s32.totalorder %s25, 4
    %s35 = sphi 0, %s37
    %s38 = sphi 0, %s35
    %s39 = sphi 0, %s38
    %s55 = sphi 0, %s39
    %s59 = sphi 0, %s59
    %s61 = sphi 0, %s59
    %s62 = sphi 0, %s61
    %s76 = sphi 0, %s62
    %s80 = sphi 0, %s80
    %s82 = sphi 0, %s80
    %s83 = sphi 0, %s82
    %s97 = sphi 0, %s83
    %s101 = sphi 0, %s101
    %s103 = sphi 0, %s101
    %s104 = sphi 0, %s103
    %s118 = sphi 0, %s104
    %s122 = sphi 0, %s122
    %s124 = sphi 0, %s122
    %s125 = sphi 0, %s124
    %s139 = sphi 0, %s125
    %s143 = sphi 0, %s143
    %s145 = sphi 0, %s143
    %s146 = sphi 0, %s145
    %s160 = sphi 0, %s146
    %s164 = sphi 0, %s164
    %s166 = sphi 0, %s164
    %s167 = sphi 0, %s166
    %s181 = sphi 0, %s167
    %s185 = sphi 0, %s185
    %s187 = sphi 0, %s185
    %s188 = sphi 0, %s187
    %s202 = sphi 0, %s188
    %s206 = sphi 0, %s206
    %s208 = sphi 0, %s206
    %s209 = sphi 0, %s208
    %s223 = sphi 0, %s209
    %s227 = sphi 0, %s227
    %s229 = sphi 0, %s227
    %s230 = sphi 0, %s229
    %s244 = sphi 0, %s230
    %s248 = sphi 0, %s248
    %s250 = sphi 0, %s248
    %s251 = sphi 0, %s250
    %s265 = sphi 0, %s251
    %s269 = sphi 0, %s269
    %s271 = sphi 0, %s269
    %s272 = sphi 0, %s271
    %s286 = sphi 0, %s272
    %s290 = sphi 0, %s290
    %s292 = sphi 0, %s290
    %s293 = sphi 0, %s292
    %s307 = sphi 0, %s293
    %s311 = sphi 0, %s311
    %s313 = sphi 0, %s311
    %s314 = sphi 0, %s313
    %s328 = sphi 0, %s314
    %s332 = sphi 0, %s332
    %s334 = sphi 0, %s332
    %s335 = sphi 0, %s334
    %s349 = sphi 0, %s335
    %s353 = sphi 0, %s353
    %s355 = sphi 0, %s353
    %s356 = sphi 0, %s355
    %s370 = sphi 0, %s356
    %s374 = sphi 0, %s374
    %s376 = sphi 0, %s374
    %s377 = sphi 0, %s376
    %s391 = sphi 0, %s377
    %s395 = sphi 0, %s395
    %s397 = sphi 0, %s395
    %s398 = sphi 0, %s397
    %s412 = sphi 0, %s398
    %s416 = sphi 0, %s416
    %s418 = sphi 0, %s416
    %s419 = sphi 0, %s418
    %s433 = sphi 0, %s419
    %s439 = sphi 0, %s441
    %s442 = sphi 0, %s439
    %s443 = sphi 0, %s442
    %s459 = sphi 0, %s443
  $region4: #{down_forward.1} parent=0 // loop_header_branch
    %28 = sbr.rel (%p26) target = $region8
  $region5: #{down_forward.1} parent=0 // loop_body
    %s30 = ssub.s32 %s25, 1
    %s31 = ssub.s32 %s25, 2
    %s32 = sadd.s32 %s25, 1
    %s33 = ssub.s32 %s25, %s32
    %p34 = scmp.eq.s32.totalorder %s33, 0
    %s36 = sadd.s32 %s35, 1
    %s37 = scalar_select %p34, %s35, %s36
    %p40 = pneg %p34
    %p41 = scmp.eq.s32.totalorder %s25, 1
    %p42 = por %p40, %p41
    %p43 = scmp.ne.s32.totalorder %s35, %s38
    %p44 = scmp.eq.s32.totalorder %s25, 0
    %p45 = por %p43, %p44
    %p46 = scmp.ne.s32.totalorder %s35, %s38
    %p47 = scmp.eq.s32.totalorder %s30, 1
    %p48 = por %p46, %p47
    %p49 = scmp.ne.s32.totalorder %s38, %s39
    %p50 = scmp.eq.s32.totalorder %s30, 0
    %p51 = por %p49, %p50
    %p52 = scmp.ne.s32.totalorder %s38, %s39
    %p53 = scmp.eq.s32.totalorder %s31, 1
    %p54 = por %p52, %p53
    %p56 = scmp.ne.s32.totalorder %s39, %s55
    %p57 = scmp.eq.s32.totalorder %s31, 0
    %p58 = por %p56, %p57
    %s60 = sadd.s32 %s59, 1
    %p63 = scmp.eq.s32.totalorder %s25, 1
    %p64 = scmp.ne.s32.totalorder %s59, %s61
    %p65 = scmp.eq.s32.totalorder %s25, 0
    %p66 = por %p64, %p65
    %p67 = scmp.ne.s32.totalorder %s59, %s61
    %p68 = scmp.eq.s32.totalorder %s30, 1
    %p69 = por %p67, %p68
    %p70 = scmp.ne.s32.totalorder %s61, %s62
    %p71 = scmp.eq.s32.totalorder %s30, 0
    %p72 = por %p70, %p71
    %p73 = scmp.ne.s32.totalorder %s61, %s62
    %p74 = scmp.eq.s32.totalorder %s31, 1
    %p75 = por %p73, %p74
    %p77 = scmp.ne.s32.totalorder %s62, %s76
    %p78 = scmp.eq.s32.totalorder %s31, 0
    %p79 = por %p77, %p78
    %s81 = sadd.s32 %s80, 1
    %p84 = scmp.eq.s32.totalorder %s25, 1
    %p85 = scmp.ne.s32.totalorder %s80, %s82
    %p86 = scmp.eq.s32.totalorder %s25, 0
    %p87 = por %p85, %p86
    %p88 = scmp.ne.s32.totalorder %s80, %s82
    %p89 = scmp.eq.s32.totalorder %s30, 1
    %p90 = por %p88, %p89
    %p91 = scmp.ne.s32.totalorder %s82, %s83
    %p92 = scmp.eq.s32.totalorder %s30, 0
    %p93 = por %p91, %p92
    %p94 = scmp.ne.s32.totalorder %s82, %s83
    %p95 = scmp.eq.s32.totalorder %s31, 1
    %p96 = por %p94, %p95
    %p98 = scmp.ne.s32.totalorder %s83, %s97
    %p99 = scmp.eq.s32.totalorder %s31, 0
    %p100 = por %p98, %p99
    %s102 = sadd.s32 %s101, 1
    %p105 = scmp.eq.s32.totalorder %s25, 1
    %p106 = scmp.ne.s32.totalorder %s101, %s103
    %p107 = scmp.eq.s32.totalorder %s25, 0
    %p108 = por %p106, %p107
    %p109 = scmp.ne.s32.totalorder %s101, %s103
    %p110 = scmp.eq.s32.totalorder %s30, 1
    %p111 = por %p109, %p110
    %p112 = scmp.ne.s32.totalorder %s103, %s104
    %p113 = scmp.eq.s32.totalorder %s30, 0
    %p114 = por %p112, %p113
    %p115 = scmp.ne.s32.totalorder %s103, %s104
    %p116 = scmp.eq.s32.totalorder %s31, 1
    %p117 = por %p115, %p116
    %p119 = scmp.ne.s32.totalorder %s104, %s118
    %p120 = scmp.eq.s32.totalorder %s31, 0
    %p121 = por %p119, %p120
    %s123 = sadd.s32 %s122, 1
    %p126 = scmp.eq.s32.totalorder %s25, 1
    %p127 = scmp.ne.s32.totalorder %s122, %s124
    %p128 = scmp.eq.s32.totalorder %s25, 0
    %p129 = por %p127, %p128
    %p130 = scmp.ne.s32.totalorder %s122, %s124
    %p131 = scmp.eq.s32.totalorder %s30, 1
    %p132 = por %p130, %p131
    %p133 = scmp.ne.s32.totalorder %s124, %s125
    %p134 = scmp.eq.s32.totalorder %s30, 0
    %p135 = por %p133, %p134
    %p136 = scmp.ne.s32.totalorder %s124, %s125
    %p137 = scmp.eq.s32.totalorder %s31, 1
    %p138 = por %p136, %p137
    %p140 = scmp.ne.s32.totalorder %s125, %s139
    %p141 = scmp.eq.s32.totalorder %s31, 0
    %p142 = por %p140, %p141
    %s144 = sadd.s32 %s143, 1
    %p147 = scmp.eq.s32.totalorder %s25, 1
    %p148 = scmp.ne.s32.totalorder %s143, %s145
    %p149 = scmp.eq.s32.totalorder %s25, 0
    %p150 = por %p148, %p149
    %p151 = scmp.ne.s32.totalorder %s143, %s145
    %p152 = scmp.eq.s32.totalorder %s30, 1
    %p153 = por %p151, %p152
    %p154 = scmp.ne.s32.totalorder %s145, %s146
    %p155 = scmp.eq.s32.totalorder %s30, 0
    %p156 = por %p154, %p155
    %p157 = scmp.ne.s32.totalorder %s145, %s146
    %p158 = scmp.eq.s32.totalorder %s31, 1
    %p159 = por %p157, %p158
    %p161 = scmp.ne.s32.totalorder %s146, %s160
    %p162 = scmp.eq.s32.totalorder %s31, 0
    %p163 = por %p161, %p162
    %s165 = sadd.s32 %s164, 1
    %p168 = scmp.eq.s32.totalorder %s25, 1
    %p169 = scmp.ne.s32.totalorder %s164, %s166
    %p170 = scmp.eq.s32.totalorder %s25, 0
    %p171 = por %p169, %p170
    %p172 = scmp.ne.s32.totalorder %s164, %s166
    %p173 = scmp.eq.s32.totalorder %s30, 1
    %p174 = por %p172, %p173
    %p175 = scmp.ne.s32.totalorder %s166, %s167
    %p176 = scmp.eq.s32.totalorder %s30, 0
    %p177 = por %p175, %p176
    %p178 = scmp.ne.s32.totalorder %s166, %s167
    %p179 = scmp.eq.s32.totalorder %s31, 1
    %p180 = por %p178, %p179
    %p182 = scmp.ne.s32.totalorder %s167, %s181
    %p183 = scmp.eq.s32.totalorder %s31, 0
    %p184 = por %p182, %p183
    %s186 = sadd.s32 %s185, 1
    %p189 = scmp.eq.s32.totalorder %s25, 1
    %p190 = scmp.ne.s32.totalorder %s185, %s187
    %p191 = scmp.eq.s32.totalorder %s25, 0
    %p192 = por %p190, %p191
    %p193 = scmp.ne.s32.totalorder %s185, %s187
    %p194 = scmp.eq.s32.totalorder %s30, 1
    %p195 = por %p193, %p194
    %p196 = scmp.ne.s32.totalorder %s187, %s188
    %p197 = scmp.eq.s32.totalorder %s30, 0
    %p198 = por %p196, %p197
    %p199 = scmp.ne.s32.totalorder %s187, %s188
    %p200 = scmp.eq.s32.totalorder %s31, 1
    %p201 = por %p199, %p200
    %p203 = scmp.ne.s32.totalorder %s188, %s202
    %p204 = scmp.eq.s32.totalorder %s31, 0
    %p205 = por %p203, %p204
    %s207 = sadd.s32 %s206, 1
    %p210 = scmp.eq.s32.totalorder %s25, 1
    %p211 = scmp.ne.s32.totalorder %s206, %s208
    %p212 = scmp.eq.s32.totalorder %s25, 0
    %p213 = por %p211, %p212
    %p214 = scmp.ne.s32.totalorder %s206, %s208
    %p215 = scmp.eq.s32.totalorder %s30, 1
    %p216 = por %p214, %p215
    %p217 = scmp.ne.s32.totalorder %s208, %s209
    %p218 = scmp.eq.s32.totalorder %s30, 0
    %p219 = por %p217, %p218
    %p220 = scmp.ne.s32.totalorder %s208, %s209
    %p221 = scmp.eq.s32.totalorder %s31, 1
    %p222 = por %p220, %p221
    %p224 = scmp.ne.s32.totalorder %s209, %s223
    %p225 = scmp.eq.s32.totalorder %s31, 0
    %p226 = por %p224, %p225
    %s228 = sadd.s32 %s227, 1
    %p231 = scmp.eq.s32.totalorder %s25, 1
    %p232 = scmp.ne.s32.totalorder %s227, %s229
    %p233 = scmp.eq.s32.totalorder %s25, 0
    %p234 = por %p232, %p233
    %p235 = scmp.ne.s32.totalorder %s227, %s229
    %p236 = scmp.eq.s32.totalorder %s30, 1
    %p237 = por %p235, %p236
    %p238 = scmp.ne.s32.totalorder %s229, %s230
    %p239 = scmp.eq.s32.totalorder %s30, 0
    %p240 = por %p238, %p239
    %p241 = scmp.ne.s32.totalorder %s229, %s230
    %p242 = scmp.eq.s32.totalorder %s31, 1
    %p243 = por %p241, %p242
    %p245 = scmp.ne.s32.totalorder %s230, %s244
    %p246 = scmp.eq.s32.totalorder %s31, 0
    %p247 = por %p245, %p246
    %s249 = sadd.s32 %s248, 1
    %p252 = scmp.eq.s32.totalorder %s25, 1
    %p253 = scmp.ne.s32.totalorder %s248, %s250
    %p254 = scmp.eq.s32.totalorder %s25, 0
    %p255 = por %p253, %p254
    %p256 = scmp.ne.s32.totalorder %s248, %s250
    %p257 = scmp.eq.s32.totalorder %s30, 1
    %p258 = por %p256, %p257
    %p259 = scmp.ne.s32.totalorder %s250, %s251
    %p260 = scmp.eq.s32.totalorder %s30, 0
    %p261 = por %p259, %p260
    %p262 = scmp.ne.s32.totalorder %s250, %s251
    %p263 = scmp.eq.s32.totalorder %s31, 1
    %p264 = por %p262, %p263
    %p266 = scmp.ne.s32.totalorder %s251, %s265
    %p267 = scmp.eq.s32.totalorder %s31, 0
    %p268 = por %p266, %p267
    %s270 = sadd.s32 %s269, 1
    %p273 = scmp.eq.s32.totalorder %s25, 1
    %p274 = scmp.ne.s32.totalorder %s269, %s271
    %p275 = scmp.eq.s32.totalorder %s25, 0
    %p276 = por %p274, %p275
    %p277 = scmp.ne.s32.totalorder %s269, %s271
    %p278 = scmp.eq.s32.totalorder %s30, 1
    %p279 = por %p277, %p278
    %p280 = scmp.ne.s32.totalorder %s271, %s272
    %p281 = scmp.eq.s32.totalorder %s30, 0
    %p282 = por %p280, %p281
    %p283 = scmp.ne.s32.totalorder %s271, %s272
    %p284 = scmp.eq.s32.totalorder %s31, 1
    %p285 = por %p283, %p284
    %p287 = scmp.ne.s32.totalorder %s272, %s286
    %p288 = scmp.eq.s32.totalorder %s31, 0
    %p289 = por %p287, %p288
    %s291 = sadd.s32 %s290, 1
    %p294 = scmp.eq.s32.totalorder %s25, 1
    %p295 = scmp.ne.s32.totalorder %s290, %s292
    %p296 = scmp.eq.s32.totalorder %s25, 0
    %p297 = por %p295, %p296
    %p298 = scmp.ne.s32.totalorder %s290, %s292
    %p299 = scmp.eq.s32.totalorder %s30, 1
    %p300 = por %p298, %p299
    %p301 = scmp.ne.s32.totalorder %s292, %s293
    %p302 = scmp.eq.s32.totalorder %s30, 0
    %p303 = por %p301, %p302
    %p304 = scmp.ne.s32.totalorder %s292, %s293
    %p305 = scmp.eq.s32.totalorder %s31, 1
    %p306 = por %p304, %p305
    %p308 = scmp.ne.s32.totalorder %s293, %s307
    %p309 = scmp.eq.s32.totalorder %s31, 0
    %p310 = por %p308, %p309
    %s312 = sadd.s32 %s311, 1
    %p315 = scmp.eq.s32.totalorder %s25, 1
    %p316 = scmp.ne.s32.totalorder %s311, %s313
    %p317 = scmp.eq.s32.totalorder %s25, 0
    %p318 = por %p316, %p317
    %p319 = scmp.ne.s32.totalorder %s311, %s313
    %p320 = scmp.eq.s32.totalorder %s30, 1
    %p321 = por %p319, %p320
    %p322 = scmp.ne.s32.totalorder %s313, %s314
    %p323 = scmp.eq.s32.totalorder %s30, 0
    %p324 = por %p322, %p323
    %p325 = scmp.ne.s32.totalorder %s313, %s314
    %p326 = scmp.eq.s32.totalorder %s31, 1
    %p327 = por %p325, %p326
    %p329 = scmp.ne.s32.totalorder %s314, %s328
    %p330 = scmp.eq.s32.totalorder %s31, 0
    %p331 = por %p329, %p330
    %s333 = sadd.s32 %s332, 1
    %p336 = scmp.eq.s32.totalorder %s25, 1
    %p337 = scmp.ne.s32.totalorder %s332, %s334
    %p338 = scmp.eq.s32.totalorder %s25, 0
    %p339 = por %p337, %p338
    %p340 = scmp.ne.s32.totalorder %s332, %s334
    %p341 = scmp.eq.s32.totalorder %s30, 1
    %p342 = por %p340, %p341
    %p343 = scmp.ne.s32.totalorder %s334, %s335
    %p344 = scmp.eq.s32.totalorder %s30, 0
    %p345 = por %p343, %p344
    %p346 = scmp.ne.s32.totalorder %s334, %s335
    %p347 = scmp.eq.s32.totalorder %s31, 1
    %p348 = por %p346, %p347
    %p350 = scmp.ne.s32.totalorder %s335, %s349
    %p351 = scmp.eq.s32.totalorder %s31, 0
    %p352 = por %p350, %p351
    %s354 = sadd.s32 %s353, 1
    %p357 = scmp.eq.s32.totalorder %s25, 1
    %p358 = scmp.ne.s32.totalorder %s353, %s355
    %p359 = scmp.eq.s32.totalorder %s25, 0
    %p360 = por %p358, %p359
    %p361 = scmp.ne.s32.totalorder %s353, %s355
    %p362 = scmp.eq.s32.totalorder %s30, 1
    %p363 = por %p361, %p362
    %p364 = scmp.ne.s32.totalorder %s355, %s356
    %p365 = scmp.eq.s32.totalorder %s30, 0
    %p366 = por %p364, %p365
    %p367 = scmp.ne.s32.totalorder %s355, %s356
    %p368 = scmp.eq.s32.totalorder %s31, 1
    %p369 = por %p367, %p368
    %p371 = scmp.ne.s32.totalorder %s356, %s370
    %p372 = scmp.eq.s32.totalorder %s31, 0
    %p373 = por %p371, %p372
    %s375 = sadd.s32 %s374, 1
    %p378 = scmp.eq.s32.totalorder %s25, 1
    %p379 = scmp.ne.s32.totalorder %s374, %s376
    %p380 = scmp.eq.s32.totalorder %s25, 0
    %p381 = por %p379, %p380
    %p382 = scmp.ne.s32.totalorder %s374, %s376
    %p383 = scmp.eq.s32.totalorder %s30, 1
    %p384 = por %p382, %p383
    %p385 = scmp.ne.s32.totalorder %s376, %s377
    %p386 = scmp.eq.s32.totalorder %s30, 0
    %p387 = por %p385, %p386
    %p388 = scmp.ne.s32.totalorder %s376, %s377
    %p389 = scmp.eq.s32.totalorder %s31, 1
    %p390 = por %p388, %p389
    %p392 = scmp.ne.s32.totalorder %s377, %s391
    %p393 = scmp.eq.s32.totalorder %s31, 0
    %p394 = por %p392, %p393
    %s396 = sadd.s32 %s395, 1
    %p399 = scmp.eq.s32.totalorder %s25, 1
    %p400 = scmp.ne.s32.totalorder %s395, %s397
    %p401 = scmp.eq.s32.totalorder %s25, 0
    %p402 = por %p400, %p401
    %p403 = scmp.ne.s32.totalorder %s395, %s397
    %p404 = scmp.eq.s32.totalorder %s30, 1
    %p405 = por %p403, %p404
    %p406 = scmp.ne.s32.totalorder %s397, %s398
    %p407 = scmp.eq.s32.totalorder %s30, 0
    %p408 = por %p406, %p407
    %p409 = scmp.ne.s32.totalorder %s397, %s398
    %p410 = scmp.eq.s32.totalorder %s31, 1
    %p411 = por %p409, %p410
    %p413 = scmp.ne.s32.totalorder %s398, %s412
    %p414 = scmp.eq.s32.totalorder %s31, 0
    %p415 = por %p413, %p414
    %s417 = sadd.s32 %s416, 1
    %p420 = scmp.eq.s32.totalorder %s25, 1
    %p421 = scmp.ne.s32.totalorder %s416, %s418
    %p422 = scmp.eq.s32.totalorder %s25, 0
    %p423 = por %p421, %p422
    %p424 = scmp.ne.s32.totalorder %s416, %s418
    %p425 = scmp.eq.s32.totalorder %s30, 1
    %p426 = por %p424, %p425
    %p427 = scmp.ne.s32.totalorder %s418, %s419
    %p428 = scmp.eq.s32.totalorder %s30, 0
    %p429 = por %p427, %p428
    %p430 = scmp.ne.s32.totalorder %s418, %s419
    %p431 = scmp.eq.s32.totalorder %s31, 1
    %p432 = por %p430, %p431
    %p434 = scmp.ne.s32.totalorder %s419, %s433
    %p435 = scmp.eq.s32.totalorder %s31, 0
    %p436 = por %p434, %p435
    %s437 = ssub.s32 %s25, %s32
    %p438 = scmp.eq.s32.totalorder %s437, 0
    %s440 = sadd.s32 %s439, 1
    %s441 = scalar_select %p438, %s439, %s440
    %p444 = pneg %p438
    %p445 = scmp.eq.s32.totalorder %s25, 1
    %p446 = por %p444, %p445
    %p447 = scmp.ne.s32.totalorder %s439, %s442
    %p448 = scmp.eq.s32.totalorder %s25, 0
    %p449 = por %p447, %p448
    %p450 = scmp.ne.s32.totalorder %s439, %s442
    %p451 = scmp.eq.s32.totalorder %s30, 1
    %p452 = por %p450, %p451
    %p453 = scmp.ne.s32.totalorder %s442, %s443
    %p454 = scmp.eq.s32.totalorder %s30, 0
    %p455 = por %p453, %p454
    %p456 = scmp.ne.s32.totalorder %s442, %s443
    %p457 = scmp.eq.s32.totalorder %s31, 1
    %p458 = por %p456, %p457
    %p460 = scmp.ne.s32.totalorder %s443, %s459
    %p461 = scmp.eq.s32.totalorder %s31, 0
    %p462 = por %p460, %p461
    %p463 = scmp.le.s32.totalorder 1, %s25
    %p464 = scmp.lt.s32.totalorder %s25, 3
    %p465 = pnand %p463, %p464
    %p466 = pneg %p465
    // Predicated region
    $region9: #{down_forward.1} parent=5 // pred_check
      _
    $region10: #{down_forward.1} parent=5 // pred_check_branch
      %468 = sbr.rel (%p465) target = $region12
    $region11: #{down_forward.1} parent=5 // pred_region
      %s469 = ssub.s32 %s25, 1
      // Predicated region
      $region13: #{down_forward.1} parent=11 // pred_check
        %p470 = pneg %p72
      $region14: #{down_forward.1} parent=11 // pred_check_branch
        %472 = sbr.rel (%p470) target = $region16
      $region15: #{down_forward.1} parent=11 // pred_region
        _
      $region16: #{down_forward.1} parent=11 // pred_fallthru
        _
      // Predicated region
      $region17: #{down_forward.1} parent=11 // pred_check
        %p473 = pneg %p93
      $region18: #{down_forward.1} parent=11 // pred_check_branch
        %475 = sbr.rel (%p473) target = $region20
      $region19: #{down_forward.1} parent=11 // pred_region
        _
      $region20: #{down_forward.1} parent=11 // pred_fallthru
        _
      // Predicated region
      $region21: #{down_forward.1} parent=11 // pred_check
        %p476 = pneg %p114
      $region22: #{down_forward.1} parent=11 // pred_check_branch
        %478 = sbr.rel (%p476) target = $region24
      $region23: #{down_forward.1} parent=11 // pred_region
        _
      $region24: #{down_forward.1} parent=11 // pred_fallthru
        _
      // Predicated region
      $region25: #{down_forward.1} parent=11 // pred_check
        %p479 = pneg %p135
      $region26: #{down_forward.1} parent=11 // pred_check_branch
        %481 = sbr.rel (%p479) target = $region28
      $region27: #{down_forward.1} parent=11 // pred_region
        _
      $region28: #{down_forward.1} parent=11 // pred_fallthru
        _
      // Predicated region
      $region29: #{down_forward.1} parent=11 // pred_check
        %p482 = pneg %p156
      $region30: #{down_forward.1} parent=11 // pred_check_branch
        %484 = sbr.rel (%p482) target = $region32
      $region31: #{down_forward.1} parent=11 // pred_region
        _
      $region32: #{down_forward.1} parent=11 // pred_fallthru
        _
      // Predicated region
      $region33: #{down_forward.1} parent=11 // pred_check
        %p485 = pneg %p177
      $region34: #{down_forward.1} parent=11 // pred_check_branch
        %487 = sbr.rel (%p485) target = $region36
      $region35: #{down_forward.1} parent=11 // pred_region
        _
      $region36: #{down_forward.1} parent=11 // pred_fallthru
        _
      // Predicated region
      $region37: #{down_forward.1} parent=11 // pred_check
        %p488 = pneg %p198
      $region38: #{down_forward.1} parent=11 // pred_check_branch
        %490 = sbr.rel (%p488) target = $region40
      $region39: #{down_forward.1} parent=11 // pred_region
        _
      $region40: #{down_forward.1} parent=11 // pred_fallthru
        _
      // Predicated region
      $region41: #{down_forward.1} parent=11 // pred_check
        %p491 = pneg %p219
      $region42: #{down_forward.1} parent=11 // pred_check_branch
        %493 = sbr.rel (%p491) target = $region44
      $region43: #{down_forward.1} parent=11 // pred_region
        _
      $region44: #{down_forward.1} parent=11 // pred_fallthru
        _
      // Predicated region
      $region45: #{down_forward.1} parent=11 // pred_check
        %p494 = pneg %p240
      $region46: #{down_forward.1} parent=11 // pred_check_branch
        %496 = sbr.rel (%p494) target = $region48
      $region47: #{down_forward.1} parent=11 // pred_region
        _
      $region48: #{down_forward.1} parent=11 // pred_fallthru
        _
      // Predicated region
      $region49: #{down_forward.1} parent=11 // pred_check
        %p497 = pneg %p261
      $region50: #{down_forward.1} parent=11 // pred_check_branch
        %499 = sbr.rel (%p497) target = $region52
      $region51: #{down_forward.1} parent=11 // pred_region
        _
      $region52: #{down_forward.1} parent=11 // pred_fallthru
        _
      // Predicated region
      $region53: #{down_forward.1} parent=11 // pred_check
        %p500 = pneg %p282
      $region54: #{down_forward.1} parent=11 // pred_check_branch
        %502 = sbr.rel (%p500) target = $region56
      $region55: #{down_forward.1} parent=11 // pred_region
        _
      $region56: #{down_forward.1} parent=11 // pred_fallthru
        _
      // Predicated region
      $region57: #{down_forward.1} parent=11 // pred_check
        %p503 = pneg %p303
      $region58: #{down_forward.1} parent=11 // pred_check_branch
        %505 = sbr.rel (%p503) target = $region60
      $region59: #{down_forward.1} parent=11 // pred_region
        _
      $region60: #{down_forward.1} parent=11 // pred_fallthru
        _
      // Predicated region
      $region61: #{down_forward.1} parent=11 // pred_check
        %p506 = pneg %p324
      $region62: #{down_forward.1} parent=11 // pred_check_branch
        %508 = sbr.rel (%p506) target = $region64
      $region63: #{down_forward.1} parent=11 // pred_region
        _
      $region64: #{down_forward.1} parent=11 // pred_fallthru
        _
      // Predicated region
      $region65: #{down_forward.1} parent=11 // pred_check
        %p509 = pneg %p345
      $region66: #{down_forward.1} parent=11 // pred_check_branch
        %511 = sbr.rel (%p509) target = $region68
      $region67: #{down_forward.1} parent=11 // pred_region
        _
      $region68: #{down_forward.1} parent=11 // pred_fallthru
        _
      // Predicated region
      $region69: #{down_forward.1} parent=11 // pred_check
        %p512 = pneg %p366
      $region70: #{down_forward.1} parent=11 // pred_check_branch
        %514 = sbr.rel (%p512) target = $region72
      $region71: #{down_forward.1} parent=11 // pred_region
        _
      $region72: #{down_forward.1} parent=11 // pred_fallthru
        _
      // Predicated region
      $region73: #{down_forward.1} parent=11 // pred_check
        %p515 = pneg %p387
      $region74: #{down_forward.1} parent=11 // pred_check_branch
        %517 = sbr.rel (%p515) target = $region76
      $region75: #{down_forward.1} parent=11 // pred_region
        _
      $region76: #{down_forward.1} parent=11 // pred_fallthru
        _
      // Predicated region
      $region77: #{down_forward.1} parent=11 // pred_check
        %p518 = pneg %p408
      $region78: #{down_forward.1} parent=11 // pred_check_branch
        %520 = sbr.rel (%p518) target = $region80
      $region79: #{down_forward.1} parent=11 // pred_region
        _
      $region80: #{down_forward.1} parent=11 // pred_fallthru
        _
      // Predicated region
      $region81: #{down_forward.1} parent=11 // pred_check
        %p521 = pneg %p429
      $region82: #{down_forward.1} parent=11 // pred_check_branch
        %523 = sbr.rel (%p521) target = $region84
      $region83: #{down_forward.1} parent=11 // pred_region
        _
      $region84: #{down_forward.1} parent=11 // pred_fallthru
        _
    $region12: #{down_forward.1} parent=5 // pred_fallthru
      _
    %p524 = scmp.lt.s32.totalorder %s25, 2
    // Predicated region
    $region85: #{down_forward.1} parent=5 // pred_check
      %p525 = pneg %p524
    $region86: #{down_forward.1} parent=5 // pred_check_branch
      %527 = sbr.rel (%p525) target = $region88
    $region87: #{down_forward.1} parent=5 // pred_region
      // Predicated region
      $region89: #{down_forward.1} parent=87 // pred_check
        %p528 = pneg %p45
      $region90: #{down_forward.1} parent=87 // pred_check_branch
        %530 = sbr.rel (%p528) target = $region92
      $region91: #{down_forward.1} parent=87 // pred_region
        %p531 = scmp.lt.s32.totalorder %s25, 1
        %s532 = scalar_select %p531, %s25, 1
        %s533 = smul.addr %s532, 16
        %s534 = smul.addr %s533, 8
        %s535 = scalar_lea.vmem %s0, %s534
      $region92: #{down_forward.1} parent=87 // pred_fallthru
        _
    $region88: #{down_forward.1} parent=5 // pred_fallthru
      _
    %p536 = scmp.le.s32.totalorder 1, %s25
    %p537 = scmp.lt.s32.totalorder %s25, 3
    %p538 = pnand %p536, %p537
    %p539 = pneg %p538
    // Predicated region
    $region93: #{down_forward.1} parent=5 // pred_check
      _
    $region94: #{down_forward.1} parent=5 // pred_check_branch
      %541 = sbr.rel (%p538) target = $region96
    $region95: #{down_forward.1} parent=5 // pred_region
      %s542 = ssub.s32 %s25, 1
      %p543 = scmp.lt.s32.totalorder %s30, 1
      %s544 = scalar_select %p543, %s30, 1
      %s545 = smul.addr %s544, 16
      %s546 = smul.addr %s545, 8
      %s547 = scalar_lea.vmem %s0, %s546
      %p548 = pneg %p51
      %p549 = pneg %p48
      %p550 = pneg %p72
      %p551 = pneg %p69
      %p552 = pneg %p93
      %p553 = pneg %p90
      %p554 = pneg %p114
      %p555 = pneg %p111
      %p556 = pneg %p135
      %p557 = pneg %p132
      %p558 = pneg %p156
      %p559 = pneg %p153
      %p560 = pneg %p177
      %p561 = pneg %p174
      %p562 = pneg %p198
      %p563 = pneg %p195
      %p564 = pneg %p219
      %p565 = pneg %p216
      %p566 = pneg %p240
      %p567 = pneg %p237
      %p568 = pneg %p261
      %p569 = pneg %p258
      %p570 = pneg %p282
      %p571 = pneg %p279
      %p572 = pneg %p303
      %p573 = pneg %p300
      %p574 = pneg %p324
      %p575 = pneg %p321
      %p576 = pneg %p345
      %p577 = pneg %p342
      %p578 = pneg %p366
      %p579 = pneg %p363
      %p580 = pneg %p387
      %p581 = pneg %p384
      %p582 = pneg %p408
      %p583 = pneg %p405
      %p584 = pneg %p429
      %p585 = pneg %p426
      %p586 = pneg %p455
      %p587 = pneg %p452
      %p588 = scmp.lt.s32.totalorder %s30, 1
      %s589 = scalar_select %p588, %s30, 1
      %s590 = smul.addr %s589, 8
      %s591 = smul.addr %s590, 8
      %s592 = scalar_lea.vmem %s19, %s591
      %p593 = scmp.lt.s32.totalorder %s30, 1
      %s594 = scalar_select %p593, %s30, 1
      %s595 = smul.addr %s594, 16
      %s596 = smul.addr %s595, 8
      %s597 = scalar_lea.vmem %s0, %s596
      %p598 = scmp.lt.s32.totalorder %s30, 1
      %s599 = scalar_select %p598, %s30, 1
      %s600 = smul.addr %s599, 8
      %s601 = smul.addr %s600, 8
      %s602 = scalar_lea.vmem %s19, %s601
      %vm603 = vcmask 31744
      %604 = vst.msk [vmem:[#allocation2] sm:$0xff] %vm603, 0.0
      %vm605 = vcmask 25600
      %606 = vst.msk [vmem:[#allocation2 + $0x8] sm:$0x3] %vm605, 0.0
      %607 = vst.msk [vmem:[#allocation2 + $0x10] sm:$0xff] %vm603, 0.0
      %608 = vst.msk [vmem:[#allocation2 + $0x18] sm:$0x3] %vm605, 0.0
      %609 = vst.msk [vmem:[#allocation2 + $0x20] sm:$0xff] %vm603, 0.0
      %610 = vst.msk [vmem:[#allocation2 + $0x28] sm:$0x3] %vm605, 0.0
      %611 = vst.msk [vmem:[#allocation2 + $0x30] sm:$0xff] %vm603, 0.0
      %612 = vst.msk [vmem:[#allocation2 + $0x38] sm:$0x3] %vm605, 0.0
      %613 = vst.msk [vmem:[#allocation2 + $0x40] sm:$0xff] %vm603, 0.0
      %614 = vst.msk [vmem:[#allocation2 + $0x48] sm:$0x3] %vm605, 0.0
      %615 = vst.msk [vmem:[#allocation2 + $0x50] sm:$0xff] %vm603, 0.0
      %616 = vst.msk [vmem:[#allocation2 + $0x58] sm:$0x3] %vm605, 0.0
      %617 = vst.msk [vmem:[#allocation2 + $0x60] sm:$0xff] %vm603, 0.0
      %618 = vst.msk [vmem:[#allocation2 + $0x68] sm:$0x3] %vm605, 0.0
      %619 = vst.msk [vmem:[#allocation2 + $0x70] sm:$0xff] %vm603, 0.0
      %620 = vst.msk [vmem:[#allocation2 + $0x78] sm:$0x3] %vm605, 0.0
      %621 = vst.msk [vmem:[#allocation2 + $0x80] sm:$0xff] %vm603, 0.0
      %622 = vst.msk [vmem:[#allocation2 + $0x88] sm:$0x3] %vm605, 0.0
      %623 = vst.msk [vmem:[#allocation2 + $0x90] sm:$0xff] %vm603, 0.0
      %624 = vst.msk [vmem:[#allocation2 + $0x98] sm:$0x3] %vm605, 0.0
      %625 = vst.msk [vmem:[#allocation3] sm:$0xff] %vm603, 0.0
      %626 = vst.msk [vmem:[#allocation3 + $0x8] sm:$0x3] %vm605, 0.0
      %627 = vst.msk [vmem:[#allocation3 + $0x10] sm:$0xff] %vm603, 0.0
      %628 = vst.msk [vmem:[#allocation3 + $0x18] sm:$0x3] %vm605, 0.0
      %629 = vst.msk [vmem:[#allocation3 + $0x20] sm:$0xff] %vm603, 0.0
      %630 = vst.msk [vmem:[#allocation3 + $0x28] sm:$0x3] %vm605, 0.0
      %631 = vst.msk [vmem:[#allocation3 + $0x30] sm:$0xff] %vm603, 0.0
      %632 = vst.msk [vmem:[#allocation3 + $0x38] sm:$0x3] %vm605, 0.0
      %633 = vst.msk [vmem:[#allocation3 + $0x40] sm:$0xff] %vm603, 0.0
      %634 = vst.msk [vmem:[#allocation3 + $0x48] sm:$0x3] %vm605, 0.0
      %635 = vst.msk [vmem:[#allocation3 + $0x50] sm:$0xff] %vm603, 0.0
      %636 = vst.msk [vmem:[#allocation3 + $0x58] sm:$0x3] %vm605, 0.0
      %637 = vst.msk [vmem:[#allocation3 + $0x60] sm:$0xff] %vm603, 0.0
      %638 = vst.msk [vmem:[#allocation3 + $0x68] sm:$0x3] %vm605, 0.0
      %639 = vst.msk [vmem:[#allocation3 + $0x70] sm:$0xff] %vm603, 0.0
      %640 = vst.msk [vmem:[#allocation3 + $0x78] sm:$0x3] %vm605, 0.0
      %641 = vst.msk [vmem:[#allocation3 + $0x80] sm:$0xff] %vm603, 0.0
      %642 = vst.msk [vmem:[#allocation3 + $0x88] sm:$0x3] %vm605, 0.0
      %643 = vst.msk [vmem:[#allocation3 + $0x90] sm:$0xff] %vm603, 0.0
      %644 = vst.msk [vmem:[#allocation3 + $0x98] sm:$0x3] %vm605, 0.0
      %vm645 = vcmask 64512
      %646 = vst.msk [vmem:[#allocation4] sm:$0xff] %vm645, 0.0
      %vm647 = vcmask 58368
      %648 = vst.msk [vmem:[#allocation4 + $0x8] sm:$0x3] %vm647, 0.0
      %649 = vst.msk [vmem:[#allocation4 + $0x10] sm:$0xff] %vm645, 0.0
      %650 = vst.msk [vmem:[#allocation4 + $0x18] sm:$0x3] %vm647, 0.0
      %651 = vst.msk [vmem:[#allocation4 + $0x20] sm:$0xff] %vm645, 0.0
      %652 = vst.msk [vmem:[#allocation4 + $0x28] sm:$0x3] %vm647, 0.0
      %653 = vst.msk [vmem:[#allocation4 + $0x30] sm:$0xff] %vm645, 0.0
      %654 = vst.msk [vmem:[#allocation4 + $0x38] sm:$0x3] %vm647, 0.0
      %655 = vst.msk [vmem:[#allocation4 + $0x40] sm:$0xff] %vm645, 0.0
      %656 = vst.msk [vmem:[#allocation4 + $0x48] sm:$0x3] %vm647, 0.0
      %657 = vst.msk [vmem:[#allocation4 + $0x50] sm:$0xff] %vm645, 0.0
      %658 = vst.msk [vmem:[#allocation4 + $0x58] sm:$0x3] %vm647, 0.0
      %659 = vst.msk [vmem:[#allocation4 + $0x60] sm:$0xff] %vm645, 0.0
      %660 = vst.msk [vmem:[#allocation4 + $0x68] sm:$0x3] %vm647, 0.0
      %661 = vst.msk [vmem:[#allocation4 + $0x70] sm:$0xff] %vm645, 0.0
      %662 = vst.msk [vmem:[#allocation4 + $0x78] sm:$0x3] %vm647, 0.0
      %663 = vst.msk [vmem:[#allocation4 + $0x80] sm:$0xff] %vm645, 0.0
      %664 = vst.msk [vmem:[#allocation4 + $0x88] sm:$0x3] %vm647, 0.0
      %665 = vst.msk [vmem:[#allocation4 + $0x90] sm:$0xff] %vm645, 0.0
      %666 = vst.msk [vmem:[#allocation4 + $0x98] sm:$0x3] %vm647, 0.0
      %v667 = vld [vmem:[%s597] sm:$0xff]
      %v668 = vld [vmem:[%s597 + $0x8] sm:$0xff]
      %v669 = vld [vmem:[%s597 + $0x10] sm:$0xff]
      %v670 = vld [vmem:[%s597 + $0x18] sm:$0xff]
      %v671 = vld [vmem:[%s597 + $0x20] sm:$0xff]
      %v672 = vld [vmem:[%s597 + $0x28] sm:$0xff]
      %v673 = vld [vmem:[%s597 + $0x30] sm:$0xff]
      %v674 = vld [vmem:[%s597 + $0x38] sm:$0xff]
      %v675 = vld [vmem:[%s597 + $0x40] sm:$0xff]
      %v676 = vld [vmem:[%s597 + $0x48] sm:$0xff]
      %v677 = vld [vmem:[%s597 + $0x50] sm:$0xff]
      %v678 = vld [vmem:[%s597 + $0x58] sm:$0xff]
      %v679 = vld [vmem:[%s597 + $0x60] sm:$0xff]
      %v680 = vld [vmem:[%s597 + $0x68] sm:$0xff]
      %v681 = vld [vmem:[%s597 + $0x70] sm:$0xff]
      %v682 = vld [vmem:[%s597 + $0x78] sm:$0xff]
      %v683 = vmax.f32 %v667, %v668
      %v684 = vmax.f32 %v669, %v670
      %v685 = vmax.f32 %v671, %v672
      %v686 = vmax.f32 %v673, %v674
      %v687 = vmax.f32 %v675, %v676
      %v688 = vmax.f32 %v677, %v678
      %v689 = vmax.f32 %v679, %v680
      %v690 = vmax.f32 %v681, %v682
      %699 = vrot.lane.b32.xlu0 %v683, 124
      %v700 = vpop.permute.xlu0 %699
      %701 = vrot.lane.b32.xlu0 %v684, 124
      %v702 = vpop.permute.xlu0 %701
      %703 = vrot.lane.b32.xlu0 %v685, 124
      %v704 = vpop.permute.xlu0 %703
      %705 = vrot.lane.b32.xlu0 %v686, 124
      %v706 = vpop.permute.xlu0 %705
      %707 = vrot.lane.b32.xlu0 %v687, 124
      %v708 = vpop.permute.xlu0 %707
      %709 = vrot.lane.b32.xlu0 %v688, 124
      %v710 = vpop.permute.xlu0 %709
      %711 = vrot.lane.b32.xlu0 %v689, 124
      %v712 = vpop.permute.xlu0 %711
      %713 = vrot.lane.b32.xlu0 %v690, 124
      %v714 = vpop.permute.xlu0 %713
      %v723 = vmax.f32 %v683, %v700
      %v724 = vmax.f32 %v684, %v702
      %v725 = vmax.f32 %v685, %v704
      %v726 = vmax.f32 %v686, %v706
      %v727 = vmax.f32 %v687, %v708
      %v728 = vmax.f32 %v688, %v710
      %v729 = vmax.f32 %v689, %v712
      %v730 = vmax.f32 %v690, %v714
      %s731 = scalar_lea.vmem [#allocation2], 16
      %732 = vst.msk [vmem:[%s731 + $0x1] sm:$0xff] %vm603, %v723
      %733 = vst.msk [vmem:[%s731 + $0x11] sm:$0xff] %vm603, %v724
      %734 = vst.msk [vmem:[%s731 + $0x21] sm:$0xff] %vm603, %v725
      %735 = vst.msk [vmem:[%s731 + $0x31] sm:$0xff] %vm603, %v726
      %736 = vst.msk [vmem:[%s731 + $0x41] sm:$0xff] %vm603, %v727
      %737 = vst.msk [vmem:[%s731 + $0x51] sm:$0xff] %vm603, %v728
      %738 = vst.msk [vmem:[%s731 + $0x61] sm:$0xff] %vm603, %v729
      %739 = vst.msk [vmem:[%s731 + $0x71] sm:$0xff] %vm603, %v730
      %v740 = vld [vmem:[%s2] sm:$0x1]
      %v741 = vld [vmem:[%s3] sm:$0x1]
      %v742 = vld [vmem:[%s5] sm:$0x1]
      %v743 = vld [vmem:[%s6] sm:$0x1]
      %v744 = vld [vmem:[#allocation2] sm:$0xff]
      %v745 = vld [vmem:[#allocation2 + $0x8] sm:$0x3]
      %v746 = vld [vmem:[#allocation2 + $0x10] sm:$0xff]
      %v747 = vld [vmem:[#allocation2 + $0x18] sm:$0x3]
      %v748 = vld [vmem:[#allocation2 + $0x20] sm:$0xff]
      %v749 = vld [vmem:[#allocation2 + $0x28] sm:$0x3]
      %v750 = vld [vmem:[#allocation2 + $0x30] sm:$0xff]
      %v751 = vld [vmem:[#allocation2 + $0x38] sm:$0x3]
      %v752 = vld [vmem:[#allocation2 + $0x40] sm:$0xff]
      %v753 = vld [vmem:[#allocation2 + $0x48] sm:$0x3]
      %v754 = vld [vmem:[#allocation2 + $0x50] sm:$0xff]
      %v755 = vld [vmem:[#allocation2 + $0x58] sm:$0x3]
      %v756 = vld [vmem:[#allocation2 + $0x60] sm:$0xff]
      %v757 = vld [vmem:[#allocation2 + $0x68] sm:$0x3]
      %v758 = vld [vmem:[#allocation2 + $0x70] sm:$0xff]
      %v759 = vld [vmem:[#allocation2 + $0x78] sm:$0x3]
      %v760 = vld [vmem:[#allocation2 + $0x80] sm:$0xff]
      %v761 = vld [vmem:[#allocation2 + $0x88] sm:$0x3]
      %v762 = vld [vmem:[#allocation2 + $0x90] sm:$0xff]
      %v763 = vld [vmem:[#allocation2 + $0x98] sm:$0x3]
      %v764 = vld [vmem:[%s1] sm:$0xf]
      %vm781 = vcmask 1046528
      %v782 = vrot.slane %v744, 1
      %v783 = vrot.slane %v745, 1
      %v784 = vsel %vm781, %v782, %v783
      %v785 = vrot.slane %v746, 1
      %v786 = vrot.slane %v747, 1
      %v787 = vsel %vm781, %v785, %v786
      %v788 = vrot.slane %v748, 1
      %v789 = vrot.slane %v749, 1
      %v790 = vsel %vm781, %v788, %v789
      %v791 = vrot.slane %v750, 1
      %v792 = vrot.slane %v751, 1
      %v793 = vsel %vm781, %v791, %v792
      %v794 = vrot.slane %v752, 1
      %v795 = vrot.slane %v753, 1
      %v796 = vsel %vm781, %v794, %v795
      %v797 = vrot.slane %v754, 1
      %v798 = vrot.slane %v755, 1
      %v799 = vsel %vm781, %v797, %v798
      %v800 = vrot.slane %v756, 1
      %v801 = vrot.slane %v757, 1
      %v802 = vsel %vm781, %v800, %v801
      %v803 = vrot.slane %v758, 1
      %v804 = vrot.slane %v759, 1
      %v805 = vsel %vm781, %v803, %v804
      %s806 = scalar_lea.vmem %s1, 4
      %v807 = vld [vmem:[%s806] sm:$0xf]
      %v808 = vsel %vm603, %v784, 0
      %v810 = vsel %vm603, %v787, 0
      %v812 = vsel %vm603, %v790, 0
      %v814 = vsel %vm603, %v793, 0
      %v816 = vsel %vm603, %v796, 0
      %v818 = vsel %vm603, %v799, 0
      %v820 = vsel %vm603, %v802, 0
      %v822 = vsel %vm603, %v805, 0
      %vm824 = vcmask 1043456
      %v826 = vsel %vm824, %v807, 0
      %828 = vmatprep.subr.mxu0 0.0
      %829 = vmatpush1.msra.mxu0 %v826
      %830 = vmatprep.subr.mxu0 0.0
      %831 = vmatpush1.msra.mxu0 0.0
      %832 = vmatprep.subr.mxu0 0.0
      %833 = vmatpush1.msra.mxu0 0.0
      %834 = vmatprep.subr.mxu0 0.0
      %835 = vmatpush1.msra.mxu0 0.0
      %836 = vmatprep.subr.mxu0 0.0
      %837 = vmatpush1.msra.mxu0 0.0
      %838 = vmatprep.subr.mxu0 0.0
      %839 = vmatpush1.msra.mxu0 0.0
      %840 = vmatprep.subr.mxu0 0.0
      %841 = vmatpush1.msra.mxu0 0.0
      %842 = vmatprep.subr.mxu0 0.0
      %843 = vmatpush1.msra.mxu0 0.0
      %844 = vmatprep.subr.mxu0 0.0
      %845 = vmatpush1.msra.mxu0 0.0
      %846 = vmatprep.subr.mxu0 0.0
      %847 = vmatpush1.msra.mxu0 0.0
      %848 = vmatprep.subr.mxu0 0.0
      %849 = vmatpush1.msra.mxu0 0.0
      %850 = vmatprep.subr.mxu0 0.0
      %851 = vmatpush1.msra.mxu0 0.0
      %852 = vmatprep.subr.mxu0 0.0
      %853 = vmatpush1.msra.mxu0 0.0
      %854 = vmatprep.subr.mxu0 0.0
      %855 = vmatpush1.msra.mxu0 0.0
      %856 = vmatprep.subr.mxu0 0.0
      %857 = vmatpush1.msra.mxu0 0.0
      %858 = vmatprep.subr.mxu0 0.0
      %859 = vmatpush1.msra.mxu0 0.0
      %860 = vmatprep.subr.mxu0 0.0
      %861 = vmatpush1.msra.mxu0 0.0
      %862 = vmatprep.subr.mxu0 0.0
      %863 = vmatpush1.msra.mxu0 0.0
      %864 = vmatprep.subr.mxu0 0.0
      %865 = vmatpush1.msra.mxu0 0.0
      %866 = vmatprep.subr.mxu0 0.0
      %867 = vmatpush1.msra.mxu0 0.0
      %868 = vmatprep.subr.mxu0 0.0
      %869 = vmatpush1.msra.mxu0 0.0
      %870 = vmatprep.subr.mxu0 0.0
      %871 = vmatpush1.msra.mxu0 0.0
      %872 = vmatprep.subr.mxu0 0.0
      %873 = vmatpush1.msra.mxu0 0.0
      %874 = vmatprep.subr.mxu0 0.0
      %875 = vmatpush1.msra.mxu0 0.0
      %876 = vmatprep.subr.mxu0 0.0
      %877 = vmatpush1.msra.mxu0 0.0
      %878 = vmatprep.subr.mxu0 0.0
      %879 = vmatpush1.msra.mxu0 0.0
      %880 = vmatprep.subr.mxu0 0.0
      %881 = vmatpush1.msra.mxu0 0.0
      %882 = vmatprep.subr.mxu0 0.0
      %883 = vmatpush1.msra.mxu0 0.0
      %884 = vmatprep.subr.mxu0 0.0
      %885 = vmatpush1.msra.mxu0 0.0
      %886 = vmatprep.subr.mxu0 0.0
      %887 = vmatpush1.msra.mxu0 0.0
      %888 = vmatprep.subr.mxu0 0.0
      %889 = vmatpush1.msra.mxu0 0.0
      %890 = vmatprep.subr.mxu0 0.0
      %891 = vmatpush1.msra.mxu0 0.0
      %892 = vmatprep.mubr.f32.mxu0 0.0
      %893 = vmatmul.mubr.f32.gmra.mrb[0].mxu0 %v808
      %v894 = vpop.f32.mrb[0].mxu0
      %v895 = vadd.f32 0.0, %v894
      %v896 = vpop.f32.mrb[0].mxu0
      %897 = vmatprep.mubr.f32.mxu0 0.0
      %898 = vmatmul.mubr.f32.gmra.mrb[0].mxu0 %v810
      %v899 = vpop.f32.mrb[0].mxu0
      %v900 = vadd.f32 0.0, %v899
      %v901 = vpop.f32.mrb[0].mxu0
      %902 = vmatprep.mubr.f32.mxu0 0.0
      %903 = vmatmul.mubr.f32.gmra.mrb[0].mxu0 %v812
      %v904 = vpop.f32.mrb[0].mxu0
      %v905 = vadd.f32 0.0, %v904
      %v906 = vpop.f32.mrb[0].mxu0
      %907 = vmatprep.mubr.f32.mxu0 0.0
      %908 = vmatmul.mubr.f32.gmra.mrb[0].mxu0 %v814
      %v909 = vpop.f32.mrb[0].mxu0
      %v910 = vadd.f32 0.0, %v909
      %v911 = vpop.f32.mrb[0].mxu0
      %912 = vmatprep.mubr.f32.mxu0 0.0
      %913 = vmatmul.mubr.f32.gmra.mrb[0].mxu0 %v816
      %v914 = vpop.f32.mrb[0].mxu0
      %v915 = vadd.f32 0.0, %v914
      %v916 = vpop.f32.mrb[0].mxu0
      %917 = vmatprep.mubr.f32.mxu0 0.0
      %918 = vmatmul.mubr.f32.gmra.mrb[0].mxu0 %v818
      %v919 = vpop.f32.mrb[0].mxu0
      %v920 = vadd.f32 0.0, %v919
      %v921 = vpop.f32.mrb[0].mxu0
      %922 = vmatprep.mubr.f32.mxu0 0.0
      %923 = vmatmul.mubr.f32.gmra.mrb[0].mxu0 %v820
      %v924 = vpop.f32.mrb[0].mxu0
      %v925 = vadd.f32 0.0, %v924
      %v926 = vpop.f32.mrb[0].mxu0
      %927 = vmatprep.mubr.f32.mxu0 0.0
      %928 = vmatmul.mubr.f32.gmra.mrb[0].mxu0 %v822
      %v929 = vpop.f32.mrb[0].mxu0
      %v930 = vadd.f32 0.0, %v929
      %v931 = vpop.f32.mrb[0].mxu0
      %932 = vdwg.mxu0
      %v933 = vsel %vm603, %v744, 0
      %v935 = vsel %vm603, %v746, 0
      %v937 = vsel %vm603, %v748, 0
      %v939 = vsel %vm603, %v750, 0
      %v941 = vsel %vm603, %v752, 0
      %v943 = vsel %vm603, %v754, 0
      %v945 = vsel %vm603, %v756, 0
      %v947 = vsel %vm603, %v758, 0
      %v950 = vsel %vm824, %v764, 0
      %952 = vmatprep.subr.mxu0 0.0
      %953 = vmatpush1.msra.mxu0 %v950
      %954 = vmatprep.subr.mxu0 0.0
      %955 = vmatpush1.msra.mxu0 0.0
      %956 = vmatprep.subr.mxu0 0.0
      %957 = vmatpush1.msra.mxu0 0.0
      %958 = vmatprep.subr.mxu0 0.0
      %959 = vmatpush1.msra.mxu0 0.0
      %960 = vmatprep.subr.mxu0 0.0
      %961 = vmatpush1.msra.mxu0 0.0
      %962 = vmatprep.subr.mxu0 0.0
      %963 = vmatpush1.msra.mxu0 0.0
      %964 = vmatprep.subr.mxu0 0.0
      %965 = vmatpush1.msra.mxu0 0.0
      %966 = vmatprep.subr.mxu0 0.0
      %967 = vmatpush1.msra.mxu0 0.0
      %968 = vmatprep.subr.mxu0 0.0
      %969 = vmatpush1.msra.mxu0 0.0
      %970 = vmatprep.subr.mxu0 0.0
      %971 = vmatpush1.msra.mxu0 0.0
      %972 = vmatprep.subr.mxu0 0.0
      %973 = vmatpush1.msra.mxu0 0.0
      %974 = vmatprep.subr.mxu0 0.0
      %975 = vmatpush1.msra.mxu0 0.0
      %976 = vmatprep.subr.mxu0 0.0
      %977 = vmatpush1.msra.mxu0 0.0
      %978 = vmatprep.subr.mxu0 0.0
      %979 = vmatpush1.msra.mxu0 0.0
      %980 = vmatprep.subr.mxu0 0.0
      %981 = vmatpush1.msra.mxu0 0.0
      %982 = vmatprep.subr.mxu0 0.0
      %983 = vmatpush1.msra.mxu0 0.0
      %984 = vmatprep.subr.mxu0 0.0
      %985 = vmatpush1.msra.mxu0 0.0
      %986 = vmatprep.subr.mxu0 0.0
      %987 = vmatpush1.msra.mxu0 0.0
      %988 = vmatprep.subr.mxu0 0.0
      %989 = vmatpush1.msra.mxu0 0.0
      %990 = vmatprep.subr.mxu0 0.0
      %991 = vmatpush1.msra.mxu0 0.0
      %992 = vmatprep.subr.mxu0 0.0
      %993 = vmatpush1.msra.mxu0 0.0
      %994 = vmatprep.subr.mxu0 0.0
      %995 = vmatpush1.msra.mxu0 0.0
      %996 = vmatprep.subr.mxu0 0.0
      %997 = vmatpush1.msra.mxu0 0.0
      %998 = vmatprep.subr.mxu0 0.0
      %999 = vmatpush1.msra.mxu0 0.0
      %1000 = vmatprep.subr.mxu0 0.0
      %1001 = vmatpush1.msra.mxu0 0.0
      %1002 = vmatprep.subr.mxu0 0.0
      %1003 = vmatpush1.msra.mxu0 0.0
      %1004 = vmatprep.subr.mxu0 0.0
      %1005 = vmatpush1.msra.mxu0 0.0
      %1006 = vmatprep.subr.mxu0 0.0
      %1007 = vmatpush1.msra.mxu0 0.0
      %1008 = vmatprep.subr.mxu0 0.0
      %1009 = vmatpush1.msra.mxu0 0.0
      %1010 = vmatprep.subr.mxu0 0.0
      %1011 = vmatpush1.msra.mxu0 0.0
      %1012 = vmatprep.subr.mxu0 0.0
      %1013 = vmatpush1.msra.mxu0 0.0
      %1014 = vmatprep.subr.mxu0 0.0
      %1015 = vmatpush1.msra.mxu0 0.0
      %1016 = vmatprep.mubr.f32.mxu0 0.0
      %1017 = vmatmul.mubr.f32.gmra.mrb[0].mxu0 %v933
      %v1018 = vpop.f32.mrb[0].mxu0
      %v1019 = vadd.f32 %v895, %v1018
      %v1020 = vpop.f32.mrb[0].mxu0
      %1021 = vmatprep.mubr.f32.mxu0 0.0
      %1022 = vmatmul.mubr.f32.gmra.mrb[0].mxu0 %v935
      %v1023 = vpop.f32.mrb[0].mxu0
      %v1024 = vadd.f32 %v900, %v1023
      %v1025 = vpop.f32.mrb[0].mxu0
      %1026 = vmatprep.mubr.f32.mxu0 0.0
      %1027 = vmatmul.mubr.f32.gmra.mrb[0].mxu0 %v937
      %v1028 = vpop.f32.mrb[0].mxu0
      %v1029 = vadd.f32 %v905, %v1028
      %v1030 = vpop.f32.mrb[0].mxu0
      %1031 = vmatprep.mubr.f32.mxu0 0.0
      %1032 = vmatmul.mubr.f32.gmra.mrb[0].mxu0 %v939
      %v1033 = vpop.f32.mrb[0].mxu0
      %v1034 = vadd.f32 %v910, %v1033
      %v1035 = vpop.f32.mrb[0].mxu0
      %1036 = vmatprep.mubr.f32.mxu0 0.0
      %1037 = vmatmul.mubr.f32.gmra.mrb[0].mxu0 %v941
      %v1038 = vpop.f32.mrb[0].mxu0
      %v1039 = vadd.f32 %v915, %v1038
      %v1040 = vpop.f32.mrb[0].mxu0
      %1041 = vmatprep.mubr.f32.mxu0 0.0
      %1042 = vmatmul.mubr.f32.gmra.mrb[0].mxu0 %v943
      %v1043 = vpop.f32.mrb[0].mxu0
      %v1044 = vadd.f32 %v920, %v1043
      %v1045 = vpop.f32.mrb[0].mxu0
      %1046 = vmatprep.mubr.f32.mxu0 0.0
      %1047 = vmatmul.mubr.f32.gmra.mrb[0].mxu0 %v945
      %v1048 = vpop.f32.mrb[0].mxu0
      %v1049 = vadd.f32 %v925, %v1048
      %v1050 = vpop.f32.mrb[0].mxu0
      %1051 = vmatprep.mubr.f32.mxu0 0.0
      %1052 = vmatmul.mubr.f32.gmra.mrb[0].mxu0 %v947
      %v1053 = vpop.f32.mrb[0].mxu0
      %v1054 = vadd.f32 %v930, %v1053
      %v1055 = vpop.f32.mrb[0].mxu0
      %1056 = vdwg.mxu0
      %vm1057 = vcmask 1045504
      %v1058 = vrot.slane %v744, 2
      %v1059 = vrot.slane %v745, 2
      %v1060 = vsel %vm1057, %v1058, %v1059
      %v1061 = vrot.slane %v746, 2
      %v1062 = vrot.slane %v747, 2
      %v1063 = vsel %vm1057, %v1061, %v1062
      %v1064 = vrot.slane %v748, 2
      %v1065 = vrot.slane %v749, 2
      %v1066 = vsel %vm1057, %v1064, %v1065
      %v1067 = vrot.slane %v750, 2
      %v1068 = vrot.slane %v751, 2
      %v1069 = vsel %vm1057, %v1067, %v1068
      %v1070 = vrot.slane %v752, 2
      %v1071 = vrot.slane %v753, 2
      %v1072 = vsel %vm1057, %v1070, %v1071
      %v1073 = vrot.slane %v754, 2
      %v1074 = vrot.slane %v755, 2
      %v1075 = vsel %vm1057, %v1073, %v1074
      %v1076 = vrot.slane %v756, 2
      %v1077 = vrot.slane %v757, 2
      %v1078 = vsel %vm1057, %v1076, %v1077
      %v1079 = vrot.slane %v758, 2
      %v1080 = vrot.slane %v759, 2
      %v1081 = vsel %vm1057, %v1079, %v1080
      %s1082 = scalar_lea.vmem %s1, 8
      %v1083 = vld [vmem:[%s1082] sm:$0xf]
      %v1084 = vsel %vm603, %v1060, 0
      %v1086 = vsel %vm603, %v1063, 0
      %v1088 = vsel %vm603, %v1066, 0
      %v1090 = vsel %vm603, %v1069, 0
      %v1092 = vsel %vm603, %v1072, 0
      %v1094 = vsel %vm603, %v1075, 0
      %v1096 = vsel %vm603, %v1078, 0
      %v1098 = vsel %vm603, %v1081, 0
      %v1101 = vsel %vm824, %v1083, 0
      %1103 = vmatprep.subr.mxu0 0.0
      %1104 = vmatpush1.msra.mxu0 %v1101
      %1105 = vmatprep.subr.mxu0 0.0
      %1106 = vmatpush1.msra.mxu0 0.0
      %1107 = vmatprep.subr.mxu0 0.0
      %1108 = vmatpush1.msra.mxu0 0.0
      %1109 = vmatprep.subr.mxu0 0.0
      %1110 = vmatpush1.msra.mxu0 0.0
      %1111 = vmatprep.subr.mxu0 0.0
      %1112 = vmatpush1.msra.mxu0 0.0
      %1113 = vmatprep.subr.mxu0 0.0
      %1114 = vmatpush1.msra.mxu0 0.0
      %1115 = vmatprep.subr.mxu0 0.0
      %1116 = vmatpush1.msra.mxu0 0.0
      %1117 = vmatprep.subr.mxu0 0.0
      %1118 = vmatpush1.msra.mxu0 0.0
      %1119 = vmatprep.subr.mxu0 0.0
      %1120 = vmatpush1.msra.mxu0 0.0
      %1121 = vmatprep.subr.mxu0 0.0
      %1122 = vmatpush1.msra.mxu0 0.0
      %1123 = vmatprep.subr.mxu0 0.0
      %1124 = vmatpush1.msra.mxu0 0.0
      %1125 = vmatprep.subr.mxu0 0.0
      %1126 = vmatpush1.msra.mxu0 0.0
      %1127 = vmatprep.subr.mxu0 0.0
      %1128 = vmatpush1.msra.mxu0 0.0
      %1129 = vmatprep.subr.mxu0 0.0
      %1130 = vmatpush1.msra.mxu0 0.0
      %1131 = vmatprep.subr.mxu0 0.0
      %1132 = vmatpush1.msra.mxu0 0.0
      %1133 = vmatprep.subr.mxu0 0.0
      %1134 = vmatpush1.msra.mxu0 0.0
      %1135 = vmatprep.subr.mxu0 0.0
      %1136 = vmatpush1.msra.mxu0 0.0
      %1137 = vmatprep.subr.mxu0 0.0
      %1138 = vmatpush1.msra.mxu0 0.0
      %1139 = vmatprep.subr.mxu0 0.0
      %1140 = vmatpush1.msra.mxu0 0.0
      %1141 = vmatprep.subr.mxu0 0.0
      %1142 = vmatpush1.msra.mxu0 0.0
      %1143 = vmatprep.subr.mxu0 0.0
      %1144 = vmatpush1.msra.mxu0 0.0
      %1145 = vmatprep.subr.mxu0 0.0
      %1146 = vmatpush1.msra.mxu0 0.0
      %1147 = vmatprep.subr.mxu0 0.0
      %1148 = vmatpush1.msra.mxu0 0.0
      %1149 = vmatprep.subr.mxu0 0.0
      %1150 = vmatpush1.msra.mxu0 0.0
      %1151 = vmatprep.subr.mxu0 0.0
      %1152 = vmatpush1.msra.mxu0 0.0
      %1153 = vmatprep.subr.mxu0 0.0
      %1154 = vmatpush1.msra.mxu0 0.0
      %1155 = vmatprep.subr.mxu0 0.0
      %1156 = vmatpush1.msra.mxu0 0.0
      %1157 = vmatprep.subr.mxu0 0.0
      %1158 = vmatpush1.msra.mxu0 0.0
      %1159 = vmatprep.subr.mxu0 0.0
      %1160 = vmatpush1.msra.mxu0 0.0
      %1161 = vmatprep.subr.mxu0 0.0
      %1162 = vmatpush1.msra.mxu0 0.0
      %1163 = vmatprep.subr.mxu0 0.0
      %1164 = vmatpush1.msra.mxu0 0.0
      %1165 = vmatprep.subr.mxu0 0.0
      %1166 = vmatpush1.msra.mxu0 0.0
      %1167 = vmatprep.mubr.f32.mxu0 0.0
      %1168 = vmatmul.mubr.f32.gmra.mrb[0].mxu0 %v1084
      %v1169 = vpop.f32.mrb[0].mxu0
      %v1170 = vadd.f32 0.0, %v1169
      %v1171 = vpop.f32.mrb[0].mxu0
      %1172 = vmatprep.mubr.f32.mxu0 0.0
      %1173 = vmatmul.mubr.f32.gmra.mrb[0].mxu0 %v1086
      %v1174 = vpop.f32.mrb[0].mxu0
      %v1175 = vadd.f32 0.0, %v1174
      %v1176 = vpop.f32.mrb[0].mxu0
      %1177 = vmatprep.mubr.f32.mxu0 0.0
      %1178 = vmatmul.mubr.f32.gmra.mrb[0].mxu0 %v1088
      %v1179 = vpop.f32.mrb[0].mxu0
      %v1180 = vadd.f32 0.0, %v1179
      %v1181 = vpop.f32.mrb[0].mxu0
      %1182 = vmatprep.mubr.f32.mxu0 0.0
      %1183 = vmatmul.mubr.f32.gmra.mrb[0].mxu0 %v1090
      %v1184 = vpop.f32.mrb[0].mxu0
      %v1185 = vadd.f32 0.0, %v1184
      %v1186 = vpop.f32.mrb[0].mxu0
      %1187 = vmatprep.mubr.f32.mxu0 0.0
      %1188 = vmatmul.mubr.f32.gmra.mrb[0].mxu0 %v1092
      %v1189 = vpop.f32.mrb[0].mxu0
      %v1190 = vadd.f32 0.0, %v1189
      %v1191 = vpop.f32.mrb[0].mxu0
      %1192 = vmatprep.mubr.f32.mxu0 0.0
      %1193 = vmatmul.mubr.f32.gmra.mrb[0].mxu0 %v1094
      %v1194 = vpop.f32.mrb[0].mxu0
      %v1195 = vadd.f32 0.0, %v1194
      %v1196 = vpop.f32.mrb[0].mxu0
      %1197 = vmatprep.mubr.f32.mxu0 0.0
      %1198 = vmatmul.mubr.f32.gmra.mrb[0].mxu0 %v1096
      %v1199 = vpop.f32.mrb[0].mxu0
      %v1200 = vadd.f32 0.0, %v1199
      %v1201 = vpop.f32.mrb[0].mxu0
      %1202 = vmatprep.mubr.f32.mxu0 0.0
      %1203 = vmatmul.mubr.f32.gmra.mrb[0].mxu0 %v1098
      %v1204 = vpop.f32.mrb[0].mxu0
      %v1205 = vadd.f32 0.0, %v1204
      %v1206 = vpop.f32.mrb[0].mxu0
      %1207 = vdwg.mxu0
      %v1208 = vadd.f32 %v1019, %v1170
      %v1209 = vadd.f32 %v1024, %v1175
      %v1210 = vadd.f32 %v1029, %v1180
      %v1211 = vadd.f32 %v1034, %v1185
      %v1212 = vadd.f32 %v1039, %v1190
      %v1213 = vadd.f32 %v1044, %v1195
      %v1214 = vadd.f32 %v1049, %v1200
      %v1215 = vadd.f32 %v1054, %v1205
      %s1216 = scalar_lea.vmem %s1, 12
      %v1217 = vld [vmem:[%s1216] sm:$0xf]
      %v1219 = vsel %vm603, %v760, 0
      %v1222 = vsel %vm824, %v1217, 0
      %1224 = vmatprep.subr.mxu0 0.0
      %1225 = vmatpush1.msra.mxu0 %v1222
      %1226 = vmatprep.subr.mxu0 0.0
      %1227 = vmatpush1.msra.mxu0 0.0
      %1228 = vmatprep.subr.mxu0 0.0
      %1229 = vmatpush1.msra.mxu0 0.0
      %1230 = vmatprep.subr.mxu0 0.0
      %1231 = vmatpush1.msra.mxu0 0.0
      %1232 = vmatprep.subr.mxu0 0.0
      %1233 = vmatpush1.msra.mxu0 0.0
      %1234 = vmatprep.subr.mxu0 0.0
      %1235 = vmatpush1.msra.mxu0 0.0
      %1236 = vmatprep.subr.mxu0 0.0
      %1237 = vmatpush1.msra.mxu0 0.0
      %1238 = vmatprep.subr.mxu0 0.0
      %1239 = vmatpush1.msra.mxu0 0.0
      %1240 = vmatprep.subr.mxu0 0.0
      %1241 = vmatpush1.msra.mxu0 0.0
      %1242 = vmatprep.subr.mxu0 0.0
      %1243 = vmatpush1.msra.mxu0 0.0
      %1244 = vmatprep.subr.mxu0 0.0
      %1245 = vmatpush1.msra.mxu0 0.0
      %1246 = vmatprep.subr.mxu0 0.0
      %1247 = vmatpush1.msra.mxu0 0.0
      %1248 = vmatprep.subr.mxu0 0.0
      %1249 = vmatpush1.msra.mxu0 0.0
      %1250 = vmatprep.subr.mxu0 0.0
      %1251 = vmatpush1.msra.mxu0 0.0
      %1252 = vmatprep.subr.mxu0 0.0
      %1253 = vmatpush1.msra.mxu0 0.0
      %1254 = vmatprep.subr.mxu0 0.0
      %1255 = vmatpush1.msra.mxu0 0.0
      %1256 = vmatprep.subr.mxu0 0.0
      %1257 = vmatpush1.msra.mxu0 0.0
      %1258 = vmatprep.subr.mxu0 0.0
      %1259 = vmatpush1.msra.mxu0 0.0
      %1260 = vmatprep.subr.mxu0 0.0
      %1261 = vmatpush1.msra.mxu0 0.0
      %1262 = vmatprep.subr.mxu0 0.0
      %1263 = vmatpush1.msra.mxu0 0.0
      %1264 = vmatprep.subr.mxu0 0.0
      %1265 = vmatpush1.msra.mxu0 0.0
      %1266 = vmatprep.subr.mxu0 0.0
      %1267 = vmatpush1.msra.mxu0 0.0
      %1268 = vmatprep.subr.mxu0 0.0
      %1269 = vmatpush1.msra.mxu0 0.0
      %1270 = vmatprep.subr.mxu0 0.0
      %1271 = vmatpush1.msra.mxu0 0.0
      %1272 = vmatprep.subr.mxu0 0.0
      %1273 = vmatpush1.msra.mxu0 0.0
      %1274 = vmatprep.subr.mxu0 0.0
      %1275 = vmatpush1.msra.mxu0 0.0
      %1276 = vmatprep.subr.mxu0 0.0
      %1277 = vmatpush1.msra.mxu0 0.0
      %1278 = vmatprep.subr.mxu0 0.0
      %1279 = vmatpush1.msra.mxu0 0.0
      %1280 = vmatprep.subr.mxu0 0.0
      %1281 = vmatpush1.msra.mxu0 0.0
      %1282 = vmatprep.subr.mxu0 0.0
      %1283 = vmatpush1.msra.mxu0 0.0
      %1284 = vmatprep.subr.mxu0 0.0
      %1285 = vmatpush1.msra.mxu0 0.0
      %1286 = vmatprep.subr.mxu0 0.0
      %1287 = vmatpush1.msra.mxu0 0.0
      %1288 = vmatprep.mubr.f32.mxu0 0.0
      %1289 = vmatmul.mubr.f32.gmra.mrb[0].mxu0 %v935
      %v1290 = vpop.f32.mrb[0].mxu0
      %v1291 = vadd.f32 0.0, %v1290
      %v1292 = vpop.f32.mrb[0].mxu0
      %1293 = vmatprep.mubr.f32.mxu0 0.0
      %1294 = vmatmul.mubr.f32.gmra.mrb[0].mxu0 %v937
      %v1295 = vpop.f32.mrb[0].mxu0
      %v1296 = vadd.f32 0.0, %v1295
      %v1297 = vpop.f32.mrb[0].mxu0
      %1298 = vmatprep.mubr.f32.mxu0 0.0
      %1299 = vmatmul.mubr.f32.gmra.mrb[0].mxu0 %v939
      %v1300 = vpop.f32.mrb[0].mxu0
      %v1301 = vadd.f32 0.0, %v1300
      %v1302 = vpop.f32.mrb[0].mxu0
      %1303 = vmatprep.mubr.f32.mxu0 0.0
      %1304 = vmatmul.mubr.f32.gmra.mrb[0].mxu0 %v941
      %v1305 = vpop.f32.mrb[0].mxu0
      %v1306 = vadd.f32 0.0, %v1305
      %v1307 = vpop.f32.mrb[0].mxu0
      %1308 = vmatprep.mubr.f32.mxu0 0.0
      %1309 = vmatmul.mubr.f32.gmra.mrb[0].mxu0 %v943
      %v1310 = vpop.f32.mrb[0].mxu0
      %v1311 = vadd.f32 0.0, %v1310
      %v1312 = vpop.f32.mrb[0].mxu0
      %1313 = vmatprep.mubr.f32.mxu0 0.0
      %1314 = vmatmul.mubr.f32.gmra.mrb[0].mxu0 %v945
      %v1315 = vpop.f32.mrb[0].mxu0
      %v1316 = vadd.f32 0.0, %v1315
      %v1317 = vpop.f32.mrb[0].mxu0
      %1318 = vmatprep.mubr.f32.mxu0 0.0
      %1319 = vmatmul.mubr.f32.gmra.mrb[0].mxu0 %v947
      %v1320 = vpop.f32.mrb[0].mxu0
      %v1321 = vadd.f32 0.0, %v1320
      %v1322 = vpop.f32.mrb[0].mxu0
      %1323 = vmatprep.mubr.f32.mxu0 0.0
      %1324 = vmatmul.mubr.f32.gmra.mrb[0].mxu0 %v1219
      %v1325 = vpop.f32.mrb[0].mxu0
      %v1326 = vadd.f32 0.0, %v1325
      %v1327 = vpop.f32.mrb[0].mxu0
      %1328 = vdwg.mxu0
      %v1329 = vadd.f32 %v1208, %v1291
      %v1330 = vadd.f32 %v1209, %v1296
      %v1331 = vadd.f32 %v1210, %v1301
      %v1332 = vadd.f32 %v1211, %v1306
      %v1333 = vadd.f32 %v1212, %v1311
      %v1334 = vadd.f32 %v1213, %v1316
      %v1335 = vadd.f32 %v1214, %v1321
      %v1336 = vadd.f32 %v1215, %v1326
      %v1338 = vrot.slane %v760, 1
      %v1339 = vrot.slane %v761, 1
      %v1340 = vsel %vm781, %v1338, %v1339
      %s1349 = scalar_lea.vmem %s1, 16
      %v1350 = vld [vmem:[%s1349] sm:$0xf]
      %v1351 = vsel %vm603, %v1340, 0
      %v1354 = vsel %vm824, %v1350, 0
      %1356 = vmatprep.subr.mxu0 0.0
      %1357 = vmatpush1.msra.mxu0 %v1354
      %1358 = vmatprep.subr.mxu0 0.0
      %1359 = vmatpush1.msra.mxu0 0.0
      %1360 = vmatprep.subr.mxu0 0.0
      %1361 = vmatpush1.msra.mxu0 0.0
      %1362 = vmatprep.subr.mxu0 0.0
      %1363 = vmatpush1.msra.mxu0 0.0
      %1364 = vmatprep.subr.mxu0 0.0
      %1365 = vmatpush1.msra.mxu0 0.0
      %1366 = vmatprep.subr.mxu0 0.0
      %1367 = vmatpush1.msra.mxu0 0.0
      %1368 = vmatprep.subr.mxu0 0.0
      %1369 = vmatpush1.msra.mxu0 0.0
      %1370 = vmatprep.subr.mxu0 0.0
      %1371 = vmatpush1.msra.mxu0 0.0
      %1372 = vmatprep.subr.mxu0 0.0
      %1373 = vmatpush1.msra.mxu0 0.0
      %1374 = vmatprep.subr.mxu0 0.0
      %1375 = vmatpush1.msra.mxu0 0.0
      %1376 = vmatprep.subr.mxu0 0.0
      %1377 = vmatpush1.msra.mxu0 0.0
      %1378 = vmatprep.subr.mxu0 0.0
      %1379 = vmatpush1.msra.mxu0 0.0
      %1380 = vmatprep.subr.mxu0 0.0
      %1381 = vmatpush1.msra.mxu0 0.0
      %1382 = vmatprep.subr.mxu0 0.0
      %1383 = vmatpush1.msra.mxu0 0.0
      %1384 = vmatprep.subr.mxu0 0.0
      %1385 = vmatpush1.msra.mxu0 0.0
      %1386 = vmatprep.subr.mxu0 0.0
      %1387 = vmatpush1.msra.mxu0 0.0
      %1388 = vmatprep.subr.mxu0 0.0
      %1389 = vmatpush1.msra.mxu0 0.0
      %1390 = vmatprep.subr.mxu0 0.0
      %1391 = vmatpush1.msra.mxu0 0.0
      %1392 = vmatprep.subr.mxu0 0.0
      %1393 = vmatpush1.msra.mxu0 0.0
      %1394 = vmatprep.subr.mxu0 0.0
      %1395 = vmatpush1.msra.mxu0 0.0
      %1396 = vmatprep.subr.mxu0 0.0
      %1397 = vmatpush1.msra.mxu0 0.0
      %1398 = vmatprep.subr.mxu0 0.0
      %1399 = vmatpush1.msra.mxu0 0.0
      %1400 = vmatprep.subr.mxu0 0.0
      %1401 = vmatpush1.msra.mxu0 0.0
      %1402 = vmatprep.subr.mxu0 0.0
      %1403 = vmatpush1.msra.mxu0 0.0
      %1404 = vmatprep.subr.mxu0 0.0
      %1405 = vmatpush1.msra.mxu0 0.0
      %1406 = vmatprep.subr.mxu0 0.0
      %1407 = vmatpush1.msra.mxu0 0.0
      %1408 = vmatprep.subr.mxu0 0.0
      %1409 = vmatpush1.msra.mxu0 0.0
      %1410 = vmatprep.subr.mxu0 0.0
      %1411 = vmatpush1.msra.mxu0 0.0
      %1412 = vmatprep.subr.mxu0 0.0
      %1413 = vmatpush1.msra.mxu0 0.0
      %1414 = vmatprep.subr.mxu0 0.0
      %1415 = vmatpush1.msra.mxu0 0.0
      %1416 = vmatprep.subr.mxu0 0.0
      %1417 = vmatpush1.msra.mxu0 0.0
      %1418 = vmatprep.subr.mxu0 0.0
      %1419 = vmatpush1.msra.mxu0 0.0
      %1420 = vmatprep.mubr.f32.mxu0 0.0
      %1421 = vmatmul.mubr.f32.gmra.mrb[0].mxu0 %v810
      %v1422 = vpop.f32.mrb[0].mxu0
      %v1423 = vadd.f32 0.0, %v1422
      %v1424 = vpop.f32.mrb[0].mxu0
      %1425 = vmatprep.mubr.f32.mxu0 0.0
      %1426 = vmatmul.mubr.f32.gmra.mrb[0].mxu0 %v812
      %v1427 = vpop.f32.mrb[0].mxu0
      %v1428 = vadd.f32 0.0, %v1427
      %v1429 = vpop.f32.mrb[0].mxu0
      %1430 = vmatprep.mubr.f32.mxu0 0.0
      %1431 = vmatmul.mubr.f32.gmra.mrb[0].mxu0 %v814
      %v1432 = vpop.f32.mrb[0].mxu0
      %v1433 = vadd.f32 0.0, %v1432
      %v1434 = vpop.f32.mrb[0].mxu0
      %1435 = vmatprep.mubr.f32.mxu0 0.0
      %1436 = vmatmul.mubr.f32.gmra.mrb[0].mxu0 %v816
      %v1437 = vpop.f32.mrb[0].mxu0
      %v1438 = vadd.f32 0.0, %v1437
      %v1439 = vpop.f32.mrb[0].mxu0
      %1440 = vmatprep.mubr.f32.mxu0 0.0
      %1441 = vmatmul.mubr.f32.gmra.mrb[0].mxu0 %v818
      %v1442 = vpop.f32.mrb[0].mxu0
      %v1443 = vadd.f32 0.0, %v1442
      %v1444 = vpop.f32.mrb[0].mxu0
      %1445 = vmatprep.mubr.f32.mxu0 0.0
      %1446 = vmatmul.mubr.f32.gmra.mrb[0].mxu0 %v820
      %v1447 = vpop.f32.mrb[0].mxu0
      %v1448 = vadd.f32 0.0, %v1447
      %v1449 = vpop.f32.mrb[0].mxu0
      %1450 = vmatprep.mubr.f32.mxu0 0.0
      %1451 = vmatmul.mubr.f32.gmra.mrb[0].mxu0 %v822
      %v1452 = vpop.f32.mrb[0].mxu0
      %v1453 = vadd.f32 0.0, %v1452
      %v1454 = vpop.f32.mrb[0].mxu0
      %1455 = vmatprep.mubr.f32.mxu0 0.0
      %1456 = vmatmul.mubr.f32.gmra.mrb[0].mxu0 %v1351
      %v1457 = vpop.f32.mrb[0].mxu0
      %v1458 = vadd.f32 0.0, %v1457
      %v1459 = vpop.f32.mrb[0].mxu0
      %1460 = vdwg.mxu0
      %v1461 = vadd.f32 %v1329, %v1423
      %v1462 = vadd.f32 %v1330, %v1428
      %v1463 = vadd.f32 %v1331, %v1433
      %v1464 = vadd.f32 %v1332, %v1438
      %v1465 = vadd.f32 %v1333, %v1443
      %v1466 = vadd.f32 %v1334, %v1448
      %v1467 = vadd.f32 %v1335, %v1453
      %v1468 = vadd.f32 %v1336, %v1458
      %v1469 = vrot.slane %v760, 2
      %v1470 = vrot.slane %v761, 2
      %v1471 = vsel %vm1057, %v1469, %v1470
      %s1472 = scalar_lea.vmem %s1, 20
      %v1473 = vld [vmem:[%s1472] sm:$0xf]
      %v1474 = vsel %vm603, %v1471, 0
      %v1477 = vsel %vm824, %v1473, 0
      %1479 = vmatprep.subr.mxu0 0.0
      %1480 = vmatpush1.msra.mxu0 %v1477
      %1481 = vmatprep.subr.mxu0 0.0
      %1482 = vmatpush1.msra.mxu0 0.0
      %1483 = vmatprep.subr.mxu0 0.0
      %1484 = vmatpush1.msra.mxu0 0.0
      %1485 = vmatprep.subr.mxu0 0.0
      %1486 = vmatpush1.msra.mxu0 0.0
      %1487 = vmatprep.subr.mxu0 0.0
      %1488 = vmatpush1.msra.mxu0 0.0
      %1489 = vmatprep.subr.mxu0 0.0
      %1490 = vmatpush1.msra.mxu0 0.0
      %1491 = vmatprep.subr.mxu0 0.0
      %1492 = vmatpush1.msra.mxu0 0.0
      %1493 = vmatprep.subr.mxu0 0.0
      %1494 = vmatpush1.msra.mxu0 0.0
      %1495 = vmatprep.subr.mxu0 0.0
      %1496 = vmatpush1.msra.mxu0 0.0
      %1497 = vmatprep.subr.mxu0 0.0
      %1498 = vmatpush1.msra.mxu0 0.0
      %1499 = vmatprep.subr.mxu0 0.0
      %1500 = vmatpush1.msra.mxu0 0.0
      %1501 = vmatprep.subr.mxu0 0.0
      %1502 = vmatpush1.msra.mxu0 0.0
      %1503 = vmatprep.subr.mxu0 0.0
      %1504 = vmatpush1.msra.mxu0 0.0
      %1505 = vmatprep.subr.mxu0 0.0
      %1506 = vmatpush1.msra.mxu0 0.0
      %1507 = vmatprep.subr.mxu0 0.0
      %1508 = vmatpush1.msra.mxu0 0.0
      %1509 = vmatprep.subr.mxu0 0.0
      %1510 = vmatpush1.msra.mxu0 0.0
      %1511 = vmatprep.subr.mxu0 0.0
      %1512 = vmatpush1.msra.mxu0 0.0
      %1513 = vmatprep.subr.mxu0 0.0
      %1514 = vmatpush1.msra.mxu0 0.0
      %1515 = vmatprep.subr.mxu0 0.0
      %1516 = vmatpush1.msra.mxu0 0.0
      %1517 = vmatprep.subr.mxu0 0.0
      %1518 = vmatpush1.msra.mxu0 0.0
      %1519 = vmatprep.subr.mxu0 0.0
      %1520 = vmatpush1.msra.mxu0 0.0
      %1521 = vmatprep.subr.mxu0 0.0
      %1522 = vmatpush1.msra.mxu0 0.0
      %1523 = vmatprep.subr.mxu0 0.0
      %1524 = vmatpush1.msra.mxu0 0.0
      %1525 = vmatprep.subr.mxu0 0.0
      %1526 = vmatpush1.msra.mxu0 0.0
      %1527 = vmatprep.subr.mxu0 0.0
      %1528 = vmatpush1.msra.mxu0 0.0
      %1529 = vmatprep.subr.mxu0 0.0
      %1530 = vmatpush1.msra.mxu0 0.0
      %1531 = vmatprep.subr.mxu0 0.0
      %1532 = vmatpush1.msra.mxu0 0.0
      %1533 = vmatprep.subr.mxu0 0.0
      %1534 = vmatpush1.msra.mxu0 0.0
      %1535 = vmatprep.subr.mxu0 0.0
      %1536 = vmatpush1.msra.mxu0 0.0
      %1537 = vmatprep.subr.mxu0 0.0
      %1538 = vmatpush1.msra.mxu0 0.0
      %1539 = vmatprep.subr.mxu0 0.0
      %1540 = vmatpush1.msra.mxu0 0.0
      %1541 = vmatprep.subr.mxu0 0.0
      %1542 = vmatpush1.msra.mxu0 0.0
      %1543 = vmatprep.mubr.f32.mxu0 0.0
      %1544 = vmatmul.mubr.f32.gmra.mrb[0].mxu0 %v1086
      %v1545 = vpop.f32.mrb[0].mxu0
      %v1546 = vadd.f32 0.0, %v1545
      %v1547 = vpop.f32.mrb[0].mxu0
      %1548 = vmatprep.mubr.f32.mxu0 0.0
      %1549 = vmatmul.mubr.f32.gmra.mrb[0].mxu0 %v1088
      %v1550 = vpop.f32.mrb[0].mxu0
      %v1551 = vadd.f32 0.0, %v1550
      %v1552 = vpop.f32.mrb[0].mxu0
      %1553 = vmatprep.mubr.f32.mxu0 0.0
      %1554 = vmatmul.mubr.f32.gmra.mrb[0].mxu0 %v1090
      %v1555 = vpop.f32.mrb[0].mxu0
      %v1556 = vadd.f32 0.0, %v1555
      %v1557 = vpop.f32.mrb[0].mxu0
      %1558 = vmatprep.mubr.f32.mxu0 0.0
      %1559 = vmatmul.mubr.f32.gmra.mrb[0].mxu0 %v1092
      %v1560 = vpop.f32.mrb[0].mxu0
      %v1561 = vadd.f32 0.0, %v1560
      %v1562 = vpop.f32.mrb[0].mxu0
      %1563 = vmatprep.mubr.f32.mxu0 0.0
      %1564 = vmatmul.mubr.f32.gmra.mrb[0].mxu0 %v1094
      %v1565 = vpop.f32.mrb[0].mxu0
      %v1566 = vadd.f32 0.0, %v1565
      %v1567 = vpop.f32.mrb[0].mxu0
      %1568 = vmatprep.mubr.f32.mxu0 0.0
      %1569 = vmatmul.mubr.f32.gmra.mrb[0].mxu0 %v1096
      %v1570 = vpop.f32.mrb[0].mxu0
      %v1571 = vadd.f32 0.0, %v1570
      %v1572 = vpop.f32.mrb[0].mxu0
      %1573 = vmatprep.mubr.f32.mxu0 0.0
      %1574 = vmatmul.mubr.f32.gmra.mrb[0].mxu0 %v1098
      %v1575 = vpop.f32.mrb[0].mxu0
      %v1576 = vadd.f32 0.0, %v1575
      %v1577 = vpop.f32.mrb[0].mxu0
      %1578 = vmatprep.mubr.f32.mxu0 0.0
      %1579 = vmatmul.mubr.f32.gmra.mrb[0].mxu0 %v1474
      %v1580 = vpop.f32.mrb[0].mxu0
      %v1581 = vadd.f32 0.0, %v1580
      %v1582 = vpop.f32.mrb[0].mxu0
      %1583 = vdwg.mxu0
      %v1584 = vadd.f32 %v1461, %v1546
      %v1585 = vadd.f32 %v1462, %v1551
      %v1586 = vadd.f32 %v1463, %v1556
      %v1587 = vadd.f32 %v1464, %v1561
      %v1588 = vadd.f32 %v1465, %v1566
      %v1589 = vadd.f32 %v1466, %v1571
      %v1590 = vadd.f32 %v1467, %v1576
      %v1591 = vadd.f32 %v1468, %v1581
      %s1592 = scalar_lea.vmem %s1, 24
      %v1593 = vld [vmem:[%s1592] sm:$0xf]
      %v1595 = vsel %vm603, %v762, 0
      %v1598 = vsel %vm824, %v1593, 0
      %1600 = vmatprep.subr.mxu0 0.0
      %1601 = vmatpush1.msra.mxu0 %v1598
      %1602 = vmatprep.subr.mxu0 0.0
      %1603 = vmatpush1.msra.mxu0 0.0
      %1604 = vmatprep.subr.mxu0 0.0
      %1605 = vmatpush1.msra.mxu0 0.0
      %1606 = vmatprep.subr.mxu0 0.0
      %1607 = vmatpush1.msra.mxu0 0.0
      %1608 = vmatprep.subr.mxu0 0.0
      %1609 = vmatpush1.msra.mxu0 0.0
      %1610 = vmatprep.subr.mxu0 0.0
      %1611 = vmatpush1.msra.mxu0 0.0
      %1612 = vmatprep.subr.mxu0 0.0
      %1613 = vmatpush1.msra.mxu0 0.0
      %1614 = vmatprep.subr.mxu0 0.0
      %1615 = vmatpush1.msra.mxu0 0.0
      %1616 = vmatprep.subr.mxu0 0.0
      %1617 = vmatpush1.msra.mxu0 0.0
      %1618 = vmatprep.subr.mxu0 0.0
      %1619 = vmatpush1.msra.mxu0 0.0
      %1620 = vmatprep.subr.mxu0 0.0
      %1621 = vmatpush1.msra.mxu0 0.0
      %1622 = vmatprep.subr.mxu0 0.0
      %1623 = vmatpush1.msra.mxu0 0.0
      %1624 = vmatprep.subr.mxu0 0.0
      %1625 = vmatpush1.msra.mxu0 0.0
      %1626 = vmatprep.subr.mxu0 0.0
      %1627 = vmatpush1.msra.mxu0 0.0
      %1628 = vmatprep.subr.mxu0 0.0
      %1629 = vmatpush1.msra.mxu0 0.0
      %1630 = vmatprep.subr.mxu0 0.0
      %1631 = vmatpush1.msra.mxu0 0.0
      %1632 = vmatprep.subr.mxu0 0.0
      %1633 = vmatpush1.msra.mxu0 0.0
      %1634 = vmatprep.subr.mxu0 0.0
      %1635 = vmatpush1.msra.mxu0 0.0
      %1636 = vmatprep.subr.mxu0 0.0
      %1637 = vmatpush1.msra.mxu0 0.0
      %1638 = vmatprep.subr.mxu0 0.0
      %1639 = vmatpush1.msra.mxu0 0.0
      %1640 = vmatprep.subr.mxu0 0.0
      %1641 = vmatpush1.msra.mxu0 0.0
      %1642 = vmatprep.subr.mxu0 0.0
      %1643 = vmatpush1.msra.mxu0 0.0
      %1644 = vmatprep.subr.mxu0 0.0
      %1645 = vmatpush1.msra.mxu0 0.0
      %1646 = vmatprep.subr.mxu0 0.0
      %1647 = vmatpush1.msra.mxu0 0.0
      %1648 = vmatprep.subr.mxu0 0.0
      %1649 = vmatpush1.msra.mxu0 0.0
      %1650 = vmatprep.subr.mxu0 0.0
      %1651 = vmatpush1.msra.mxu0 0.0
      %1652 = vmatprep.subr.mxu0 0.0
      %1653 = vmatpush1.msra.mxu0 0.0
      %1654 = vmatprep.subr.mxu0 0.0
      %1655 = vmatpush1.msra.mxu0 0.0
      %1656 = vmatprep.subr.mxu0 0.0
      %1657 = vmatpush1.msra.mxu0 0.0
      %1658 = vmatprep.subr.mxu0 0.0
      %1659 = vmatpush1.msra.mxu0 0.0
      %1660 = vmatprep.subr.mxu0 0.0
      %1661 = vmatpush1.msra.mxu0 0.0
      %1662 = vmatprep.subr.mxu0 0.0
      %1663 = vmatpush1.msra.mxu0 0.0
      %1664 = vmatprep.mubr.f32.mxu0 0.0
      %1665 = vmatmul.mubr.f32.gmra.mrb[0].mxu0 %v937
      %v1666 = vpop.f32.mrb[0].mxu0
      %v1667 = vadd.f32 0.0, %v1666
      %v1668 = vpop.f32.mrb[0].mxu0
      %1669 = vmatprep.mubr.f32.mxu0 0.0
      %1670 = vmatmul.mubr.f32.gmra.mrb[0].mxu0 %v939
      %v1671 = vpop.f32.mrb[0].mxu0
      %v1672 = vadd.f32 0.0, %v1671
      %v1673 = vpop.f32.mrb[0].mxu0
      %1674 = vmatprep.mubr.f32.mxu0 0.0
      %1675 = vmatmul.mubr.f32.gmra.mrb[0].mxu0 %v941
      %v1676 = vpop.f32.mrb[0].mxu0
      %v1677 = vadd.f32 0.0, %v1676
      %v1678 = vpop.f32.mrb[0].mxu0
      %1679 = vmatprep.mubr.f32.mxu0 0.0
      %1680 = vmatmul.mubr.f32.gmra.mrb[0].mxu0 %v943
      %v1681 = vpop.f32.mrb[0].mxu0
      %v1682 = vadd.f32 0.0, %v1681
      %v1683 = vpop.f32.mrb[0].mxu0
      %1684 = vmatprep.mubr.f32.mxu0 0.0
      %1685 = vmatmul.mubr.f32.gmra.mrb[0].mxu0 %v945
      %v1686 = vpop.f32.mrb[0].mxu0
      %v1687 = vadd.f32 0.0, %v1686
      %v1688 = vpop.f32.mrb[0].mxu0
      %1689 = vmatprep.mubr.f32.mxu0 0.0
      %1690 = vmatmul.mubr.f32.gmra.mrb[0].mxu0 %v947
      %v1691 = vpop.f32.mrb[0].mxu0
      %v1692 = vadd.f32 0.0, %v1691
      %v1693 = vpop.f32.mrb[0].mxu0
      %1694 = vmatprep.mubr.f32.mxu0 0.0
      %1695 = vmatmul.mubr.f32.gmra.mrb[0].mxu0 %v1219
      %v1696 = vpop.f32.mrb[0].mxu0
      %v1697 = vadd.f32 0.0, %v1696
      %v1698 = vpop.f32.mrb[0].mxu0
      %1699 = vmatprep.mubr.f32.mxu0 0.0
      %1700 = vmatmul.mubr.f32.gmra.mrb[0].mxu0 %v1595
      %v1701 = vpop.f32.mrb[0].mxu0
      %v1702 = vadd.f32 0.0, %v1701
      %v1703 = vpop.f32.mrb[0].mxu0
      %1704 = vdwg.mxu0
      %v1705 = vadd.f32 %v1584, %v1667
      %v1706 = vadd.f32 %v1585, %v1672
      %v1707 = vadd.f32 %v1586, %v1677
      %v1708 = vadd.f32 %v1587, %v1682
      %v1709 = vadd.f32 %v1588, %v1687
      %v1710 = vadd.f32 %v1589, %v1692
      %v1711 = vadd.f32 %v1590, %v1697
      %v1712 = vadd.f32 %v1591, %v1702
      %v1714 = vrot.slane %v762, 1
      %v1715 = vrot.slane %v763, 1
      %v1716 = vsel %vm781, %v1714, %v1715
      %s1717 = scalar_lea.vmem %s1, 28
      %v1718 = vld [vmem:[%s1717] sm:$0xf]
      %v1719 = vsel %vm603, %v1716, 0
      %v1722 = vsel %vm824, %v1718, 0
      %1724 = vmatprep.subr.mxu0 0.0
      %1725 = vmatpush1.msra.mxu0 %v1722
      %1726 = vmatprep.subr.mxu0 0.0
      %1727 = vmatpush1.msra.mxu0 0.0
      %1728 = vmatprep.subr.mxu0 0.0
      %1729 = vmatpush1.msra.mxu0 0.0
      %1730 = vmatprep.subr.mxu0 0.0
      %1731 = vmatpush1.msra.mxu0 0.0
      %1732 = vmatprep.subr.mxu0 0.0
      %1733 = vmatpush1.msra.mxu0 0.0
      %1734 = vmatprep.subr.mxu0 0.0
      %1735 = vmatpush1.msra.mxu0 0.0
      %1736 = vmatprep.subr.mxu0 0.0
      %1737 = vmatpush1.msra.mxu0 0.0
      %1738 = vmatprep.subr.mxu0 0.0
      %1739 = vmatpush1.msra.mxu0 0.0
      %1740 = vmatprep.subr.mxu0 0.0
      %1741 = vmatpush1.msra.mxu0 0.0
      %1742 = vmatprep.subr.mxu0 0.0
      %1743 = vmatpush1.msra.mxu0 0.0
      %1744 = vmatprep.subr.mxu0 0.0
      %1745 = vmatpush1.msra.mxu0 0.0
      %1746 = vmatprep.subr.mxu0 0.0
      %1747 = vmatpush1.msra.mxu0 0.0
      %1748 = vmatprep.subr.mxu0 0.0
      %1749 = vmatpush1.msra.mxu0 0.0
      %1750 = vmatprep.subr.mxu0 0.0
      %1751 = vmatpush1.msra.mxu0 0.0
      %1752 = vmatprep.subr.mxu0 0.0
      %1753 = vmatpush1.msra.mxu0 0.0
      %1754 = vmatprep.subr.mxu0 0.0
      %1755 = vmatpush1.msra.mxu0 0.0
      %1756 = vmatprep.subr.mxu0 0.0
      %1757 = vmatpush1.msra.mxu0 0.0
      %1758 = vmatprep.subr.mxu0 0.0
      %1759 = vmatpush1.msra.mxu0 0.0
      %1760 = vmatprep.subr.mxu0 0.0
      %1761 = vmatpush1.msra.mxu0 0.0
      %1762 = vmatprep.subr.mxu0 0.0
      %1763 = vmatpush1.msra.mxu0 0.0
      %1764 = vmatprep.subr.mxu0 0.0
      %1765 = vmatpush1.msra.mxu0 0.0
      %1766 = vmatprep.subr.mxu0 0.0
      %1767 = vmatpush1.msra.mxu0 0.0
      %1768 = vmatprep.subr.mxu0 0.0
      %1769 = vmatpush1.msra.mxu0 0.0
      %1770 = vmatprep.subr.mxu0 0.0
      %1771 = vmatpush1.msra.mxu0 0.0
      %1772 = vmatprep.subr.mxu0 0.0
      %1773 = vmatpush1.msra.mxu0 0.0
      %1774 = vmatprep.subr.mxu0 0.0
      %1775 = vmatpush1.msra.mxu0 0.0
      %1776 = vmatprep.subr.mxu0 0.0
      %1777 = vmatpush1.msra.mxu0 0.0
      %1778 = vmatprep.subr.mxu0 0.0
      %1779 = vmatpush1.msra.mxu0 0.0
      %1780 = vmatprep.subr.mxu0 0.0
      %1781 = vmatpush1.msra.mxu0 0.0
      %1782 = vmatprep.subr.mxu0 0.0
      %1783 = vmatpush1.msra.mxu0 0.0
      %1784 = vmatprep.subr.mxu0 0.0
      %1785 = vmatpush1.msra.mxu0 0.0
      %1786 = vmatprep.subr.mxu0 0.0
      %1787 = vmatpush1.msra.mxu0 0.0
      %1788 = vmatprep.mubr.f32.mxu0 0.0
      %1789 = vmatmul.mubr.f32.gmra.mrb[0].mxu0 %v812
      %v1790 = vpop.f32.mrb[0].mxu0
      %v1791 = vadd.f32 0.0, %v1790
      %v1792 = vpop.f32.mrb[0].mxu0
      %1793 = vmatprep.mubr.f32.mxu0 0.0
      %1794 = vmatmul.mubr.f32.gmra.mrb[0].mxu0 %v814
      %v1795 = vpop.f32.mrb[0].mxu0
      %v1796 = vadd.f32 0.0, %v1795
      %v1797 = vpop.f32.mrb[0].mxu0
      %1798 = vmatprep.mubr.f32.mxu0 0.0
      %1799 = vmatmul.mubr.f32.gmra.mrb[0].mxu0 %v816
      %v1800 = vpop.f32.mrb[0].mxu0
      %v1801 = vadd.f32 0.0, %v1800
      %v1802 = vpop.f32.mrb[0].mxu0
      %1803 = vmatprep.mubr.f32.mxu0 0.0
      %1804 = vmatmul.mubr.f32.gmra.mrb[0].mxu0 %v818
      %v1805 = vpop.f32.mrb[0].mxu0
      %v1806 = vadd.f32 0.0, %v1805
      %v1807 = vpop.f32.mrb[0].mxu0
      %1808 = vmatprep.mubr.f32.mxu0 0.0
      %1809 = vmatmul.mubr.f32.gmra.mrb[0].mxu0 %v820
      %v1810 = vpop.f32.mrb[0].mxu0
      %v1811 = vadd.f32 0.0, %v1810
      %v1812 = vpop.f32.mrb[0].mxu0
      %1813 = vmatprep.mubr.f32.mxu0 0.0
      %1814 = vmatmul.mubr.f32.gmra.mrb[0].mxu0 %v822
      %v1815 = vpop.f32.mrb[0].mxu0
      %v1816 = vadd.f32 0.0, %v1815
      %v1817 = vpop.f32.mrb[0].mxu0
      %1818 = vmatprep.mubr.f32.mxu0 0.0
      %1819 = vmatmul.mubr.f32.gmra.mrb[0].mxu0 %v1351
      %v1820 = vpop.f32.mrb[0].mxu0
      %v1821 = vadd.f32 0.0, %v1820
      %v1822 = vpop.f32.mrb[0].mxu0
      %1823 = vmatprep.mubr.f32.mxu0 0.0
      %1824 = vmatmul.mubr.f32.gmra.mrb[0].mxu0 %v1719
      %v1825 = vpop.f32.mrb[0].mxu0
      %v1826 = vadd.f32 0.0, %v1825
      %v1827 = vpop.f32.mrb[0].mxu0
      %1828 = vdwg.mxu0
      %v1829 = vadd.f32 %v1705, %v1791
      %v1830 = vadd.f32 %v1706, %v1796
      %v1831 = vadd.f32 %v1707, %v1801
      %v1832 = vadd.f32 %v1708, %v1806
      %v1833 = vadd.f32 %v1709, %v1811
      %v1834 = vadd.f32 %v1710, %v1816
      %v1835 = vadd.f32 %v1711, %v1821
      %v1836 = vadd.f32 %v1712, %v1826
      %v1837 = vrot.slane %v762, 2
      %v1838 = vrot.slane %v763, 2
      %v1839 = vsel %vm1057, %v1837, %v1838
      %s1840 = scalar_lea.vmem %s1, 32
      %v1841 = vld [vmem:[%s1840] sm:$0xf]
      %v1842 = vsel %vm603, %v1839, 0
      %v1845 = vsel %vm824, %v1841, 0
      %1847 = vmatprep.subr.mxu0 0.0
      %1848 = vmatpush1.msra.mxu0 %v1845
      %1849 = vmatprep.subr.mxu0 0.0
      %1850 = vmatpush1.msra.mxu0 0.0
      %1851 = vmatprep.subr.mxu0 0.0
      %1852 = vmatpush1.msra.mxu0 0.0
      %1853 = vmatprep.subr.mxu0 0.0
      %1854 = vmatpush1.msra.mxu0 0.0
      %1855 = vmatprep.subr.mxu0 0.0
      %1856 = vmatpush1.msra.mxu0 0.0
      %1857 = vmatprep.subr.mxu0 0.0
      %1858 = vmatpush1.msra.mxu0 0.0
      %1859 = vmatprep.subr.mxu0 0.0
      %1860 = vmatpush1.msra.mxu0 0.0
      %1861 = vmatprep.subr.mxu0 0.0
      %1862 = vmatpush1.msra.mxu0 0.0
      %1863 = vmatprep.subr.mxu0 0.0
      %1864 = vmatpush1.msra.mxu0 0.0
      %1865 = vmatprep.subr.mxu0 0.0
      %1866 = vmatpush1.msra.mxu0 0.0
      %1867 = vmatprep.subr.mxu0 0.0
      %1868 = vmatpush1.msra.mxu0 0.0
      %1869 = vmatprep.subr.mxu0 0.0
      %1870 = vmatpush1.msra.mxu0 0.0
      %1871 = vmatprep.subr.mxu0 0.0
      %1872 = vmatpush1.msra.mxu0 0.0
      %1873 = vmatprep.subr.mxu0 0.0
      %1874 = vmatpush1.msra.mxu0 0.0
      %1875 = vmatprep.subr.mxu0 0.0
      %1876 = vmatpush1.msra.mxu0 0.0
      %1877 = vmatprep.subr.mxu0 0.0
      %1878 = vmatpush1.msra.mxu0 0.0
      %1879 = vmatprep.subr.mxu0 0.0
      %1880 = vmatpush1.msra.mxu0 0.0
      %1881 = vmatprep.subr.mxu0 0.0
      %1882 = vmatpush1.msra.mxu0 0.0
      %1883 = vmatprep.subr.mxu0 0.0
      %1884 = vmatpush1.msra.mxu0 0.0
      %1885 = vmatprep.subr.mxu0 0.0
      %1886 = vmatpush1.msra.mxu0 0.0
      %1887 = vmatprep.subr.mxu0 0.0
      %1888 = vmatpush1.msra.mxu0 0.0
      %1889 = vmatprep.subr.mxu0 0.0
      %1890 = vmatpush1.msra.mxu0 0.0
      %1891 = vmatprep.subr.mxu0 0.0
      %1892 = vmatpush1.msra.mxu0 0.0
      %1893 = vmatprep.subr.mxu0 0.0
      %1894 = vmatpush1.msra.mxu0 0.0
      %1895 = vmatprep.subr.mxu0 0.0
      %1896 = vmatpush1.msra.mxu0 0.0
      %1897 = vmatprep.subr.mxu0 0.0
      %1898 = vmatpush1.msra.mxu0 0.0
      %1899 = vmatprep.subr.mxu0 0.0
      %1900 = vmatpush1.msra.mxu0 0.0
      %1901 = vmatprep.subr.mxu0 0.0
      %1902 = vmatpush1.msra.mxu0 0.0
      %1903 = vmatprep.subr.mxu0 0.0
      %1904 = vmatpush1.msra.mxu0 0.0
      %1905 = vmatprep.subr.mxu0 0.0
      %1906 = vmatpush1.msra.mxu0 0.0
      %1907 = vmatprep.subr.mxu0 0.0
      %1908 = vmatpush1.msra.mxu0 0.0
      %1909 = vmatprep.subr.mxu0 0.0
      %1910 = vmatpush1.msra.mxu0 0.0
      %1911 = vmatprep.mubr.f32.mxu0 0.0
      %1912 = vmatmul.mubr.f32.gmra.mrb[0].mxu0 %v1088
      %v1913 = vpop.f32.mrb[0].mxu0
      %v1914 = vadd.f32 0.0, %v1913
      %v1915 = vpop.f32.mrb[0].mxu0
      %1916 = vmatprep.mubr.f32.mxu0 0.0
      %1917 = vmatmul.mubr.f32.gmra.mrb[0].mxu0 %v1090
      %v1918 = vpop.f32.mrb[0].mxu0
      %v1919 = vadd.f32 0.0, %v1918
      %v1920 = vpop.f32.mrb[0].mxu0
      %1921 = vmatprep.mubr.f32.mxu0 0.0
      %1922 = vmatmul.mubr.f32.gmra.mrb[0].mxu0 %v1092
      %v1923 = vpop.f32.mrb[0].mxu0
      %v1924 = vadd.f32 0.0, %v1923
      %v1925 = vpop.f32.mrb[0].mxu0
      %1926 = vmatprep.mubr.f32.mxu0 0.0
      %1927 = vmatmul.mubr.f32.gmra.mrb[0].mxu0 %v1094
      %v1928 = vpop.f32.mrb[0].mxu0
      %v1929 = vadd.f32 0.0, %v1928
      %v1930 = vpop.f32.mrb[0].mxu0
      %1931 = vmatprep.mubr.f32.mxu0 0.0
      %1932 = vmatmul.mubr.f32.gmra.mrb[0].mxu0 %v1096
      %v1933 = vpop.f32.mrb[0].mxu0
      %v1934 = vadd.f32 0.0, %v1933
      %v1935 = vpop.f32.mrb[0].mxu0
      %1936 = vmatprep.mubr.f32.mxu0 0.0
      %1937 = vmatmul.mubr.f32.gmra.mrb[0].mxu0 %v1098
      %v1938 = vpop.f32.mrb[0].mxu0
      %v1939 = vadd.f32 0.0, %v1938
      %v1940 = vpop.f32.mrb[0].mxu0
      %1941 = vmatprep.mubr.f32.mxu0 0.0
      %1942 = vmatmul.mubr.f32.gmra.mrb[0].mxu0 %v1474
      %v1943 = vpop.f32.mrb[0].mxu0
      %v1944 = vadd.f32 0.0, %v1943
      %v1945 = vpop.f32.mrb[0].mxu0
      %1946 = vmatprep.mubr.f32.mxu0 0.0
      %1947 = vmatmul.mubr.f32.gmra.mrb[0].mxu0 %v1842
      %v1948 = vpop.f32.mrb[0].mxu0
      %v1949 = vadd.f32 0.0, %v1948
      %v1950 = vpop.f32.mrb[0].mxu0
      %1951 = vdwg.mxu0
      %v1952 = vadd.f32 %v1829, %v1914
      %v1953 = vadd.f32 %v1830, %v1919
      %v1954 = vadd.f32 %v1831, %v1924
      %v1955 = vadd.f32 %v1832, %v1929
      %v1956 = vadd.f32 %v1833, %v1934
      %v1957 = vadd.f32 %v1834, %v1939
      %v1958 = vadd.f32 %v1835, %v1944
      %v1959 = vadd.f32 %v1836, %v1949
      %v1960 = vsel %vm603, %v1952, 0.0
      %v1961 = vsel %vm603, %v1953, 0.0
      %v1962 = vadd.f32 %v1960, %v1961
      %v1963 = vsel %vm603, %v1954, 0.0
      %v1964 = vadd.f32 %v1962, %v1963
      %v1965 = vsel %vm603, %v1955, 0.0
      %v1966 = vadd.f32 %v1964, %v1965
      %v1967 = vsel %vm603, %v1956, 0.0
      %v1968 = vadd.f32 %v1966, %v1967
      %v1969 = vsel %vm603, %v1957, 0.0
      %v1970 = vadd.f32 %v1968, %v1969
      %v1971 = vsel %vm603, %v1958, 0.0
      %v1972 = vadd.f32 %v1970, %v1971
      %v1973 = vsel %vm603, %v1959, 0.0
      %v1974 = vadd.f32 %v1972, %v1973
      %1975 = vadd.xlane.f32.xlu0 %v1974
      %v1976 = vpop.xlane.xlu0 %1975
      %v1977 = vrot.slane %v1976, 4
      %v1978 = vadd.f32 %v1976, %v1977
      %v1979 = vrot.slane %v1978, 2
      %v1980 = vadd.f32 %v1978, %v1979
      %v1981 = vrot.slane %v1980, 1
      %v1982 = vadd.f32 %v1980, %v1981
      %s1983 = vtos %v1982
      %v1984 = vstv %s1983
      %v1985 = vmul.f32 %v1952, %v1952
      %v1986 = vmul.f32 %v1953, %v1953
      %v1987 = vmul.f32 %v1954, %v1954
      %v1988 = vmul.f32 %v1955, %v1955
      %v1989 = vmul.f32 %v1956, %v1956
      %v1990 = vmul.f32 %v1957, %v1957
      %v1991 = vmul.f32 %v1958, %v1958
      %v1992 = vmul.f32 %v1959, %v1959
      %v1993 = vsel %vm603, %v1985, 0.0
      %v1994 = vsel %vm603, %v1986, 0.0
      %v1995 = vadd.f32 %v1993, %v1994
      %v1996 = vsel %vm603, %v1987, 0.0
      %v1997 = vadd.f32 %v1995, %v1996
      %v1998 = vsel %vm603, %v1988, 0.0
      %v1999 = vadd.f32 %v1997, %v1998
      %v2000 = vsel %vm603, %v1989, 0.0
      %v2001 = vadd.f32 %v1999, %v2000
      %v2002 = vsel %vm603, %v1990, 0.0
      %v2003 = vadd.f32 %v2001, %v2002
      %v2004 = vsel %vm603, %v1991, 0.0
      %v2005 = vadd.f32 %v2003, %v2004
      %v2006 = vsel %vm603, %v1992, 0.0
      %v2007 = vadd.f32 %v2005, %v2006
      %2008 = vadd.xlane.f32.xlu0 %v2007
      %v2009 = vpop.xlane.xlu0 %2008
      %v2010 = vrot.slane %v2009, 4
      %v2011 = vadd.f32 %v2009, %v2010
      %v2012 = vrot.slane %v2011, 2
      %v2013 = vadd.f32 %v2011, %v2012
      %v2014 = vrot.slane %v2013, 1
      %v2015 = vadd.f32 %v2013, %v2014
      %s2016 = vtos %v2015
      %v2017 = vstv %s2016
      %v2018 = vmul.f32 %v1984, 0.00390625
      %v2019 = vmul.f32 %v2017, 0.00390625
      %v2020 = vmul.f32 %v2018, %v2018
      %v2021 = vsub.f32 %v2019, %v2020
      %v2022 = vmax.f32 %v2021, 0.0
      %v2023 = vsub.f32 %v1952, %v2018
      %v2024 = vsub.f32 %v1953, %v2018
      %v2025 = vsub.f32 %v1954, %v2018
      %v2026 = vsub.f32 %v1955, %v2018
      %v2027 = vsub.f32 %v1956, %v2018
      %v2028 = vsub.f32 %v1957, %v2018
      %v2029 = vsub.f32 %v1958, %v2018
      %v2030 = vsub.f32 %v1959, %v2018
      %v2031 = vadd.f32 %v2022, 1e-05
      %v2032 = vrsqrt.pop %v2031
      %v2033 = vmul.f32 %v2023, %v2032
      %v2034 = vmul.f32 %v2024, %v2032
      %v2035 = vmul.f32 %v2025, %v2032
      %v2036 = vmul.f32 %v2026, %v2032
      %v2037 = vmul.f32 %v2027, %v2032
      %v2038 = vmul.f32 %v2028, %v2032
      %v2039 = vmul.f32 %v2029, %v2032
      %v2040 = vmul.f32 %v2030, %v2032
      %v2042 = vlaneseq
      %v2043 = vshrl.u32 %v2042, 7
      %v2044 = vsub.s32 0, %v2043
      %v2045 = vrot.slane %v740, %v2044
      %v2047 = vmul.f32 %v2033, %v2045
      %v2048 = vmul.f32 %v2034, %v2045
      %v2049 = vmul.f32 %v2035, %v2045
      %v2050 = vmul.f32 %v2036, %v2045
      %v2051 = vmul.f32 %v2037, %v2045
      %v2052 = vmul.f32 %v2038, %v2045
      %v2053 = vmul.f32 %v2039, %v2045
      %v2054 = vmul.f32 %v2040, %v2045
      %v2056 = vlaneseq
      %v2057 = vshrl.u32 %v2056, 7
      %v2058 = vsub.s32 0, %v2057
      %v2059 = vrot.slane %v741, %v2058
      %v2061 = vadd.f32 %v2047, %v2059
      %v2062 = vadd.f32 %v2048, %v2059
      %v2063 = vadd.f32 %v2049, %v2059
      %v2064 = vadd.f32 %v2050, %v2059
      %v2065 = vadd.f32 %v2051, %v2059
      %v2066 = vadd.f32 %v2052, %v2059
      %v2067 = vadd.f32 %v2053, %v2059
      %v2068 = vadd.f32 %v2054, %v2059
      %v2069 = vmul.f32 %v2061, 0.5
      %v2070 = vmul.f32 %v2062, 0.5
      %v2071 = vmul.f32 %v2063, 0.5
      %v2072 = vmul.f32 %v2064, 0.5
      %v2073 = vmul.f32 %v2065, 0.5
      %v2074 = vmul.f32 %v2066, 0.5
      %v2075 = vmul.f32 %v2067, 0.5
      %v2076 = vmul.f32 %v2068, 0.5
      %v2077 = vmul.f32 %v2061, 0.70710677
      %v2078 = vmul.f32 %v2062, 0.70710677
      %v2079 = vmul.f32 %v2063, 0.70710677
      %v2080 = vmul.f32 %v2064, 0.70710677
      %v2081 = vmul.f32 %v2065, 0.70710677
      %v2082 = vmul.f32 %v2066, 0.70710677
      %v2083 = vmul.f32 %v2067, 0.70710677
      %v2084 = vmul.f32 %v2068, 0.70710677
      %vm2085 = vcmp.ge.f32.partialorder %v2077, 0.0
      %vm2086 = vcmp.ge.f32.partialorder %v2078, 0.0
      %vm2087 = vcmp.ge.f32.partialorder %v2079, 0.0
      %vm2088 = vcmp.ge.f32.partialorder %v2080, 0.0
      %vm2089 = vcmp.ge.f32.partialorder %v2081, 0.0
      %vm2090 = vcmp.ge.f32.partialorder %v2082, 0.0
      %vm2091 = vcmp.ge.f32.partialorder %v2083, 0.0
      %vm2092 = vcmp.ge.f32.partialorder %v2084, 0.0
      %v2093 = vsel %vm2085, 1.0, -1.0
      %v2094 = vsel %vm2086, 1.0, -1.0
      %v2095 = vsel %vm2087, 1.0, -1.0
      %v2096 = vsel %vm2088, 1.0, -1.0
      %v2097 = vsel %vm2089, 1.0, -1.0
      %v2098 = vsel %vm2090, 1.0, -1.0
      %v2099 = vsel %vm2091, 1.0, -1.0
      %v2100 = vsel %vm2092, 1.0, -1.0
      %v2101 = vand.u32 2147483647, %v2077
      %v2102 = vand.u32 2147483647, %v2078
      %v2103 = vand.u32 2147483647, %v2079
      %v2104 = vand.u32 2147483647, %v2080
      %v2105 = vand.u32 2147483647, %v2081
      %v2106 = vand.u32 2147483647, %v2082
      %v2107 = vand.u32 2147483647, %v2083
      %v2108 = vand.u32 2147483647, %v2084
      %v2109 = vmul.f32 %v2101, 0.3275911
      %v2110 = vmul.f32 %v2102, 0.3275911
      %v2111 = vmul.f32 %v2103, 0.3275911
      %v2112 = vmul.f32 %v2104, 0.3275911
      %v2113 = vmul.f32 %v2105, 0.3275911
      %v2114 = vmul.f32 %v2106, 0.3275911
      %v2115 = vmul.f32 %v2107, 0.3275911
      %v2116 = vmul.f32 %v2108, 0.3275911
      %v2117 = vadd.f32 %v2109, 1.0
      %v2118 = vadd.f32 %v2110, 1.0
      %v2119 = vadd.f32 %v2111, 1.0
      %v2120 = vadd.f32 %v2112, 1.0
      %v2121 = vadd.f32 %v2113, 1.0
      %v2122 = vadd.f32 %v2114, 1.0
      %v2123 = vadd.f32 %v2115, 1.0
      %v2124 = vadd.f32 %v2116, 1.0
      %v2125 = vrcp.pop %v2117
      %v2126 = vrcp.pop %v2118
      %v2127 = vrcp.pop %v2119
      %v2128 = vrcp.pop %v2120
      %v2129 = vrcp.pop %v2121
      %v2130 = vrcp.pop %v2122
      %v2131 = vrcp.pop %v2123
      %v2132 = vrcp.pop %v2124
      %v2133 = vmul.f32 %v2125, 1.0614054
      %v2134 = vmul.f32 %v2126, 1.0614054
      %v2135 = vmul.f32 %v2127, 1.0614054
      %v2136 = vmul.f32 %v2128, 1.0614054
      %v2137 = vmul.f32 %v2129, 1.0614054
      %v2138 = vmul.f32 %v2130, 1.0614054
      %v2139 = vmul.f32 %v2131, 1.0614054
      %v2140 = vmul.f32 %v2132, 1.0614054
      %v2141 = vadd.f32 %v2133, -1.4531521
      %v2142 = vadd.f32 %v2134, -1.4531521
      %v2143 = vadd.f32 %v2135, -1.4531521
      %v2144 = vadd.f32 %v2136, -1.4531521
      %v2145 = vadd.f32 %v2137, -1.4531521
      %v2146 = vadd.f32 %v2138, -1.4531521
      %v2147 = vadd.f32 %v2139, -1.4531521
      %v2148 = vadd.f32 %v2140, -1.4531521
      %v2149 = vmul.f32 %v2141, %v2125
      %v2150 = vmul.f32 %v2142, %v2126
      %v2151 = vmul.f32 %v2143, %v2127
      %v2152 = vmul.f32 %v2144, %v2128
      %v2153 = vmul.f32 %v2145, %v2129
      %v2154 = vmul.f32 %v2146, %v2130
      %v2155 = vmul.f32 %v2147, %v2131
      %v2156 = vmul.f32 %v2148, %v2132
      %v2157 = vadd.f32 %v2149, 1.4214138
      %v2158 = vadd.f32 %v2150, 1.4214138
      %v2159 = vadd.f32 %v2151, 1.4214138
      %v2160 = vadd.f32 %v2152, 1.4214138
      %v2161 = vadd.f32 %v2153, 1.4214138
      %v2162 = vadd.f32 %v2154, 1.4214138
      %v2163 = vadd.f32 %v2155, 1.4214138
      %v2164 = vadd.f32 %v2156, 1.4214138
      %v2165 = vmul.f32 %v2157, %v2125
      %v2166 = vmul.f32 %v2158, %v2126
      %v2167 = vmul.f32 %v2159, %v2127
      %v2168 = vmul.f32 %v2160, %v2128
      %v2169 = vmul.f32 %v2161, %v2129
      %v2170 = vmul.f32 %v2162, %v2130
      %v2171 = vmul.f32 %v2163, %v2131
      %v2172 = vmul.f32 %v2164, %v2132
      %v2173 = vadd.f32 %v2165, -0.28449672
      %v2174 = vadd.f32 %v2166, -0.28449672
      %v2175 = vadd.f32 %v2167, -0.28449672
      %v2176 = vadd.f32 %v2168, -0.28449672
      %v2177 = vadd.f32 %v2169, -0.28449672
      %v2178 = vadd.f32 %v2170, -0.28449672
      %v2179 = vadd.f32 %v2171, -0.28449672
      %v2180 = vadd.f32 %v2172, -0.28449672
      %v2181 = vmul.f32 %v2173, %v2125
      %v2182 = vmul.f32 %v2174, %v2126
      %v2183 = vmul.f32 %v2175, %v2127
      %v2184 = vmul.f32 %v2176, %v2128
      %v2185 = vmul.f32 %v2177, %v2129
      %v2186 = vmul.f32 %v2178, %v2130
      %v2187 = vmul.f32 %v2179, %v2131
      %v2188 = vmul.f32 %v2180, %v2132
      %v2189 = vadd.f32 %v2181, 0.2548296
      %v2190 = vadd.f32 %v2182, 0.2548296
      %v2191 = vadd.f32 %v2183, 0.2548296
      %v2192 = vadd.f32 %v2184, 0.2548296
      %v2193 = vadd.f32 %v2185, 0.2548296
      %v2194 = vadd.f32 %v2186, 0.2548296
      %v2195 = vadd.f32 %v2187, 0.2548296
      %v2196 = vadd.f32 %v2188, 0.2548296
      %v2197 = vmul.f32 %v2189, %v2125
      %v2198 = vmul.f32 %v2190, %v2126
      %v2199 = vmul.f32 %v2191, %v2127
      %v2200 = vmul.f32 %v2192, %v2128
      %v2201 = vmul.f32 %v2193, %v2129
      %v2202 = vmul.f32 %v2194, %v2130
      %v2203 = vmul.f32 %v2195, %v2131
      %v2204 = vmul.f32 %v2196, %v2132
      %v2205 = vsub.f32 0.0, %v2101
      %v2206 = vsub.f32 0.0, %v2102
      %v2207 = vsub.f32 0.0, %v2103
      %v2208 = vsub.f32 0.0, %v2104
      %v2209 = vsub.f32 0.0, %v2105
      %v2210 = vsub.f32 0.0, %v2106
      %v2211 = vsub.f32 0.0, %v2107
      %v2212 = vsub.f32 0.0, %v2108
      %v2213 = vmul.f32 %v2205, %v2101
      %v2214 = vmul.f32 %v2206, %v2102
      %v2215 = vmul.f32 %v2207, %v2103
      %v2216 = vmul.f32 %v2208, %v2104
      %v2217 = vmul.f32 %v2209, %v2105
      %v2218 = vmul.f32 %v2210, %v2106
      %v2219 = vmul.f32 %v2211, %v2107
      %v2220 = vmul.f32 %v2212, %v2108
      %v2221 = vmul.f32 %v2213, 1.442695
      %v2222 = vpow.pop %v2221
      %v2223 = vmul.f32 %v2214, 1.442695
      %v2224 = vpow.pop %v2223
      %v2225 = vmul.f32 %v2215, 1.442695
      %v2226 = vpow.pop %v2225
      %v2227 = vmul.f32 %v2216, 1.442695
      %v2228 = vpow.pop %v2227
      %v2229 = vmul.f32 %v2217, 1.442695
      %v2230 = vpow.pop %v2229
      %v2231 = vmul.f32 %v2218, 1.442695
      %v2232 = vpow.pop %v2231
      %v2233 = vmul.f32 %v2219, 1.442695
      %v2234 = vpow.pop %v2233
      %v2235 = vmul.f32 %v2220, 1.442695
      %v2236 = vpow.pop %v2235
      %v2237 = vmul.f32 %v2197, %v2222
      %v2238 = vmul.f32 %v2198, %v2224
      %v2239 = vmul.f32 %v2199, %v2226
      %v2240 = vmul.f32 %v2200, %v2228
      %v2241 = vmul.f32 %v2201, %v2230
      %v2242 = vmul.f32 %v2202, %v2232
      %v2243 = vmul.f32 %v2203, %v2234
      %v2244 = vmul.f32 %v2204, %v2236
      %v2245 = vsub.f32 1.0, %v2237
      %v2246 = vsub.f32 1.0, %v2238
      %v2247 = vsub.f32 1.0, %v2239
      %v2248 = vsub.f32 1.0, %v2240
      %v2249 = vsub.f32 1.0, %v2241
      %v2250 = vsub.f32 1.0, %v2242
      %v2251 = vsub.f32 1.0, %v2243
      %v2252 = vsub.f32 1.0, %v2244
      %v2253 = vmul.f32 %v2093, %v2245
      %v2254 = vmul.f32 %v2094, %v2246
      %v2255 = vmul.f32 %v2095, %v2247
      %v2256 = vmul.f32 %v2096, %v2248
      %v2257 = vmul.f32 %v2097, %v2249
      %v2258 = vmul.f32 %v2098, %v2250
      %v2259 = vmul.f32 %v2099, %v2251
      %v2260 = vmul.f32 %v2100, %v2252
      %v2261 = vadd.f32 %v2253, 1.0
      %v2262 = vadd.f32 %v2254, 1.0
      %v2263 = vadd.f32 %v2255, 1.0
      %v2264 = vadd.f32 %v2256, 1.0
      %v2265 = vadd.f32 %v2257, 1.0
      %v2266 = vadd.f32 %v2258, 1.0
      %v2267 = vadd.f32 %v2259, 1.0
      %v2268 = vadd.f32 %v2260, 1.0
      %v2269 = vmul.f32 %v2069, %v2261
      %v2270 = vmul.f32 %v2070, %v2262
      %v2271 = vmul.f32 %v2071, %v2263
      %v2272 = vmul.f32 %v2072, %v2264
      %v2273 = vmul.f32 %v2073, %v2265
      %v2274 = vmul.f32 %v2074, %v2266
      %v2275 = vmul.f32 %v2075, %v2267
      %v2276 = vmul.f32 %v2076, %v2268
      %s2277 = scalar_lea.vmem [#allocation3], 16
      %2278 = vst.msk [vmem:[%s2277 + $0x1] sm:$0xff] %vm603, %v2269
      %2279 = vst.msk [vmem:[%s2277 + $0x11] sm:$0xff] %vm603, %v2270
      %2280 = vst.msk [vmem:[%s2277 + $0x21] sm:$0xff] %vm603, %v2271
      %2281 = vst.msk [vmem:[%s2277 + $0x31] sm:$0xff] %vm603, %v2272
      %2282 = vst.msk [vmem:[%s2277 + $0x41] sm:$0xff] %vm603, %v2273
      %2283 = vst.msk [vmem:[%s2277 + $0x51] sm:$0xff] %vm603, %v2274
      %2284 = vst.msk [vmem:[%s2277 + $0x61] sm:$0xff] %vm603, %v2275
      %2285 = vst.msk [vmem:[%s2277 + $0x71] sm:$0xff] %vm603, %v2276
      %v2286 = vld [vmem:[#allocation3] sm:$0xff]
      %v2287 = vld [vmem:[#allocation3 + $0x8] sm:$0x3]
      %v2288 = vld [vmem:[#allocation3 + $0x10] sm:$0xff]
      %v2289 = vld [vmem:[#allocation3 + $0x18] sm:$0x3]
      %v2290 = vld [vmem:[#allocation3 + $0x20] sm:$0xff]
      %v2291 = vld [vmem:[#allocation3 + $0x28] sm:$0x3]
      %v2292 = vld [vmem:[#allocation3 + $0x30] sm:$0xff]
      %v2293 = vld [vmem:[#allocation3 + $0x38] sm:$0x3]
      %v2294 = vld [vmem:[#allocation3 + $0x40] sm:$0xff]
      %v2295 = vld [vmem:[#allocation3 + $0x48] sm:$0x3]
      %v2296 = vld [vmem:[#allocation3 + $0x50] sm:$0xff]
      %v2297 = vld [vmem:[#allocation3 + $0x58] sm:$0x3]
      %v2298 = vld [vmem:[#allocation3 + $0x60] sm:$0xff]
      %v2299 = vld [vmem:[#allocation3 + $0x68] sm:$0x3]
      %v2300 = vld [vmem:[#allocation3 + $0x70] sm:$0xff]
      %v2301 = vld [vmem:[#allocation3 + $0x78] sm:$0x3]
      %v2302 = vld [vmem:[#allocation3 + $0x80] sm:$0xff]
      %v2303 = vld [vmem:[#allocation3 + $0x88] sm:$0x3]
      %v2304 = vld [vmem:[#allocation3 + $0x90] sm:$0xff]
      %v2305 = vld [vmem:[#allocation3 + $0x98] sm:$0x3]
      %v2306 = vld [vmem:[%s4] sm:$0xf]
      %v2323 = vrot.slane %v2286, 1
      %v2324 = vrot.slane %v2287, 1
      %v2325 = vsel %vm781, %v2323, %v2324
      %v2326 = vrot.slane %v2288, 1
      %v2327 = vrot.slane %v2289, 1
      %v2328 = vsel %vm781, %v2326, %v2327
      %v2329 = vrot.slane %v2290, 1
      %v2330 = vrot.slane %v2291, 1
      %v2331 = vsel %vm781, %v2329, %v2330
      %v2332 = vrot.slane %v2292, 1
      %v2333 = vrot.slane %v2293, 1
      %v2334 = vsel %vm781, %v2332, %v2333
      %v2335 = vrot.slane %v2294, 1
      %v2336 = vrot.slane %v2295, 1
      %v2337 = vsel %vm781, %v2335, %v2336
      %v2338 = vrot.slane %v2296, 1
      %v2339 = vrot.slane %v2297, 1
      %v2340 = vsel %vm781, %v2338, %v2339
      %v2341 = vrot.slane %v2298, 1
      %v2342 = vrot.slane %v2299, 1
      %v2343 = vsel %vm781, %v2341, %v2342
      %v2344 = vrot.slane %v2300, 1
      %v2345 = vrot.slane %v2301, 1
      %v2346 = vsel %vm781, %v2344, %v2345
      %s2347 = scalar_lea.vmem %s4, 4
      %v2348 = vld [vmem:[%s2347] sm:$0xf]
      %v2349 = vsel %vm603, %v2325, 0
      %v2351 = vsel %vm603, %v2328, 0
      %v2353 = vsel %vm603, %v2331, 0
      %v2355 = vsel %vm603, %v2334, 0
      %v2357 = vsel %vm603, %v2337, 0
      %v2359 = vsel %vm603, %v2340, 0
      %v2361 = vsel %vm603, %v2343, 0
      %v2363 = vsel %vm603, %v2346, 0
      %v2366 = vsel %vm824, %v2348, 0
      %2368 = vmatprep.subr.mxu0 0.0
      %2369 = vmatpush1.msra.mxu0 %v2366
      %2370 = vmatprep.subr.mxu0 0.0
      %2371 = vmatpush1.msra.mxu0 0.0
      %2372 = vmatprep.subr.mxu0 0.0
      %2373 = vmatpush1.msra.mxu0 0.0
      %2374 = vmatprep.subr.mxu0 0.0
      %2375 = vmatpush1.msra.mxu0 0.0
      %2376 = vmatprep.subr.mxu0 0.0
      %2377 = vmatpush1.msra.mxu0 0.0
      %2378 = vmatprep.subr.mxu0 0.0
      %2379 = vmatpush1.msra.mxu0 0.0
      %2380 = vmatprep.subr.mxu0 0.0
      %2381 = vmatpush1.msra.mxu0 0.0
      %2382 = vmatprep.subr.mxu0 0.0
      %2383 = vmatpush1.msra.mxu0 0.0
      %2384 = vmatprep.subr.mxu0 0.0
      %2385 = vmatpush1.msra.mxu0 0.0
      %2386 = vmatprep.subr.mxu0 0.0
      %2387 = vmatpush1.msra.mxu0 0.0
      %2388 = vmatprep.subr.mxu0 0.0
      %2389 = vmatpush1.msra.mxu0 0.0
      %2390 = vmatprep.subr.mxu0 0.0
      %2391 = vmatpush1.msra.mxu0 0.0
      %2392 = vmatprep.subr.mxu0 0.0
      %2393 = vmatpush1.msra.mxu0 0.0
      %2394 = vmatprep.subr.mxu0 0.0
      %2395 = vmatpush1.msra.mxu0 0.0
      %2396 = vmatprep.subr.mxu0 0.0
      %2397 = vmatpush1.msra.mxu0 0.0
      %2398 = vmatprep.subr.mxu0 0.0
      %2399 = vmatpush1.msra.mxu0 0.0
      %2400 = vmatprep.subr.mxu0 0.0
      %2401 = vmatpush1.msra.mxu0 0.0
      %2402 = vmatprep.subr.mxu0 0.0
      %2403 = vmatpush1.msra.mxu0 0.0
      %2404 = vmatprep.subr.mxu0 0.0
      %2405 = vmatpush1.msra.mxu0 0.0
      %2406 = vmatprep.subr.mxu0 0.0
      %2407 = vmatpush1.msra.mxu0 0.0
      %2408 = vmatprep.subr.mxu0 0.0
      %2409 = vmatpush1.msra.mxu0 0.0
      %2410 = vmatprep.subr.mxu0 0.0
      %2411 = vmatpush1.msra.mxu0 0.0
      %2412 = vmatprep.subr.mxu0 0.0
      %2413 = vmatpush1.msra.mxu0 0.0
      %2414 = vmatprep.subr.mxu0 0.0
      %2415 = vmatpush1.msra.mxu0 0.0
      %2416 = vmatprep.subr.mxu0 0.0
      %2417 = vmatpush1.msra.mxu0 0.0
      %2418 = vmatprep.subr.mxu0 0.0
      %2419 = vmatpush1.msra.mxu0 0.0
      %2420 = vmatprep.subr.mxu0 0.0
      %2421 = vmatpush1.msra.mxu0 0.0
      %2422 = vmatprep.subr.mxu0 0.0
      %2423 = vmatpush1.msra.mxu0 0.0
      %2424 = vmatprep.subr.mxu0 0.0
      %2425 = vmatpush1.msra.mxu0 0.0
      %2426 = vmatprep.subr.mxu0 0.0
      %2427 = vmatpush1.msra.mxu0 0.0
      %2428 = vmatprep.subr.mxu0 0.0
      %2429 = vmatpush1.msra.mxu0 0.0
      %2430 = vmatprep.subr.mxu0 0.0
      %2431 = vmatpush1.msra.mxu0 0.0
      %2432 = vmatprep.mubr.f32.mxu0 0.0
      %2433 = vmatmul.mubr.f32.gmra.mrb[0].mxu0 %v2349
      %v2434 = vpop.f32.mrb[0].mxu0
      %v2435 = vadd.f32 0.0, %v2434
      %v2436 = vpop.f32.mrb[0].mxu0
      %2437 = vmatprep.mubr.f32.mxu0 0.0
      %2438 = vmatmul.mubr.f32.gmra.mrb[0].mxu0 %v2351
      %v2439 = vpop.f32.mrb[0].mxu0
      %v2440 = vadd.f32 0.0, %v2439
      %v2441 = vpop.f32.mrb[0].mxu0
      %2442 = vmatprep.mubr.f32.mxu0 0.0
      %2443 = vmatmul.mubr.f32.gmra.mrb[0].mxu0 %v2353
      %v2444 = vpop.f32.mrb[0].mxu0
      %v2445 = vadd.f32 0.0, %v2444
      %v2446 = vpop.f32.mrb[0].mxu0
      %2447 = vmatprep.mubr.f32.mxu0 0.0
      %2448 = vmatmul.mubr.f32.gmra.mrb[0].mxu0 %v2355
      %v2449 = vpop.f32.mrb[0].mxu0
      %v2450 = vadd.f32 0.0, %v2449
      %v2451 = vpop.f32.mrb[0].mxu0
      %2452 = vmatprep.mubr.f32.mxu0 0.0
      %2453 = vmatmul.mubr.f32.gmra.mrb[0].mxu0 %v2357
      %v2454 = vpop.f32.mrb[0].mxu0
      %v2455 = vadd.f32 0.0, %v2454
      %v2456 = vpop.f32.mrb[0].mxu0
      %2457 = vmatprep.mubr.f32.mxu0 0.0
      %2458 = vmatmul.mubr.f32.gmra.mrb[0].mxu0 %v2359
      %v2459 = vpop.f32.mrb[0].mxu0
      %v2460 = vadd.f32 0.0, %v2459
      %v2461 = vpop.f32.mrb[0].mxu0
      %2462 = vmatprep.mubr.f32.mxu0 0.0
      %2463 = vmatmul.mubr.f32.gmra.mrb[0].mxu0 %v2361
      %v2464 = vpop.f32.mrb[0].mxu0
      %v2465 = vadd.f32 0.0, %v2464
      %v2466 = vpop.f32.mrb[0].mxu0
      %2467 = vmatprep.mubr.f32.mxu0 0.0
      %2468 = vmatmul.mubr.f32.gmra.mrb[0].mxu0 %v2363
      %v2469 = vpop.f32.mrb[0].mxu0
      %v2470 = vadd.f32 0.0, %v2469
      %v2471 = vpop.f32.mrb[0].mxu0
      %2472 = vdwg.mxu0
      %v2473 = vsel %vm603, %v2286, 0
      %v2475 = vsel %vm603, %v2288, 0
      %v2477 = vsel %vm603, %v2290, 0
      %v2479 = vsel %vm603, %v2292, 0
      %v2481 = vsel %vm603, %v2294, 0
      %v2483 = vsel %vm603, %v2296, 0
      %v2485 = vsel %vm603, %v2298, 0
      %v2487 = vsel %vm603, %v2300, 0
      %v2490 = vsel %vm824, %v2306, 0
      %2492 = vmatprep.subr.mxu0 0.0
      %2493 = vmatpush1.msra.mxu0 %v2490
      %2494 = vmatprep.subr.mxu0 0.0
      %2495 = vmatpush1.msra.mxu0 0.0
      %2496 = vmatprep.subr.mxu0 0.0
      %2497 = vmatpush1.msra.mxu0 0.0
      %2498 = vmatprep.subr.mxu0 0.0
      %2499 = vmatpush1.msra.mxu0 0.0
      %2500 = vmatprep.subr.mxu0 0.0
      %2501 = vmatpush1.msra.mxu0 0.0
      %2502 = vmatprep.subr.mxu0 0.0
      %2503 = vmatpush1.msra.mxu0 0.0
      %2504 = vmatprep.subr.mxu0 0.0
      %2505 = vmatpush1.msra.mxu0 0.0
      %2506 = vmatprep.subr.mxu0 0.0
      %2507 = vmatpush1.msra.mxu0 0.0
      %2508 = vmatprep.subr.mxu0 0.0
      %2509 = vmatpush1.msra.mxu0 0.0
      %2510 = vmatprep.subr.mxu0 0.0
      %2511 = vmatpush1.msra.mxu0 0.0
      %2512 = vmatprep.subr.mxu0 0.0
      %2513 = vmatpush1.msra.mxu0 0.0
      %2514 = vmatprep.subr.mxu0 0.0
      %2515 = vmatpush1.msra.mxu0 0.0
      %2516 = vmatprep.subr.mxu0 0.0
      %2517 = vmatpush1.msra.mxu0 0.0
      %2518 = vmatprep.subr.mxu0 0.0
      %2519 = vmatpush1.msra.mxu0 0.0
      %2520 = vmatprep.subr.mxu0 0.0
      %2521 = vmatpush1.msra.mxu0 0.0
      %2522 = vmatprep.subr.mxu0 0.0
      %2523 = vmatpush1.msra.mxu0 0.0
      %2524 = vmatprep.subr.mxu0 0.0
      %2525 = vmatpush1.msra.mxu0 0.0
      %2526 = vmatprep.subr.mxu0 0.0
      %2527 = vmatpush1.msra.mxu0 0.0
      %2528 = vmatprep.subr.mxu0 0.0
      %2529 = vmatpush1.msra.mxu0 0.0
      %2530 = vmatprep.subr.mxu0 0.0
      %2531 = vmatpush1.msra.mxu0 0.0
      %2532 = vmatprep.subr.mxu0 0.0
      %2533 = vmatpush1.msra.mxu0 0.0
      %2534 = vmatprep.subr.mxu0 0.0
      %2535 = vmatpush1.msra.mxu0 0.0
      %2536 = vmatprep.subr.mxu0 0.0
      %2537 = vmatpush1.msra.mxu0 0.0
      %2538 = vmatprep.subr.mxu0 0.0
      %2539 = vmatpush1.msra.mxu0 0.0
      %2540 = vmatprep.subr.mxu0 0.0
      %2541 = vmatpush1.msra.mxu0 0.0
      %2542 = vmatprep.subr.mxu0 0.0
      %2543 = vmatpush1.msra.mxu0 0.0
      %2544 = vmatprep.subr.mxu0 0.0
      %2545 = vmatpush1.msra.mxu0 0.0
      %2546 = vmatprep.subr.mxu0 0.0
      %2547 = vmatpush1.msra.mxu0 0.0
      %2548 = vmatprep.subr.mxu0 0.0
      %2549 = vmatpush1.msra.mxu0 0.0
      %2550 = vmatprep.subr.mxu0 0.0
      %2551 = vmatpush1.msra.mxu0 0.0
      %2552 = vmatprep.subr.mxu0 0.0
      %2553 = vmatpush1.msra.mxu0 0.0
      %2554 = vmatprep.subr.mxu0 0.0
      %2555 = vmatpush1.msra.mxu0 0.0
      %2556 = vmatprep.mubr.f32.mxu0 0.0
      %2557 = vmatmul.mubr.f32.gmra.mrb[0].mxu0 %v2473
      %v2558 = vpop.f32.mrb[0].mxu0
      %v2559 = vadd.f32 %v2435, %v2558
      %v2560 = vpop.f32.mrb[0].mxu0
      %2561 = vmatprep.mubr.f32.mxu0 0.0
      %2562 = vmatmul.mubr.f32.gmra.mrb[0].mxu0 %v2475
      %v2563 = vpop.f32.mrb[0].mxu0
      %v2564 = vadd.f32 %v2440, %v2563
      %v2565 = vpop.f32.mrb[0].mxu0
      %2566 = vmatprep.mubr.f32.mxu0 0.0
      %2567 = vmatmul.mubr.f32.gmra.mrb[0].mxu0 %v2477
      %v2568 = vpop.f32.mrb[0].mxu0
      %v2569 = vadd.f32 %v2445, %v2568
      %v2570 = vpop.f32.mrb[0].mxu0
      %2571 = vmatprep.mubr.f32.mxu0 0.0
      %2572 = vmatmul.mubr.f32.gmra.mrb[0].mxu0 %v2479
      %v2573 = vpop.f32.mrb[0].mxu0
      %v2574 = vadd.f32 %v2450, %v2573
      %v2575 = vpop.f32.mrb[0].mxu0
      %2576 = vmatprep.mubr.f32.mxu0 0.0
      %2577 = vmatmul.mubr.f32.gmra.mrb[0].mxu0 %v2481
      %v2578 = vpop.f32.mrb[0].mxu0
      %v2579 = vadd.f32 %v2455, %v2578
      %v2580 = vpop.f32.mrb[0].mxu0
      %2581 = vmatprep.mubr.f32.mxu0 0.0
      %2582 = vmatmul.mubr.f32.gmra.mrb[0].mxu0 %v2483
      %v2583 = vpop.f32.mrb[0].mxu0
      %v2584 = vadd.f32 %v2460, %v2583
      %v2585 = vpop.f32.mrb[0].mxu0
      %2586 = vmatprep.mubr.f32.mxu0 0.0
      %2587 = vmatmul.mubr.f32.gmra.mrb[0].mxu0 %v2485
      %v2588 = vpop.f32.mrb[0].mxu0
      %v2589 = vadd.f32 %v2465, %v2588
      %v2590 = vpop.f32.mrb[0].mxu0
      %2591 = vmatprep.mubr.f32.mxu0 0.0
      %2592 = vmatmul.mubr.f32.gmra.mrb[0].mxu0 %v2487
      %v2593 = vpop.f32.mrb[0].mxu0
      %v2594 = vadd.f32 %v2470, %v2593
      %v2595 = vpop.f32.mrb[0].mxu0
      %2596 = vdwg.mxu0
      %v2597 = vrot.slane %v2286, 2
      %v2598 = vrot.slane %v2287, 2
      %v2599 = vsel %vm1057, %v2597, %v2598
      %v2600 = vrot.slane %v2288, 2
      %v2601 = vrot.slane %v2289, 2
      %v2602 = vsel %vm1057, %v2600, %v2601
      %v2603 = vrot.slane %v2290, 2
      %v2604 = vrot.slane %v2291, 2
      %v2605 = vsel %vm1057, %v2603, %v2604
      %v2606 = vrot.slane %v2292, 2
      %v2607 = vrot.slane %v2293, 2
      %v2608 = vsel %vm1057, %v2606, %v2607
      %v2609 = vrot.slane %v2294, 2
      %v2610 = vrot.slane %v2295, 2
      %v2611 = vsel %vm1057, %v2609, %v2610
      %v2612 = vrot.slane %v2296, 2
      %v2613 = vrot.slane %v2297, 2
      %v2614 = vsel %vm1057, %v2612, %v2613
      %v2615 = vrot.slane %v2298, 2
      %v2616 = vrot.slane %v2299, 2
      %v2617 = vsel %vm1057, %v2615, %v2616
      %v2618 = vrot.slane %v2300, 2
      %v2619 = vrot.slane %v2301, 2
      %v2620 = vsel %vm1057, %v2618, %v2619
      %s2621 = scalar_lea.vmem %s4, 8
      %v2622 = vld [vmem:[%s2621] sm:$0xf]
      %v2623 = vsel %vm603, %v2599, 0
      %v2625 = vsel %vm603, %v2602, 0
      %v2627 = vsel %vm603, %v2605, 0
      %v2629 = vsel %vm603, %v2608, 0
      %v2631 = vsel %vm603, %v2611, 0
      %v2633 = vsel %vm603, %v2614, 0
      %v2635 = vsel %vm603, %v2617, 0
      %v2637 = vsel %vm603, %v2620, 0
      %v2640 = vsel %vm824, %v2622, 0
      %2642 = vmatprep.subr.mxu0 0.0
      %2643 = vmatpush1.msra.mxu0 %v2640
      %2644 = vmatprep.subr.mxu0 0.0
      %2645 = vmatpush1.msra.mxu0 0.0
      %2646 = vmatprep.subr.mxu0 0.0
      %2647 = vmatpush1.msra.mxu0 0.0
      %2648 = vmatprep.subr.mxu0 0.0
      %2649 = vmatpush1.msra.mxu0 0.0
      %2650 = vmatprep.subr.mxu0 0.0
      %2651 = vmatpush1.msra.mxu0 0.0
      %2652 = vmatprep.subr.mxu0 0.0
      %2653 = vmatpush1.msra.mxu0 0.0
      %2654 = vmatprep.subr.mxu0 0.0
      %2655 = vmatpush1.msra.mxu0 0.0
      %2656 = vmatprep.subr.mxu0 0.0
      %2657 = vmatpush1.msra.mxu0 0.0
      %2658 = vmatprep.subr.mxu0 0.0
      %2659 = vmatpush1.msra.mxu0 0.0
      %2660 = vmatprep.subr.mxu0 0.0
      %2661 = vmatpush1.msra.mxu0 0.0
      %2662 = vmatprep.subr.mxu0 0.0
      %2663 = vmatpush1.msra.mxu0 0.0
      %2664 = vmatprep.subr.mxu0 0.0
      %2665 = vmatpush1.msra.mxu0 0.0
      %2666 = vmatprep.subr.mxu0 0.0
      %2667 = vmatpush1.msra.mxu0 0.0
      %2668 = vmatprep.subr.mxu0 0.0
      %2669 = vmatpush1.msra.mxu0 0.0
      %2670 = vmatprep.subr.mxu0 0.0
      %2671 = vmatpush1.msra.mxu0 0.0
      %2672 = vmatprep.subr.mxu0 0.0
      %2673 = vmatpush1.msra.mxu0 0.0
      %2674 = vmatprep.subr.mxu0 0.0
      %2675 = vmatpush1.msra.mxu0 0.0
      %2676 = vmatprep.subr.mxu0 0.0
      %2677 = vmatpush1.msra.mxu0 0.0
      %2678 = vmatprep.subr.mxu0 0.0
      %2679 = vmatpush1.msra.mxu0 0.0
      %2680 = vmatprep.subr.mxu0 0.0
      %2681 = vmatpush1.msra.mxu0 0.0
      %2682 = vmatprep.subr.mxu0 0.0
      %2683 = vmatpush1.msra.mxu0 0.0
      %2684 = vmatprep.subr.mxu0 0.0
      %2685 = vmatpush1.msra.mxu0 0.0
      %2686 = vmatprep.subr.mxu0 0.0
      %2687 = vmatpush1.msra.mxu0 0.0
      %2688 = vmatprep.subr.mxu0 0.0
      %2689 = vmatpush1.msra.mxu0 0.0
      %2690 = vmatprep.subr.mxu0 0.0
      %2691 = vmatpush1.msra.mxu0 0.0
      %2692 = vmatprep.subr.mxu0 0.0
      %2693 = vmatpush1.msra.mxu0 0.0
      %2694 = vmatprep.subr.mxu0 0.0
      %2695 = vmatpush1.msra.mxu0 0.0
      %2696 = vmatprep.subr.mxu0 0.0
      %2697 = vmatpush1.msra.mxu0 0.0
      %2698 = vmatprep.subr.mxu0 0.0
      %2699 = vmatpush1.msra.mxu0 0.0
      %2700 = vmatprep.subr.mxu0 0.0
      %2701 = vmatpush1.msra.mxu0 0.0
      %2702 = vmatprep.subr.mxu0 0.0
      %2703 = vmatpush1.msra.mxu0 0.0
      %2704 = vmatprep.subr.mxu0 0.0
      %2705 = vmatpush1.msra.mxu0 0.0
      %2706 = vmatprep.mubr.f32.mxu0 0.0
      %2707 = vmatmul.mubr.f32.gmra.mrb[0].mxu0 %v2623
      %v2708 = vpop.f32.mrb[0].mxu0
      %v2709 = vadd.f32 0.0, %v2708
      %v2710 = vpop.f32.mrb[0].mxu0
      %2711 = vmatprep.mubr.f32.mxu0 0.0
      %2712 = vmatmul.mubr.f32.gmra.mrb[0].mxu0 %v2625
      %v2713 = vpop.f32.mrb[0].mxu0
      %v2714 = vadd.f32 0.0, %v2713
      %v2715 = vpop.f32.mrb[0].mxu0
      %2716 = vmatprep.mubr.f32.mxu0 0.0
      %2717 = vmatmul.mubr.f32.gmra.mrb[0].mxu0 %v2627
      %v2718 = vpop.f32.mrb[0].mxu0
      %v2719 = vadd.f32 0.0, %v2718
      %v2720 = vpop.f32.mrb[0].mxu0
      %2721 = vmatprep.mubr.f32.mxu0 0.0
      %2722 = vmatmul.mubr.f32.gmra.mrb[0].mxu0 %v2629
      %v2723 = vpop.f32.mrb[0].mxu0
      %v2724 = vadd.f32 0.0, %v2723
      %v2725 = vpop.f32.mrb[0].mxu0
      %2726 = vmatprep.mubr.f32.mxu0 0.0
      %2727 = vmatmul.mubr.f32.gmra.mrb[0].mxu0 %v2631
      %v2728 = vpop.f32.mrb[0].mxu0
      %v2729 = vadd.f32 0.0, %v2728
      %v2730 = vpop.f32.mrb[0].mxu0
      %2731 = vmatprep.mubr.f32.mxu0 0.0
      %2732 = vmatmul.mubr.f32.gmra.mrb[0].mxu0 %v2633
      %v2733 = vpop.f32.mrb[0].mxu0
      %v2734 = vadd.f32 0.0, %v2733
      %v2735 = vpop.f32.mrb[0].mxu0
      %2736 = vmatprep.mubr.f32.mxu0 0.0
      %2737 = vmatmul.mubr.f32.gmra.mrb[0].mxu0 %v2635
      %v2738 = vpop.f32.mrb[0].mxu0
      %v2739 = vadd.f32 0.0, %v2738
      %v2740 = vpop.f32.mrb[0].mxu0
      %2741 = vmatprep.mubr.f32.mxu0 0.0
      %2742 = vmatmul.mubr.f32.gmra.mrb[0].mxu0 %v2637
      %v2743 = vpop.f32.mrb[0].mxu0
      %v2744 = vadd.f32 0.0, %v2743
      %v2745 = vpop.f32.mrb[0].mxu0
      %2746 = vdwg.mxu0
      %v2747 = vadd.f32 %v2559, %v2709
      %v2748 = vadd.f32 %v2564, %v2714
      %v2749 = vadd.f32 %v2569, %v2719
      %v2750 = vadd.f32 %v2574, %v2724
      %v2751 = vadd.f32 %v2579, %v2729
      %v2752 = vadd.f32 %v2584, %v2734
      %v2753 = vadd.f32 %v2589, %v2739
      %v2754 = vadd.f32 %v2594, %v2744
      %s2755 = scalar_lea.vmem %s4, 12
      %v2756 = vld [vmem:[%s2755] sm:$0xf]
      %v2758 = vsel %vm603, %v2302, 0
      %v2761 = vsel %vm824, %v2756, 0
      %2763 = vmatprep.subr.mxu0 0.0
      %2764 = vmatpush1.msra.mxu0 %v2761
      %2765 = vmatprep.subr.mxu0 0.0
      %2766 = vmatpush1.msra.mxu0 0.0
      %2767 = vmatprep.subr.mxu0 0.0
      %2768 = vmatpush1.msra.mxu0 0.0
      %2769 = vmatprep.subr.mxu0 0.0
      %2770 = vmatpush1.msra.mxu0 0.0
      %2771 = vmatprep.subr.mxu0 0.0
      %2772 = vmatpush1.msra.mxu0 0.0
      %2773 = vmatprep.subr.mxu0 0.0
      %2774 = vmatpush1.msra.mxu0 0.0
      %2775 = vmatprep.subr.mxu0 0.0
      %2776 = vmatpush1.msra.mxu0 0.0
      %2777 = vmatprep.subr.mxu0 0.0
      %2778 = vmatpush1.msra.mxu0 0.0
      %2779 = vmatprep.subr.mxu0 0.0
      %2780 = vmatpush1.msra.mxu0 0.0
      %2781 = vmatprep.subr.mxu0 0.0
      %2782 = vmatpush1.msra.mxu0 0.0
      %2783 = vmatprep.subr.mxu0 0.0
      %2784 = vmatpush1.msra.mxu0 0.0
      %2785 = vmatprep.subr.mxu0 0.0
      %2786 = vmatpush1.msra.mxu0 0.0
      %2787 = vmatprep.subr.mxu0 0.0
      %2788 = vmatpush1.msra.mxu0 0.0
      %2789 = vmatprep.subr.mxu0 0.0
      %2790 = vmatpush1.msra.mxu0 0.0
      %2791 = vmatprep.subr.mxu0 0.0
      %2792 = vmatpush1.msra.mxu0 0.0
      %2793 = vmatprep.subr.mxu0 0.0
      %2794 = vmatpush1.msra.mxu0 0.0
      %2795 = vmatprep.subr.mxu0 0.0
      %2796 = vmatpush1.msra.mxu0 0.0
      %2797 = vmatprep.subr.mxu0 0.0
      %2798 = vmatpush1.msra.mxu0 0.0
      %2799 = vmatprep.subr.mxu0 0.0
      %2800 = vmatpush1.msra.mxu0 0.0
      %2801 = vmatprep.subr.mxu0 0.0
      %2802 = vmatpush1.msra.mxu0 0.0
      %2803 = vmatprep.subr.mxu0 0.0
      %2804 = vmatpush1.msra.mxu0 0.0
      %2805 = vmatprep.subr.mxu0 0.0
      %2806 = vmatpush1.msra.mxu0 0.0
      %2807 = vmatprep.subr.mxu0 0.0
      %2808 = vmatpush1.msra.mxu0 0.0
      %2809 = vmatprep.subr.mxu0 0.0
      %2810 = vmatpush1.msra.mxu0 0.0
      %2811 = vmatprep.subr.mxu0 0.0
      %2812 = vmatpush1.msra.mxu0 0.0
      %2813 = vmatprep.subr.mxu0 0.0
      %2814 = vmatpush1.msra.mxu0 0.0
      %2815 = vmatprep.subr.mxu0 0.0
      %2816 = vmatpush1.msra.mxu0 0.0
      %2817 = vmatprep.subr.mxu0 0.0
      %2818 = vmatpush1.msra.mxu0 0.0
      %2819 = vmatprep.subr.mxu0 0.0
      %2820 = vmatpush1.msra.mxu0 0.0
      %2821 = vmatprep.subr.mxu0 0.0
      %2822 = vmatpush1.msra.mxu0 0.0
      %2823 = vmatprep.subr.mxu0 0.0
      %2824 = vmatpush1.msra.mxu0 0.0
      %2825 = vmatprep.subr.mxu0 0.0
      %2826 = vmatpush1.msra.mxu0 0.0
      %2827 = vmatprep.mubr.f32.mxu0 0.0
      %2828 = vmatmul.mubr.f32.gmra.mrb[0].mxu0 %v2475
      %v2829 = vpop.f32.mrb[0].mxu0
      %v2830 = vadd.f32 0.0, %v2829
      %v2831 = vpop.f32.mrb[0].mxu0
      %2832 = vmatprep.mubr.f32.mxu0 0.0
      %2833 = vmatmul.mubr.f32.gmra.mrb[0].mxu0 %v2477
      %v2834 = vpop.f32.mrb[0].mxu0
      %v2835 = vadd.f32 0.0, %v2834
      %v2836 = vpop.f32.mrb[0].mxu0
      %2837 = vmatprep.mubr.f32.mxu0 0.0
      %2838 = vmatmul.mubr.f32.gmra.mrb[0].mxu0 %v2479
      %v2839 = vpop.f32.mrb[0].mxu0
      %v2840 = vadd.f32 0.0, %v2839
      %v2841 = vpop.f32.mrb[0].mxu0
      %2842 = vmatprep.mubr.f32.mxu0 0.0
      %2843 = vmatmul.mubr.f32.gmra.mrb[0].mxu0 %v2481
      %v2844 = vpop.f32.mrb[0].mxu0
      %v2845 = vadd.f32 0.0, %v2844
      %v2846 = vpop.f32.mrb[0].mxu0
      %2847 = vmatprep.mubr.f32.mxu0 0.0
      %2848 = vmatmul.mubr.f32.gmra.mrb[0].mxu0 %v2483
      %v2849 = vpop.f32.mrb[0].mxu0
      %v2850 = vadd.f32 0.0, %v2849
      %v2851 = vpop.f32.mrb[0].mxu0
      %2852 = vmatprep.mubr.f32.mxu0 0.0
      %2853 = vmatmul.mubr.f32.gmra.mrb[0].mxu0 %v2485
      %v2854 = vpop.f32.mrb[0].mxu0
      %v2855 = vadd.f32 0.0, %v2854
      %v2856 = vpop.f32.mrb[0].mxu0
      %2857 = vmatprep.mubr.f32.mxu0 0.0
      %2858 = vmatmul.mubr.f32.gmra.mrb[0].mxu0 %v2487
      %v2859 = vpop.f32.mrb[0].mxu0
      %v2860 = vadd.f32 0.0, %v2859
      %v2861 = vpop.f32.mrb[0].mxu0
      %2862 = vmatprep.mubr.f32.mxu0 0.0
      %2863 = vmatmul.mubr.f32.gmra.mrb[0].mxu0 %v2758
      %v2864 = vpop.f32.mrb[0].mxu0
      %v2865 = vadd.f32 0.0, %v2864
      %v2866 = vpop.f32.mrb[0].mxu0
      %2867 = vdwg.mxu0
      %v2868 = vadd.f32 %v2747, %v2830
      %v2869 = vadd.f32 %v2748, %v2835
      %v2870 = vadd.f32 %v2749, %v2840
      %v2871 = vadd.f32 %v2750, %v2845
      %v2872 = vadd.f32 %v2751, %v2850
      %v2873 = vadd.f32 %v2752, %v2855
      %v2874 = vadd.f32 %v2753, %v2860
      %v2875 = vadd.f32 %v2754, %v2865
      %v2877 = vrot.slane %v2302, 1
      %v2878 = vrot.slane %v2303, 1
      %v2879 = vsel %vm781, %v2877, %v2878
      %s2880 = scalar_lea.vmem %s4, 16
      %v2881 = vld [vmem:[%s2880] sm:$0xf]
      %v2882 = vsel %vm603, %v2879, 0
      %v2885 = vsel %vm824, %v2881, 0
      %2887 = vmatprep.subr.mxu0 0.0
      %2888 = vmatpush1.msra.mxu0 %v2885
      %2889 = vmatprep.subr.mxu0 0.0
      %2890 = vmatpush1.msra.mxu0 0.0
      %2891 = vmatprep.subr.mxu0 0.0
      %2892 = vmatpush1.msra.mxu0 0.0
      %2893 = vmatprep.subr.mxu0 0.0
      %2894 = vmatpush1.msra.mxu0 0.0
      %2895 = vmatprep.subr.mxu0 0.0
      %2896 = vmatpush1.msra.mxu0 0.0
      %2897 = vmatprep.subr.mxu0 0.0
      %2898 = vmatpush1.msra.mxu0 0.0
      %2899 = vmatprep.subr.mxu0 0.0
      %2900 = vmatpush1.msra.mxu0 0.0
      %2901 = vmatprep.subr.mxu0 0.0
      %2902 = vmatpush1.msra.mxu0 0.0
      %2903 = vmatprep.subr.mxu0 0.0
      %2904 = vmatpush1.msra.mxu0 0.0
      %2905 = vmatprep.subr.mxu0 0.0
      %2906 = vmatpush1.msra.mxu0 0.0
      %2907 = vmatprep.subr.mxu0 0.0
      %2908 = vmatpush1.msra.mxu0 0.0
      %2909 = vmatprep.subr.mxu0 0.0
      %2910 = vmatpush1.msra.mxu0 0.0
      %2911 = vmatprep.subr.mxu0 0.0
      %2912 = vmatpush1.msra.mxu0 0.0
      %2913 = vmatprep.subr.mxu0 0.0
      %2914 = vmatpush1.msra.mxu0 0.0
      %2915 = vmatprep.subr.mxu0 0.0
      %2916 = vmatpush1.msra.mxu0 0.0
      %2917 = vmatprep.subr.mxu0 0.0
      %2918 = vmatpush1.msra.mxu0 0.0
      %2919 = vmatprep.subr.mxu0 0.0
      %2920 = vmatpush1.msra.mxu0 0.0
      %2921 = vmatprep.subr.mxu0 0.0
      %2922 = vmatpush1.msra.mxu0 0.0
      %2923 = vmatprep.subr.mxu0 0.0
      %2924 = vmatpush1.msra.mxu0 0.0
      %2925 = vmatprep.subr.mxu0 0.0
      %2926 = vmatpush1.msra.mxu0 0.0
      %2927 = vmatprep.subr.mxu0 0.0
      %2928 = vmatpush1.msra.mxu0 0.0
      %2929 = vmatprep.subr.mxu0 0.0
      %2930 = vmatpush1.msra.mxu0 0.0
      %2931 = vmatprep.subr.mxu0 0.0
      %2932 = vmatpush1.msra.mxu0 0.0
      %2933 = vmatprep.subr.mxu0 0.0
      %2934 = vmatpush1.msra.mxu0 0.0
      %2935 = vmatprep.subr.mxu0 0.0
      %2936 = vmatpush1.msra.mxu0 0.0
      %2937 = vmatprep.subr.mxu0 0.0
      %2938 = vmatpush1.msra.mxu0 0.0
      %2939 = vmatprep.subr.mxu0 0.0
      %2940 = vmatpush1.msra.mxu0 0.0
      %2941 = vmatprep.subr.mxu0 0.0
      %2942 = vmatpush1.msra.mxu0 0.0
      %2943 = vmatprep.subr.mxu0 0.0
      %2944 = vmatpush1.msra.mxu0 0.0
      %2945 = vmatprep.subr.mxu0 0.0
      %2946 = vmatpush1.msra.mxu0 0.0
      %2947 = vmatprep.subr.mxu0 0.0
      %2948 = vmatpush1.msra.mxu0 0.0
      %2949 = vmatprep.subr.mxu0 0.0
      %2950 = vmatpush1.msra.mxu0 0.0
      %2951 = vmatprep.mubr.f32.mxu0 0.0
      %2952 = vmatmul.mubr.f32.gmra.mrb[0].mxu0 %v2351
      %v2953 = vpop.f32.mrb[0].mxu0
      %v2954 = vadd.f32 0.0, %v2953
      %v2955 = vpop.f32.mrb[0].mxu0
      %2956 = vmatprep.mubr.f32.mxu0 0.0
      %2957 = vmatmul.mubr.f32.gmra.mrb[0].mxu0 %v2353
      %v2958 = vpop.f32.mrb[0].mxu0
      %v2959 = vadd.f32 0.0, %v2958
      %v2960 = vpop.f32.mrb[0].mxu0
      %2961 = vmatprep.mubr.f32.mxu0 0.0
      %2962 = vmatmul.mubr.f32.gmra.mrb[0].mxu0 %v2355
      %v2963 = vpop.f32.mrb[0].mxu0
      %v2964 = vadd.f32 0.0, %v2963
      %v2965 = vpop.f32.mrb[0].mxu0
      %2966 = vmatprep.mubr.f32.mxu0 0.0
      %2967 = vmatmul.mubr.f32.gmra.mrb[0].mxu0 %v2357
      %v2968 = vpop.f32.mrb[0].mxu0
      %v2969 = vadd.f32 0.0, %v2968
      %v2970 = vpop.f32.mrb[0].mxu0
      %2971 = vmatprep.mubr.f32.mxu0 0.0
      %2972 = vmatmul.mubr.f32.gmra.mrb[0].mxu0 %v2359
      %v2973 = vpop.f32.mrb[0].mxu0
      %v2974 = vadd.f32 0.0, %v2973
      %v2975 = vpop.f32.mrb[0].mxu0
      %2976 = vmatprep.mubr.f32.mxu0 0.0
      %2977 = vmatmul.mubr.f32.gmra.mrb[0].mxu0 %v2361
      %v2978 = vpop.f32.mrb[0].mxu0
      %v2979 = vadd.f32 0.0, %v2978
      %v2980 = vpop.f32.mrb[0].mxu0
      %2981 = vmatprep.mubr.f32.mxu0 0.0
      %2982 = vmatmul.mubr.f32.gmra.mrb[0].mxu0 %v2363
      %v2983 = vpop.f32.mrb[0].mxu0
      %v2984 = vadd.f32 0.0, %v2983
      %v2985 = vpop.f32.mrb[0].mxu0
      %2986 = vmatprep.mubr.f32.mxu0 0.0
      %2987 = vmatmul.mubr.f32.gmra.mrb[0].mxu0 %v2882
      %v2988 = vpop.f32.mrb[0].mxu0
      %v2989 = vadd.f32 0.0, %v2988
      %v2990 = vpop.f32.mrb[0].mxu0
      %2991 = vdwg.mxu0
      %v2992 = vadd.f32 %v2868, %v2954
      %v2993 = vadd.f32 %v2869, %v2959
      %v2994 = vadd.f32 %v2870, %v2964
      %v2995 = vadd.f32 %v2871, %v2969
      %v2996 = vadd.f32 %v2872, %v2974
      %v2997 = vadd.f32 %v2873, %v2979
      %v2998 = vadd.f32 %v2874, %v2984
      %v2999 = vadd.f32 %v2875, %v2989
      %v3000 = vrot.slane %v2302, 2
      %v3001 = vrot.slane %v2303, 2
      %v3002 = vsel %vm1057, %v3000, %v3001
      %s3003 = scalar_lea.vmem %s4, 20
      %v3004 = vld [vmem:[%s3003] sm:$0xf]
      %v3005 = vsel %vm603, %v3002, 0
      %v3008 = vsel %vm824, %v3004, 0
      %3010 = vmatprep.subr.mxu0 0.0
      %3011 = vmatpush1.msra.mxu0 %v3008
      %3012 = vmatprep.subr.mxu0 0.0
      %3013 = vmatpush1.msra.mxu0 0.0
      %3014 = vmatprep.subr.mxu0 0.0
      %3015 = vmatpush1.msra.mxu0 0.0
      %3016 = vmatprep.subr.mxu0 0.0
      %3017 = vmatpush1.msra.mxu0 0.0
      %3018 = vmatprep.subr.mxu0 0.0
      %3019 = vmatpush1.msra.mxu0 0.0
      %3020 = vmatprep.subr.mxu0 0.0
      %3021 = vmatpush1.msra.mxu0 0.0
      %3022 = vmatprep.subr.mxu0 0.0
      %3023 = vmatpush1.msra.mxu0 0.0
      %3024 = vmatprep.subr.mxu0 0.0
      %3025 = vmatpush1.msra.mxu0 0.0
      %3026 = vmatprep.subr.mxu0 0.0
      %3027 = vmatpush1.msra.mxu0 0.0
      %3028 = vmatprep.subr.mxu0 0.0
      %3029 = vmatpush1.msra.mxu0 0.0
      %3030 = vmatprep.subr.mxu0 0.0
      %3031 = vmatpush1.msra.mxu0 0.0
      %3032 = vmatprep.subr.mxu0 0.0
      %3033 = vmatpush1.msra.mxu0 0.0
      %3034 = vmatprep.subr.mxu0 0.0
      %3035 = vmatpush1.msra.mxu0 0.0
      %3036 = vmatprep.subr.mxu0 0.0
      %3037 = vmatpush1.msra.mxu0 0.0
      %3038 = vmatprep.subr.mxu0 0.0
      %3039 = vmatpush1.msra.mxu0 0.0
      %3040 = vmatprep.subr.mxu0 0.0
      %3041 = vmatpush1.msra.mxu0 0.0
      %3042 = vmatprep.subr.mxu0 0.0
      %3043 = vmatpush1.msra.mxu0 0.0
      %3044 = vmatprep.subr.mxu0 0.0
      %3045 = vmatpush1.msra.mxu0 0.0
      %3046 = vmatprep.subr.mxu0 0.0
      %3047 = vmatpush1.msra.mxu0 0.0
      %3048 = vmatprep.subr.mxu0 0.0
      %3049 = vmatpush1.msra.mxu0 0.0
      %3050 = vmatprep.subr.mxu0 0.0
      %3051 = vmatpush1.msra.mxu0 0.0
      %3052 = vmatprep.subr.mxu0 0.0
      %3053 = vmatpush1.msra.mxu0 0.0
      %3054 = vmatprep.subr.mxu0 0.0
      %3055 = vmatpush1.msra.mxu0 0.0
      %3056 = vmatprep.subr.mxu0 0.0
      %3057 = vmatpush1.msra.mxu0 0.0
      %3058 = vmatprep.subr.mxu0 0.0
      %3059 = vmatpush1.msra.mxu0 0.0
      %3060 = vmatprep.subr.mxu0 0.0
      %3061 = vmatpush1.msra.mxu0 0.0
      %3062 = vmatprep.subr.mxu0 0.0
      %3063 = vmatpush1.msra.mxu0 0.0
      %3064 = vmatprep.subr.mxu0 0.0
      %3065 = vmatpush1.msra.mxu0 0.0
      %3066 = vmatprep.subr.mxu0 0.0
      %3067 = vmatpush1.msra.mxu0 0.0
      %3068 = vmatprep.subr.mxu0 0.0
      %3069 = vmatpush1.msra.mxu0 0.0
      %3070 = vmatprep.subr.mxu0 0.0
      %3071 = vmatpush1.msra.mxu0 0.0
      %3072 = vmatprep.subr.mxu0 0.0
      %3073 = vmatpush1.msra.mxu0 0.0
      %3074 = vmatprep.mubr.f32.mxu0 0.0
      %3075 = vmatmul.mubr.f32.gmra.mrb[0].mxu0 %v2625
      %v3076 = vpop.f32.mrb[0].mxu0
      %v3077 = vadd.f32 0.0, %v3076
      %v3078 = vpop.f32.mrb[0].mxu0
      %3079 = vmatprep.mubr.f32.mxu0 0.0
      %3080 = vmatmul.mubr.f32.gmra.mrb[0].mxu0 %v2627
      %v3081 = vpop.f32.mrb[0].mxu0
      %v3082 = vadd.f32 0.0, %v3081
      %v3083 = vpop.f32.mrb[0].mxu0
      %3084 = vmatprep.mubr.f32.mxu0 0.0
      %3085 = vmatmul.mubr.f32.gmra.mrb[0].mxu0 %v2629
      %v3086 = vpop.f32.mrb[0].mxu0
      %v3087 = vadd.f32 0.0, %v3086
      %v3088 = vpop.f32.mrb[0].mxu0
      %3089 = vmatprep.mubr.f32.mxu0 0.0
      %3090 = vmatmul.mubr.f32.gmra.mrb[0].mxu0 %v2631
      %v3091 = vpop.f32.mrb[0].mxu0
      %v3092 = vadd.f32 0.0, %v3091
      %v3093 = vpop.f32.mrb[0].mxu0
      %3094 = vmatprep.mubr.f32.mxu0 0.0
      %3095 = vmatmul.mubr.f32.gmra.mrb[0].mxu0 %v2633
      %v3096 = vpop.f32.mrb[0].mxu0
      %v3097 = vadd.f32 0.0, %v3096
      %v3098 = vpop.f32.mrb[0].mxu0
      %3099 = vmatprep.mubr.f32.mxu0 0.0
      %3100 = vmatmul.mubr.f32.gmra.mrb[0].mxu0 %v2635
      %v3101 = vpop.f32.mrb[0].mxu0
      %v3102 = vadd.f32 0.0, %v3101
      %v3103 = vpop.f32.mrb[0].mxu0
      %3104 = vmatprep.mubr.f32.mxu0 0.0
      %3105 = vmatmul.mubr.f32.gmra.mrb[0].mxu0 %v2637
      %v3106 = vpop.f32.mrb[0].mxu0
      %v3107 = vadd.f32 0.0, %v3106
      %v3108 = vpop.f32.mrb[0].mxu0
      %3109 = vmatprep.mubr.f32.mxu0 0.0
      %3110 = vmatmul.mubr.f32.gmra.mrb[0].mxu0 %v3005
      %v3111 = vpop.f32.mrb[0].mxu0
      %v3112 = vadd.f32 0.0, %v3111
      %v3113 = vpop.f32.mrb[0].mxu0
      %3114 = vdwg.mxu0
      %v3115 = vadd.f32 %v2992, %v3077
      %v3116 = vadd.f32 %v2993, %v3082
      %v3117 = vadd.f32 %v2994, %v3087
      %v3118 = vadd.f32 %v2995, %v3092
      %v3119 = vadd.f32 %v2996, %v3097
      %v3120 = vadd.f32 %v2997, %v3102
      %v3121 = vadd.f32 %v2998, %v3107
      %v3122 = vadd.f32 %v2999, %v3112
      %s3123 = scalar_lea.vmem %s4, 24
      %v3124 = vld [vmem:[%s3123] sm:$0xf]
      %v3126 = vsel %vm603, %v2304, 0
      %v3129 = vsel %vm824, %v3124, 0
      %3131 = vmatprep.subr.mxu0 0.0
      %3132 = vmatpush1.msra.mxu0 %v3129
      %3133 = vmatprep.subr.mxu0 0.0
      %3134 = vmatpush1.msra.mxu0 0.0
      %3135 = vmatprep.subr.mxu0 0.0
      %3136 = vmatpush1.msra.mxu0 0.0
      %3137 = vmatprep.subr.mxu0 0.0
      %3138 = vmatpush1.msra.mxu0 0.0
      %3139 = vmatprep.subr.mxu0 0.0
      %3140 = vmatpush1.msra.mxu0 0.0
      %3141 = vmatprep.subr.mxu0 0.0
      %3142 = vmatpush1.msra.mxu0 0.0
      %3143 = vmatprep.subr.mxu0 0.0
      %3144 = vmatpush1.msra.mxu0 0.0
      %3145 = vmatprep.subr.mxu0 0.0
      %3146 = vmatpush1.msra.mxu0 0.0
      %3147 = vmatprep.subr.mxu0 0.0
      %3148 = vmatpush1.msra.mxu0 0.0
      %3149 = vmatprep.subr.mxu0 0.0
      %3150 = vmatpush1.msra.mxu0 0.0
      %3151 = vmatprep.subr.mxu0 0.0
      %3152 = vmatpush1.msra.mxu0 0.0
      %3153 = vmatprep.subr.mxu0 0.0
      %3154 = vmatpush1.msra.mxu0 0.0
      %3155 = vmatprep.subr.mxu0 0.0
      %3156 = vmatpush1.msra.mxu0 0.0
      %3157 = vmatprep.subr.mxu0 0.0
      %3158 = vmatpush1.msra.mxu0 0.0
      %3159 = vmatprep.subr.mxu0 0.0
      %3160 = vmatpush1.msra.mxu0 0.0
      %3161 = vmatprep.subr.mxu0 0.0
      %3162 = vmatpush1.msra.mxu0 0.0
      %3163 = vmatprep.subr.mxu0 0.0
      %3164 = vmatpush1.msra.mxu0 0.0
      %3165 = vmatprep.subr.mxu0 0.0
      %3166 = vmatpush1.msra.mxu0 0.0
      %3167 = vmatprep.subr.mxu0 0.0
      %3168 = vmatpush1.msra.mxu0 0.0
      %3169 = vmatprep.subr.mxu0 0.0
      %3170 = vmatpush1.msra.mxu0 0.0
      %3171 = vmatprep.subr.mxu0 0.0
      %3172 = vmatpush1.msra.mxu0 0.0
      %3173 = vmatprep.subr.mxu0 0.0
      %3174 = vmatpush1.msra.mxu0 0.0
      %3175 = vmatprep.subr.mxu0 0.0
      %3176 = vmatpush1.msra.mxu0 0.0
      %3177 = vmatprep.subr.mxu0 0.0
      %3178 = vmatpush1.msra.mxu0 0.0
      %3179 = vmatprep.subr.mxu0 0.0
      %3180 = vmatpush1.msra.mxu0 0.0
      %3181 = vmatprep.subr.mxu0 0.0
      %3182 = vmatpush1.msra.mxu0 0.0
      %3183 = vmatprep.subr.mxu0 0.0
      %3184 = vmatpush1.msra.mxu0 0.0
      %3185 = vmatprep.subr.mxu0 0.0
      %3186 = vmatpush1.msra.mxu0 0.0
      %3187 = vmatprep.subr.mxu0 0.0
      %3188 = vmatpush1.msra.mxu0 0.0
      %3189 = vmatprep.subr.mxu0 0.0
      %3190 = vmatpush1.msra.mxu0 0.0
      %3191 = vmatprep.subr.mxu0 0.0
      %3192 = vmatpush1.msra.mxu0 0.0
      %3193 = vmatprep.subr.mxu0 0.0
      %3194 = vmatpush1.msra.mxu0 0.0
      %3195 = vmatprep.mubr.f32.mxu0 0.0
      %3196 = vmatmul.mubr.f32.gmra.mrb[0].mxu0 %v2477
      %v3197 = vpop.f32.mrb[0].mxu0
      %v3198 = vadd.f32 0.0, %v3197
      %v3199 = vpop.f32.mrb[0].mxu0
      %3200 = vmatprep.mubr.f32.mxu0 0.0
      %3201 = vmatmul.mubr.f32.gmra.mrb[0].mxu0 %v2479
      %v3202 = vpop.f32.mrb[0].mxu0
      %v3203 = vadd.f32 0.0, %v3202
      %v3204 = vpop.f32.mrb[0].mxu0
      %3205 = vmatprep.mubr.f32.mxu0 0.0
      %3206 = vmatmul.mubr.f32.gmra.mrb[0].mxu0 %v2481
      %v3207 = vpop.f32.mrb[0].mxu0
      %v3208 = vadd.f32 0.0, %v3207
      %v3209 = vpop.f32.mrb[0].mxu0
      %3210 = vmatprep.mubr.f32.mxu0 0.0
      %3211 = vmatmul.mubr.f32.gmra.mrb[0].mxu0 %v2483
      %v3212 = vpop.f32.mrb[0].mxu0
      %v3213 = vadd.f32 0.0, %v3212
      %v3214 = vpop.f32.mrb[0].mxu0
      %3215 = vmatprep.mubr.f32.mxu0 0.0
      %3216 = vmatmul.mubr.f32.gmra.mrb[0].mxu0 %v2485
      %v3217 = vpop.f32.mrb[0].mxu0
      %v3218 = vadd.f32 0.0, %v3217
      %v3219 = vpop.f32.mrb[0].mxu0
      %3220 = vmatprep.mubr.f32.mxu0 0.0
      %3221 = vmatmul.mubr.f32.gmra.mrb[0].mxu0 %v2487
      %v3222 = vpop.f32.mrb[0].mxu0
      %v3223 = vadd.f32 0.0, %v3222
      %v3224 = vpop.f32.mrb[0].mxu0
      %3225 = vmatprep.mubr.f32.mxu0 0.0
      %3226 = vmatmul.mubr.f32.gmra.mrb[0].mxu0 %v2758
      %v3227 = vpop.f32.mrb[0].mxu0
      %v3228 = vadd.f32 0.0, %v3227
      %v3229 = vpop.f32.mrb[0].mxu0
      %3230 = vmatprep.mubr.f32.mxu0 0.0
      %3231 = vmatmul.mubr.f32.gmra.mrb[0].mxu0 %v3126
      %v3232 = vpop.f32.mrb[0].mxu0
      %v3233 = vadd.f32 0.0, %v3232
      %v3234 = vpop.f32.mrb[0].mxu0
      %3235 = vdwg.mxu0
      %v3236 = vadd.f32 %v3115, %v3198
      %v3237 = vadd.f32 %v3116, %v3203
      %v3238 = vadd.f32 %v3117, %v3208
      %v3239 = vadd.f32 %v3118, %v3213
      %v3240 = vadd.f32 %v3119, %v3218
      %v3241 = vadd.f32 %v3120, %v3223
      %v3242 = vadd.f32 %v3121, %v3228
      %v3243 = vadd.f32 %v3122, %v3233
      %v3245 = vrot.slane %v2304, 1
      %v3246 = vrot.slane %v2305, 1
      %v3247 = vsel %vm781, %v3245, %v3246
      %s3248 = scalar_lea.vmem %s4, 28
      %v3249 = vld [vmem:[%s3248] sm:$0xf]
      %v3250 = vsel %vm603, %v3247, 0
      %v3253 = vsel %vm824, %v3249, 0
      %3255 = vmatprep.subr.mxu0 0.0
      %3256 = vmatpush1.msra.mxu0 %v3253
      %3257 = vmatprep.subr.mxu0 0.0
      %3258 = vmatpush1.msra.mxu0 0.0
      %3259 = vmatprep.subr.mxu0 0.0
      %3260 = vmatpush1.msra.mxu0 0.0
      %3261 = vmatprep.subr.mxu0 0.0
      %3262 = vmatpush1.msra.mxu0 0.0
      %3263 = vmatprep.subr.mxu0 0.0
      %3264 = vmatpush1.msra.mxu0 0.0
      %3265 = vmatprep.subr.mxu0 0.0
      %3266 = vmatpush1.msra.mxu0 0.0
      %3267 = vmatprep.subr.mxu0 0.0
      %3268 = vmatpush1.msra.mxu0 0.0
      %3269 = vmatprep.subr.mxu0 0.0
      %3270 = vmatpush1.msra.mxu0 0.0
      %3271 = vmatprep.subr.mxu0 0.0
      %3272 = vmatpush1.msra.mxu0 0.0
      %3273 = vmatprep.subr.mxu0 0.0
      %3274 = vmatpush1.msra.mxu0 0.0
      %3275 = vmatprep.subr.mxu0 0.0
      %3276 = vmatpush1.msra.mxu0 0.0
      %3277 = vmatprep.subr.mxu0 0.0
      %3278 = vmatpush1.msra.mxu0 0.0
      %3279 = vmatprep.subr.mxu0 0.0
      %3280 = vmatpush1.msra.mxu0 0.0
      %3281 = vmatprep.subr.mxu0 0.0
      %3282 = vmatpush1.msra.mxu0 0.0
      %3283 = vmatprep.subr.mxu0 0.0
      %3284 = vmatpush1.msra.mxu0 0.0
      %3285 = vmatprep.subr.mxu0 0.0
      %3286 = vmatpush1.msra.mxu0 0.0
      %3287 = vmatprep.subr.mxu0 0.0
      %3288 = vmatpush1.msra.mxu0 0.0
      %3289 = vmatprep.subr.mxu0 0.0
      %3290 = vmatpush1.msra.mxu0 0.0
      %3291 = vmatprep.subr.mxu0 0.0
      %3292 = vmatpush1.msra.mxu0 0.0
      %3293 = vmatprep.subr.mxu0 0.0
      %3294 = vmatpush1.msra.mxu0 0.0
      %3295 = vmatprep.subr.mxu0 0.0
      %3296 = vmatpush1.msra.mxu0 0.0
      %3297 = vmatprep.subr.mxu0 0.0
      %3298 = vmatpush1.msra.mxu0 0.0
      %3299 = vmatprep.subr.mxu0 0.0
      %3300 = vmatpush1.msra.mxu0 0.0
      %3301 = vmatprep.subr.mxu0 0.0
      %3302 = vmatpush1.msra.mxu0 0.0
      %3303 = vmatprep.subr.mxu0 0.0
      %3304 = vmatpush1.msra.mxu0 0.0
      %3305 = vmatprep.subr.mxu0 0.0
      %3306 = vmatpush1.msra.mxu0 0.0
      %3307 = vmatprep.subr.mxu0 0.0
      %3308 = vmatpush1.msra.mxu0 0.0
      %3309 = vmatprep.subr.mxu0 0.0
      %3310 = vmatpush1.msra.mxu0 0.0
      %3311 = vmatprep.subr.mxu0 0.0
      %3312 = vmatpush1.msra.mxu0 0.0
      %3313 = vmatprep.subr.mxu0 0.0
      %3314 = vmatpush1.msra.mxu0 0.0
      %3315 = vmatprep.subr.mxu0 0.0
      %3316 = vmatpush1.msra.mxu0 0.0
      %3317 = vmatprep.subr.mxu0 0.0
      %3318 = vmatpush1.msra.mxu0 0.0
      %3319 = vmatprep.mubr.f32.mxu0 0.0
      %3320 = vmatmul.mubr.f32.gmra.mrb[0].mxu0 %v2353
      %v3321 = vpop.f32.mrb[0].mxu0
      %v3322 = vadd.f32 0.0, %v3321
      %v3323 = vpop.f32.mrb[0].mxu0
      %3324 = vmatprep.mubr.f32.mxu0 0.0
      %3325 = vmatmul.mubr.f32.gmra.mrb[0].mxu0 %v2355
      %v3326 = vpop.f32.mrb[0].mxu0
      %v3327 = vadd.f32 0.0, %v3326
      %v3328 = vpop.f32.mrb[0].mxu0
      %3329 = vmatprep.mubr.f32.mxu0 0.0
      %3330 = vmatmul.mubr.f32.gmra.mrb[0].mxu0 %v2357
      %v3331 = vpop.f32.mrb[0].mxu0
      %v3332 = vadd.f32 0.0, %v3331
      %v3333 = vpop.f32.mrb[0].mxu0
      %3334 = vmatprep.mubr.f32.mxu0 0.0
      %3335 = vmatmul.mubr.f32.gmra.mrb[0].mxu0 %v2359
      %v3336 = vpop.f32.mrb[0].mxu0
      %v3337 = vadd.f32 0.0, %v3336
      %v3338 = vpop.f32.mrb[0].mxu0
      %3339 = vmatprep.mubr.f32.mxu0 0.0
      %3340 = vmatmul.mubr.f32.gmra.mrb[0].mxu0 %v2361
      %v3341 = vpop.f32.mrb[0].mxu0
      %v3342 = vadd.f32 0.0, %v3341
      %v3343 = vpop.f32.mrb[0].mxu0
      %3344 = vmatprep.mubr.f32.mxu0 0.0
      %3345 = vmatmul.mubr.f32.gmra.mrb[0].mxu0 %v2363
      %v3346 = vpop.f32.mrb[0].mxu0
      %v3347 = vadd.f32 0.0, %v3346
      %v3348 = vpop.f32.mrb[0].mxu0
      %3349 = vmatprep.mubr.f32.mxu0 0.0
      %3350 = vmatmul.mubr.f32.gmra.mrb[0].mxu0 %v2882
      %v3351 = vpop.f32.mrb[0].mxu0
      %v3352 = vadd.f32 0.0, %v3351
      %v3353 = vpop.f32.mrb[0].mxu0
      %3354 = vmatprep.mubr.f32.mxu0 0.0
      %3355 = vmatmul.mubr.f32.gmra.mrb[0].mxu0 %v3250
      %v3356 = vpop.f32.mrb[0].mxu0
      %v3357 = vadd.f32 0.0, %v3356
      %v3358 = vpop.f32.mrb[0].mxu0
      %3359 = vdwg.mxu0
      %v3360 = vadd.f32 %v3236, %v3322
      %v3361 = vadd.f32 %v3237, %v3327
      %v3362 = vadd.f32 %v3238, %v3332
      %v3363 = vadd.f32 %v3239, %v3337
      %v3364 = vadd.f32 %v3240, %v3342
      %v3365 = vadd.f32 %v3241, %v3347
      %v3366 = vadd.f32 %v3242, %v3352
      %v3367 = vadd.f32 %v3243, %v3357
      %v3368 = vrot.slane %v2304, 2
      %v3369 = vrot.slane %v2305, 2
      %v3370 = vsel %vm1057, %v3368, %v3369
      %s3371 = scalar_lea.vmem %s4, 32
      %v3372 = vld [vmem:[%s3371] sm:$0xf]
      %v3373 = vsel %vm603, %v3370, 0
      %v3376 = vsel %vm824, %v3372, 0
      %3378 = vmatprep.subr.mxu0 0.0
      %3379 = vmatpush1.msra.mxu0 %v3376
      %3380 = vmatprep.subr.mxu0 0.0
      %3381 = vmatpush1.msra.mxu0 0.0
      %3382 = vmatprep.subr.mxu0 0.0
      %3383 = vmatpush1.msra.mxu0 0.0
      %3384 = vmatprep.subr.mxu0 0.0
      %3385 = vmatpush1.msra.mxu0 0.0
      %3386 = vmatprep.subr.mxu0 0.0
      %3387 = vmatpush1.msra.mxu0 0.0
      %3388 = vmatprep.subr.mxu0 0.0
      %3389 = vmatpush1.msra.mxu0 0.0
      %3390 = vmatprep.subr.mxu0 0.0
      %3391 = vmatpush1.msra.mxu0 0.0
      %3392 = vmatprep.subr.mxu0 0.0
      %3393 = vmatpush1.msra.mxu0 0.0
      %3394 = vmatprep.subr.mxu0 0.0
      %3395 = vmatpush1.msra.mxu0 0.0
      %3396 = vmatprep.subr.mxu0 0.0
      %3397 = vmatpush1.msra.mxu0 0.0
      %3398 = vmatprep.subr.mxu0 0.0
      %3399 = vmatpush1.msra.mxu0 0.0
      %3400 = vmatprep.subr.mxu0 0.0
      %3401 = vmatpush1.msra.mxu0 0.0
      %3402 = vmatprep.subr.mxu0 0.0
      %3403 = vmatpush1.msra.mxu0 0.0
      %3404 = vmatprep.subr.mxu0 0.0
      %3405 = vmatpush1.msra.mxu0 0.0
      %3406 = vmatprep.subr.mxu0 0.0
      %3407 = vmatpush1.msra.mxu0 0.0
      %3408 = vmatprep.subr.mxu0 0.0
      %3409 = vmatpush1.msra.mxu0 0.0
      %3410 = vmatprep.subr.mxu0 0.0
      %3411 = vmatpush1.msra.mxu0 0.0
      %3412 = vmatprep.subr.mxu0 0.0
      %3413 = vmatpush1.msra.mxu0 0.0
      %3414 = vmatprep.subr.mxu0 0.0
      %3415 = vmatpush1.msra.mxu0 0.0
      %3416 = vmatprep.subr.mxu0 0.0
      %3417 = vmatpush1.msra.mxu0 0.0
      %3418 = vmatprep.subr.mxu0 0.0
      %3419 = vmatpush1.msra.mxu0 0.0
      %3420 = vmatprep.subr.mxu0 0.0
      %3421 = vmatpush1.msra.mxu0 0.0
      %3422 = vmatprep.subr.mxu0 0.0
      %3423 = vmatpush1.msra.mxu0 0.0
      %3424 = vmatprep.subr.mxu0 0.0
      %3425 = vmatpush1.msra.mxu0 0.0
      %3426 = vmatprep.subr.mxu0 0.0
      %3427 = vmatpush1.msra.mxu0 0.0
      %3428 = vmatprep.subr.mxu0 0.0
      %3429 = vmatpush1.msra.mxu0 0.0
      %3430 = vmatprep.subr.mxu0 0.0
      %3431 = vmatpush1.msra.mxu0 0.0
      %3432 = vmatprep.subr.mxu0 0.0
      %3433 = vmatpush1.msra.mxu0 0.0
      %3434 = vmatprep.subr.mxu0 0.0
      %3435 = vmatpush1.msra.mxu0 0.0
      %3436 = vmatprep.subr.mxu0 0.0
      %3437 = vmatpush1.msra.mxu0 0.0
      %3438 = vmatprep.subr.mxu0 0.0
      %3439 = vmatpush1.msra.mxu0 0.0
      %3440 = vmatprep.subr.mxu0 0.0
      %3441 = vmatpush1.msra.mxu0 0.0
      %3442 = vmatprep.mubr.f32.mxu0 0.0
      %3443 = vmatmul.mubr.f32.gmra.mrb[0].mxu0 %v2627
      %v3444 = vpop.f32.mrb[0].mxu0
      %v3445 = vadd.f32 0.0, %v3444
      %v3446 = vpop.f32.mrb[0].mxu0
      %3447 = vmatprep.mubr.f32.mxu0 0.0
      %3448 = vmatmul.mubr.f32.gmra.mrb[0].mxu0 %v2629
      %v3449 = vpop.f32.mrb[0].mxu0
      %v3450 = vadd.f32 0.0, %v3449
      %v3451 = vpop.f32.mrb[0].mxu0
      %3452 = vmatprep.mubr.f32.mxu0 0.0
      %3453 = vmatmul.mubr.f32.gmra.mrb[0].mxu0 %v2631
      %v3454 = vpop.f32.mrb[0].mxu0
      %v3455 = vadd.f32 0.0, %v3454
      %v3456 = vpop.f32.mrb[0].mxu0
      %3457 = vmatprep.mubr.f32.mxu0 0.0
      %3458 = vmatmul.mubr.f32.gmra.mrb[0].mxu0 %v2633
      %v3459 = vpop.f32.mrb[0].mxu0
      %v3460 = vadd.f32 0.0, %v3459
      %v3461 = vpop.f32.mrb[0].mxu0
      %3462 = vmatprep.mubr.f32.mxu0 0.0
      %3463 = vmatmul.mubr.f32.gmra.mrb[0].mxu0 %v2635
      %v3464 = vpop.f32.mrb[0].mxu0
      %v3465 = vadd.f32 0.0, %v3464
      %v3466 = vpop.f32.mrb[0].mxu0
      %3467 = vmatprep.mubr.f32.mxu0 0.0
      %3468 = vmatmul.mubr.f32.gmra.mrb[0].mxu0 %v2637
      %v3469 = vpop.f32.mrb[0].mxu0
      %v3470 = vadd.f32 0.0, %v3469
      %v3471 = vpop.f32.mrb[0].mxu0
      %3472 = vmatprep.mubr.f32.mxu0 0.0
      %3473 = vmatmul.mubr.f32.gmra.mrb[0].mxu0 %v3005
      %v3474 = vpop.f32.mrb[0].mxu0
      %v3475 = vadd.f32 0.0, %v3474
      %v3476 = vpop.f32.mrb[0].mxu0
      %3477 = vmatprep.mubr.f32.mxu0 0.0
      %3478 = vmatmul.mubr.f32.gmra.mrb[0].mxu0 %v3373
      %v3479 = vpop.f32.mrb[0].mxu0
      %v3480 = vadd.f32 0.0, %v3479
      %v3481 = vpop.f32.mrb[0].mxu0
      %3482 = vdwg.mxu0
      %v3483 = vadd.f32 %v3360, %v3445
      %v3484 = vadd.f32 %v3361, %v3450
      %v3485 = vadd.f32 %v3362, %v3455
      %v3486 = vadd.f32 %v3363, %v3460
      %v3487 = vadd.f32 %v3364, %v3465
      %v3488 = vadd.f32 %v3365, %v3470
      %v3489 = vadd.f32 %v3366, %v3475
      %v3490 = vadd.f32 %v3367, %v3480
      %v3491 = vsel %vm603, %v3483, 0.0
      %v3492 = vsel %vm603, %v3484, 0.0
      %v3493 = vadd.f32 %v3491, %v3492
      %v3494 = vsel %vm603, %v3485, 0.0
      %v3495 = vadd.f32 %v3493, %v3494
      %v3496 = vsel %vm603, %v3486, 0.0
      %v3497 = vadd.f32 %v3495, %v3496
      %v3498 = vsel %vm603, %v3487, 0.0
      %v3499 = vadd.f32 %v3497, %v3498
      %v3500 = vsel %vm603, %v3488, 0.0
      %v3501 = vadd.f32 %v3499, %v3500
      %v3502 = vsel %vm603, %v3489, 0.0
      %v3503 = vadd.f32 %v3501, %v3502
      %v3504 = vsel %vm603, %v3490, 0.0
      %v3505 = vadd.f32 %v3503, %v3504
      %3506 = vadd.xlane.f32.xlu0 %v3505
      %v3507 = vpop.xlane.xlu0 %3506
      %v3508 = vrot.slane %v3507, 4
      %v3509 = vadd.f32 %v3507, %v3508
      %v3510 = vrot.slane %v3509, 2
      %v3511 = vadd.f32 %v3509, %v3510
      %v3512 = vrot.slane %v3511, 1
      %v3513 = vadd.f32 %v3511, %v3512
      %s3514 = vtos %v3513
      %v3515 = vstv %s3514
      %v3516 = vmul.f32 %v3483, %v3483
      %v3517 = vmul.f32 %v3484, %v3484
      %v3518 = vmul.f32 %v3485, %v3485
      %v3519 = vmul.f32 %v3486, %v3486
      %v3520 = vmul.f32 %v3487, %v3487
      %v3521 = vmul.f32 %v3488, %v3488
      %v3522 = vmul.f32 %v3489, %v3489
      %v3523 = vmul.f32 %v3490, %v3490
      %v3524 = vsel %vm603, %v3516, 0.0
      %v3525 = vsel %vm603, %v3517, 0.0
      %v3526 = vadd.f32 %v3524, %v3525
      %v3527 = vsel %vm603, %v3518, 0.0
      %v3528 = vadd.f32 %v3526, %v3527
      %v3529 = vsel %vm603, %v3519, 0.0
      %v3530 = vadd.f32 %v3528, %v3529
      %v3531 = vsel %vm603, %v3520, 0.0
      %v3532 = vadd.f32 %v3530, %v3531
      %v3533 = vsel %vm603, %v3521, 0.0
      %v3534 = vadd.f32 %v3532, %v3533
      %v3535 = vsel %vm603, %v3522, 0.0
      %v3536 = vadd.f32 %v3534, %v3535
      %v3537 = vsel %vm603, %v3523, 0.0
      %v3538 = vadd.f32 %v3536, %v3537
      %3539 = vadd.xlane.f32.xlu0 %v3538
      %v3540 = vpop.xlane.xlu0 %3539
      %v3541 = vrot.slane %v3540, 4
      %v3542 = vadd.f32 %v3540, %v3541
      %v3543 = vrot.slane %v3542, 2
      %v3544 = vadd.f32 %v3542, %v3543
      %v3545 = vrot.slane %v3544, 1
      %v3546 = vadd.f32 %v3544, %v3545
      %s3547 = vtos %v3546
      %v3548 = vstv %s3547
      %v3549 = vmul.f32 %v3515, 0.00390625
      %v3550 = vmul.f32 %v3548, 0.00390625
      %v3551 = vmul.f32 %v3549, %v3549
      %v3552 = vsub.f32 %v3550, %v3551
      %v3553 = vmax.f32 %v3552, 0.0
      %v3554 = vsub.f32 %v3483, %v3549
      %v3555 = vsub.f32 %v3484, %v3549
      %v3556 = vsub.f32 %v3485, %v3549
      %v3557 = vsub.f32 %v3486, %v3549
      %v3558 = vsub.f32 %v3487, %v3549
      %v3559 = vsub.f32 %v3488, %v3549
      %v3560 = vsub.f32 %v3489, %v3549
      %v3561 = vsub.f32 %v3490, %v3549
      %v3562 = vadd.f32 %v3553, 1e-05
      %v3563 = vrsqrt.pop %v3562
      %v3564 = vmul.f32 %v3554, %v3563
      %v3565 = vmul.f32 %v3555, %v3563
      %v3566 = vmul.f32 %v3556, %v3563
      %v3567 = vmul.f32 %v3557, %v3563
      %v3568 = vmul.f32 %v3558, %v3563
      %v3569 = vmul.f32 %v3559, %v3563
      %v3570 = vmul.f32 %v3560, %v3563
      %v3571 = vmul.f32 %v3561, %v3563
      %v3573 = vlaneseq
      %v3574 = vshrl.u32 %v3573, 7
      %v3575 = vsub.s32 0, %v3574
      %v3576 = vrot.slane %v742, %v3575
      %v3578 = vmul.f32 %v3564, %v3576
      %v3579 = vmul.f32 %v3565, %v3576
      %v3580 = vmul.f32 %v3566, %v3576
      %v3581 = vmul.f32 %v3567, %v3576
      %v3582 = vmul.f32 %v3568, %v3576
      %v3583 = vmul.f32 %v3569, %v3576
      %v3584 = vmul.f32 %v3570, %v3576
      %v3585 = vmul.f32 %v3571, %v3576
      %v3587 = vlaneseq
      %v3588 = vshrl.u32 %v3587, 7
      %v3589 = vsub.s32 0, %v3588
      %v3590 = vrot.slane %v743, %v3589
      %v3592 = vadd.f32 %v3578, %v3590
      %v3593 = vadd.f32 %v3579, %v3590
      %v3594 = vadd.f32 %v3580, %v3590
      %v3595 = vadd.f32 %v3581, %v3590
      %v3596 = vadd.f32 %v3582, %v3590
      %v3597 = vadd.f32 %v3583, %v3590
      %v3598 = vadd.f32 %v3584, %v3590
      %v3599 = vadd.f32 %v3585, %v3590
      %v3600 = vadd.f32 %v787, %v3592
      %v3601 = vadd.f32 %v790, %v3593
      %v3602 = vadd.f32 %v793, %v3594
      %v3603 = vadd.f32 %v796, %v3595
      %v3604 = vadd.f32 %v799, %v3596
      %v3605 = vadd.f32 %v802, %v3597
      %v3606 = vadd.f32 %v805, %v3598
      %v3607 = vadd.f32 %v1340, %v3599
      %v3608 = vmul.f32 %v3600, 0.5
      %v3609 = vmul.f32 %v3601, 0.5
      %v3610 = vmul.f32 %v3602, 0.5
      %v3611 = vmul.f32 %v3603, 0.5
      %v3612 = vmul.f32 %v3604, 0.5
      %v3613 = vmul.f32 %v3605, 0.5
      %v3614 = vmul.f32 %v3606, 0.5
      %v3615 = vmul.f32 %v3607, 0.5
      %v3616 = vmul.f32 %v3600, 0.70710677
      %v3617 = vmul.f32 %v3601, 0.70710677
      %v3618 = vmul.f32 %v3602, 0.70710677
      %v3619 = vmul.f32 %v3603, 0.70710677
      %v3620 = vmul.f32 %v3604, 0.70710677
      %v3621 = vmul.f32 %v3605, 0.70710677
      %v3622 = vmul.f32 %v3606, 0.70710677
      %v3623 = vmul.f32 %v3607, 0.70710677
      %vm3624 = vcmp.ge.f32.partialorder %v3616, 0.0
      %vm3625 = vcmp.ge.f32.partialorder %v3617, 0.0
      %vm3626 = vcmp.ge.f32.partialorder %v3618, 0.0
      %vm3627 = vcmp.ge.f32.partialorder %v3619, 0.0
      %vm3628 = vcmp.ge.f32.partialorder %v3620, 0.0
      %vm3629 = vcmp.ge.f32.partialorder %v3621, 0.0
      %vm3630 = vcmp.ge.f32.partialorder %v3622, 0.0
      %vm3631 = vcmp.ge.f32.partialorder %v3623, 0.0
      %v3632 = vsel %vm3624, 1.0, -1.0
      %v3633 = vsel %vm3625, 1.0, -1.0
      %v3634 = vsel %vm3626, 1.0, -1.0
      %v3635 = vsel %vm3627, 1.0, -1.0
      %v3636 = vsel %vm3628, 1.0, -1.0
      %v3637 = vsel %vm3629, 1.0, -1.0
      %v3638 = vsel %vm3630, 1.0, -1.0
      %v3639 = vsel %vm3631, 1.0, -1.0
      %v3640 = vand.u32 2147483647, %v3616
      %v3641 = vand.u32 2147483647, %v3617
      %v3642 = vand.u32 2147483647, %v3618
      %v3643 = vand.u32 2147483647, %v3619
      %v3644 = vand.u32 2147483647, %v3620
      %v3645 = vand.u32 2147483647, %v3621
      %v3646 = vand.u32 2147483647, %v3622
      %v3647 = vand.u32 2147483647, %v3623
      %v3648 = vmul.f32 %v3640, 0.3275911
      %v3649 = vmul.f32 %v3641, 0.3275911
      %v3650 = vmul.f32 %v3642, 0.3275911
      %v3651 = vmul.f32 %v3643, 0.3275911
      %v3652 = vmul.f32 %v3644, 0.3275911
      %v3653 = vmul.f32 %v3645, 0.3275911
      %v3654 = vmul.f32 %v3646, 0.3275911
      %v3655 = vmul.f32 %v3647, 0.3275911
      %v3656 = vadd.f32 %v3648, 1.0
      %v3657 = vadd.f32 %v3649, 1.0
      %v3658 = vadd.f32 %v3650, 1.0
      %v3659 = vadd.f32 %v3651, 1.0
      %v3660 = vadd.f32 %v3652, 1.0
      %v3661 = vadd.f32 %v3653, 1.0
      %v3662 = vadd.f32 %v3654, 1.0
      %v3663 = vadd.f32 %v3655, 1.0
      %v3664 = vrcp.pop %v3656
      %v3665 = vrcp.pop %v3657
      %v3666 = vrcp.pop %v3658
      %v3667 = vrcp.pop %v3659
      %v3668 = vrcp.pop %v3660
      %v3669 = vrcp.pop %v3661
      %v3670 = vrcp.pop %v3662
      %v3671 = vrcp.pop %v3663
      %v3672 = vmul.f32 %v3664, 1.0614054
      %v3673 = vmul.f32 %v3665, 1.0614054
      %v3674 = vmul.f32 %v3666, 1.0614054
      %v3675 = vmul.f32 %v3667, 1.0614054
      %v3676 = vmul.f32 %v3668, 1.0614054
      %v3677 = vmul.f32 %v3669, 1.0614054
      %v3678 = vmul.f32 %v3670, 1.0614054
      %v3679 = vmul.f32 %v3671, 1.0614054
      %v3680 = vadd.f32 %v3672, -1.4531521
      %v3681 = vadd.f32 %v3673, -1.4531521
      %v3682 = vadd.f32 %v3674, -1.4531521
      %v3683 = vadd.f32 %v3675, -1.4531521
      %v3684 = vadd.f32 %v3676, -1.4531521
      %v3685 = vadd.f32 %v3677, -1.4531521
      %v3686 = vadd.f32 %v3678, -1.4531521
      %v3687 = vadd.f32 %v3679, -1.4531521
      %v3688 = vmul.f32 %v3680, %v3664
      %v3689 = vmul.f32 %v3681, %v3665
      %v3690 = vmul.f32 %v3682, %v3666
      %v3691 = vmul.f32 %v3683, %v3667
      %v3692 = vmul.f32 %v3684, %v3668
      %v3693 = vmul.f32 %v3685, %v3669
      %v3694 = vmul.f32 %v3686, %v3670
      %v3695 = vmul.f32 %v3687, %v3671
      %v3696 = vadd.f32 %v3688, 1.4214138
      %v3697 = vadd.f32 %v3689, 1.4214138
      %v3698 = vadd.f32 %v3690, 1.4214138
      %v3699 = vadd.f32 %v3691, 1.4214138
      %v3700 = vadd.f32 %v3692, 1.4214138
      %v3701 = vadd.f32 %v3693, 1.4214138
      %v3702 = vadd.f32 %v3694, 1.4214138
      %v3703 = vadd.f32 %v3695, 1.4214138
      %v3704 = vmul.f32 %v3696, %v3664
      %v3705 = vmul.f32 %v3697, %v3665
      %v3706 = vmul.f32 %v3698, %v3666
      %v3707 = vmul.f32 %v3699, %v3667
      %v3708 = vmul.f32 %v3700, %v3668
      %v3709 = vmul.f32 %v3701, %v3669
      %v3710 = vmul.f32 %v3702, %v3670
      %v3711 = vmul.f32 %v3703, %v3671
      %v3712 = vadd.f32 %v3704, -0.28449672
      %v3713 = vadd.f32 %v3705, -0.28449672
      %v3714 = vadd.f32 %v3706, -0.28449672
      %v3715 = vadd.f32 %v3707, -0.28449672
      %v3716 = vadd.f32 %v3708, -0.28449672
      %v3717 = vadd.f32 %v3709, -0.28449672
      %v3718 = vadd.f32 %v3710, -0.28449672
      %v3719 = vadd.f32 %v3711, -0.28449672
      %v3720 = vmul.f32 %v3712, %v3664
      %v3721 = vmul.f32 %v3713, %v3665
      %v3722 = vmul.f32 %v3714, %v3666
      %v3723 = vmul.f32 %v3715, %v3667
      %v3724 = vmul.f32 %v3716, %v3668
      %v3725 = vmul.f32 %v3717, %v3669
      %v3726 = vmul.f32 %v3718, %v3670
      %v3727 = vmul.f32 %v3719, %v3671
      %v3728 = vadd.f32 %v3720, 0.2548296
      %v3729 = vadd.f32 %v3721, 0.2548296
      %v3730 = vadd.f32 %v3722, 0.2548296
      %v3731 = vadd.f32 %v3723, 0.2548296
      %v3732 = vadd.f32 %v3724, 0.2548296
      %v3733 = vadd.f32 %v3725, 0.2548296
      %v3734 = vadd.f32 %v3726, 0.2548296
      %v3735 = vadd.f32 %v3727, 0.2548296
      %v3736 = vmul.f32 %v3728, %v3664
      %v3737 = vmul.f32 %v3729, %v3665
      %v3738 = vmul.f32 %v3730, %v3666
      %v3739 = vmul.f32 %v3731, %v3667
      %v3740 = vmul.f32 %v3732, %v3668
      %v3741 = vmul.f32 %v3733, %v3669
      %v3742 = vmul.f32 %v3734, %v3670
      %v3743 = vmul.f32 %v3735, %v3671
      %v3744 = vsub.f32 0.0, %v3640
      %v3745 = vsub.f32 0.0, %v3641
      %v3746 = vsub.f32 0.0, %v3642
      %v3747 = vsub.f32 0.0, %v3643
      %v3748 = vsub.f32 0.0, %v3644
      %v3749 = vsub.f32 0.0, %v3645
      %v3750 = vsub.f32 0.0, %v3646
      %v3751 = vsub.f32 0.0, %v3647
      %v3752 = vmul.f32 %v3744, %v3640
      %v3753 = vmul.f32 %v3745, %v3641
      %v3754 = vmul.f32 %v3746, %v3642
      %v3755 = vmul.f32 %v3747, %v3643
      %v3756 = vmul.f32 %v3748, %v3644
      %v3757 = vmul.f32 %v3749, %v3645
      %v3758 = vmul.f32 %v3750, %v3646
      %v3759 = vmul.f32 %v3751, %v3647
      %v3760 = vmul.f32 %v3752, 1.442695
      %v3761 = vpow.pop %v3760
      %v3762 = vmul.f32 %v3753, 1.442695
      %v3763 = vpow.pop %v3762
      %v3764 = vmul.f32 %v3754, 1.442695
      %v3765 = vpow.pop %v3764
      %v3766 = vmul.f32 %v3755, 1.442695
      %v3767 = vpow.pop %v3766
      %v3768 = vmul.f32 %v3756, 1.442695
      %v3769 = vpow.pop %v3768
      %v3770 = vmul.f32 %v3757, 1.442695
      %v3771 = vpow.pop %v3770
      %v3772 = vmul.f32 %v3758, 1.442695
      %v3773 = vpow.pop %v3772
      %v3774 = vmul.f32 %v3759, 1.442695
      %v3775 = vpow.pop %v3774
      %v3776 = vmul.f32 %v3736, %v3761
      %v3777 = vmul.f32 %v3737, %v3763
      %v3778 = vmul.f32 %v3738, %v3765
      %v3779 = vmul.f32 %v3739, %v3767
      %v3780 = vmul.f32 %v3740, %v3769
      %v3781 = vmul.f32 %v3741, %v3771
      %v3782 = vmul.f32 %v3742, %v3773
      %v3783 = vmul.f32 %v3743, %v3775
      %v3784 = vsub.f32 1.0, %v3776
      %v3785 = vsub.f32 1.0, %v3777
      %v3786 = vsub.f32 1.0, %v3778
      %v3787 = vsub.f32 1.0, %v3779
      %v3788 = vsub.f32 1.0, %v3780
      %v3789 = vsub.f32 1.0, %v3781
      %v3790 = vsub.f32 1.0, %v3782
      %v3791 = vsub.f32 1.0, %v3783
      %v3792 = vmul.f32 %v3632, %v3784
      %v3793 = vmul.f32 %v3633, %v3785
      %v3794 = vmul.f32 %v3634, %v3786
      %v3795 = vmul.f32 %v3635, %v3787
      %v3796 = vmul.f32 %v3636, %v3788
      %v3797 = vmul.f32 %v3637, %v3789
      %v3798 = vmul.f32 %v3638, %v3790
      %v3799 = vmul.f32 %v3639, %v3791
      %v3800 = vadd.f32 %v3792, 1.0
      %v3801 = vadd.f32 %v3793, 1.0
      %v3802 = vadd.f32 %v3794, 1.0
      %v3803 = vadd.f32 %v3795, 1.0
      %v3804 = vadd.f32 %v3796, 1.0
      %v3805 = vadd.f32 %v3797, 1.0
      %v3806 = vadd.f32 %v3798, 1.0
      %v3807 = vadd.f32 %v3799, 1.0
      %v3808 = vmul.f32 %v3608, %v3800
      %v3809 = vmul.f32 %v3609, %v3801
      %v3810 = vmul.f32 %v3610, %v3802
      %v3811 = vmul.f32 %v3611, %v3803
      %v3812 = vmul.f32 %v3612, %v3804
      %v3813 = vmul.f32 %v3613, %v3805
      %v3814 = vmul.f32 %v3614, %v3806
      %v3815 = vmul.f32 %v3615, %v3807
      %3816 = vst.msk [vmem:[%s731 + $0x1] sm:$0xff] %vm603, %v3808
      %3817 = vst.msk [vmem:[%s731 + $0x11] sm:$0xff] %vm603, %v3809
      %3818 = vst.msk [vmem:[%s731 + $0x21] sm:$0xff] %vm603, %v3810
      %3819 = vst.msk [vmem:[%s731 + $0x31] sm:$0xff] %vm603, %v3811
      %3820 = vst.msk [vmem:[%s731 + $0x41] sm:$0xff] %vm603, %v3812
      %3821 = vst.msk [vmem:[%s731 + $0x51] sm:$0xff] %vm603, %v3813
      %3822 = vst.msk [vmem:[%s731 + $0x61] sm:$0xff] %vm603, %v3814
      %3823 = vst.msk [vmem:[%s731 + $0x71] sm:$0xff] %vm603, %v3815
      %v3824 = vld [vmem:[%s8] sm:$0x1]
      %v3825 = vld [vmem:[%s9] sm:$0x1]
      %v3826 = vld [vmem:[%s11] sm:$0x1]
      %v3827 = vld [vmem:[%s12] sm:$0x1]
      %v3828 = vld [vmem:[#allocation2] sm:$0xff]
      %v3829 = vld [vmem:[#allocation2 + $0x8] sm:$0x3]
      %v3830 = vld [vmem:[#allocation2 + $0x10] sm:$0xff]
      %v3831 = vld [vmem:[#allocation2 + $0x18] sm:$0x3]
      %v3832 = vld [vmem:[#allocation2 + $0x20] sm:$0xff]
      %v3833 = vld [vmem:[#allocation2 + $0x28] sm:$0x3]
      %v3834 = vld [vmem:[#allocation2 + $0x30] sm:$0xff]
      %v3835 = vld [vmem:[#allocation2 + $0x38] sm:$0x3]
      %v3836 = vld [vmem:[#allocation2 + $0x40] sm:$0xff]
      %v3837 = vld [vmem:[#allocation2 + $0x48] sm:$0x3]
      %v3838 = vld [vmem:[#allocation2 + $0x50] sm:$0xff]
      %v3839 = vld [vmem:[#allocation2 + $0x58] sm:$0x3]
      %v3840 = vld [vmem:[#allocation2 + $0x60] sm:$0xff]
      %v3841 = vld [vmem:[#allocation2 + $0x68] sm:$0x3]
      %v3842 = vld [vmem:[#allocation2 + $0x70] sm:$0xff]
      %v3843 = vld [vmem:[#allocation2 + $0x78] sm:$0x3]
      %v3844 = vld [vmem:[#allocation2 + $0x80] sm:$0xff]
      %v3845 = vld [vmem:[#allocation2 + $0x88] sm:$0x3]
      %v3846 = vld [vmem:[#allocation2 + $0x90] sm:$0xff]
      %v3847 = vld [vmem:[#allocation2 + $0x98] sm:$0x3]
      %v3848 = vld [vmem:[%s7] sm:$0xf]
      %v3865 = vrot.slane %v3828, 1
      %v3866 = vrot.slane %v3829, 1
      %v3867 = vsel %vm781, %v3865, %v3866
      %v3868 = vrot.slane %v3830, 1
      %v3869 = vrot.slane %v3831, 1
      %v3870 = vsel %vm781, %v3868, %v3869
      %v3871 = vrot.slane %v3832, 1
      %v3872 = vrot.slane %v3833, 1
      %v3873 = vsel %vm781, %v3871, %v3872
      %v3874 = vrot.slane %v3834, 1
      %v3875 = vrot.slane %v3835, 1
      %v3876 = vsel %vm781, %v3874, %v3875
      %v3877 = vrot.slane %v3836, 1
      %v3878 = vrot.slane %v3837, 1
      %v3879 = vsel %vm781, %v3877, %v3878
      %v3880 = vrot.slane %v3838, 1
      %v3881 = vrot.slane %v3839, 1
      %v3882 = vsel %vm781, %v3880, %v3881
      %v3883 = vrot.slane %v3840, 1
      %v3884 = vrot.slane %v3841, 1
      %v3885 = vsel %vm781, %v3883, %v3884
      %v3886 = vrot.slane %v3842, 1
      %v3887 = vrot.slane %v3843, 1
      %v3888 = vsel %vm781, %v3886, %v3887
      %s3889 = scalar_lea.vmem %s7, 4
      %v3890 = vld [vmem:[%s3889] sm:$0xf]
      %v3891 = vsel %vm603, %v3867, 0
      %v3893 = vsel %vm603, %v3870, 0
      %v3895 = vsel %vm603, %v3873, 0
      %v3897 = vsel %vm603, %v3876, 0
      %v3899 = vsel %vm603, %v3879, 0
      %v3901 = vsel %vm603, %v3882, 0
      %v3903 = vsel %vm603, %v3885, 0
      %v3905 = vsel %vm603, %v3888, 0
      %v3908 = vsel %vm824, %v3890, 0
      %3910 = vmatprep.subr.mxu0 0.0
      %3911 = vmatpush1.msra.mxu0 %v3908
      %3912 = vmatprep.subr.mxu0 0.0
      %3913 = vmatpush1.msra.mxu0 0.0
      %3914 = vmatprep.subr.mxu0 0.0
      %3915 = vmatpush1.msra.mxu0 0.0
      %3916 = vmatprep.subr.mxu0 0.0
      %3917 = vmatpush1.msra.mxu0 0.0
      %3918 = vmatprep.subr.mxu0 0.0
      %3919 = vmatpush1.msra.mxu0 0.0
      %3920 = vmatprep.subr.mxu0 0.0
      %3921 = vmatpush1.msra.mxu0 0.0
      %3922 = vmatprep.subr.mxu0 0.0
      %3923 = vmatpush1.msra.mxu0 0.0
      %3924 = vmatprep.subr.mxu0 0.0
      %3925 = vmatpush1.msra.mxu0 0.0
      %3926 = vmatprep.subr.mxu0 0.0
      %3927 = vmatpush1.msra.mxu0 0.0
      %3928 = vmatprep.subr.mxu0 0.0
      %3929 = vmatpush1.msra.mxu0 0.0
      %3930 = vmatprep.subr.mxu0 0.0
      %3931 = vmatpush1.msra.mxu0 0.0
      %3932 = vmatprep.subr.mxu0 0.0
      %3933 = vmatpush1.msra.mxu0 0.0
      %3934 = vmatprep.subr.mxu0 0.0
      %3935 = vmatpush1.msra.mxu0 0.0
      %3936 = vmatprep.subr.mxu0 0.0
      %3937 = vmatpush1.msra.mxu0 0.0
      %3938 = vmatprep.subr.mxu0 0.0
      %3939 = vmatpush1.msra.mxu0 0.0
      %3940 = vmatprep.subr.mxu0 0.0
      %3941 = vmatpush1.msra.mxu0 0.0
      %3942 = vmatprep.subr.mxu0 0.0
      %3943 = vmatpush1.msra.mxu0 0.0
      %3944 = vmatprep.subr.mxu0 0.0
      %3945 = vmatpush1.msra.mxu0 0.0
      %3946 = vmatprep.subr.mxu0 0.0
      %3947 = vmatpush1.msra.mxu0 0.0
      %3948 = vmatprep.subr.mxu0 0.0
      %3949 = vmatpush1.msra.mxu0 0.0
      %3950 = vmatprep.subr.mxu0 0.0
      %3951 = vmatpush1.msra.mxu0 0.0
      %3952 = vmatprep.subr.mxu0 0.0
      %3953 = vmatpush1.msra.mxu0 0.0
      %3954 = vmatprep.subr.mxu0 0.0
      %3955 = vmatpush1.msra.mxu0 0.0
      %3956 = vmatprep.subr.mxu0 0.0
      %3957 = vmatpush1.msra.mxu0 0.0
      %3958 = vmatprep.subr.mxu0 0.0
      %3959 = vmatpush1.msra.mxu0 0.0
      %3960 = vmatprep.subr.mxu0 0.0
      %3961 = vmatpush1.msra.mxu0 0.0
      %3962 = vmatprep.subr.mxu0 0.0
      %3963 = vmatpush1.msra.mxu0 0.0
      %3964 = vmatprep.subr.mxu0 0.0
      %3965 = vmatpush1.msra.mxu0 0.0
      %3966 = vmatprep.subr.mxu0 0.0
      %3967 = vmatpush1.msra.mxu0 0.0
      %3968 = vmatprep.subr.mxu0 0.0
      %3969 = vmatpush1.msra.mxu0 0.0
      %3970 = vmatprep.subr.mxu0 0.0
      %3971 = vmatpush1.msra.mxu0 0.0
      %3972 = vmatprep.subr.mxu0 0.0
      %3973 = vmatpush1.msra.mxu0 0.0
      %3974 = vmatprep.mubr.f32.mxu0 0.0
      %3975 = vmatmul.mubr.f32.gmra.mrb[0].mxu0 %v3891
      %v3976 = vpop.f32.mrb[0].mxu0
      %v3977 = vadd.f32 0.0, %v3976
      %v3978 = vpop.f32.mrb[0].mxu0
      %3979 = vmatprep.mubr.f32.mxu0 0.0
      %3980 = vmatmul.mubr.f32.gmra.mrb[0].mxu0 %v3893
      %v3981 = vpop.f32.mrb[0].mxu0
      %v3982 = vadd.f32 0.0, %v3981
      %v3983 = vpop.f32.mrb[0].mxu0
      %3984 = vmatprep.mubr.f32.mxu0 0.0
      %3985 = vmatmul.mubr.f32.gmra.mrb[0].mxu0 %v3895
      %v3986 = vpop.f32.mrb[0].mxu0
      %v3987 = vadd.f32 0.0, %v3986
      %v3988 = vpop.f32.mrb[0].mxu0
      %3989 = vmatprep.mubr.f32.mxu0 0.0
      %3990 = vmatmul.mubr.f32.gmra.mrb[0].mxu0 %v3897
      %v3991 = vpop.f32.mrb[0].mxu0
      %v3992 = vadd.f32 0.0, %v3991
      %v3993 = vpop.f32.mrb[0].mxu0
      %3994 = vmatprep.mubr.f32.mxu0 0.0
      %3995 = vmatmul.mubr.f32.gmra.mrb[0].mxu0 %v3899
      %v3996 = vpop.f32.mrb[0].mxu0
      %v3997 = vadd.f32 0.0, %v3996
      %v3998 = vpop.f32.mrb[0].mxu0
      %3999 = vmatprep.mubr.f32.mxu0 0.0
      %4000 = vmatmul.mubr.f32.gmra.mrb[0].mxu0 %v3901
      %v4001 = vpop.f32.mrb[0].mxu0
      %v4002 = vadd.f32 0.0, %v4001
      %v4003 = vpop.f32.mrb[0].mxu0
      %4004 = vmatprep.mubr.f32.mxu0 0.0
      %4005 = vmatmul.mubr.f32.gmra.mrb[0].mxu0 %v3903
      %v4006 = vpop.f32.mrb[0].mxu0
      %v4007 = vadd.f32 0.0, %v4006
      %v4008 = vpop.f32.mrb[0].mxu0
      %4009 = vmatprep.mubr.f32.mxu0 0.0
      %4010 = vmatmul.mubr.f32.gmra.mrb[0].mxu0 %v3905
      %v4011 = vpop.f32.mrb[0].mxu0
      %v4012 = vadd.f32 0.0, %v4011
      %v4013 = vpop.f32.mrb[0].mxu0
      %4014 = vdwg.mxu0
      %v4015 = vsel %vm603, %v3828, 0
      %v4017 = vsel %vm603, %v3830, 0
      %v4019 = vsel %vm603, %v3832, 0
      %v4021 = vsel %vm603, %v3834, 0
      %v4023 = vsel %vm603, %v3836, 0
      %v4025 = vsel %vm603, %v3838, 0
      %v4027 = vsel %vm603, %v3840, 0
      %v4029 = vsel %vm603, %v3842, 0
      %v4032 = vsel %vm824, %v3848, 0
      %4034 = vmatprep.subr.mxu0 0.0
      %4035 = vmatpush1.msra.mxu0 %v4032
      %4036 = vmatprep.subr.mxu0 0.0
      %4037 = vmatpush1.msra.mxu0 0.0
      %4038 = vmatprep.subr.mxu0 0.0
      %4039 = vmatpush1.msra.mxu0 0.0
      %4040 = vmatprep.subr.mxu0 0.0
      %4041 = vmatpush1.msra.mxu0 0.0
      %4042 = vmatprep.subr.mxu0 0.0
      %4043 = vmatpush1.msra.mxu0 0.0
      %4044 = vmatprep.subr.mxu0 0.0
      %4045 = vmatpush1.msra.mxu0 0.0
      %4046 = vmatprep.subr.mxu0 0.0
      %4047 = vmatpush1.msra.mxu0 0.0
      %4048 = vmatprep.subr.mxu0 0.0
      %4049 = vmatpush1.msra.mxu0 0.0
      %4050 = vmatprep.subr.mxu0 0.0
      %4051 = vmatpush1.msra.mxu0 0.0
      %4052 = vmatprep.subr.mxu0 0.0
      %4053 = vmatpush1.msra.mxu0 0.0
      %4054 = vmatprep.subr.mxu0 0.0
      %4055 = vmatpush1.msra.mxu0 0.0
      %4056 = vmatprep.subr.mxu0 0.0
      %4057 = vmatpush1.msra.mxu0 0.0
      %4058 = vmatprep.subr.mxu0 0.0
      %4059 = vmatpush1.msra.mxu0 0.0
      %4060 = vmatprep.subr.mxu0 0.0
      %4061 = vmatpush1.msra.mxu0 0.0
      %4062 = vmatprep.subr.mxu0 0.0
      %4063 = vmatpush1.msra.mxu0 0.0
      %4064 = vmatprep.subr.mxu0 0.0
      %4065 = vmatpush1.msra.mxu0 0.0
      %4066 = vmatprep.subr.mxu0 0.0
      %4067 = vmatpush1.msra.mxu0 0.0
      %4068 = vmatprep.subr.mxu0 0.0
      %4069 = vmatpush1.msra.mxu0 0.0
      %4070 = vmatprep.subr.mxu0 0.0
      %4071 = vmatpush1.msra.mxu0 0.0
      %4072 = vmatprep.subr.mxu0 0.0
      %4073 = vmatpush1.msra.mxu0 0.0
      %4074 = vmatprep.subr.mxu0 0.0
      %4075 = vmatpush1.msra.mxu0 0.0
      %4076 = vmatprep.subr.mxu0 0.0
      %4077 = vmatpush1.msra.mxu0 0.0
      %4078 = vmatprep.subr.mxu0 0.0
      %4079 = vmatpush1.msra.mxu0 0.0
      %4080 = vmatprep.subr.mxu0 0.0
      %4081 = vmatpush1.msra.mxu0 0.0
      %4082 = vmatprep.subr.mxu0 0.0
      %4083 = vmatpush1.msra.mxu0 0.0
      %4084 = vmatprep.subr.mxu0 0.0
      %4085 = vmatpush1.msra.mxu0 0.0
      %4086 = vmatprep.subr.mxu0 0.0
      %4087 = vmatpush1.msra.mxu0 0.0
      %4088 = vmatprep.subr.mxu0 0.0
      %4089 = vmatpush1.msra.mxu0 0.0
      %4090 = vmatprep.subr.mxu0 0.0
      %4091 = vmatpush1.msra.mxu0 0.0
      %4092 = vmatprep.subr.mxu0 0.0
      %4093 = vmatpush1.msra.mxu0 0.0
      %4094 = vmatprep.subr.mxu0 0.0
      %4095 = vmatpush1.msra.mxu0 0.0
      %4096 = vmatprep.subr.mxu0 0.0
      %4097 = vmatpush1.msra.mxu0 0.0
      %4098 = vmatprep.mubr.f32.mxu0 0.0
      %4099 = vmatmul.mubr.f32.gmra.mrb[0].mxu0 %v4015
      %v4100 = vpop.f32.mrb[0].mxu0
      %v4101 = vadd.f32 %v3977, %v4100
      %v4102 = vpop.f32.mrb[0].mxu0
      %4103 = vmatprep.mubr.f32.mxu0 0.0
      %4104 = vmatmul.mubr.f32.gmra.mrb[0].mxu0 %v4017
      %v4105 = vpop.f32.mrb[0].mxu0
      %v4106 = vadd.f32 %v3982, %v4105
      %v4107 = vpop.f32.mrb[0].mxu0
      %4108 = vmatprep.mubr.f32.mxu0 0.0
      %4109 = vmatmul.mubr.f32.gmra.mrb[0].mxu0 %v4019
      %v4110 = vpop.f32.mrb[0].mxu0
      %v4111 = vadd.f32 %v3987, %v4110
      %v4112 = vpop.f32.mrb[0].mxu0
      %4113 = vmatprep.mubr.f32.mxu0 0.0
      %4114 = vmatmul.mubr.f32.gmra.mrb[0].mxu0 %v4021
      %v4115 = vpop.f32.mrb[0].mxu0
      %v4116 = vadd.f32 %v3992, %v4115
      %v4117 = vpop.f32.mrb[0].mxu0
      %4118 = vmatprep.mubr.f32.mxu0 0.0
      %4119 = vmatmul.mubr.f32.gmra.mrb[0].mxu0 %v4023
      %v4120 = vpop.f32.mrb[0].mxu0
      %v4121 = vadd.f32 %v3997, %v4120
      %v4122 = vpop.f32.mrb[0].mxu0
      %4123 = vmatprep.mubr.f32.mxu0 0.0
      %4124 = vmatmul.mubr.f32.gmra.mrb[0].mxu0 %v4025
      %v4125 = vpop.f32.mrb[0].mxu0
      %v4126 = vadd.f32 %v4002, %v4125
      %v4127 = vpop.f32.mrb[0].mxu0
      %4128 = vmatprep.mubr.f32.mxu0 0.0
      %4129 = vmatmul.mubr.f32.gmra.mrb[0].mxu0 %v4027
      %v4130 = vpop.f32.mrb[0].mxu0
      %v4131 = vadd.f32 %v4007, %v4130
      %v4132 = vpop.f32.mrb[0].mxu0
      %4133 = vmatprep.mubr.f32.mxu0 0.0
      %4134 = vmatmul.mubr.f32.gmra.mrb[0].mxu0 %v4029
      %v4135 = vpop.f32.mrb[0].mxu0
      %v4136 = vadd.f32 %v4012, %v4135
      %v4137 = vpop.f32.mrb[0].mxu0
      %4138 = vdwg.mxu0
      %v4139 = vrot.slane %v3828, 2
      %v4140 = vrot.slane %v3829, 2
      %v4141 = vsel %vm1057, %v4139, %v4140
      %v4142 = vrot.slane %v3830, 2
      %v4143 = vrot.slane %v3831, 2
      %v4144 = vsel %vm1057, %v4142, %v4143
      %v4145 = vrot.slane %v3832, 2
      %v4146 = vrot.slane %v3833, 2
      %v4147 = vsel %vm1057, %v4145, %v4146
      %v4148 = vrot.slane %v3834, 2
      %v4149 = vrot.slane %v3835, 2
      %v4150 = vsel %vm1057, %v4148, %v4149
      %v4151 = vrot.slane %v3836, 2
      %v4152 = vrot.slane %v3837, 2
      %v4153 = vsel %vm1057, %v4151, %v4152
      %v4154 = vrot.slane %v3838, 2
      %v4155 = vrot.slane %v3839, 2
      %v4156 = vsel %vm1057, %v4154, %v4155
      %v4157 = vrot.slane %v3840, 2
      %v4158 = vrot.slane %v3841, 2
      %v4159 = vsel %vm1057, %v4157, %v4158
      %v4160 = vrot.slane %v3842, 2
      %v4161 = vrot.slane %v3843, 2
      %v4162 = vsel %vm1057, %v4160, %v4161
      %s4163 = scalar_lea.vmem %s7, 8
      %v4164 = vld [vmem:[%s4163] sm:$0xf]
      %v4165 = vsel %vm603, %v4141, 0
      %v4167 = vsel %vm603, %v4144, 0
      %v4169 = vsel %vm603, %v4147, 0
      %v4171 = vsel %vm603, %v4150, 0
      %v4173 = vsel %vm603, %v4153, 0
      %v4175 = vsel %vm603, %v4156, 0
      %v4177 = vsel %vm603, %v4159, 0
      %v4179 = vsel %vm603, %v4162, 0
      %v4182 = vsel %vm824, %v4164, 0
      %4184 = vmatprep.subr.mxu0 0.0
      %4185 = vmatpush1.msra.mxu0 %v4182
      %4186 = vmatprep.subr.mxu0 0.0
      %4187 = vmatpush1.msra.mxu0 0.0
      %4188 = vmatprep.subr.mxu0 0.0
      %4189 = vmatpush1.msra.mxu0 0.0
      %4190 = vmatprep.subr.mxu0 0.0
      %4191 = vmatpush1.msra.mxu0 0.0
      %4192 = vmatprep.subr.mxu0 0.0
      %4193 = vmatpush1.msra.mxu0 0.0
      %4194 = vmatprep.subr.mxu0 0.0
      %4195 = vmatpush1.msra.mxu0 0.0
      %4196 = vmatprep.subr.mxu0 0.0
      %4197 = vmatpush1.msra.mxu0 0.0
      %4198 = vmatprep.subr.mxu0 0.0
      %4199 = vmatpush1.msra.mxu0 0.0
      %4200 = vmatprep.subr.mxu0 0.0
      %4201 = vmatpush1.msra.mxu0 0.0
      %4202 = vmatprep.subr.mxu0 0.0
      %4203 = vmatpush1.msra.mxu0 0.0
      %4204 = vmatprep.subr.mxu0 0.0
      %4205 = vmatpush1.msra.mxu0 0.0
      %4206 = vmatprep.subr.mxu0 0.0
      %4207 = vmatpush1.msra.mxu0 0.0
      %4208 = vmatprep.subr.mxu0 0.0
      %4209 = vmatpush1.msra.mxu0 0.0
      %4210 = vmatprep.subr.mxu0 0.0
      %4211 = vmatpush1.msra.mxu0 0.0
      %4212 = vmatprep.subr.mxu0 0.0
      %4213 = vmatpush1.msra.mxu0 0.0
      %4214 = vmatprep.subr.mxu0 0.0
      %4215 = vmatpush1.msra.mxu0 0.0
      %4216 = vmatprep.subr.mxu0 0.0
      %4217 = vmatpush1.msra.mxu0 0.0
      %4218 = vmatprep.subr.mxu0 0.0
      %4219 = vmatpush1.msra.mxu0 0.0
      %4220 = vmatprep.subr.mxu0 0.0
      %4221 = vmatpush1.msra.mxu0 0.0
      %4222 = vmatprep.subr.mxu0 0.0
      %4223 = vmatpush1.msra.mxu0 0.0
      %4224 = vmatprep.subr.mxu0 0.0
      %4225 = vmatpush1.msra.mxu0 0.0
      %4226 = vmatprep.subr.mxu0 0.0
      %4227 = vmatpush1.msra.mxu0 0.0
      %4228 = vmatprep.subr.mxu0 0.0
      %4229 = vmatpush1.msra.mxu0 0.0
      %4230 = vmatprep.subr.mxu0 0.0
      %4231 = vmatpush1.msra.mxu0 0.0
      %4232 = vmatprep.subr.mxu0 0.0
      %4233 = vmatpush1.msra.mxu0 0.0
      %4234 = vmatprep.subr.mxu0 0.0
      %4235 = vmatpush1.msra.mxu0 0.0
      %4236 = vmatprep.subr.mxu0 0.0
      %4237 = vmatpush1.msra.mxu0 0.0
      %4238 = vmatprep.subr.mxu0 0.0
      %4239 = vmatpush1.msra.mxu0 0.0
      %4240 = vmatprep.subr.mxu0 0.0
      %4241 = vmatpush1.msra.mxu0 0.0
      %4242 = vmatprep.subr.mxu0 0.0
      %4243 = vmatpush1.msra.mxu0 0.0
      %4244 = vmatprep.subr.mxu0 0.0
      %4245 = vmatpush1.msra.mxu0 0.0
      %4246 = vmatprep.subr.mxu0 0.0
      %4247 = vmatpush1.msra.mxu0 0.0
      %4248 = vmatprep.mubr.f32.mxu0 0.0
      %4249 = vmatmul.mubr.f32.gmra.mrb[0].mxu0 %v4165
      %v4250 = vpop.f32.mrb[0].mxu0
      %v4251 = vadd.f32 0.0, %v4250
      %v4252 = vpop.f32.mrb[0].mxu0
      %4253 = vmatprep.mubr.f32.mxu0 0.0
      %4254 = vmatmul.mubr.f32.gmra.mrb[0].mxu0 %v4167
      %v4255 = vpop.f32.mrb[0].mxu0
      %v4256 = vadd.f32 0.0, %v4255
      %v4257 = vpop.f32.mrb[0].mxu0
      %4258 = vmatprep.mubr.f32.mxu0 0.0
      %4259 = vmatmul.mubr.f32.gmra.mrb[0].mxu0 %v4169
      %v4260 = vpop.f32.mrb[0].mxu0
      %v4261 = vadd.f32 0.0, %v4260
      %v4262 = vpop.f32.mrb[0].mxu0
      %4263 = vmatprep.mubr.f32.mxu0 0.0
      %4264 = vmatmul.mubr.f32.gmra.mrb[0].mxu0 %v4171
      %v4265 = vpop.f32.mrb[0].mxu0
      %v4266 = vadd.f32 0.0, %v4265
      %v4267 = vpop.f32.mrb[0].mxu0
      %4268 = vmatprep.mubr.f32.mxu0 0.0
      %4269 = vmatmul.mubr.f32.gmra.mrb[0].mxu0 %v4173
      %v4270 = vpop.f32.mrb[0].mxu0
      %v4271 = vadd.f32 0.0, %v4270
      %v4272 = vpop.f32.mrb[0].mxu0
      %4273 = vmatprep.mubr.f32.mxu0 0.0
      %4274 = vmatmul.mubr.f32.gmra.mrb[0].mxu0 %v4175
      %v4275 = vpop.f32.mrb[0].mxu0
      %v4276 = vadd.f32 0.0, %v4275
      %v4277 = vpop.f32.mrb[0].mxu0
      %4278 = vmatprep.mubr.f32.mxu0 0.0
      %4279 = vmatmul.mubr.f32.gmra.mrb[0].mxu0 %v4177
      %v4280 = vpop.f32.mrb[0].mxu0
      %v4281 = vadd.f32 0.0, %v4280
      %v4282 = vpop.f32.mrb[0].mxu0
      %4283 = vmatprep.mubr.f32.mxu0 0.0
      %4284 = vmatmul.mubr.f32.gmra.mrb[0].mxu0 %v4179
      %v4285 = vpop.f32.mrb[0].mxu0
      %v4286 = vadd.f32 0.0, %v4285
      %v4287 = vpop.f32.mrb[0].mxu0
      %4288 = vdwg.mxu0
      %v4289 = vadd.f32 %v4101, %v4251
      %v4290 = vadd.f32 %v4106, %v4256
      %v4291 = vadd.f32 %v4111, %v4261
      %v4292 = vadd.f32 %v4116, %v4266
      %v4293 = vadd.f32 %v4121, %v4271
      %v4294 = vadd.f32 %v4126, %v4276
      %v4295 = vadd.f32 %v4131, %v4281
      %v4296 = vadd.f32 %v4136, %v4286
      %s4297 = scalar_lea.vmem %s7, 12
      %v4298 = vld [vmem:[%s4297] sm:$0xf]
      %v4300 = vsel %vm603, %v3844, 0
      %v4303 = vsel %vm824, %v4298, 0
      %4305 = vmatprep.subr.mxu0 0.0
      %4306 = vmatpush1.msra.mxu0 %v4303
      %4307 = vmatprep.subr.mxu0 0.0
      %4308 = vmatpush1.msra.mxu0 0.0
      %4309 = vmatprep.subr.mxu0 0.0
      %4310 = vmatpush1.msra.mxu0 0.0
      %4311 = vmatprep.subr.mxu0 0.0
      %4312 = vmatpush1.msra.mxu0 0.0
      %4313 = vmatprep.subr.mxu0 0.0
      %4314 = vmatpush1.msra.mxu0 0.0
      %4315 = vmatprep.subr.mxu0 0.0
      %4316 = vmatpush1.msra.mxu0 0.0
      %4317 = vmatprep.subr.mxu0 0.0
      %4318 = vmatpush1.msra.mxu0 0.0
      %4319 = vmatprep.subr.mxu0 0.0
      %4320 = vmatpush1.msra.mxu0 0.0
      %4321 = vmatprep.subr.mxu0 0.0
      %4322 = vmatpush1.msra.mxu0 0.0
      %4323 = vmatprep.subr.mxu0 0.0
      %4324 = vmatpush1.msra.mxu0 0.0
      %4325 = vmatprep.subr.mxu0 0.0
      %4326 = vmatpush1.msra.mxu0 0.0
      %4327 = vmatprep.subr.mxu0 0.0
      %4328 = vmatpush1.msra.mxu0 0.0
      %4329 = vmatprep.subr.mxu0 0.0
      %4330 = vmatpush1.msra.mxu0 0.0
      %4331 = vmatprep.subr.mxu0 0.0
      %4332 = vmatpush1.msra.mxu0 0.0
      %4333 = vmatprep.subr.mxu0 0.0
      %4334 = vmatpush1.msra.mxu0 0.0
      %4335 = vmatprep.subr.mxu0 0.0
      %4336 = vmatpush1.msra.mxu0 0.0
      %4337 = vmatprep.subr.mxu0 0.0
      %4338 = vmatpush1.msra.mxu0 0.0
      %4339 = vmatprep.subr.mxu0 0.0
      %4340 = vmatpush1.msra.mxu0 0.0
      %4341 = vmatprep.subr.mxu0 0.0
      %4342 = vmatpush1.msra.mxu0 0.0
      %4343 = vmatprep.subr.mxu0 0.0
      %4344 = vmatpush1.msra.mxu0 0.0
      %4345 = vmatprep.subr.mxu0 0.0
      %4346 = vmatpush1.msra.mxu0 0.0
      %4347 = vmatprep.subr.mxu0 0.0
      %4348 = vmatpush1.msra.mxu0 0.0
      %4349 = vmatprep.subr.mxu0 0.0
      %4350 = vmatpush1.msra.mxu0 0.0
      %4351 = vmatprep.subr.mxu0 0.0
      %4352 = vmatpush1.msra.mxu0 0.0
      %4353 = vmatprep.subr.mxu0 0.0
      %4354 = vmatpush1.msra.mxu0 0.0
      %4355 = vmatprep.subr.mxu0 0.0
      %4356 = vmatpush1.msra.mxu0 0.0
      %4357 = vmatprep.subr.mxu0 0.0
      %4358 = vmatpush1.msra.mxu0 0.0
      %4359 = vmatprep.subr.mxu0 0.0
      %4360 = vmatpush1.msra.mxu0 0.0
      %4361 = vmatprep.subr.mxu0 0.0
      %4362 = vmatpush1.msra.mxu0 0.0
      %4363 = vmatprep.subr.mxu0 0.0
      %4364 = vmatpush1.msra.mxu0 0.0
      %4365 = vmatprep.subr.mxu0 0.0
      %4366 = vmatpush1.msra.mxu0 0.0
      %4367 = vmatprep.subr.mxu0 0.0
      %4368 = vmatpush1.msra.mxu0 0.0
      %4369 = vmatprep.mubr.f32.mxu0 0.0
      %4370 = vmatmul.mubr.f32.gmra.mrb[0].mxu0 %v4017
      %v4371 = vpop.f32.mrb[0].mxu0
      %v4372 = vadd.f32 0.0, %v4371
      %v4373 = vpop.f32.mrb[0].mxu0
      %4374 = vmatprep.mubr.f32.mxu0 0.0
      %4375 = vmatmul.mubr.f32.gmra.mrb[0].mxu0 %v4019
      %v4376 = vpop.f32.mrb[0].mxu0
      %v4377 = vadd.f32 0.0, %v4376
      %v4378 = vpop.f32.mrb[0].mxu0
      %4379 = vmatprep.mubr.f32.mxu0 0.0
      %4380 = vmatmul.mubr.f32.gmra.mrb[0].mxu0 %v4021
      %v4381 = vpop.f32.mrb[0].mxu0
      %v4382 = vadd.f32 0.0, %v4381
      %v4383 = vpop.f32.mrb[0].mxu0
      %4384 = vmatprep.mubr.f32.mxu0 0.0
      %4385 = vmatmul.mubr.f32.gmra.mrb[0].mxu0 %v4023
      %v4386 = vpop.f32.mrb[0].mxu0
      %v4387 = vadd.f32 0.0, %v4386
      %v4388 = vpop.f32.mrb[0].mxu0
      %4389 = vmatprep.mubr.f32.mxu0 0.0
      %4390 = vmatmul.mubr.f32.gmra.mrb[0].mxu0 %v4025
      %v4391 = vpop.f32.mrb[0].mxu0
      %v4392 = vadd.f32 0.0, %v4391
      %v4393 = vpop.f32.mrb[0].mxu0
      %4394 = vmatprep.mubr.f32.mxu0 0.0
      %4395 = vmatmul.mubr.f32.gmra.mrb[0].mxu0 %v4027
      %v4396 = vpop.f32.mrb[0].mxu0
      %v4397 = vadd.f32 0.0, %v4396
      %v4398 = vpop.f32.mrb[0].mxu0
      %4399 = vmatprep.mubr.f32.mxu0 0.0
      %4400 = vmatmul.mubr.f32.gmra.mrb[0].mxu0 %v4029
      %v4401 = vpop.f32.mrb[0].mxu0
      %v4402 = vadd.f32 0.0, %v4401
      %v4403 = vpop.f32.mrb[0].mxu0
      %4404 = vmatprep.mubr.f32.mxu0 0.0
      %4405 = vmatmul.mubr.f32.gmra.mrb[0].mxu0 %v4300
      %v4406 = vpop.f32.mrb[0].mxu0
      %v4407 = vadd.f32 0.0, %v4406
      %v4408 = vpop.f32.mrb[0].mxu0
      %4409 = vdwg.mxu0
      %v4410 = vadd.f32 %v4289, %v4372
      %v4411 = vadd.f32 %v4290, %v4377
      %v4412 = vadd.f32 %v4291, %v4382
      %v4413 = vadd.f32 %v4292, %v4387
      %v4414 = vadd.f32 %v4293, %v4392
      %v4415 = vadd.f32 %v4294, %v4397
      %v4416 = vadd.f32 %v4295, %v4402
      %v4417 = vadd.f32 %v4296, %v4407
      %v4419 = vrot.slane %v3844, 1
      %v4420 = vrot.slane %v3845, 1
      %v4421 = vsel %vm781, %v4419, %v4420
      %s4430 = scalar_lea.vmem %s7, 16
      %v4431 = vld [vmem:[%s4430] sm:$0xf]
      %v4432 = vsel %vm603, %v4421, 0
      %v4435 = vsel %vm824, %v4431, 0
      %4437 = vmatprep.subr.mxu0 0.0
      %4438 = vmatpush1.msra.mxu0 %v4435
      %4439 = vmatprep.subr.mxu0 0.0
      %4440 = vmatpush1.msra.mxu0 0.0
      %4441 = vmatprep.subr.mxu0 0.0
      %4442 = vmatpush1.msra.mxu0 0.0
      %4443 = vmatprep.subr.mxu0 0.0
      %4444 = vmatpush1.msra.mxu0 0.0
      %4445 = vmatprep.subr.mxu0 0.0
      %4446 = vmatpush1.msra.mxu0 0.0
      %4447 = vmatprep.subr.mxu0 0.0
      %4448 = vmatpush1.msra.mxu0 0.0
      %4449 = vmatprep.subr.mxu0 0.0
      %4450 = vmatpush1.msra.mxu0 0.0
      %4451 = vmatprep.subr.mxu0 0.0
      %4452 = vmatpush1.msra.mxu0 0.0
      %4453 = vmatprep.subr.mxu0 0.0
      %4454 = vmatpush1.msra.mxu0 0.0
      %4455 = vmatprep.subr.mxu0 0.0
      %4456 = vmatpush1.msra.mxu0 0.0
      %4457 = vmatprep.subr.mxu0 0.0
      %4458 = vmatpush1.msra.mxu0 0.0
      %4459 = vmatprep.subr.mxu0 0.0
      %4460 = vmatpush1.msra.mxu0 0.0
      %4461 = vmatprep.subr.mxu0 0.0
      %4462 = vmatpush1.msra.mxu0 0.0
      %4463 = vmatprep.subr.mxu0 0.0
      %4464 = vmatpush1.msra.mxu0 0.0
      %4465 = vmatprep.subr.mxu0 0.0
      %4466 = vmatpush1.msra.mxu0 0.0
      %4467 = vmatprep.subr.mxu0 0.0
      %4468 = vmatpush1.msra.mxu0 0.0
      %4469 = vmatprep.subr.mxu0 0.0
      %4470 = vmatpush1.msra.mxu0 0.0
      %4471 = vmatprep.subr.mxu0 0.0
      %4472 = vmatpush1.msra.mxu0 0.0
      %4473 = vmatprep.subr.mxu0 0.0
      %4474 = vmatpush1.msra.mxu0 0.0
      %4475 = vmatprep.subr.mxu0 0.0
      %4476 = vmatpush1.msra.mxu0 0.0
      %4477 = vmatprep.subr.mxu0 0.0
      %4478 = vmatpush1.msra.mxu0 0.0
      %4479 = vmatprep.subr.mxu0 0.0
      %4480 = vmatpush1.msra.mxu0 0.0
      %4481 = vmatprep.subr.mxu0 0.0
      %4482 = vmatpush1.msra.mxu0 0.0
      %4483 = vmatprep.subr.mxu0 0.0
      %4484 = vmatpush1.msra.mxu0 0.0
      %4485 = vmatprep.subr.mxu0 0.0
      %4486 = vmatpush1.msra.mxu0 0.0
      %4487 = vmatprep.subr.mxu0 0.0
      %4488 = vmatpush1.msra.mxu0 0.0
      %4489 = vmatprep.subr.mxu0 0.0
      %4490 = vmatpush1.msra.mxu0 0.0
      %4491 = vmatprep.subr.mxu0 0.0
      %4492 = vmatpush1.msra.mxu0 0.0
      %4493 = vmatprep.subr.mxu0 0.0
      %4494 = vmatpush1.msra.mxu0 0.0
      %4495 = vmatprep.subr.mxu0 0.0
      %4496 = vmatpush1.msra.mxu0 0.0
      %4497 = vmatprep.subr.mxu0 0.0
      %4498 = vmatpush1.msra.mxu0 0.0
      %4499 = vmatprep.subr.mxu0 0.0
      %4500 = vmatpush1.msra.mxu0 0.0
      %4501 = vmatprep.mubr.f32.mxu0 0.0
      %4502 = vmatmul.mubr.f32.gmra.mrb[0].mxu0 %v3893
      %v4503 = vpop.f32.mrb[0].mxu0
      %v4504 = vadd.f32 0.0, %v4503
      %v4505 = vpop.f32.mrb[0].mxu0
      %4506 = vmatprep.mubr.f32.mxu0 0.0
      %4507 = vmatmul.mubr.f32.gmra.mrb[0].mxu0 %v3895
      %v4508 = vpop.f32.mrb[0].mxu0
      %v4509 = vadd.f32 0.0, %v4508
      %v4510 = vpop.f32.mrb[0].mxu0
      %4511 = vmatprep.mubr.f32.mxu0 0.0
      %4512 = vmatmul.mubr.f32.gmra.mrb[0].mxu0 %v3897
      %v4513 = vpop.f32.mrb[0].mxu0
      %v4514 = vadd.f32 0.0, %v4513
      %v4515 = vpop.f32.mrb[0].mxu0
      %4516 = vmatprep.mubr.f32.mxu0 0.0
      %4517 = vmatmul.mubr.f32.gmra.mrb[0].mxu0 %v3899
      %v4518 = vpop.f32.mrb[0].mxu0
      %v4519 = vadd.f32 0.0, %v4518
      %v4520 = vpop.f32.mrb[0].mxu0
      %4521 = vmatprep.mubr.f32.mxu0 0.0
      %4522 = vmatmul.mubr.f32.gmra.mrb[0].mxu0 %v3901
      %v4523 = vpop.f32.mrb[0].mxu0
      %v4524 = vadd.f32 0.0, %v4523
      %v4525 = vpop.f32.mrb[0].mxu0
      %4526 = vmatprep.mubr.f32.mxu0 0.0
      %4527 = vmatmul.mubr.f32.gmra.mrb[0].mxu0 %v3903
      %v4528 = vpop.f32.mrb[0].mxu0
      %v4529 = vadd.f32 0.0, %v4528
      %v4530 = vpop.f32.mrb[0].mxu0
      %4531 = vmatprep.mubr.f32.mxu0 0.0
      %4532 = vmatmul.mubr.f32.gmra.mrb[0].mxu0 %v3905
      %v4533 = vpop.f32.mrb[0].mxu0
      %v4534 = vadd.f32 0.0, %v4533
      %v4535 = vpop.f32.mrb[0].mxu0
      %4536 = vmatprep.mubr.f32.mxu0 0.0
      %4537 = vmatmul.mubr.f32.gmra.mrb[0].mxu0 %v4432
      %v4538 = vpop.f32.mrb[0].mxu0
      %v4539 = vadd.f32 0.0, %v4538
      %v4540 = vpop.f32.mrb[0].mxu0
      %4541 = vdwg.mxu0
      %v4542 = vadd.f32 %v4410, %v4504
      %v4543 = vadd.f32 %v4411, %v4509
      %v4544 = vadd.f32 %v4412, %v4514
      %v4545 = vadd.f32 %v4413, %v4519
      %v4546 = vadd.f32 %v4414, %v4524
      %v4547 = vadd.f32 %v4415, %v4529
      %v4548 = vadd.f32 %v4416, %v4534
      %v4549 = vadd.f32 %v4417, %v4539
      %v4550 = vrot.slane %v3844, 2
      %v4551 = vrot.slane %v3845, 2
      %v4552 = vsel %vm1057, %v4550, %v4551
      %s4553 = scalar_lea.vmem %s7, 20
      %v4554 = vld [vmem:[%s4553] sm:$0xf]
      %v4555 = vsel %vm603, %v4552, 0
      %v4558 = vsel %vm824, %v4554, 0
      %4560 = vmatprep.subr.mxu0 0.0
      %4561 = vmatpush1.msra.mxu0 %v4558
      %4562 = vmatprep.subr.mxu0 0.0
      %4563 = vmatpush1.msra.mxu0 0.0
      %4564 = vmatprep.subr.mxu0 0.0
      %4565 = vmatpush1.msra.mxu0 0.0
      %4566 = vmatprep.subr.mxu0 0.0
      %4567 = vmatpush1.msra.mxu0 0.0
      %4568 = vmatprep.subr.mxu0 0.0
      %4569 = vmatpush1.msra.mxu0 0.0
      %4570 = vmatprep.subr.mxu0 0.0
      %4571 = vmatpush1.msra.mxu0 0.0
      %4572 = vmatprep.subr.mxu0 0.0
      %4573 = vmatpush1.msra.mxu0 0.0
      %4574 = vmatprep.subr.mxu0 0.0
      %4575 = vmatpush1.msra.mxu0 0.0
      %4576 = vmatprep.subr.mxu0 0.0
      %4577 = vmatpush1.msra.mxu0 0.0
      %4578 = vmatprep.subr.mxu0 0.0
      %4579 = vmatpush1.msra.mxu0 0.0
      %4580 = vmatprep.subr.mxu0 0.0
      %4581 = vmatpush1.msra.mxu0 0.0
      %4582 = vmatprep.subr.mxu0 0.0
      %4583 = vmatpush1.msra.mxu0 0.0
      %4584 = vmatprep.subr.mxu0 0.0
      %4585 = vmatpush1.msra.mxu0 0.0
      %4586 = vmatprep.subr.mxu0 0.0
      %4587 = vmatpush1.msra.mxu0 0.0
      %4588 = vmatprep.subr.mxu0 0.0
      %4589 = vmatpush1.msra.mxu0 0.0
      %4590 = vmatprep.subr.mxu0 0.0
      %4591 = vmatpush1.msra.mxu0 0.0
      %4592 = vmatprep.subr.mxu0 0.0
      %4593 = vmatpush1.msra.mxu0 0.0
      %4594 = vmatprep.subr.mxu0 0.0
      %4595 = vmatpush1.msra.mxu0 0.0
      %4596 = vmatprep.subr.mxu0 0.0
      %4597 = vmatpush1.msra.mxu0 0.0
      %4598 = vmatprep.subr.mxu0 0.0
      %4599 = vmatpush1.msra.mxu0 0.0
      %4600 = vmatprep.subr.mxu0 0.0
      %4601 = vmatpush1.msra.mxu0 0.0
      %4602 = vmatprep.subr.mxu0 0.0
      %4603 = vmatpush1.msra.mxu0 0.0
      %4604 = vmatprep.subr.mxu0 0.0
      %4605 = vmatpush1.msra.mxu0 0.0
      %4606 = vmatprep.subr.mxu0 0.0
      %4607 = vmatpush1.msra.mxu0 0.0
      %4608 = vmatprep.subr.mxu0 0.0
      %4609 = vmatpush1.msra.mxu0 0.0
      %4610 = vmatprep.subr.mxu0 0.0
      %4611 = vmatpush1.msra.mxu0 0.0
      %4612 = vmatprep.subr.mxu0 0.0
      %4613 = vmatpush1.msra.mxu0 0.0
      %4614 = vmatprep.subr.mxu0 0.0
      %4615 = vmatpush1.msra.mxu0 0.0
      %4616 = vmatprep.subr.mxu0 0.0
      %4617 = vmatpush1.msra.mxu0 0.0
      %4618 = vmatprep.subr.mxu0 0.0
      %4619 = vmatpush1.msra.mxu0 0.0
      %4620 = vmatprep.subr.mxu0 0.0
      %4621 = vmatpush1.msra.mxu0 0.0
      %4622 = vmatprep.subr.mxu0 0.0
      %4623 = vmatpush1.msra.mxu0 0.0
      %4624 = vmatprep.mubr.f32.mxu0 0.0
      %4625 = vmatmul.mubr.f32.gmra.mrb[0].mxu0 %v4167
      %v4626 = vpop.f32.mrb[0].mxu0
      %v4627 = vadd.f32 0.0, %v4626
      %v4628 = vpop.f32.mrb[0].mxu0
      %4629 = vmatprep.mubr.f32.mxu0 0.0
      %4630 = vmatmul.mubr.f32.gmra.mrb[0].mxu0 %v4169
      %v4631 = vpop.f32.mrb[0].mxu0
      %v4632 = vadd.f32 0.0, %v4631
      %v4633 = vpop.f32.mrb[0].mxu0
      %4634 = vmatprep.mubr.f32.mxu0 0.0
      %4635 = vmatmul.mubr.f32.gmra.mrb[0].mxu0 %v4171
      %v4636 = vpop.f32.mrb[0].mxu0
      %v4637 = vadd.f32 0.0, %v4636
      %v4638 = vpop.f32.mrb[0].mxu0
      %4639 = vmatprep.mubr.f32.mxu0 0.0
      %4640 = vmatmul.mubr.f32.gmra.mrb[0].mxu0 %v4173
      %v4641 = vpop.f32.mrb[0].mxu0
      %v4642 = vadd.f32 0.0, %v4641
      %v4643 = vpop.f32.mrb[0].mxu0
      %4644 = vmatprep.mubr.f32.mxu0 0.0
      %4645 = vmatmul.mubr.f32.gmra.mrb[0].mxu0 %v4175
      %v4646 = vpop.f32.mrb[0].mxu0
      %v4647 = vadd.f32 0.0, %v4646
      %v4648 = vpop.f32.mrb[0].mxu0
      %4649 = vmatprep.mubr.f32.mxu0 0.0
      %4650 = vmatmul.mubr.f32.gmra.mrb[0].mxu0 %v4177
      %v4651 = vpop.f32.mrb[0].mxu0
      %v4652 = vadd.f32 0.0, %v4651
      %v4653 = vpop.f32.mrb[0].mxu0
      %4654 = vmatprep.mubr.f32.mxu0 0.0
      %4655 = vmatmul.mubr.f32.gmra.mrb[0].mxu0 %v4179
      %v4656 = vpop.f32.mrb[0].mxu0
      %v4657 = vadd.f32 0.0, %v4656
      %v4658 = vpop.f32.mrb[0].mxu0
      %4659 = vmatprep.mubr.f32.mxu0 0.0
      %4660 = vmatmul.mubr.f32.gmra.mrb[0].mxu0 %v4555
      %v4661 = vpop.f32.mrb[0].mxu0
      %v4662 = vadd.f32 0.0, %v4661
      %v4663 = vpop.f32.mrb[0].mxu0
      %4664 = vdwg.mxu0
      %v4665 = vadd.f32 %v4542, %v4627
      %v4666 = vadd.f32 %v4543, %v4632
      %v4667 = vadd.f32 %v4544, %v4637
      %v4668 = vadd.f32 %v4545, %v4642
      %v4669 = vadd.f32 %v4546, %v4647
      %v4670 = vadd.f32 %v4547, %v4652
      %v4671 = vadd.f32 %v4548, %v4657
      %v4672 = vadd.f32 %v4549, %v4662
      %s4673 = scalar_lea.vmem %s7, 24
      %v4674 = vld [vmem:[%s4673] sm:$0xf]
      %v4676 = vsel %vm603, %v3846, 0
      %v4679 = vsel %vm824, %v4674, 0
      %4681 = vmatprep.subr.mxu0 0.0
      %4682 = vmatpush1.msra.mxu0 %v4679
      %4683 = vmatprep.subr.mxu0 0.0
      %4684 = vmatpush1.msra.mxu0 0.0
      %4685 = vmatprep.subr.mxu0 0.0
      %4686 = vmatpush1.msra.mxu0 0.0
      %4687 = vmatprep.subr.mxu0 0.0
      %4688 = vmatpush1.msra.mxu0 0.0
      %4689 = vmatprep.subr.mxu0 0.0
      %4690 = vmatpush1.msra.mxu0 0.0
      %4691 = vmatprep.subr.mxu0 0.0
      %4692 = vmatpush1.msra.mxu0 0.0
      %4693 = vmatprep.subr.mxu0 0.0
      %4694 = vmatpush1.msra.mxu0 0.0
      %4695 = vmatprep.subr.mxu0 0.0
      %4696 = vmatpush1.msra.mxu0 0.0
      %4697 = vmatprep.subr.mxu0 0.0
      %4698 = vmatpush1.msra.mxu0 0.0
      %4699 = vmatprep.subr.mxu0 0.0
      %4700 = vmatpush1.msra.mxu0 0.0
      %4701 = vmatprep.subr.mxu0 0.0
      %4702 = vmatpush1.msra.mxu0 0.0
      %4703 = vmatprep.subr.mxu0 0.0
      %4704 = vmatpush1.msra.mxu0 0.0
      %4705 = vmatprep.subr.mxu0 0.0
      %4706 = vmatpush1.msra.mxu0 0.0
      %4707 = vmatprep.subr.mxu0 0.0
      %4708 = vmatpush1.msra.mxu0 0.0
      %4709 = vmatprep.subr.mxu0 0.0
      %4710 = vmatpush1.msra.mxu0 0.0
      %4711 = vmatprep.subr.mxu0 0.0
      %4712 = vmatpush1.msra.mxu0 0.0
      %4713 = vmatprep.subr.mxu0 0.0
      %4714 = vmatpush1.msra.mxu0 0.0
      %4715 = vmatprep.subr.mxu0 0.0
      %4716 = vmatpush1.msra.mxu0 0.0
      %4717 = vmatprep.subr.mxu0 0.0
      %4718 = vmatpush1.msra.mxu0 0.0
      %4719 = vmatprep.subr.mxu0 0.0
      %4720 = vmatpush1.msra.mxu0 0.0
      %4721 = vmatprep.subr.mxu0 0.0
      %4722 = vmatpush1.msra.mxu0 0.0
      %4723 = vmatprep.subr.mxu0 0.0
      %4724 = vmatpush1.msra.mxu0 0.0
      %4725 = vmatprep.subr.mxu0 0.0
      %4726 = vmatpush1.msra.mxu0 0.0
      %4727 = vmatprep.subr.mxu0 0.0
      %4728 = vmatpush1.msra.mxu0 0.0
      %4729 = vmatprep.subr.mxu0 0.0
      %4730 = vmatpush1.msra.mxu0 0.0
      %4731 = vmatprep.subr.mxu0 0.0
      %4732 = vmatpush1.msra.mxu0 0.0
      %4733 = vmatprep.subr.mxu0 0.0
      %4734 = vmatpush1.msra.mxu0 0.0
      %4735 = vmatprep.subr.mxu0 0.0
      %4736 = vmatpush1.msra.mxu0 0.0
      %4737 = vmatprep.subr.mxu0 0.0
      %4738 = vmatpush1.msra.mxu0 0.0
      %4739 = vmatprep.subr.mxu0 0.0
      %4740 = vmatpush1.msra.mxu0 0.0
      %4741 = vmatprep.subr.mxu0 0.0
      %4742 = vmatpush1.msra.mxu0 0.0
      %4743 = vmatprep.subr.mxu0 0.0
      %4744 = vmatpush1.msra.mxu0 0.0
      %4745 = vmatprep.mubr.f32.mxu0 0.0
      %4746 = vmatmul.mubr.f32.gmra.mrb[0].mxu0 %v4019
      %v4747 = vpop.f32.mrb[0].mxu0
      %v4748 = vadd.f32 0.0, %v4747
      %v4749 = vpop.f32.mrb[0].mxu0
      %4750 = vmatprep.mubr.f32.mxu0 0.0
      %4751 = vmatmul.mubr.f32.gmra.mrb[0].mxu0 %v4021
      %v4752 = vpop.f32.mrb[0].mxu0
      %v4753 = vadd.f32 0.0, %v4752
      %v4754 = vpop.f32.mrb[0].mxu0
      %4755 = vmatprep.mubr.f32.mxu0 0.0
      %4756 = vmatmul.mubr.f32.gmra.mrb[0].mxu0 %v4023
      %v4757 = vpop.f32.mrb[0].mxu0
      %v4758 = vadd.f32 0.0, %v4757
      %v4759 = vpop.f32.mrb[0].mxu0
      %4760 = vmatprep.mubr.f32.mxu0 0.0
      %4761 = vmatmul.mubr.f32.gmra.mrb[0].mxu0 %v4025
      %v4762 = vpop.f32.mrb[0].mxu0
      %v4763 = vadd.f32 0.0, %v4762
      %v4764 = vpop.f32.mrb[0].mxu0
      %4765 = vmatprep.mubr.f32.mxu0 0.0
      %4766 = vmatmul.mubr.f32.gmra.mrb[0].mxu0 %v4027
      %v4767 = vpop.f32.mrb[0].mxu0
      %v4768 = vadd.f32 0.0, %v4767
      %v4769 = vpop.f32.mrb[0].mxu0
      %4770 = vmatprep.mubr.f32.mxu0 0.0
      %4771 = vmatmul.mubr.f32.gmra.mrb[0].mxu0 %v4029
      %v4772 = vpop.f32.mrb[0].mxu0
      %v4773 = vadd.f32 0.0, %v4772
      %v4774 = vpop.f32.mrb[0].mxu0
      %4775 = vmatprep.mubr.f32.mxu0 0.0
      %4776 = vmatmul.mubr.f32.gmra.mrb[0].mxu0 %v4300
      %v4777 = vpop.f32.mrb[0].mxu0
      %v4778 = vadd.f32 0.0, %v4777
      %v4779 = vpop.f32.mrb[0].mxu0
      %4780 = vmatprep.mubr.f32.mxu0 0.0
      %4781 = vmatmul.mubr.f32.gmra.mrb[0].mxu0 %v4676
      %v4782 = vpop.f32.mrb[0].mxu0
      %v4783 = vadd.f32 0.0, %v4782
      %v4784 = vpop.f32.mrb[0].mxu0
      %4785 = vdwg.mxu0
      %v4786 = vadd.f32 %v4665, %v4748
      %v4787 = vadd.f32 %v4666, %v4753
      %v4788 = vadd.f32 %v4667, %v4758
      %v4789 = vadd.f32 %v4668, %v4763
      %v4790 = vadd.f32 %v4669, %v4768
      %v4791 = vadd.f32 %v4670, %v4773
      %v4792 = vadd.f32 %v4671, %v4778
      %v4793 = vadd.f32 %v4672, %v4783
      %v4795 = vrot.slane %v3846, 1
      %v4796 = vrot.slane %v3847, 1
      %v4797 = vsel %vm781, %v4795, %v4796
      %s4798 = scalar_lea.vmem %s7, 28
      %v4799 = vld [vmem:[%s4798] sm:$0xf]
      %v4800 = vsel %vm603, %v4797, 0
      %v4803 = vsel %vm824, %v4799, 0
      %4805 = vmatprep.subr.mxu0 0.0
      %4806 = vmatpush1.msra.mxu0 %v4803
      %4807 = vmatprep.subr.mxu0 0.0
      %4808 = vmatpush1.msra.mxu0 0.0
      %4809 = vmatprep.subr.mxu0 0.0
      %4810 = vmatpush1.msra.mxu0 0.0
      %4811 = vmatprep.subr.mxu0 0.0
      %4812 = vmatpush1.msra.mxu0 0.0
      %4813 = vmatprep.subr.mxu0 0.0
      %4814 = vmatpush1.msra.mxu0 0.0
      %4815 = vmatprep.subr.mxu0 0.0
      %4816 = vmatpush1.msra.mxu0 0.0
      %4817 = vmatprep.subr.mxu0 0.0
      %4818 = vmatpush1.msra.mxu0 0.0
      %4819 = vmatprep.subr.mxu0 0.0
      %4820 = vmatpush1.msra.mxu0 0.0
      %4821 = vmatprep.subr.mxu0 0.0
      %4822 = vmatpush1.msra.mxu0 0.0
      %4823 = vmatprep.subr.mxu0 0.0
      %4824 = vmatpush1.msra.mxu0 0.0
      %4825 = vmatprep.subr.mxu0 0.0
      %4826 = vmatpush1.msra.mxu0 0.0
      %4827 = vmatprep.subr.mxu0 0.0
      %4828 = vmatpush1.msra.mxu0 0.0
      %4829 = vmatprep.subr.mxu0 0.0
      %4830 = vmatpush1.msra.mxu0 0.0
      %4831 = vmatprep.subr.mxu0 0.0
      %4832 = vmatpush1.msra.mxu0 0.0
      %4833 = vmatprep.subr.mxu0 0.0
      %4834 = vmatpush1.msra.mxu0 0.0
      %4835 = vmatprep.subr.mxu0 0.0
      %4836 = vmatpush1.msra.mxu0 0.0
      %4837 = vmatprep.subr.mxu0 0.0
      %4838 = vmatpush1.msra.mxu0 0.0
      %4839 = vmatprep.subr.mxu0 0.0
      %4840 = vmatpush1.msra.mxu0 0.0
      %4841 = vmatprep.subr.mxu0 0.0
      %4842 = vmatpush1.msra.mxu0 0.0
      %4843 = vmatprep.subr.mxu0 0.0
      %4844 = vmatpush1.msra.mxu0 0.0
      %4845 = vmatprep.subr.mxu0 0.0
      %4846 = vmatpush1.msra.mxu0 0.0
      %4847 = vmatprep.subr.mxu0 0.0
      %4848 = vmatpush1.msra.mxu0 0.0
      %4849 = vmatprep.subr.mxu0 0.0
      %4850 = vmatpush1.msra.mxu0 0.0
      %4851 = vmatprep.subr.mxu0 0.0
      %4852 = vmatpush1.msra.mxu0 0.0
      %4853 = vmatprep.subr.mxu0 0.0
      %4854 = vmatpush1.msra.mxu0 0.0
      %4855 = vmatprep.subr.mxu0 0.0
      %4856 = vmatpush1.msra.mxu0 0.0
      %4857 = vmatprep.subr.mxu0 0.0
      %4858 = vmatpush1.msra.mxu0 0.0
      %4859 = vmatprep.subr.mxu0 0.0
      %4860 = vmatpush1.msra.mxu0 0.0
      %4861 = vmatprep.subr.mxu0 0.0
      %4862 = vmatpush1.msra.mxu0 0.0
      %4863 = vmatprep.subr.mxu0 0.0
      %4864 = vmatpush1.msra.mxu0 0.0
      %4865 = vmatprep.subr.mxu0 0.0
      %4866 = vmatpush1.msra.mxu0 0.0
      %4867 = vmatprep.subr.mxu0 0.0
      %4868 = vmatpush1.msra.mxu0 0.0
      %4869 = vmatprep.mubr.f32.mxu0 0.0
      %4870 = vmatmul.mubr.f32.gmra.mrb[0].mxu0 %v3895
      %v4871 = vpop.f32.mrb[0].mxu0
      %v4872 = vadd.f32 0.0, %v4871
      %v4873 = vpop.f32.mrb[0].mxu0
      %4874 = vmatprep.mubr.f32.mxu0 0.0
      %4875 = vmatmul.mubr.f32.gmra.mrb[0].mxu0 %v3897
      %v4876 = vpop.f32.mrb[0].mxu0
      %v4877 = vadd.f32 0.0, %v4876
      %v4878 = vpop.f32.mrb[0].mxu0
      %4879 = vmatprep.mubr.f32.mxu0 0.0
      %4880 = vmatmul.mubr.f32.gmra.mrb[0].mxu0 %v3899
      %v4881 = vpop.f32.mrb[0].mxu0
      %v4882 = vadd.f32 0.0, %v4881
      %v4883 = vpop.f32.mrb[0].mxu0
      %4884 = vmatprep.mubr.f32.mxu0 0.0
      %4885 = vmatmul.mubr.f32.gmra.mrb[0].mxu0 %v3901
      %v4886 = vpop.f32.mrb[0].mxu0
      %v4887 = vadd.f32 0.0, %v4886
      %v4888 = vpop.f32.mrb[0].mxu0
      %4889 = vmatprep.mubr.f32.mxu0 0.0
      %4890 = vmatmul.mubr.f32.gmra.mrb[0].mxu0 %v3903
      %v4891 = vpop.f32.mrb[0].mxu0
      %v4892 = vadd.f32 0.0, %v4891
      %v4893 = vpop.f32.mrb[0].mxu0
      %4894 = vmatprep.mubr.f32.mxu0 0.0
      %4895 = vmatmul.mubr.f32.gmra.mrb[0].mxu0 %v3905
      %v4896 = vpop.f32.mrb[0].mxu0
      %v4897 = vadd.f32 0.0, %v4896
      %v4898 = vpop.f32.mrb[0].mxu0
      %4899 = vmatprep.mubr.f32.mxu0 0.0
      %4900 = vmatmul.mubr.f32.gmra.mrb[0].mxu0 %v4432
      %v4901 = vpop.f32.mrb[0].mxu0
      %v4902 = vadd.f32 0.0, %v4901
      %v4903 = vpop.f32.mrb[0].mxu0
      %4904 = vmatprep.mubr.f32.mxu0 0.0
      %4905 = vmatmul.mubr.f32.gmra.mrb[0].mxu0 %v4800
      %v4906 = vpop.f32.mrb[0].mxu0
      %v4907 = vadd.f32 0.0, %v4906
      %v4908 = vpop.f32.mrb[0].mxu0
      %4909 = vdwg.mxu0
      %v4910 = vadd.f32 %v4786, %v4872
      %v4911 = vadd.f32 %v4787, %v4877
      %v4912 = vadd.f32 %v4788, %v4882
      %v4913 = vadd.f32 %v4789, %v4887
      %v4914 = vadd.f32 %v4790, %v4892
      %v4915 = vadd.f32 %v4791, %v4897
      %v4916 = vadd.f32 %v4792, %v4902
      %v4917 = vadd.f32 %v4793, %v4907
      %v4918 = vrot.slane %v3846, 2
      %v4919 = vrot.slane %v3847, 2
      %v4920 = vsel %vm1057, %v4918, %v4919
      %s4921 = scalar_lea.vmem %s7, 32
      %v4922 = vld [vmem:[%s4921] sm:$0xf]
      %v4923 = vsel %vm603, %v4920, 0
      %v4926 = vsel %vm824, %v4922, 0
      %4928 = vmatprep.subr.mxu0 0.0
      %4929 = vmatpush1.msra.mxu0 %v4926
      %4930 = vmatprep.subr.mxu0 0.0
      %4931 = vmatpush1.msra.mxu0 0.0
      %4932 = vmatprep.subr.mxu0 0.0
      %4933 = vmatpush1.msra.mxu0 0.0
      %4934 = vmatprep.subr.mxu0 0.0
      %4935 = vmatpush1.msra.mxu0 0.0
      %4936 = vmatprep.subr.mxu0 0.0
      %4937 = vmatpush1.msra.mxu0 0.0
      %4938 = vmatprep.subr.mxu0 0.0
      %4939 = vmatpush1.msra.mxu0 0.0
      %4940 = vmatprep.subr.mxu0 0.0
      %4941 = vmatpush1.msra.mxu0 0.0
      %4942 = vmatprep.subr.mxu0 0.0
      %4943 = vmatpush1.msra.mxu0 0.0
      %4944 = vmatprep.subr.mxu0 0.0
      %4945 = vmatpush1.msra.mxu0 0.0
      %4946 = vmatprep.subr.mxu0 0.0
      %4947 = vmatpush1.msra.mxu0 0.0
      %4948 = vmatprep.subr.mxu0 0.0
      %4949 = vmatpush1.msra.mxu0 0.0
      %4950 = vmatprep.subr.mxu0 0.0
      %4951 = vmatpush1.msra.mxu0 0.0
      %4952 = vmatprep.subr.mxu0 0.0
      %4953 = vmatpush1.msra.mxu0 0.0
      %4954 = vmatprep.subr.mxu0 0.0
      %4955 = vmatpush1.msra.mxu0 0.0
      %4956 = vmatprep.subr.mxu0 0.0
      %4957 = vmatpush1.msra.mxu0 0.0
      %4958 = vmatprep.subr.mxu0 0.0
      %4959 = vmatpush1.msra.mxu0 0.0
      %4960 = vmatprep.subr.mxu0 0.0
      %4961 = vmatpush1.msra.mxu0 0.0
      %4962 = vmatprep.subr.mxu0 0.0
      %4963 = vmatpush1.msra.mxu0 0.0
      %4964 = vmatprep.subr.mxu0 0.0
      %4965 = vmatpush1.msra.mxu0 0.0
      %4966 = vmatprep.subr.mxu0 0.0
      %4967 = vmatpush1.msra.mxu0 0.0
      %4968 = vmatprep.subr.mxu0 0.0
      %4969 = vmatpush1.msra.mxu0 0.0
      %4970 = vmatprep.subr.mxu0 0.0
      %4971 = vmatpush1.msra.mxu0 0.0
      %4972 = vmatprep.subr.mxu0 0.0
      %4973 = vmatpush1.msra.mxu0 0.0
      %4974 = vmatprep.subr.mxu0 0.0
      %4975 = vmatpush1.msra.mxu0 0.0
      %4976 = vmatprep.subr.mxu0 0.0
      %4977 = vmatpush1.msra.mxu0 0.0
      %4978 = vmatprep.subr.mxu0 0.0
      %4979 = vmatpush1.msra.mxu0 0.0
      %4980 = vmatprep.subr.mxu0 0.0
      %4981 = vmatpush1.msra.mxu0 0.0
      %4982 = vmatprep.subr.mxu0 0.0
      %4983 = vmatpush1.msra.mxu0 0.0
      %4984 = vmatprep.subr.mxu0 0.0
      %4985 = vmatpush1.msra.mxu0 0.0
      %4986 = vmatprep.subr.mxu0 0.0
      %4987 = vmatpush1.msra.mxu0 0.0
      %4988 = vmatprep.subr.mxu0 0.0
      %4989 = vmatpush1.msra.mxu0 0.0
      %4990 = vmatprep.subr.mxu0 0.0
      %4991 = vmatpush1.msra.mxu0 0.0
      %4992 = vmatprep.mubr.f32.mxu0 0.0
      %4993 = vmatmul.mubr.f32.gmra.mrb[0].mxu0 %v4169
      %v4994 = vpop.f32.mrb[0].mxu0
      %v4995 = vadd.f32 0.0, %v4994
      %v4996 = vpop.f32.mrb[0].mxu0
      %4997 = vmatprep.mubr.f32.mxu0 0.0
      %4998 = vmatmul.mubr.f32.gmra.mrb[0].mxu0 %v4171
      %v4999 = vpop.f32.mrb[0].mxu0
      %v5000 = vadd.f32 0.0, %v4999
      %v5001 = vpop.f32.mrb[0].mxu0
      %5002 = vmatprep.mubr.f32.mxu0 0.0
      %5003 = vmatmul.mubr.f32.gmra.mrb[0].mxu0 %v4173
      %v5004 = vpop.f32.mrb[0].mxu0
      %v5005 = vadd.f32 0.0, %v5004
      %v5006 = vpop.f32.mrb[0].mxu0
      %5007 = vmatprep.mubr.f32.mxu0 0.0
      %5008 = vmatmul.mubr.f32.gmra.mrb[0].mxu0 %v4175
      %v5009 = vpop.f32.mrb[0].mxu0
      %v5010 = vadd.f32 0.0, %v5009
      %v5011 = vpop.f32.mrb[0].mxu0
      %5012 = vmatprep.mubr.f32.mxu0 0.0
      %5013 = vmatmul.mubr.f32.gmra.mrb[0].mxu0 %v4177
      %v5014 = vpop.f32.mrb[0].mxu0
      %v5015 = vadd.f32 0.0, %v5014
      %v5016 = vpop.f32.mrb[0].mxu0
      %5017 = vmatprep.mubr.f32.mxu0 0.0
      %5018 = vmatmul.mubr.f32.gmra.mrb[0].mxu0 %v4179
      %v5019 = vpop.f32.mrb[0].mxu0
      %v5020 = vadd.f32 0.0, %v5019
      %v5021 = vpop.f32.mrb[0].mxu0
      %5022 = vmatprep.mubr.f32.mxu0 0.0
      %5023 = vmatmul.mubr.f32.gmra.mrb[0].mxu0 %v4555
      %v5024 = vpop.f32.mrb[0].mxu0
      %v5025 = vadd.f32 0.0, %v5024
      %v5026 = vpop.f32.mrb[0].mxu0
      %5027 = vmatprep.mubr.f32.mxu0 0.0
      %5028 = vmatmul.mubr.f32.gmra.mrb[0].mxu0 %v4923
      %v5029 = vpop.f32.mrb[0].mxu0
      %v5030 = vadd.f32 0.0, %v5029
      %v5031 = vpop.f32.mrb[0].mxu0
      %5032 = vdwg.mxu0
      %v5033 = vadd.f32 %v4910, %v4995
      %v5034 = vadd.f32 %v4911, %v5000
      %v5035 = vadd.f32 %v4912, %v5005
      %v5036 = vadd.f32 %v4913, %v5010
      %v5037 = vadd.f32 %v4914, %v5015
      %v5038 = vadd.f32 %v4915, %v5020
      %v5039 = vadd.f32 %v4916, %v5025
      %v5040 = vadd.f32 %v4917, %v5030
      %v5041 = vsel %vm603, %v5033, 0.0
      %v5042 = vsel %vm603, %v5034, 0.0
      %v5043 = vadd.f32 %v5041, %v5042
      %v5044 = vsel %vm603, %v5035, 0.0
      %v5045 = vadd.f32 %v5043, %v5044
      %v5046 = vsel %vm603, %v5036, 0.0
      %v5047 = vadd.f32 %v5045, %v5046
      %v5048 = vsel %vm603, %v5037, 0.0
      %v5049 = vadd.f32 %v5047, %v5048
      %v5050 = vsel %vm603, %v5038, 0.0
      %v5051 = vadd.f32 %v5049, %v5050
      %v5052 = vsel %vm603, %v5039, 0.0
      %v5053 = vadd.f32 %v5051, %v5052
      %v5054 = vsel %vm603, %v5040, 0.0
      %v5055 = vadd.f32 %v5053, %v5054
      %5056 = vadd.xlane.f32.xlu0 %v5055
      %v5057 = vpop.xlane.xlu0 %5056
      %v5058 = vrot.slane %v5057, 4
      %v5059 = vadd.f32 %v5057, %v5058
      %v5060 = vrot.slane %v5059, 2
      %v5061 = vadd.f32 %v5059, %v5060
      %v5062 = vrot.slane %v5061, 1
      %v5063 = vadd.f32 %v5061, %v5062
      %s5064 = vtos %v5063
      %v5065 = vstv %s5064
      %v5066 = vmul.f32 %v5033, %v5033
      %v5067 = vmul.f32 %v5034, %v5034
      %v5068 = vmul.f32 %v5035, %v5035
      %v5069 = vmul.f32 %v5036, %v5036
      %v5070 = vmul.f32 %v5037, %v5037
      %v5071 = vmul.f32 %v5038, %v5038
      %v5072 = vmul.f32 %v5039, %v5039
      %v5073 = vmul.f32 %v5040, %v5040
      %v5074 = vsel %vm603, %v5066, 0.0
      %v5075 = vsel %vm603, %v5067, 0.0
      %v5076 = vadd.f32 %v5074, %v5075
      %v5077 = vsel %vm603, %v5068, 0.0
      %v5078 = vadd.f32 %v5076, %v5077
      %v5079 = vsel %vm603, %v5069, 0.0
      %v5080 = vadd.f32 %v5078, %v5079
      %v5081 = vsel %vm603, %v5070, 0.0
      %v5082 = vadd.f32 %v5080, %v5081
      %v5083 = vsel %vm603, %v5071, 0.0
      %v5084 = vadd.f32 %v5082, %v5083
      %v5085 = vsel %vm603, %v5072, 0.0
      %v5086 = vadd.f32 %v5084, %v5085
      %v5087 = vsel %vm603, %v5073, 0.0
      %v5088 = vadd.f32 %v5086, %v5087
      %5089 = vadd.xlane.f32.xlu0 %v5088
      %v5090 = vpop.xlane.xlu0 %5089
      %v5091 = vrot.slane %v5090, 4
      %v5092 = vadd.f32 %v5090, %v5091
      %v5093 = vrot.slane %v5092, 2
      %v5094 = vadd.f32 %v5092, %v5093
      %v5095 = vrot.slane %v5094, 1
      %v5096 = vadd.f32 %v5094, %v5095
      %s5097 = vtos %v5096
      %v5098 = vstv %s5097
      %v5099 = vmul.f32 %v5065, 0.00390625
      %v5100 = vmul.f32 %v5098, 0.00390625
      %v5101 = vmul.f32 %v5099, %v5099
      %v5102 = vsub.f32 %v5100, %v5101
      %v5103 = vmax.f32 %v5102, 0.0
      %v5104 = vsub.f32 %v5033, %v5099
      %v5105 = vsub.f32 %v5034, %v5099
      %v5106 = vsub.f32 %v5035, %v5099
      %v5107 = vsub.f32 %v5036, %v5099
      %v5108 = vsub.f32 %v5037, %v5099
      %v5109 = vsub.f32 %v5038, %v5099
      %v5110 = vsub.f32 %v5039, %v5099
      %v5111 = vsub.f32 %v5040, %v5099
      %v5112 = vadd.f32 %v5103, 1e-05
      %v5113 = vrsqrt.pop %v5112
      %v5114 = vmul.f32 %v5104, %v5113
      %v5115 = vmul.f32 %v5105, %v5113
      %v5116 = vmul.f32 %v5106, %v5113
      %v5117 = vmul.f32 %v5107, %v5113
      %v5118 = vmul.f32 %v5108, %v5113
      %v5119 = vmul.f32 %v5109, %v5113
      %v5120 = vmul.f32 %v5110, %v5113
      %v5121 = vmul.f32 %v5111, %v5113
      %v5123 = vlaneseq
      %v5124 = vshrl.u32 %v5123, 7
      %v5125 = vsub.s32 0, %v5124
      %v5126 = vrot.slane %v3824, %v5125
      %v5128 = vmul.f32 %v5114, %v5126
      %v5129 = vmul.f32 %v5115, %v5126
      %v5130 = vmul.f32 %v5116, %v5126
      %v5131 = vmul.f32 %v5117, %v5126
      %v5132 = vmul.f32 %v5118, %v5126
      %v5133 = vmul.f32 %v5119, %v5126
      %v5134 = vmul.f32 %v5120, %v5126
      %v5135 = vmul.f32 %v5121, %v5126
      %v5137 = vlaneseq
      %v5138 = vshrl.u32 %v5137, 7
      %v5139 = vsub.s32 0, %v5138
      %v5140 = vrot.slane %v3825, %v5139
      %v5142 = vadd.f32 %v5128, %v5140
      %v5143 = vadd.f32 %v5129, %v5140
      %v5144 = vadd.f32 %v5130, %v5140
      %v5145 = vadd.f32 %v5131, %v5140
      %v5146 = vadd.f32 %v5132, %v5140
      %v5147 = vadd.f32 %v5133, %v5140
      %v5148 = vadd.f32 %v5134, %v5140
      %v5149 = vadd.f32 %v5135, %v5140
      %v5150 = vmul.f32 %v5142, 0.5
      %v5151 = vmul.f32 %v5143, 0.5
      %v5152 = vmul.f32 %v5144, 0.5
      %v5153 = vmul.f32 %v5145, 0.5
      %v5154 = vmul.f32 %v5146, 0.5
      %v5155 = vmul.f32 %v5147, 0.5
      %v5156 = vmul.f32 %v5148, 0.5
      %v5157 = vmul.f32 %v5149, 0.5
      %v5158 = vmul.f32 %v5142, 0.70710677
      %v5159 = vmul.f32 %v5143, 0.70710677
      %v5160 = vmul.f32 %v5144, 0.70710677
      %v5161 = vmul.f32 %v5145, 0.70710677
      %v5162 = vmul.f32 %v5146, 0.70710677
      %v5163 = vmul.f32 %v5147, 0.70710677
      %v5164 = vmul.f32 %v5148, 0.70710677
      %v5165 = vmul.f32 %v5149, 0.70710677
      %vm5166 = vcmp.ge.f32.partialorder %v5158, 0.0
      %vm5167 = vcmp.ge.f32.partialorder %v5159, 0.0
      %vm5168 = vcmp.ge.f32.partialorder %v5160, 0.0
      %vm5169 = vcmp.ge.f32.partialorder %v5161, 0.0
      %vm5170 = vcmp.ge.f32.partialorder %v5162, 0.0
      %vm5171 = vcmp.ge.f32.partialorder %v5163, 0.0
      %vm5172 = vcmp.ge.f32.partialorder %v5164, 0.0
      %vm5173 = vcmp.ge.f32.partialorder %v5165, 0.0
      %v5174 = vsel %vm5166, 1.0, -1.0
      %v5175 = vsel %vm5167, 1.0, -1.0
      %v5176 = vsel %vm5168, 1.0, -1.0
      %v5177 = vsel %vm5169, 1.0, -1.0
      %v5178 = vsel %vm5170, 1.0, -1.0
      %v5179 = vsel %vm5171, 1.0, -1.0
      %v5180 = vsel %vm5172, 1.0, -1.0
      %v5181 = vsel %vm5173, 1.0, -1.0
      %v5182 = vand.u32 2147483647, %v5158
      %v5183 = vand.u32 2147483647, %v5159
      %v5184 = vand.u32 2147483647, %v5160
      %v5185 = vand.u32 2147483647, %v5161
      %v5186 = vand.u32 2147483647, %v5162
      %v5187 = vand.u32 2147483647, %v5163
      %v5188 = vand.u32 2147483647, %v5164
      %v5189 = vand.u32 2147483647, %v5165
      %v5190 = vmul.f32 %v5182, 0.3275911
      %v5191 = vmul.f32 %v5183, 0.3275911
      %v5192 = vmul.f32 %v5184, 0.3275911
      %v5193 = vmul.f32 %v5185, 0.3275911
      %v5194 = vmul.f32 %v5186, 0.3275911
      %v5195 = vmul.f32 %v5187, 0.3275911
      %v5196 = vmul.f32 %v5188, 0.3275911
      %v5197 = vmul.f32 %v5189, 0.3275911
      %v5198 = vadd.f32 %v5190, 1.0
      %v5199 = vadd.f32 %v5191, 1.0
      %v5200 = vadd.f32 %v5192, 1.0
      %v5201 = vadd.f32 %v5193, 1.0
      %v5202 = vadd.f32 %v5194, 1.0
      %v5203 = vadd.f32 %v5195, 1.0
      %v5204 = vadd.f32 %v5196, 1.0
      %v5205 = vadd.f32 %v5197, 1.0
      %v5206 = vrcp.pop %v5198
      %v5207 = vrcp.pop %v5199
      %v5208 = vrcp.pop %v5200
      %v5209 = vrcp.pop %v5201
      %v5210 = vrcp.pop %v5202
      %v5211 = vrcp.pop %v5203
      %v5212 = vrcp.pop %v5204
      %v5213 = vrcp.pop %v5205
      %v5214 = vmul.f32 %v5206, 1.0614054
      %v5215 = vmul.f32 %v5207, 1.0614054
      %v5216 = vmul.f32 %v5208, 1.0614054
      %v5217 = vmul.f32 %v5209, 1.0614054
      %v5218 = vmul.f32 %v5210, 1.0614054
      %v5219 = vmul.f32 %v5211, 1.0614054
      %v5220 = vmul.f32 %v5212, 1.0614054
      %v5221 = vmul.f32 %v5213, 1.0614054
      %v5222 = vadd.f32 %v5214, -1.4531521
      %v5223 = vadd.f32 %v5215, -1.4531521
      %v5224 = vadd.f32 %v5216, -1.4531521
      %v5225 = vadd.f32 %v5217, -1.4531521
      %v5226 = vadd.f32 %v5218, -1.4531521
      %v5227 = vadd.f32 %v5219, -1.4531521
      %v5228 = vadd.f32 %v5220, -1.4531521
      %v5229 = vadd.f32 %v5221, -1.4531521
      %v5230 = vmul.f32 %v5222, %v5206
      %v5231 = vmul.f32 %v5223, %v5207
      %v5232 = vmul.f32 %v5224, %v5208
      %v5233 = vmul.f32 %v5225, %v5209
      %v5234 = vmul.f32 %v5226, %v5210
      %v5235 = vmul.f32 %v5227, %v5211
      %v5236 = vmul.f32 %v5228, %v5212
      %v5237 = vmul.f32 %v5229, %v5213
      %v5238 = vadd.f32 %v5230, 1.4214138
      %v5239 = vadd.f32 %v5231, 1.4214138
      %v5240 = vadd.f32 %v5232, 1.4214138
      %v5241 = vadd.f32 %v5233, 1.4214138
      %v5242 = vadd.f32 %v5234, 1.4214138
      %v5243 = vadd.f32 %v5235, 1.4214138
      %v5244 = vadd.f32 %v5236, 1.4214138
      %v5245 = vadd.f32 %v5237, 1.4214138
      %v5246 = vmul.f32 %v5238, %v5206
      %v5247 = vmul.f32 %v5239, %v5207
      %v5248 = vmul.f32 %v5240, %v5208
      %v5249 = vmul.f32 %v5241, %v5209
      %v5250 = vmul.f32 %v5242, %v5210
      %v5251 = vmul.f32 %v5243, %v5211
      %v5252 = vmul.f32 %v5244, %v5212
      %v5253 = vmul.f32 %v5245, %v5213
      %v5254 = vadd.f32 %v5246, -0.28449672
      %v5255 = vadd.f32 %v5247, -0.28449672
      %v5256 = vadd.f32 %v5248, -0.28449672
      %v5257 = vadd.f32 %v5249, -0.28449672
      %v5258 = vadd.f32 %v5250, -0.28449672
      %v5259 = vadd.f32 %v5251, -0.28449672
      %v5260 = vadd.f32 %v5252, -0.28449672
      %v5261 = vadd.f32 %v5253, -0.28449672
      %v5262 = vmul.f32 %v5254, %v5206
      %v5263 = vmul.f32 %v5255, %v5207
      %v5264 = vmul.f32 %v5256, %v5208
      %v5265 = vmul.f32 %v5257, %v5209
      %v5266 = vmul.f32 %v5258, %v5210
      %v5267 = vmul.f32 %v5259, %v5211
      %v5268 = vmul.f32 %v5260, %v5212
      %v5269 = vmul.f32 %v5261, %v5213
      %v5270 = vadd.f32 %v5262, 0.2548296
      %v5271 = vadd.f32 %v5263, 0.2548296
      %v5272 = vadd.f32 %v5264, 0.2548296
      %v5273 = vadd.f32 %v5265, 0.2548296
      %v5274 = vadd.f32 %v5266, 0.2548296
      %v5275 = vadd.f32 %v5267, 0.2548296
      %v5276 = vadd.f32 %v5268, 0.2548296
      %v5277 = vadd.f32 %v5269, 0.2548296
      %v5278 = vmul.f32 %v5270, %v5206
      %v5279 = vmul.f32 %v5271, %v5207
      %v5280 = vmul.f32 %v5272, %v5208
      %v5281 = vmul.f32 %v5273, %v5209
      %v5282 = vmul.f32 %v5274, %v5210
      %v5283 = vmul.f32 %v5275, %v5211
      %v5284 = vmul.f32 %v5276, %v5212
      %v5285 = vmul.f32 %v5277, %v5213
      %v5286 = vsub.f32 0.0, %v5182
      %v5287 = vsub.f32 0.0, %v5183
      %v5288 = vsub.f32 0.0, %v5184
      %v5289 = vsub.f32 0.0, %v5185
      %v5290 = vsub.f32 0.0, %v5186
      %v5291 = vsub.f32 0.0, %v5187
      %v5292 = vsub.f32 0.0, %v5188
      %v5293 = vsub.f32 0.0, %v5189
      %v5294 = vmul.f32 %v5286, %v5182
      %v5295 = vmul.f32 %v5287, %v5183
      %v5296 = vmul.f32 %v5288, %v5184
      %v5297 = vmul.f32 %v5289, %v5185
      %v5298 = vmul.f32 %v5290, %v5186
      %v5299 = vmul.f32 %v5291, %v5187
      %v5300 = vmul.f32 %v5292, %v5188
      %v5301 = vmul.f32 %v5293, %v5189
      %v5302 = vmul.f32 %v5294, 1.442695
      %v5303 = vpow.pop %v5302
      %v5304 = vmul.f32 %v5295, 1.442695
      %v5305 = vpow.pop %v5304
      %v5306 = vmul.f32 %v5296, 1.442695
      %v5307 = vpow.pop %v5306
      %v5308 = vmul.f32 %v5297, 1.442695
      %v5309 = vpow.pop %v5308
      %v5310 = vmul.f32 %v5298, 1.442695
      %v5311 = vpow.pop %v5310
      %v5312 = vmul.f32 %v5299, 1.442695
      %v5313 = vpow.pop %v5312
      %v5314 = vmul.f32 %v5300, 1.442695
      %v5315 = vpow.pop %v5314
      %v5316 = vmul.f32 %v5301, 1.442695
      %v5317 = vpow.pop %v5316
      %v5318 = vmul.f32 %v5278, %v5303
      %v5319 = vmul.f32 %v5279, %v5305
      %v5320 = vmul.f32 %v5280, %v5307
      %v5321 = vmul.f32 %v5281, %v5309
      %v5322 = vmul.f32 %v5282, %v5311
      %v5323 = vmul.f32 %v5283, %v5313
      %v5324 = vmul.f32 %v5284, %v5315
      %v5325 = vmul.f32 %v5285, %v5317
      %v5326 = vsub.f32 1.0, %v5318
      %v5327 = vsub.f32 1.0, %v5319
      %v5328 = vsub.f32 1.0, %v5320
      %v5329 = vsub.f32 1.0, %v5321
      %v5330 = vsub.f32 1.0, %v5322
      %v5331 = vsub.f32 1.0, %v5323
      %v5332 = vsub.f32 1.0, %v5324
      %v5333 = vsub.f32 1.0, %v5325
      %v5334 = vmul.f32 %v5174, %v5326
      %v5335 = vmul.f32 %v5175, %v5327
      %v5336 = vmul.f32 %v5176, %v5328
      %v5337 = vmul.f32 %v5177, %v5329
      %v5338 = vmul.f32 %v5178, %v5330
      %v5339 = vmul.f32 %v5179, %v5331
      %v5340 = vmul.f32 %v5180, %v5332
      %v5341 = vmul.f32 %v5181, %v5333
      %v5342 = vadd.f32 %v5334, 1.0
      %v5343 = vadd.f32 %v5335, 1.0
      %v5344 = vadd.f32 %v5336, 1.0
      %v5345 = vadd.f32 %v5337, 1.0
      %v5346 = vadd.f32 %v5338, 1.0
      %v5347 = vadd.f32 %v5339, 1.0
      %v5348 = vadd.f32 %v5340, 1.0
      %v5349 = vadd.f32 %v5341, 1.0
      %v5350 = vmul.f32 %v5150, %v5342
      %v5351 = vmul.f32 %v5151, %v5343
      %v5352 = vmul.f32 %v5152, %v5344
      %v5353 = vmul.f32 %v5153, %v5345
      %v5354 = vmul.f32 %v5154, %v5346
      %v5355 = vmul.f32 %v5155, %v5347
      %v5356 = vmul.f32 %v5156, %v5348
      %v5357 = vmul.f32 %v5157, %v5349
      %5358 = vst.msk [vmem:[%s2277 + $0x1] sm:$0xff] %vm603, %v5350
      %5359 = vst.msk [vmem:[%s2277 + $0x11] sm:$0xff] %vm603, %v5351
      %5360 = vst.msk [vmem:[%s2277 + $0x21] sm:$0xff] %vm603, %v5352
      %5361 = vst.msk [vmem:[%s2277 + $0x31] sm:$0xff] %vm603, %v5353
      %5362 = vst.msk [vmem:[%s2277 + $0x41] sm:$0xff] %vm603, %v5354
      %5363 = vst.msk [vmem:[%s2277 + $0x51] sm:$0xff] %vm603, %v5355
      %5364 = vst.msk [vmem:[%s2277 + $0x61] sm:$0xff] %vm603, %v5356
      %5365 = vst.msk [vmem:[%s2277 + $0x71] sm:$0xff] %vm603, %v5357
      %v5366 = vld [vmem:[#allocation3] sm:$0xff]
      %v5367 = vld [vmem:[#allocation3 + $0x8] sm:$0x3]
      %v5368 = vld [vmem:[#allocation3 + $0x10] sm:$0xff]
      %v5369 = vld [vmem:[#allocation3 + $0x18] sm:$0x3]
      %v5370 = vld [vmem:[#allocation3 + $0x20] sm:$0xff]
      %v5371 = vld [vmem:[#allocation3 + $0x28] sm:$0x3]
      %v5372 = vld [vmem:[#allocation3 + $0x30] sm:$0xff]
      %v5373 = vld [vmem:[#allocation3 + $0x38] sm:$0x3]
      %v5374 = vld [vmem:[#allocation3 + $0x40] sm:$0xff]
      %v5375 = vld [vmem:[#allocation3 + $0x48] sm:$0x3]
      %v5376 = vld [vmem:[#allocation3 + $0x50] sm:$0xff]
      %v5377 = vld [vmem:[#allocation3 + $0x58] sm:$0x3]
      %v5378 = vld [vmem:[#allocation3 + $0x60] sm:$0xff]
      %v5379 = vld [vmem:[#allocation3 + $0x68] sm:$0x3]
      %v5380 = vld [vmem:[#allocation3 + $0x70] sm:$0xff]
      %v5381 = vld [vmem:[#allocation3 + $0x78] sm:$0x3]
      %v5382 = vld [vmem:[#allocation3 + $0x80] sm:$0xff]
      %v5383 = vld [vmem:[#allocation3 + $0x88] sm:$0x3]
      %v5384 = vld [vmem:[#allocation3 + $0x90] sm:$0xff]
      %v5385 = vld [vmem:[#allocation3 + $0x98] sm:$0x3]
      %v5386 = vld [vmem:[%s10] sm:$0xf]
      %v5403 = vrot.slane %v5366, 1
      %v5404 = vrot.slane %v5367, 1
      %v5405 = vsel %vm781, %v5403, %v5404
      %v5406 = vrot.slane %v5368, 1
      %v5407 = vrot.slane %v5369, 1
      %v5408 = vsel %vm781, %v5406, %v5407
      %v5409 = vrot.slane %v5370, 1
      %v5410 = vrot.slane %v5371, 1
      %v5411 = vsel %vm781, %v5409, %v5410
      %v5412 = vrot.slane %v5372, 1
      %v5413 = vrot.slane %v5373, 1
      %v5414 = vsel %vm781, %v5412, %v5413
      %v5415 = vrot.slane %v5374, 1
      %v5416 = vrot.slane %v5375, 1
      %v5417 = vsel %vm781, %v5415, %v5416
      %v5418 = vrot.slane %v5376, 1
      %v5419 = vrot.slane %v5377, 1
      %v5420 = vsel %vm781, %v5418, %v5419
      %v5421 = vrot.slane %v5378, 1
      %v5422 = vrot.slane %v5379, 1
      %v5423 = vsel %vm781, %v5421, %v5422
      %v5424 = vrot.slane %v5380, 1
      %v5425 = vrot.slane %v5381, 1
      %v5426 = vsel %vm781, %v5424, %v5425
      %s5427 = scalar_lea.vmem %s10, 4
      %v5428 = vld [vmem:[%s5427] sm:$0xf]
      %v5429 = vsel %vm603, %v5405, 0
      %v5431 = vsel %vm603, %v5408, 0
      %v5433 = vsel %vm603, %v5411, 0
      %v5435 = vsel %vm603, %v5414, 0
      %v5437 = vsel %vm603, %v5417, 0
      %v5439 = vsel %vm603, %v5420, 0
      %v5441 = vsel %vm603, %v5423, 0
      %v5443 = vsel %vm603, %v5426, 0
      %v5446 = vsel %vm824, %v5428, 0
      %5448 = vmatprep.subr.mxu0 0.0
      %5449 = vmatpush1.msra.mxu0 %v5446
      %5450 = vmatprep.subr.mxu0 0.0
      %5451 = vmatpush1.msra.mxu0 0.0
      %5452 = vmatprep.subr.mxu0 0.0
      %5453 = vmatpush1.msra.mxu0 0.0
      %5454 = vmatprep.subr.mxu0 0.0
      %5455 = vmatpush1.msra.mxu0 0.0
      %5456 = vmatprep.subr.mxu0 0.0
      %5457 = vmatpush1.msra.mxu0 0.0
      %5458 = vmatprep.subr.mxu0 0.0
      %5459 = vmatpush1.msra.mxu0 0.0
      %5460 = vmatprep.subr.mxu0 0.0
      %5461 = vmatpush1.msra.mxu0 0.0
      %5462 = vmatprep.subr.mxu0 0.0
      %5463 = vmatpush1.msra.mxu0 0.0
      %5464 = vmatprep.subr.mxu0 0.0
      %5465 = vmatpush1.msra.mxu0 0.0
      %5466 = vmatprep.subr.mxu0 0.0
      %5467 = vmatpush1.msra.mxu0 0.0
      %5468 = vmatprep.subr.mxu0 0.0
      %5469 = vmatpush1.msra.mxu0 0.0
      %5470 = vmatprep.subr.mxu0 0.0
      %5471 = vmatpush1.msra.mxu0 0.0
      %5472 = vmatprep.subr.mxu0 0.0
      %5473 = vmatpush1.msra.mxu0 0.0
      %5474 = vmatprep.subr.mxu0 0.0
      %5475 = vmatpush1.msra.mxu0 0.0
      %5476 = vmatprep.subr.mxu0 0.0
      %5477 = vmatpush1.msra.mxu0 0.0
      %5478 = vmatprep.subr.mxu0 0.0
      %5479 = vmatpush1.msra.mxu0 0.0
      %5480 = vmatprep.subr.mxu0 0.0
      %5481 = vmatpush1.msra.mxu0 0.0
      %5482 = vmatprep.subr.mxu0 0.0
      %5483 = vmatpush1.msra.mxu0 0.0
      %5484 = vmatprep.subr.mxu0 0.0
      %5485 = vmatpush1.msra.mxu0 0.0
      %5486 = vmatprep.subr.mxu0 0.0
      %5487 = vmatpush1.msra.mxu0 0.0
      %5488 = vmatprep.subr.mxu0 0.0
      %5489 = vmatpush1.msra.mxu0 0.0
      %5490 = vmatprep.subr.mxu0 0.0
      %5491 = vmatpush1.msra.mxu0 0.0
      %5492 = vmatprep.subr.mxu0 0.0
      %5493 = vmatpush1.msra.mxu0 0.0
      %5494 = vmatprep.subr.mxu0 0.0
      %5495 = vmatpush1.msra.mxu0 0.0
      %5496 = vmatprep.subr.mxu0 0.0
      %5497 = vmatpush1.msra.mxu0 0.0
      %5498 = vmatprep.subr.mxu0 0.0
      %5499 = vmatpush1.msra.mxu0 0.0
      %5500 = vmatprep.subr.mxu0 0.0
      %5501 = vmatpush1.msra.mxu0 0.0
      %5502 = vmatprep.subr.mxu0 0.0
      %5503 = vmatpush1.msra.mxu0 0.0
      %5504 = vmatprep.subr.mxu0 0.0
      %5505 = vmatpush1.msra.mxu0 0.0
      %5506 = vmatprep.subr.mxu0 0.0
      %5507 = vmatpush1.msra.mxu0 0.0
      %5508 = vmatprep.subr.mxu0 0.0
      %5509 = vmatpush1.msra.mxu0 0.0
      %5510 = vmatprep.subr.mxu0 0.0
      %5511 = vmatpush1.msra.mxu0 0.0
      %5512 = vmatprep.mubr.f32.mxu0 0.0
      %5513 = vmatmul.mubr.f32.gmra.mrb[0].mxu0 %v5429
      %v5514 = vpop.f32.mrb[0].mxu0
      %v5515 = vadd.f32 0.0, %v5514
      %v5516 = vpop.f32.mrb[0].mxu0
      %5517 = vmatprep.mubr.f32.mxu0 0.0
      %5518 = vmatmul.mubr.f32.gmra.mrb[0].mxu0 %v5431
      %v5519 = vpop.f32.mrb[0].mxu0
      %v5520 = vadd.f32 0.0, %v5519
      %v5521 = vpop.f32.mrb[0].mxu0
      %5522 = vmatprep.mubr.f32.mxu0 0.0
      %5523 = vmatmul.mubr.f32.gmra.mrb[0].mxu0 %v5433
      %v5524 = vpop.f32.mrb[0].mxu0
      %v5525 = vadd.f32 0.0, %v5524
      %v5526 = vpop.f32.mrb[0].mxu0
      %5527 = vmatprep.mubr.f32.mxu0 0.0
      %5528 = vmatmul.mubr.f32.gmra.mrb[0].mxu0 %v5435
      %v5529 = vpop.f32.mrb[0].mxu0
      %v5530 = vadd.f32 0.0, %v5529
      %v5531 = vpop.f32.mrb[0].mxu0
      %5532 = vmatprep.mubr.f32.mxu0 0.0
      %5533 = vmatmul.mubr.f32.gmra.mrb[0].mxu0 %v5437
      %v5534 = vpop.f32.mrb[0].mxu0
      %v5535 = vadd.f32 0.0, %v5534
      %v5536 = vpop.f32.mrb[0].mxu0
      %5537 = vmatprep.mubr.f32.mxu0 0.0
      %5538 = vmatmul.mubr.f32.gmra.mrb[0].mxu0 %v5439
      %v5539 = vpop.f32.mrb[0].mxu0
      %v5540 = vadd.f32 0.0, %v5539
      %v5541 = vpop.f32.mrb[0].mxu0
      %5542 = vmatprep.mubr.f32.mxu0 0.0
      %5543 = vmatmul.mubr.f32.gmra.mrb[0].mxu0 %v5441
      %v5544 = vpop.f32.mrb[0].mxu0
      %v5545 = vadd.f32 0.0, %v5544
      %v5546 = vpop.f32.mrb[0].mxu0
      %5547 = vmatprep.mubr.f32.mxu0 0.0
      %5548 = vmatmul.mubr.f32.gmra.mrb[0].mxu0 %v5443
      %v5549 = vpop.f32.mrb[0].mxu0
      %v5550 = vadd.f32 0.0, %v5549
      %v5551 = vpop.f32.mrb[0].mxu0
      %5552 = vdwg.mxu0
      %v5553 = vsel %vm603, %v5366, 0
      %v5555 = vsel %vm603, %v5368, 0
      %v5557 = vsel %vm603, %v5370, 0
      %v5559 = vsel %vm603, %v5372, 0
      %v5561 = vsel %vm603, %v5374, 0
      %v5563 = vsel %vm603, %v5376, 0
      %v5565 = vsel %vm603, %v5378, 0
      %v5567 = vsel %vm603, %v5380, 0
      %v5570 = vsel %vm824, %v5386, 0
      %5572 = vmatprep.subr.mxu0 0.0
      %5573 = vmatpush1.msra.mxu0 %v5570
      %5574 = vmatprep.subr.mxu0 0.0
      %5575 = vmatpush1.msra.mxu0 0.0
      %5576 = vmatprep.subr.mxu0 0.0
      %5577 = vmatpush1.msra.mxu0 0.0
      %5578 = vmatprep.subr.mxu0 0.0
      %5579 = vmatpush1.msra.mxu0 0.0
      %5580 = vmatprep.subr.mxu0 0.0
      %5581 = vmatpush1.msra.mxu0 0.0
      %5582 = vmatprep.subr.mxu0 0.0
      %5583 = vmatpush1.msra.mxu0 0.0
      %5584 = vmatprep.subr.mxu0 0.0
      %5585 = vmatpush1.msra.mxu0 0.0
      %5586 = vmatprep.subr.mxu0 0.0
      %5587 = vmatpush1.msra.mxu0 0.0
      %5588 = vmatprep.subr.mxu0 0.0
      %5589 = vmatpush1.msra.mxu0 0.0
      %5590 = vmatprep.subr.mxu0 0.0
      %5591 = vmatpush1.msra.mxu0 0.0
      %5592 = vmatprep.subr.mxu0 0.0
      %5593 = vmatpush1.msra.mxu0 0.0
      %5594 = vmatprep.subr.mxu0 0.0
      %5595 = vmatpush1.msra.mxu0 0.0
      %5596 = vmatprep.subr.mxu0 0.0
      %5597 = vmatpush1.msra.mxu0 0.0
      %5598 = vmatprep.subr.mxu0 0.0
      %5599 = vmatpush1.msra.mxu0 0.0
      %5600 = vmatprep.subr.mxu0 0.0
      %5601 = vmatpush1.msra.mxu0 0.0
      %5602 = vmatprep.subr.mxu0 0.0
      %5603 = vmatpush1.msra.mxu0 0.0
      %5604 = vmatprep.subr.mxu0 0.0
      %5605 = vmatpush1.msra.mxu0 0.0
      %5606 = vmatprep.subr.mxu0 0.0
      %5607 = vmatpush1.msra.mxu0 0.0
      %5608 = vmatprep.subr.mxu0 0.0
      %5609 = vmatpush1.msra.mxu0 0.0
      %5610 = vmatprep.subr.mxu0 0.0
      %5611 = vmatpush1.msra.mxu0 0.0
      %5612 = vmatprep.subr.mxu0 0.0
      %5613 = vmatpush1.msra.mxu0 0.0
      %5614 = vmatprep.subr.mxu0 0.0
      %5615 = vmatpush1.msra.mxu0 0.0
      %5616 = vmatprep.subr.mxu0 0.0
      %5617 = vmatpush1.msra.mxu0 0.0
      %5618 = vmatprep.subr.mxu0 0.0
      %5619 = vmatpush1.msra.mxu0 0.0
      %5620 = vmatprep.subr.mxu0 0.0
      %5621 = vmatpush1.msra.mxu0 0.0
      %5622 = vmatprep.subr.mxu0 0.0
      %5623 = vmatpush1.msra.mxu0 0.0
      %5624 = vmatprep.subr.mxu0 0.0
      %5625 = vmatpush1.msra.mxu0 0.0
      %5626 = vmatprep.subr.mxu0 0.0
      %5627 = vmatpush1.msra.mxu0 0.0
      %5628 = vmatprep.subr.mxu0 0.0
      %5629 = vmatpush1.msra.mxu0 0.0
      %5630 = vmatprep.subr.mxu0 0.0
      %5631 = vmatpush1.msra.mxu0 0.0
      %5632 = vmatprep.subr.mxu0 0.0
      %5633 = vmatpush1.msra.mxu0 0.0
      %5634 = vmatprep.subr.mxu0 0.0
      %5635 = vmatpush1.msra.mxu0 0.0
      %5636 = vmatprep.mubr.f32.mxu0 0.0
      %5637 = vmatmul.mubr.f32.gmra.mrb[0].mxu0 %v5553
      %v5638 = vpop.f32.mrb[0].mxu0
      %v5639 = vadd.f32 %v5515, %v5638
      %v5640 = vpop.f32.mrb[0].mxu0
      %5641 = vmatprep.mubr.f32.mxu0 0.0
      %5642 = vmatmul.mubr.f32.gmra.mrb[0].mxu0 %v5555
      %v5643 = vpop.f32.mrb[0].mxu0
      %v5644 = vadd.f32 %v5520, %v5643
      %v5645 = vpop.f32.mrb[0].mxu0
      %5646 = vmatprep.mubr.f32.mxu0 0.0
      %5647 = vmatmul.mubr.f32.gmra.mrb[0].mxu0 %v5557
      %v5648 = vpop.f32.mrb[0].mxu0
      %v5649 = vadd.f32 %v5525, %v5648
      %v5650 = vpop.f32.mrb[0].mxu0
      %5651 = vmatprep.mubr.f32.mxu0 0.0
      %5652 = vmatmul.mubr.f32.gmra.mrb[0].mxu0 %v5559
      %v5653 = vpop.f32.mrb[0].mxu0
      %v5654 = vadd.f32 %v5530, %v5653
      %v5655 = vpop.f32.mrb[0].mxu0
      %5656 = vmatprep.mubr.f32.mxu0 0.0
      %5657 = vmatmul.mubr.f32.gmra.mrb[0].mxu0 %v5561
      %v5658 = vpop.f32.mrb[0].mxu0
      %v5659 = vadd.f32 %v5535, %v5658
      %v5660 = vpop.f32.mrb[0].mxu0
      %5661 = vmatprep.mubr.f32.mxu0 0.0
      %5662 = vmatmul.mubr.f32.gmra.mrb[0].mxu0 %v5563
      %v5663 = vpop.f32.mrb[0].mxu0
      %v5664 = vadd.f32 %v5540, %v5663
      %v5665 = vpop.f32.mrb[0].mxu0
      %5666 = vmatprep.mubr.f32.mxu0 0.0
      %5667 = vmatmul.mubr.f32.gmra.mrb[0].mxu0 %v5565
      %v5668 = vpop.f32.mrb[0].mxu0
      %v5669 = vadd.f32 %v5545, %v5668
      %v5670 = vpop.f32.mrb[0].mxu0
      %5671 = vmatprep.mubr.f32.mxu0 0.0
      %5672 = vmatmul.mubr.f32.gmra.mrb[0].mxu0 %v5567
      %v5673 = vpop.f32.mrb[0].mxu0
      %v5674 = vadd.f32 %v5550, %v5673
      %v5675 = vpop.f32.mrb[0].mxu0
      %5676 = vdwg.mxu0
      %v5677 = vrot.slane %v5366, 2
      %v5678 = vrot.slane %v5367, 2
      %v5679 = vsel %vm1057, %v5677, %v5678
      %v5680 = vrot.slane %v5368, 2
      %v5681 = vrot.slane %v5369, 2
      %v5682 = vsel %vm1057, %v5680, %v5681
      %v5683 = vrot.slane %v5370, 2
      %v5684 = vrot.slane %v5371, 2
      %v5685 = vsel %vm1057, %v5683, %v5684
      %v5686 = vrot.slane %v5372, 2
      %v5687 = vrot.slane %v5373, 2
      %v5688 = vsel %vm1057, %v5686, %v5687
      %v5689 = vrot.slane %v5374, 2
      %v5690 = vrot.slane %v5375, 2
      %v5691 = vsel %vm1057, %v5689, %v5690
      %v5692 = vrot.slane %v5376, 2
      %v5693 = vrot.slane %v5377, 2
      %v5694 = vsel %vm1057, %v5692, %v5693
      %v5695 = vrot.slane %v5378, 2
      %v5696 = vrot.slane %v5379, 2
      %v5697 = vsel %vm1057, %v5695, %v5696
      %v5698 = vrot.slane %v5380, 2
      %v5699 = vrot.slane %v5381, 2
      %v5700 = vsel %vm1057, %v5698, %v5699
      %s5701 = scalar_lea.vmem %s10, 8
      %v5702 = vld [vmem:[%s5701] sm:$0xf]
      %v5703 = vsel %vm603, %v5679, 0
      %v5705 = vsel %vm603, %v5682, 0
      %v5707 = vsel %vm603, %v5685, 0
      %v5709 = vsel %vm603, %v5688, 0
      %v5711 = vsel %vm603, %v5691, 0
      %v5713 = vsel %vm603, %v5694, 0
      %v5715 = vsel %vm603, %v5697, 0
      %v5717 = vsel %vm603, %v5700, 0
      %v5720 = vsel %vm824, %v5702, 0
      %5722 = vmatprep.subr.mxu0 0.0
      %5723 = vmatpush1.msra.mxu0 %v5720
      %5724 = vmatprep.subr.mxu0 0.0
      %5725 = vmatpush1.msra.mxu0 0.0
      %5726 = vmatprep.subr.mxu0 0.0
      %5727 = vmatpush1.msra.mxu0 0.0
      %5728 = vmatprep.subr.mxu0 0.0
      %5729 = vmatpush1.msra.mxu0 0.0
      %5730 = vmatprep.subr.mxu0 0.0
      %5731 = vmatpush1.msra.mxu0 0.0
      %5732 = vmatprep.subr.mxu0 0.0
      %5733 = vmatpush1.msra.mxu0 0.0
      %5734 = vmatprep.subr.mxu0 0.0
      %5735 = vmatpush1.msra.mxu0 0.0
      %5736 = vmatprep.subr.mxu0 0.0
      %5737 = vmatpush1.msra.mxu0 0.0
      %5738 = vmatprep.subr.mxu0 0.0
      %5739 = vmatpush1.msra.mxu0 0.0
      %5740 = vmatprep.subr.mxu0 0.0
      %5741 = vmatpush1.msra.mxu0 0.0
      %5742 = vmatprep.subr.mxu0 0.0
      %5743 = vmatpush1.msra.mxu0 0.0
      %5744 = vmatprep.subr.mxu0 0.0
      %5745 = vmatpush1.msra.mxu0 0.0
      %5746 = vmatprep.subr.mxu0 0.0
      %5747 = vmatpush1.msra.mxu0 0.0
      %5748 = vmatprep.subr.mxu0 0.0
      %5749 = vmatpush1.msra.mxu0 0.0
      %5750 = vmatprep.subr.mxu0 0.0
      %5751 = vmatpush1.msra.mxu0 0.0
      %5752 = vmatprep.subr.mxu0 0.0
      %5753 = vmatpush1.msra.mxu0 0.0
      %5754 = vmatprep.subr.mxu0 0.0
      %5755 = vmatpush1.msra.mxu0 0.0
      %5756 = vmatprep.subr.mxu0 0.0
      %5757 = vmatpush1.msra.mxu0 0.0
      %5758 = vmatprep.subr.mxu0 0.0
      %5759 = vmatpush1.msra.mxu0 0.0
      %5760 = vmatprep.subr.mxu0 0.0
      %5761 = vmatpush1.msra.mxu0 0.0
      %5762 = vmatprep.subr.mxu0 0.0
      %5763 = vmatpush1.msra.mxu0 0.0
      %5764 = vmatprep.subr.mxu0 0.0
      %5765 = vmatpush1.msra.mxu0 0.0
      %5766 = vmatprep.subr.mxu0 0.0
      %5767 = vmatpush1.msra.mxu0 0.0
      %5768 = vmatprep.subr.mxu0 0.0
      %5769 = vmatpush1.msra.mxu0 0.0
      %5770 = vmatprep.subr.mxu0 0.0
      %5771 = vmatpush1.msra.mxu0 0.0
      %5772 = vmatprep.subr.mxu0 0.0
      %5773 = vmatpush1.msra.mxu0 0.0
      %5774 = vmatprep.subr.mxu0 0.0
      %5775 = vmatpush1.msra.mxu0 0.0
      %5776 = vmatprep.subr.mxu0 0.0
      %5777 = vmatpush1.msra.mxu0 0.0
      %5778 = vmatprep.subr.mxu0 0.0
      %5779 = vmatpush1.msra.mxu0 0.0
      %5780 = vmatprep.subr.mxu0 0.0
      %5781 = vmatpush1.msra.mxu0 0.0
      %5782 = vmatprep.subr.mxu0 0.0
      %5783 = vmatpush1.msra.mxu0 0.0
      %5784 = vmatprep.subr.mxu0 0.0
      %5785 = vmatpush1.msra.mxu0 0.0
      %5786 = vmatprep.mubr.f32.mxu0 0.0
      %5787 = vmatmul.mubr.f32.gmra.mrb[0].mxu0 %v5703
      %v5788 = vpop.f32.mrb[0].mxu0
      %v5789 = vadd.f32 0.0, %v5788
      %v5790 = vpop.f32.mrb[0].mxu0
      %5791 = vmatprep.mubr.f32.mxu0 0.0
      %5792 = vmatmul.mubr.f32.gmra.mrb[0].mxu0 %v5705
      %v5793 = vpop.f32.mrb[0].mxu0
      %v5794 = vadd.f32 0.0, %v5793
      %v5795 = vpop.f32.mrb[0].mxu0
      %5796 = vmatprep.mubr.f32.mxu0 0.0
      %5797 = vmatmul.mubr.f32.gmra.mrb[0].mxu0 %v5707
      %v5798 = vpop.f32.mrb[0].mxu0
      %v5799 = vadd.f32 0.0, %v5798
      %v5800 = vpop.f32.mrb[0].mxu0
      %5801 = vmatprep.mubr.f32.mxu0 0.0
      %5802 = vmatmul.mubr.f32.gmra.mrb[0].mxu0 %v5709
      %v5803 = vpop.f32.mrb[0].mxu0
      %v5804 = vadd.f32 0.0, %v5803
      %v5805 = vpop.f32.mrb[0].mxu0
      %5806 = vmatprep.mubr.f32.mxu0 0.0
      %5807 = vmatmul.mubr.f32.gmra.mrb[0].mxu0 %v5711
      %v5808 = vpop.f32.mrb[0].mxu0
      %v5809 = vadd.f32 0.0, %v5808
      %v5810 = vpop.f32.mrb[0].mxu0
      %5811 = vmatprep.mubr.f32.mxu0 0.0
      %5812 = vmatmul.mubr.f32.gmra.mrb[0].mxu0 %v5713
      %v5813 = vpop.f32.mrb[0].mxu0
      %v5814 = vadd.f32 0.0, %v5813
      %v5815 = vpop.f32.mrb[0].mxu0
      %5816 = vmatprep.mubr.f32.mxu0 0.0
      %5817 = vmatmul.mubr.f32.gmra.mrb[0].mxu0 %v5715
      %v5818 = vpop.f32.mrb[0].mxu0
      %v5819 = vadd.f32 0.0, %v5818
      %v5820 = vpop.f32.mrb[0].mxu0
      %5821 = vmatprep.mubr.f32.mxu0 0.0
      %5822 = vmatmul.mubr.f32.gmra.mrb[0].mxu0 %v5717
      %v5823 = vpop.f32.mrb[0].mxu0
      %v5824 = vadd.f32 0.0, %v5823
      %v5825 = vpop.f32.mrb[0].mxu0
      %5826 = vdwg.mxu0
      %v5827 = vadd.f32 %v5639, %v5789
      %v5828 = vadd.f32 %v5644, %v5794
      %v5829 = vadd.f32 %v5649, %v5799
      %v5830 = vadd.f32 %v5654, %v5804
      %v5831 = vadd.f32 %v5659, %v5809
      %v5832 = vadd.f32 %v5664, %v5814
      %v5833 = vadd.f32 %v5669, %v5819
      %v5834 = vadd.f32 %v5674, %v5824
      %s5835 = scalar_lea.vmem %s10, 12
      %v5836 = vld [vmem:[%s5835] sm:$0xf]
      %v5838 = vsel %vm603, %v5382, 0
      %v5841 = vsel %vm824, %v5836, 0
      %5843 = vmatprep.subr.mxu0 0.0
      %5844 = vmatpush1.msra.mxu0 %v5841
      %5845 = vmatprep.subr.mxu0 0.0
      %5846 = vmatpush1.msra.mxu0 0.0
      %5847 = vmatprep.subr.mxu0 0.0
      %5848 = vmatpush1.msra.mxu0 0.0
      %5849 = vmatprep.subr.mxu0 0.0
      %5850 = vmatpush1.msra.mxu0 0.0
      %5851 = vmatprep.subr.mxu0 0.0
      %5852 = vmatpush1.msra.mxu0 0.0
      %5853 = vmatprep.subr.mxu0 0.0
      %5854 = vmatpush1.msra.mxu0 0.0
      %5855 = vmatprep.subr.mxu0 0.0
      %5856 = vmatpush1.msra.mxu0 0.0
      %5857 = vmatprep.subr.mxu0 0.0
      %5858 = vmatpush1.msra.mxu0 0.0
      %5859 = vmatprep.subr.mxu0 0.0
      %5860 = vmatpush1.msra.mxu0 0.0
      %5861 = vmatprep.subr.mxu0 0.0
      %5862 = vmatpush1.msra.mxu0 0.0
      %5863 = vmatprep.subr.mxu0 0.0
      %5864 = vmatpush1.msra.mxu0 0.0
      %5865 = vmatprep.subr.mxu0 0.0
      %5866 = vmatpush1.msra.mxu0 0.0
      %5867 = vmatprep.subr.mxu0 0.0
      %5868 = vmatpush1.msra.mxu0 0.0
      %5869 = vmatprep.subr.mxu0 0.0
      %5870 = vmatpush1.msra.mxu0 0.0
      %5871 = vmatprep.subr.mxu0 0.0
      %5872 = vmatpush1.msra.mxu0 0.0
      %5873 = vmatprep.subr.mxu0 0.0
      %5874 = vmatpush1.msra.mxu0 0.0
      %5875 = vmatprep.subr.mxu0 0.0
      %5876 = vmatpush1.msra.mxu0 0.0
      %5877 = vmatprep.subr.mxu0 0.0
      %5878 = vmatpush1.msra.mxu0 0.0
      %5879 = vmatprep.subr.mxu0 0.0
      %5880 = vmatpush1.msra.mxu0 0.0
      %5881 = vmatprep.subr.mxu0 0.0
      %5882 = vmatpush1.msra.mxu0 0.0
      %5883 = vmatprep.subr.mxu0 0.0
      %5884 = vmatpush1.msra.mxu0 0.0
      %5885 = vmatprep.subr.mxu0 0.0
      %5886 = vmatpush1.msra.mxu0 0.0
      %5887 = vmatprep.subr.mxu0 0.0
      %5888 = vmatpush1.msra.mxu0 0.0
      %5889 = vmatprep.subr.mxu0 0.0
      %5890 = vmatpush1.msra.mxu0 0.0
      %5891 = vmatprep.subr.mxu0 0.0
      %5892 = vmatpush1.msra.mxu0 0.0
      %5893 = vmatprep.subr.mxu0 0.0
      %5894 = vmatpush1.msra.mxu0 0.0
      %5895 = vmatprep.subr.mxu0 0.0
      %5896 = vmatpush1.msra.mxu0 0.0
      %5897 = vmatprep.subr.mxu0 0.0
      %5898 = vmatpush1.msra.mxu0 0.0
      %5899 = vmatprep.subr.mxu0 0.0
      %5900 = vmatpush1.msra.mxu0 0.0
      %5901 = vmatprep.subr.mxu0 0.0
      %5902 = vmatpush1.msra.mxu0 0.0
      %5903 = vmatprep.subr.mxu0 0.0
      %5904 = vmatpush1.msra.mxu0 0.0
      %5905 = vmatprep.subr.mxu0 0.0
      %5906 = vmatpush1.msra.mxu0 0.0
      %5907 = vmatprep.mubr.f32.mxu0 0.0
      %5908 = vmatmul.mubr.f32.gmra.mrb[0].mxu0 %v5555
      %v5909 = vpop.f32.mrb[0].mxu0
      %v5910 = vadd.f32 0.0, %v5909
      %v5911 = vpop.f32.mrb[0].mxu0
      %5912 = vmatprep.mubr.f32.mxu0 0.0
      %5913 = vmatmul.mubr.f32.gmra.mrb[0].mxu0 %v5557
      %v5914 = vpop.f32.mrb[0].mxu0
      %v5915 = vadd.f32 0.0, %v5914
      %v5916 = vpop.f32.mrb[0].mxu0
      %5917 = vmatprep.mubr.f32.mxu0 0.0
      %5918 = vmatmul.mubr.f32.gmra.mrb[0].mxu0 %v5559
      %v5919 = vpop.f32.mrb[0].mxu0
      %v5920 = vadd.f32 0.0, %v5919
      %v5921 = vpop.f32.mrb[0].mxu0
      %5922 = vmatprep.mubr.f32.mxu0 0.0
      %5923 = vmatmul.mubr.f32.gmra.mrb[0].mxu0 %v5561
      %v5924 = vpop.f32.mrb[0].mxu0
      %v5925 = vadd.f32 0.0, %v5924
      %v5926 = vpop.f32.mrb[0].mxu0
      %5927 = vmatprep.mubr.f32.mxu0 0.0
      %5928 = vmatmul.mubr.f32.gmra.mrb[0].mxu0 %v5563
      %v5929 = vpop.f32.mrb[0].mxu0
      %v5930 = vadd.f32 0.0, %v5929
      %v5931 = vpop.f32.mrb[0].mxu0
      %5932 = vmatprep.mubr.f32.mxu0 0.0
      %5933 = vmatmul.mubr.f32.gmra.mrb[0].mxu0 %v5565
      %v5934 = vpop.f32.mrb[0].mxu0
      %v5935 = vadd.f32 0.0, %v5934
      %v5936 = vpop.f32.mrb[0].mxu0
      %5937 = vmatprep.mubr.f32.mxu0 0.0
      %5938 = vmatmul.mubr.f32.gmra.mrb[0].mxu0 %v5567
      %v5939 = vpop.f32.mrb[0].mxu0
      %v5940 = vadd.f32 0.0, %v5939
      %v5941 = vpop.f32.mrb[0].mxu0
      %5942 = vmatprep.mubr.f32.mxu0 0.0
      %5943 = vmatmul.mubr.f32.gmra.mrb[0].mxu0 %v5838
      %v5944 = vpop.f32.mrb[0].mxu0
      %v5945 = vadd.f32 0.0, %v5944
      %v5946 = vpop.f32.mrb[0].mxu0
      %5947 = vdwg.mxu0
      %v5948 = vadd.f32 %v5827, %v5910
      %v5949 = vadd.f32 %v5828, %v5915
      %v5950 = vadd.f32 %v5829, %v5920
      %v5951 = vadd.f32 %v5830, %v5925
      %v5952 = vadd.f32 %v5831, %v5930
      %v5953 = vadd.f32 %v5832, %v5935
      %v5954 = vadd.f32 %v5833, %v5940
      %v5955 = vadd.f32 %v5834, %v5945
      %v5957 = vrot.slane %v5382, 1
      %v5958 = vrot.slane %v5383, 1
      %v5959 = vsel %vm781, %v5957, %v5958
      %s5960 = scalar_lea.vmem %s10, 16
      %v5961 = vld [vmem:[%s5960] sm:$0xf]
      %v5962 = vsel %vm603, %v5959, 0
      %v5965 = vsel %vm824, %v5961, 0
      %5967 = vmatprep.subr.mxu0 0.0
      %5968 = vmatpush1.msra.mxu0 %v5965
      %5969 = vmatprep.subr.mxu0 0.0
      %5970 = vmatpush1.msra.mxu0 0.0
      %5971 = vmatprep.subr.mxu0 0.0
      %5972 = vmatpush1.msra.mxu0 0.0
      %5973 = vmatprep.subr.mxu0 0.0
      %5974 = vmatpush1.msra.mxu0 0.0
      %5975 = vmatprep.subr.mxu0 0.0
      %5976 = vmatpush1.msra.mxu0 0.0
      %5977 = vmatprep.subr.mxu0 0.0
      %5978 = vmatpush1.msra.mxu0 0.0
      %5979 = vmatprep.subr.mxu0 0.0
      %5980 = vmatpush1.msra.mxu0 0.0
      %5981 = vmatprep.subr.mxu0 0.0
      %5982 = vmatpush1.msra.mxu0 0.0
      %5983 = vmatprep.subr.mxu0 0.0
      %5984 = vmatpush1.msra.mxu0 0.0
      %5985 = vmatprep.subr.mxu0 0.0
      %5986 = vmatpush1.msra.mxu0 0.0
      %5987 = vmatprep.subr.mxu0 0.0
      %5988 = vmatpush1.msra.mxu0 0.0
      %5989 = vmatprep.subr.mxu0 0.0
      %5990 = vmatpush1.msra.mxu0 0.0
      %5991 = vmatprep.subr.mxu0 0.0
      %5992 = vmatpush1.msra.mxu0 0.0
      %5993 = vmatprep.subr.mxu0 0.0
      %5994 = vmatpush1.msra.mxu0 0.0
      %5995 = vmatprep.subr.mxu0 0.0
      %5996 = vmatpush1.msra.mxu0 0.0
      %5997 = vmatprep.subr.mxu0 0.0
      %5998 = vmatpush1.msra.mxu0 0.0
      %5999 = vmatprep.subr.mxu0 0.0
      %6000 = vmatpush1.msra.mxu0 0.0
      %6001 = vmatprep.subr.mxu0 0.0
      %6002 = vmatpush1.msra.mxu0 0.0
      %6003 = vmatprep.subr.mxu0 0.0
      %6004 = vmatpush1.msra.mxu0 0.0
      %6005 = vmatprep.subr.mxu0 0.0
      %6006 = vmatpush1.msra.mxu0 0.0
      %6007 = vmatprep.subr.mxu0 0.0
      %6008 = vmatpush1.msra.mxu0 0.0
      %6009 = vmatprep.subr.mxu0 0.0
      %6010 = vmatpush1.msra.mxu0 0.0
      %6011 = vmatprep.subr.mxu0 0.0
      %6012 = vmatpush1.msra.mxu0 0.0
      %6013 = vmatprep.subr.mxu0 0.0
      %6014 = vmatpush1.msra.mxu0 0.0
      %6015 = vmatprep.subr.mxu0 0.0
      %6016 = vmatpush1.msra.mxu0 0.0
      %6017 = vmatprep.subr.mxu0 0.0
      %6018 = vmatpush1.msra.mxu0 0.0
      %6019 = vmatprep.subr.mxu0 0.0
      %6020 = vmatpush1.msra.mxu0 0.0
      %6021 = vmatprep.subr.mxu0 0.0
      %6022 = vmatpush1.msra.mxu0 0.0
      %6023 = vmatprep.subr.mxu0 0.0
      %6024 = vmatpush1.msra.mxu0 0.0
      %6025 = vmatprep.subr.mxu0 0.0
      %6026 = vmatpush1.msra.mxu0 0.0
      %6027 = vmatprep.subr.mxu0 0.0
      %6028 = vmatpush1.msra.mxu0 0.0
      %6029 = vmatprep.subr.mxu0 0.0
      %6030 = vmatpush1.msra.mxu0 0.0
      %6031 = vmatprep.mubr.f32.mxu0 0.0
      %6032 = vmatmul.mubr.f32.gmra.mrb[0].mxu0 %v5431
      %v6033 = vpop.f32.mrb[0].mxu0
      %v6034 = vadd.f32 0.0, %v6033
      %v6035 = vpop.f32.mrb[0].mxu0
      %6036 = vmatprep.mubr.f32.mxu0 0.0
      %6037 = vmatmul.mubr.f32.gmra.mrb[0].mxu0 %v5433
      %v6038 = vpop.f32.mrb[0].mxu0
      %v6039 = vadd.f32 0.0, %v6038
      %v6040 = vpop.f32.mrb[0].mxu0
      %6041 = vmatprep.mubr.f32.mxu0 0.0
      %6042 = vmatmul.mubr.f32.gmra.mrb[0].mxu0 %v5435
      %v6043 = vpop.f32.mrb[0].mxu0
      %v6044 = vadd.f32 0.0, %v6043
      %v6045 = vpop.f32.mrb[0].mxu0
      %6046 = vmatprep.mubr.f32.mxu0 0.0
      %6047 = vmatmul.mubr.f32.gmra.mrb[0].mxu0 %v5437
      %v6048 = vpop.f32.mrb[0].mxu0
      %v6049 = vadd.f32 0.0, %v6048
      %v6050 = vpop.f32.mrb[0].mxu0
      %6051 = vmatprep.mubr.f32.mxu0 0.0
      %6052 = vmatmul.mubr.f32.gmra.mrb[0].mxu0 %v5439
      %v6053 = vpop.f32.mrb[0].mxu0
      %v6054 = vadd.f32 0.0, %v6053
      %v6055 = vpop.f32.mrb[0].mxu0
      %6056 = vmatprep.mubr.f32.mxu0 0.0
      %6057 = vmatmul.mubr.f32.gmra.mrb[0].mxu0 %v5441
      %v6058 = vpop.f32.mrb[0].mxu0
      %v6059 = vadd.f32 0.0, %v6058
      %v6060 = vpop.f32.mrb[0].mxu0
      %6061 = vmatprep.mubr.f32.mxu0 0.0
      %6062 = vmatmul.mubr.f32.gmra.mrb[0].mxu0 %v5443
      %v6063 = vpop.f32.mrb[0].mxu0
      %v6064 = vadd.f32 0.0, %v6063
      %v6065 = vpop.f32.mrb[0].mxu0
      %6066 = vmatprep.mubr.f32.mxu0 0.0
      %6067 = vmatmul.mubr.f32.gmra.mrb[0].mxu0 %v5962
      %v6068 = vpop.f32.mrb[0].mxu0
      %v6069 = vadd.f32 0.0, %v6068
      %v6070 = vpop.f32.mrb[0].mxu0
      %6071 = vdwg.mxu0
      %v6072 = vadd.f32 %v5948, %v6034
      %v6073 = vadd.f32 %v5949, %v6039
      %v6074 = vadd.f32 %v5950, %v6044
      %v6075 = vadd.f32 %v5951, %v6049
      %v6076 = vadd.f32 %v5952, %v6054
      %v6077 = vadd.f32 %v5953, %v6059
      %v6078 = vadd.f32 %v5954, %v6064
      %v6079 = vadd.f32 %v5955, %v6069
      %v6080 = vrot.slane %v5382, 2
      %v6081 = vrot.slane %v5383, 2
      %v6082 = vsel %vm1057, %v6080, %v6081
      %s6083 = scalar_lea.vmem %s10, 20
      %v6084 = vld [vmem:[%s6083] sm:$0xf]
      %v6085 = vsel %vm603, %v6082, 0
      %v6088 = vsel %vm824, %v6084, 0
      %6090 = vmatprep.subr.mxu0 0.0
      %6091 = vmatpush1.msra.mxu0 %v6088
      %6092 = vmatprep.subr.mxu0 0.0
      %6093 = vmatpush1.msra.mxu0 0.0
      %6094 = vmatprep.subr.mxu0 0.0
      %6095 = vmatpush1.msra.mxu0 0.0
      %6096 = vmatprep.subr.mxu0 0.0
      %6097 = vmatpush1.msra.mxu0 0.0
      %6098 = vmatprep.subr.mxu0 0.0
      %6099 = vmatpush1.msra.mxu0 0.0
      %6100 = vmatprep.subr.mxu0 0.0
      %6101 = vmatpush1.msra.mxu0 0.0
      %6102 = vmatprep.subr.mxu0 0.0
      %6103 = vmatpush1.msra.mxu0 0.0
      %6104 = vmatprep.subr.mxu0 0.0
      %6105 = vmatpush1.msra.mxu0 0.0
      %6106 = vmatprep.subr.mxu0 0.0
      %6107 = vmatpush1.msra.mxu0 0.0
      %6108 = vmatprep.subr.mxu0 0.0
      %6109 = vmatpush1.msra.mxu0 0.0
      %6110 = vmatprep.subr.mxu0 0.0
      %6111 = vmatpush1.msra.mxu0 0.0
      %6112 = vmatprep.subr.mxu0 0.0
      %6113 = vmatpush1.msra.mxu0 0.0
      %6114 = vmatprep.subr.mxu0 0.0
      %6115 = vmatpush1.msra.mxu0 0.0
      %6116 = vmatprep.subr.mxu0 0.0
      %6117 = vmatpush1.msra.mxu0 0.0
      %6118 = vmatprep.subr.mxu0 0.0
      %6119 = vmatpush1.msra.mxu0 0.0
      %6120 = vmatprep.subr.mxu0 0.0
      %6121 = vmatpush1.msra.mxu0 0.0
      %6122 = vmatprep.subr.mxu0 0.0
      %6123 = vmatpush1.msra.mxu0 0.0
      %6124 = vmatprep.subr.mxu0 0.0
      %6125 = vmatpush1.msra.mxu0 0.0
      %6126 = vmatprep.subr.mxu0 0.0
      %6127 = vmatpush1.msra.mxu0 0.0
      %6128 = vmatprep.subr.mxu0 0.0
      %6129 = vmatpush1.msra.mxu0 0.0
      %6130 = vmatprep.subr.mxu0 0.0
      %6131 = vmatpush1.msra.mxu0 0.0
      %6132 = vmatprep.subr.mxu0 0.0
      %6133 = vmatpush1.msra.mxu0 0.0
      %6134 = vmatprep.subr.mxu0 0.0
      %6135 = vmatpush1.msra.mxu0 0.0
      %6136 = vmatprep.subr.mxu0 0.0
      %6137 = vmatpush1.msra.mxu0 0.0
      %6138 = vmatprep.subr.mxu0 0.0
      %6139 = vmatpush1.msra.mxu0 0.0
      %6140 = vmatprep.subr.mxu0 0.0
      %6141 = vmatpush1.msra.mxu0 0.0
      %6142 = vmatprep.subr.mxu0 0.0
      %6143 = vmatpush1.msra.mxu0 0.0
      %6144 = vmatprep.subr.mxu0 0.0
      %6145 = vmatpush1.msra.mxu0 0.0
      %6146 = vmatprep.subr.mxu0 0.0
      %6147 = vmatpush1.msra.mxu0 0.0
      %6148 = vmatprep.subr.mxu0 0.0
      %6149 = vmatpush1.msra.mxu0 0.0
      %6150 = vmatprep.subr.mxu0 0.0
      %6151 = vmatpush1.msra.mxu0 0.0
      %6152 = vmatprep.subr.mxu0 0.0
      %6153 = vmatpush1.msra.mxu0 0.0
      %6154 = vmatprep.mubr.f32.mxu0 0.0
      %6155 = vmatmul.mubr.f32.gmra.mrb[0].mxu0 %v5705
      %v6156 = vpop.f32.mrb[0].mxu0
      %v6157 = vadd.f32 0.0, %v6156
      %v6158 = vpop.f32.mrb[0].mxu0
      %6159 = vmatprep.mubr.f32.mxu0 0.0
      %6160 = vmatmul.mubr.f32.gmra.mrb[0].mxu0 %v5707
      %v6161 = vpop.f32.mrb[0].mxu0
      %v6162 = vadd.f32 0.0, %v6161
      %v6163 = vpop.f32.mrb[0].mxu0
      %6164 = vmatprep.mubr.f32.mxu0 0.0
      %6165 = vmatmul.mubr.f32.gmra.mrb[0].mxu0 %v5709
      %v6166 = vpop.f32.mrb[0].mxu0
      %v6167 = vadd.f32 0.0, %v6166
      %v6168 = vpop.f32.mrb[0].mxu0
      %6169 = vmatprep.mubr.f32.mxu0 0.0
      %6170 = vmatmul.mubr.f32.gmra.mrb[0].mxu0 %v5711
      %v6171 = vpop.f32.mrb[0].mxu0
      %v6172 = vadd.f32 0.0, %v6171
      %v6173 = vpop.f32.mrb[0].mxu0
      %6174 = vmatprep.mubr.f32.mxu0 0.0
      %6175 = vmatmul.mubr.f32.gmra.mrb[0].mxu0 %v5713
      %v6176 = vpop.f32.mrb[0].mxu0
      %v6177 = vadd.f32 0.0, %v6176
      %v6178 = vpop.f32.mrb[0].mxu0
      %6179 = vmatprep.mubr.f32.mxu0 0.0
      %6180 = vmatmul.mubr.f32.gmra.mrb[0].mxu0 %v5715
      %v6181 = vpop.f32.mrb[0].mxu0
      %v6182 = vadd.f32 0.0, %v6181
      %v6183 = vpop.f32.mrb[0].mxu0
      %6184 = vmatprep.mubr.f32.mxu0 0.0
      %6185 = vmatmul.mubr.f32.gmra.mrb[0].mxu0 %v5717
      %v6186 = vpop.f32.mrb[0].mxu0
      %v6187 = vadd.f32 0.0, %v6186
      %v6188 = vpop.f32.mrb[0].mxu0
      %6189 = vmatprep.mubr.f32.mxu0 0.0
      %6190 = vmatmul.mubr.f32.gmra.mrb[0].mxu0 %v6085
      %v6191 = vpop.f32.mrb[0].mxu0
      %v6192 = vadd.f32 0.0, %v6191
      %v6193 = vpop.f32.mrb[0].mxu0
      %6194 = vdwg.mxu0
      %v6195 = vadd.f32 %v6072, %v6157
      %v6196 = vadd.f32 %v6073, %v6162
      %v6197 = vadd.f32 %v6074, %v6167
      %v6198 = vadd.f32 %v6075, %v6172
      %v6199 = vadd.f32 %v6076, %v6177
      %v6200 = vadd.f32 %v6077, %v6182
      %v6201 = vadd.f32 %v6078, %v6187
      %v6202 = vadd.f32 %v6079, %v6192
      %s6203 = scalar_lea.vmem %s10, 24
      %v6204 = vld [vmem:[%s6203] sm:$0xf]
      %v6206 = vsel %vm603, %v5384, 0
      %v6209 = vsel %vm824, %v6204, 0
      %6211 = vmatprep.subr.mxu0 0.0
      %6212 = vmatpush1.msra.mxu0 %v6209
      %6213 = vmatprep.subr.mxu0 0.0
      %6214 = vmatpush1.msra.mxu0 0.0
      %6215 = vmatprep.subr.mxu0 0.0
      %6216 = vmatpush1.msra.mxu0 0.0
      %6217 = vmatprep.subr.mxu0 0.0
      %6218 = vmatpush1.msra.mxu0 0.0
      %6219 = vmatprep.subr.mxu0 0.0
      %6220 = vmatpush1.msra.mxu0 0.0
      %6221 = vmatprep.subr.mxu0 0.0
      %6222 = vmatpush1.msra.mxu0 0.0
      %6223 = vmatprep.subr.mxu0 0.0
      %6224 = vmatpush1.msra.mxu0 0.0
      %6225 = vmatprep.subr.mxu0 0.0
      %6226 = vmatpush1.msra.mxu0 0.0
      %6227 = vmatprep.subr.mxu0 0.0
      %6228 = vmatpush1.msra.mxu0 0.0
      %6229 = vmatprep.subr.mxu0 0.0
      %6230 = vmatpush1.msra.mxu0 0.0
      %6231 = vmatprep.subr.mxu0 0.0
      %6232 = vmatpush1.msra.mxu0 0.0
      %6233 = vmatprep.subr.mxu0 0.0
      %6234 = vmatpush1.msra.mxu0 0.0
      %6235 = vmatprep.subr.mxu0 0.0
      %6236 = vmatpush1.msra.mxu0 0.0
      %6237 = vmatprep.subr.mxu0 0.0
      %6238 = vmatpush1.msra.mxu0 0.0
      %6239 = vmatprep.subr.mxu0 0.0
      %6240 = vmatpush1.msra.mxu0 0.0
      %6241 = vmatprep.subr.mxu0 0.0
      %6242 = vmatpush1.msra.mxu0 0.0
      %6243 = vmatprep.subr.mxu0 0.0
      %6244 = vmatpush1.msra.mxu0 0.0
      %6245 = vmatprep.subr.mxu0 0.0
      %6246 = vmatpush1.msra.mxu0 0.0
      %6247 = vmatprep.subr.mxu0 0.0
      %6248 = vmatpush1.msra.mxu0 0.0
      %6249 = vmatprep.subr.mxu0 0.0
      %6250 = vmatpush1.msra.mxu0 0.0
      %6251 = vmatprep.subr.mxu0 0.0
      %6252 = vmatpush1.msra.mxu0 0.0
      %6253 = vmatprep.subr.mxu0 0.0
      %6254 = vmatpush1.msra.mxu0 0.0
      %6255 = vmatprep.subr.mxu0 0.0
      %6256 = vmatpush1.msra.mxu0 0.0
      %6257 = vmatprep.subr.mxu0 0.0
      %6258 = vmatpush1.msra.mxu0 0.0
      %6259 = vmatprep.subr.mxu0 0.0
      %6260 = vmatpush1.msra.mxu0 0.0
      %6261 = vmatprep.subr.mxu0 0.0
      %6262 = vmatpush1.msra.mxu0 0.0
      %6263 = vmatprep.subr.mxu0 0.0
      %6264 = vmatpush1.msra.mxu0 0.0
      %6265 = vmatprep.subr.mxu0 0.0
      %6266 = vmatpush1.msra.mxu0 0.0
      %6267 = vmatprep.subr.mxu0 0.0
      %6268 = vmatpush1.msra.mxu0 0.0
      %6269 = vmatprep.subr.mxu0 0.0
      %6270 = vmatpush1.msra.mxu0 0.0
      %6271 = vmatprep.subr.mxu0 0.0
      %6272 = vmatpush1.msra.mxu0 0.0
      %6273 = vmatprep.subr.mxu0 0.0
      %6274 = vmatpush1.msra.mxu0 0.0
      %6275 = vmatprep.mubr.f32.mxu0 0.0
      %6276 = vmatmul.mubr.f32.gmra.mrb[0].mxu0 %v5557
      %v6277 = vpop.f32.mrb[0].mxu0
      %v6278 = vadd.f32 0.0, %v6277
      %v6279 = vpop.f32.mrb[0].mxu0
      %6280 = vmatprep.mubr.f32.mxu0 0.0
      %6281 = vmatmul.mubr.f32.gmra.mrb[0].mxu0 %v5559
      %v6282 = vpop.f32.mrb[0].mxu0
      %v6283 = vadd.f32 0.0, %v6282
      %v6284 = vpop.f32.mrb[0].mxu0
      %6285 = vmatprep.mubr.f32.mxu0 0.0
      %6286 = vmatmul.mubr.f32.gmra.mrb[0].mxu0 %v5561
      %v6287 = vpop.f32.mrb[0].mxu0
      %v6288 = vadd.f32 0.0, %v6287
      %v6289 = vpop.f32.mrb[0].mxu0
      %6290 = vmatprep.mubr.f32.mxu0 0.0
      %6291 = vmatmul.mubr.f32.gmra.mrb[0].mxu0 %v5563
      %v6292 = vpop.f32.mrb[0].mxu0
      %v6293 = vadd.f32 0.0, %v6292
      %v6294 = vpop.f32.mrb[0].mxu0
      %6295 = vmatprep.mubr.f32.mxu0 0.0
      %6296 = vmatmul.mubr.f32.gmra.mrb[0].mxu0 %v5565
      %v6297 = vpop.f32.mrb[0].mxu0
      %v6298 = vadd.f32 0.0, %v6297
      %v6299 = vpop.f32.mrb[0].mxu0
      %6300 = vmatprep.mubr.f32.mxu0 0.0
      %6301 = vmatmul.mubr.f32.gmra.mrb[0].mxu0 %v5567
      %v6302 = vpop.f32.mrb[0].mxu0
      %v6303 = vadd.f32 0.0, %v6302
      %v6304 = vpop.f32.mrb[0].mxu0
      %6305 = vmatprep.mubr.f32.mxu0 0.0
      %6306 = vmatmul.mubr.f32.gmra.mrb[0].mxu0 %v5838
      %v6307 = vpop.f32.mrb[0].mxu0
      %v6308 = vadd.f32 0.0, %v6307
      %v6309 = vpop.f32.mrb[0].mxu0
      %6310 = vmatprep.mubr.f32.mxu0 0.0
      %6311 = vmatmul.mubr.f32.gmra.mrb[0].mxu0 %v6206
      %v6312 = vpop.f32.mrb[0].mxu0
      %v6313 = vadd.f32 0.0, %v6312
      %v6314 = vpop.f32.mrb[0].mxu0
      %6315 = vdwg.mxu0
      %v6316 = vadd.f32 %v6195, %v6278
      %v6317 = vadd.f32 %v6196, %v6283
      %v6318 = vadd.f32 %v6197, %v6288
      %v6319 = vadd.f32 %v6198, %v6293
      %v6320 = vadd.f32 %v6199, %v6298
      %v6321 = vadd.f32 %v6200, %v6303
      %v6322 = vadd.f32 %v6201, %v6308
      %v6323 = vadd.f32 %v6202, %v6313
      %v6325 = vrot.slane %v5384, 1
      %v6326 = vrot.slane %v5385, 1
      %v6327 = vsel %vm781, %v6325, %v6326
      %s6328 = scalar_lea.vmem %s10, 28
      %v6329 = vld [vmem:[%s6328] sm:$0xf]
      %v6330 = vsel %vm603, %v6327, 0
      %v6333 = vsel %vm824, %v6329, 0
      %6335 = vmatprep.subr.mxu0 0.0
      %6336 = vmatpush1.msra.mxu0 %v6333
      %6337 = vmatprep.subr.mxu0 0.0
      %6338 = vmatpush1.msra.mxu0 0.0
      %6339 = vmatprep.subr.mxu0 0.0
      %6340 = vmatpush1.msra.mxu0 0.0
      %6341 = vmatprep.subr.mxu0 0.0
      %6342 = vmatpush1.msra.mxu0 0.0
      %6343 = vmatprep.subr.mxu0 0.0
      %6344 = vmatpush1.msra.mxu0 0.0
      %6345 = vmatprep.subr.mxu0 0.0
      %6346 = vmatpush1.msra.mxu0 0.0
      %6347 = vmatprep.subr.mxu0 0.0
      %6348 = vmatpush1.msra.mxu0 0.0
      %6349 = vmatprep.subr.mxu0 0.0
      %6350 = vmatpush1.msra.mxu0 0.0
      %6351 = vmatprep.subr.mxu0 0.0
      %6352 = vmatpush1.msra.mxu0 0.0
      %6353 = vmatprep.subr.mxu0 0.0
      %6354 = vmatpush1.msra.mxu0 0.0
      %6355 = vmatprep.subr.mxu0 0.0
      %6356 = vmatpush1.msra.mxu0 0.0
      %6357 = vmatprep.subr.mxu0 0.0
      %6358 = vmatpush1.msra.mxu0 0.0
      %6359 = vmatprep.subr.mxu0 0.0
      %6360 = vmatpush1.msra.mxu0 0.0
      %6361 = vmatprep.subr.mxu0 0.0
      %6362 = vmatpush1.msra.mxu0 0.0
      %6363 = vmatprep.subr.mxu0 0.0
      %6364 = vmatpush1.msra.mxu0 0.0
      %6365 = vmatprep.subr.mxu0 0.0
      %6366 = vmatpush1.msra.mxu0 0.0
      %6367 = vmatprep.subr.mxu0 0.0
      %6368 = vmatpush1.msra.mxu0 0.0
      %6369 = vmatprep.subr.mxu0 0.0
      %6370 = vmatpush1.msra.mxu0 0.0
      %6371 = vmatprep.subr.mxu0 0.0
      %6372 = vmatpush1.msra.mxu0 0.0
      %6373 = vmatprep.subr.mxu0 0.0
      %6374 = vmatpush1.msra.mxu0 0.0
      %6375 = vmatprep.subr.mxu0 0.0
      %6376 = vmatpush1.msra.mxu0 0.0
      %6377 = vmatprep.subr.mxu0 0.0
      %6378 = vmatpush1.msra.mxu0 0.0
      %6379 = vmatprep.subr.mxu0 0.0
      %6380 = vmatpush1.msra.mxu0 0.0
      %6381 = vmatprep.subr.mxu0 0.0
      %6382 = vmatpush1.msra.mxu0 0.0
      %6383 = vmatprep.subr.mxu0 0.0
      %6384 = vmatpush1.msra.mxu0 0.0
      %6385 = vmatprep.subr.mxu0 0.0
      %6386 = vmatpush1.msra.mxu0 0.0
      %6387 = vmatprep.subr.mxu0 0.0
      %6388 = vmatpush1.msra.mxu0 0.0
      %6389 = vmatprep.subr.mxu0 0.0
      %6390 = vmatpush1.msra.mxu0 0.0
      %6391 = vmatprep.subr.mxu0 0.0
      %6392 = vmatpush1.msra.mxu0 0.0
      %6393 = vmatprep.subr.mxu0 0.0
      %6394 = vmatpush1.msra.mxu0 0.0
      %6395 = vmatprep.subr.mxu0 0.0
      %6396 = vmatpush1.msra.mxu0 0.0
      %6397 = vmatprep.subr.mxu0 0.0
      %6398 = vmatpush1.msra.mxu0 0.0
      %6399 = vmatprep.mubr.f32.mxu0 0.0
      %6400 = vmatmul.mubr.f32.gmra.mrb[0].mxu0 %v5433
      %v6401 = vpop.f32.mrb[0].mxu0
      %v6402 = vadd.f32 0.0, %v6401
      %v6403 = vpop.f32.mrb[0].mxu0
      %6404 = vmatprep.mubr.f32.mxu0 0.0
      %6405 = vmatmul.mubr.f32.gmra.mrb[0].mxu0 %v5435
      %v6406 = vpop.f32.mrb[0].mxu0
      %v6407 = vadd.f32 0.0, %v6406
      %v6408 = vpop.f32.mrb[0].mxu0
      %6409 = vmatprep.mubr.f32.mxu0 0.0
      %6410 = vmatmul.mubr.f32.gmra.mrb[0].mxu0 %v5437
      %v6411 = vpop.f32.mrb[0].mxu0
      %v6412 = vadd.f32 0.0, %v6411
      %v6413 = vpop.f32.mrb[0].mxu0
      %6414 = vmatprep.mubr.f32.mxu0 0.0
      %6415 = vmatmul.mubr.f32.gmra.mrb[0].mxu0 %v5439
      %v6416 = vpop.f32.mrb[0].mxu0
      %v6417 = vadd.f32 0.0, %v6416
      %v6418 = vpop.f32.mrb[0].mxu0
      %6419 = vmatprep.mubr.f32.mxu0 0.0
      %6420 = vmatmul.mubr.f32.gmra.mrb[0].mxu0 %v5441
      %v6421 = vpop.f32.mrb[0].mxu0
      %v6422 = vadd.f32 0.0, %v6421
      %v6423 = vpop.f32.mrb[0].mxu0
      %6424 = vmatprep.mubr.f32.mxu0 0.0
      %6425 = vmatmul.mubr.f32.gmra.mrb[0].mxu0 %v5443
      %v6426 = vpop.f32.mrb[0].mxu0
      %v6427 = vadd.f32 0.0, %v6426
      %v6428 = vpop.f32.mrb[0].mxu0
      %6429 = vmatprep.mubr.f32.mxu0 0.0
      %6430 = vmatmul.mubr.f32.gmra.mrb[0].mxu0 %v5962
      %v6431 = vpop.f32.mrb[0].mxu0
      %v6432 = vadd.f32 0.0, %v6431
      %v6433 = vpop.f32.mrb[0].mxu0
      %6434 = vmatprep.mubr.f32.mxu0 0.0
      %6435 = vmatmul.mubr.f32.gmra.mrb[0].mxu0 %v6330
      %v6436 = vpop.f32.mrb[0].mxu0
      %v6437 = vadd.f32 0.0, %v6436
      %v6438 = vpop.f32.mrb[0].mxu0
      %6439 = vdwg.mxu0
      %v6440 = vadd.f32 %v6316, %v6402
      %v6441 = vadd.f32 %v6317, %v6407
      %v6442 = vadd.f32 %v6318, %v6412
      %v6443 = vadd.f32 %v6319, %v6417
      %v6444 = vadd.f32 %v6320, %v6422
      %v6445 = vadd.f32 %v6321, %v6427
      %v6446 = vadd.f32 %v6322, %v6432
      %v6447 = vadd.f32 %v6323, %v6437
      %v6448 = vrot.slane %v5384, 2
      %v6449 = vrot.slane %v5385, 2
      %v6450 = vsel %vm1057, %v6448, %v6449
      %s6451 = scalar_lea.vmem %s10, 32
      %v6452 = vld [vmem:[%s6451] sm:$0xf]
      %v6453 = vsel %vm603, %v6450, 0
      %v6456 = vsel %vm824, %v6452, 0
      %6458 = vmatprep.subr.mxu0 0.0
      %6459 = vmatpush1.msra.mxu0 %v6456
      %6460 = vmatprep.subr.mxu0 0.0
      %6461 = vmatpush1.msra.mxu0 0.0
      %6462 = vmatprep.subr.mxu0 0.0
      %6463 = vmatpush1.msra.mxu0 0.0
      %6464 = vmatprep.subr.mxu0 0.0
      %6465 = vmatpush1.msra.mxu0 0.0
      %6466 = vmatprep.subr.mxu0 0.0
      %6467 = vmatpush1.msra.mxu0 0.0
      %6468 = vmatprep.subr.mxu0 0.0
      %6469 = vmatpush1.msra.mxu0 0.0
      %6470 = vmatprep.subr.mxu0 0.0
      %6471 = vmatpush1.msra.mxu0 0.0
      %6472 = vmatprep.subr.mxu0 0.0
      %6473 = vmatpush1.msra.mxu0 0.0
      %6474 = vmatprep.subr.mxu0 0.0
      %6475 = vmatpush1.msra.mxu0 0.0
      %6476 = vmatprep.subr.mxu0 0.0
      %6477 = vmatpush1.msra.mxu0 0.0
      %6478 = vmatprep.subr.mxu0 0.0
      %6479 = vmatpush1.msra.mxu0 0.0
      %6480 = vmatprep.subr.mxu0 0.0
      %6481 = vmatpush1.msra.mxu0 0.0
      %6482 = vmatprep.subr.mxu0 0.0
      %6483 = vmatpush1.msra.mxu0 0.0
      %6484 = vmatprep.subr.mxu0 0.0
      %6485 = vmatpush1.msra.mxu0 0.0
      %6486 = vmatprep.subr.mxu0 0.0
      %6487 = vmatpush1.msra.mxu0 0.0
      %6488 = vmatprep.subr.mxu0 0.0
      %6489 = vmatpush1.msra.mxu0 0.0
      %6490 = vmatprep.subr.mxu0 0.0
      %6491 = vmatpush1.msra.mxu0 0.0
      %6492 = vmatprep.subr.mxu0 0.0
      %6493 = vmatpush1.msra.mxu0 0.0
      %6494 = vmatprep.subr.mxu0 0.0
      %6495 = vmatpush1.msra.mxu0 0.0
      %6496 = vmatprep.subr.mxu0 0.0
      %6497 = vmatpush1.msra.mxu0 0.0
      %6498 = vmatprep.subr.mxu0 0.0
      %6499 = vmatpush1.msra.mxu0 0.0
      %6500 = vmatprep.subr.mxu0 0.0
      %6501 = vmatpush1.msra.mxu0 0.0
      %6502 = vmatprep.subr.mxu0 0.0
      %6503 = vmatpush1.msra.mxu0 0.0
      %6504 = vmatprep.subr.mxu0 0.0
      %6505 = vmatpush1.msra.mxu0 0.0
      %6506 = vmatprep.subr.mxu0 0.0
      %6507 = vmatpush1.msra.mxu0 0.0
      %6508 = vmatprep.subr.mxu0 0.0
      %6509 = vmatpush1.msra.mxu0 0.0
      %6510 = vmatprep.subr.mxu0 0.0
      %6511 = vmatpush1.msra.mxu0 0.0
      %6512 = vmatprep.subr.mxu0 0.0
      %6513 = vmatpush1.msra.mxu0 0.0
      %6514 = vmatprep.subr.mxu0 0.0
      %6515 = vmatpush1.msra.mxu0 0.0
      %6516 = vmatprep.subr.mxu0 0.0
      %6517 = vmatpush1.msra.mxu0 0.0
      %6518 = vmatprep.subr.mxu0 0.0
      %6519 = vmatpush1.msra.mxu0 0.0
      %6520 = vmatprep.subr.mxu0 0.0
      %6521 = vmatpush1.msra.mxu0 0.0
      %6522 = vmatprep.mubr.f32.mxu0 0.0
      %6523 = vmatmul.mubr.f32.gmra.mrb[0].mxu0 %v5707
      %v6524 = vpop.f32.mrb[0].mxu0
      %v6525 = vadd.f32 0.0, %v6524
      %v6526 = vpop.f32.mrb[0].mxu0
      %6527 = vmatprep.mubr.f32.mxu0 0.0
      %6528 = vmatmul.mubr.f32.gmra.mrb[0].mxu0 %v5709
      %v6529 = vpop.f32.mrb[0].mxu0
      %v6530 = vadd.f32 0.0, %v6529
      %v6531 = vpop.f32.mrb[0].mxu0
      %6532 = vmatprep.mubr.f32.mxu0 0.0
      %6533 = vmatmul.mubr.f32.gmra.mrb[0].mxu0 %v5711
      %v6534 = vpop.f32.mrb[0].mxu0
      %v6535 = vadd.f32 0.0, %v6534
      %v6536 = vpop.f32.mrb[0].mxu0
      %6537 = vmatprep.mubr.f32.mxu0 0.0
      %6538 = vmatmul.mubr.f32.gmra.mrb[0].mxu0 %v5713
      %v6539 = vpop.f32.mrb[0].mxu0
      %v6540 = vadd.f32 0.0, %v6539
      %v6541 = vpop.f32.mrb[0].mxu0
      %6542 = vmatprep.mubr.f32.mxu0 0.0
      %6543 = vmatmul.mubr.f32.gmra.mrb[0].mxu0 %v5715
      %v6544 = vpop.f32.mrb[0].mxu0
      %v6545 = vadd.f32 0.0, %v6544
      %v6546 = vpop.f32.mrb[0].mxu0
      %6547 = vmatprep.mubr.f32.mxu0 0.0
      %6548 = vmatmul.mubr.f32.gmra.mrb[0].mxu0 %v5717
      %v6549 = vpop.f32.mrb[0].mxu0
      %v6550 = vadd.f32 0.0, %v6549
      %v6551 = vpop.f32.mrb[0].mxu0
      %6552 = vmatprep.mubr.f32.mxu0 0.0
      %6553 = vmatmul.mubr.f32.gmra.mrb[0].mxu0 %v6085
      %v6554 = vpop.f32.mrb[0].mxu0
      %v6555 = vadd.f32 0.0, %v6554
      %v6556 = vpop.f32.mrb[0].mxu0
      %6557 = vmatprep.mubr.f32.mxu0 0.0
      %6558 = vmatmul.mubr.f32.gmra.mrb[0].mxu0 %v6453
      %v6559 = vpop.f32.mrb[0].mxu0
      %v6560 = vadd.f32 0.0, %v6559
      %v6561 = vpop.f32.mrb[0].mxu0
      %6562 = vdwg.mxu0
      %v6563 = vadd.f32 %v6440, %v6525
      %v6564 = vadd.f32 %v6441, %v6530
      %v6565 = vadd.f32 %v6442, %v6535
      %v6566 = vadd.f32 %v6443, %v6540
      %v6567 = vadd.f32 %v6444, %v6545
      %v6568 = vadd.f32 %v6445, %v6550
      %v6569 = vadd.f32 %v6446, %v6555
      %v6570 = vadd.f32 %v6447, %v6560
      %v6571 = vsel %vm603, %v6563, 0.0
      %v6572 = vsel %vm603, %v6564, 0.0
      %v6573 = vadd.f32 %v6571, %v6572
      %v6574 = vsel %vm603, %v6565, 0.0
      %v6575 = vadd.f32 %v6573, %v6574
      %v6576 = vsel %vm603, %v6566, 0.0
      %v6577 = vadd.f32 %v6575, %v6576
      %v6578 = vsel %vm603, %v6567, 0.0
      %v6579 = vadd.f32 %v6577, %v6578
      %v6580 = vsel %vm603, %v6568, 0.0
      %v6581 = vadd.f32 %v6579, %v6580
      %v6582 = vsel %vm603, %v6569, 0.0
      %v6583 = vadd.f32 %v6581, %v6582
      %v6584 = vsel %vm603, %v6570, 0.0
      %v6585 = vadd.f32 %v6583, %v6584
      %6586 = vadd.xlane.f32.xlu0 %v6585
      %v6587 = vpop.xlane.xlu0 %6586
      %v6588 = vrot.slane %v6587, 4
      %v6589 = vadd.f32 %v6587, %v6588
      %v6590 = vrot.slane %v6589, 2
      %v6591 = vadd.f32 %v6589, %v6590
      %v6592 = vrot.slane %v6591, 1
      %v6593 = vadd.f32 %v6591, %v6592
      %s6594 = vtos %v6593
      %v6595 = vstv %s6594
      %v6596 = vmul.f32 %v6563, %v6563
      %v6597 = vmul.f32 %v6564, %v6564
      %v6598 = vmul.f32 %v6565, %v6565
      %v6599 = vmul.f32 %v6566, %v6566
      %v6600 = vmul.f32 %v6567, %v6567
      %v6601 = vmul.f32 %v6568, %v6568
      %v6602 = vmul.f32 %v6569, %v6569
      %v6603 = vmul.f32 %v6570, %v6570
      %v6604 = vsel %vm603, %v6596, 0.0
      %v6605 = vsel %vm603, %v6597, 0.0
      %v6606 = vadd.f32 %v6604, %v6605
      %v6607 = vsel %vm603, %v6598, 0.0
      %v6608 = vadd.f32 %v6606, %v6607
      %v6609 = vsel %vm603, %v6599, 0.0
      %v6610 = vadd.f32 %v6608, %v6609
      %v6611 = vsel %vm603, %v6600, 0.0
      %v6612 = vadd.f32 %v6610, %v6611
      %v6613 = vsel %vm603, %v6601, 0.0
      %v6614 = vadd.f32 %v6612, %v6613
      %v6615 = vsel %vm603, %v6602, 0.0
      %v6616 = vadd.f32 %v6614, %v6615
      %v6617 = vsel %vm603, %v6603, 0.0
      %v6618 = vadd.f32 %v6616, %v6617
      %6619 = vadd.xlane.f32.xlu0 %v6618
      %v6620 = vpop.xlane.xlu0 %6619
      %v6621 = vrot.slane %v6620, 4
      %v6622 = vadd.f32 %v6620, %v6621
      %v6623 = vrot.slane %v6622, 2
      %v6624 = vadd.f32 %v6622, %v6623
      %v6625 = vrot.slane %v6624, 1
      %v6626 = vadd.f32 %v6624, %v6625
      %s6627 = vtos %v6626
      %v6628 = vstv %s6627
      %v6629 = vmul.f32 %v6595, 0.00390625
      %v6630 = vmul.f32 %v6628, 0.00390625
      %v6631 = vmul.f32 %v6629, %v6629
      %v6632 = vsub.f32 %v6630, %v6631
      %v6633 = vmax.f32 %v6632, 0.0
      %v6634 = vsub.f32 %v6563, %v6629
      %v6635 = vsub.f32 %v6564, %v6629
      %v6636 = vsub.f32 %v6565, %v6629
      %v6637 = vsub.f32 %v6566, %v6629
      %v6638 = vsub.f32 %v6567, %v6629
      %v6639 = vsub.f32 %v6568, %v6629
      %v6640 = vsub.f32 %v6569, %v6629
      %v6641 = vsub.f32 %v6570, %v6629
      %v6642 = vadd.f32 %v6633, 1e-05
      %v6643 = vrsqrt.pop %v6642
      %v6644 = vmul.f32 %v6634, %v6643
      %v6645 = vmul.f32 %v6635, %v6643
      %v6646 = vmul.f32 %v6636, %v6643
      %v6647 = vmul.f32 %v6637, %v6643
      %v6648 = vmul.f32 %v6638, %v6643
      %v6649 = vmul.f32 %v6639, %v6643
      %v6650 = vmul.f32 %v6640, %v6643
      %v6651 = vmul.f32 %v6641, %v6643
      %v6653 = vlaneseq
      %v6654 = vshrl.u32 %v6653, 7
      %v6655 = vsub.s32 0, %v6654
      %v6656 = vrot.slane %v3826, %v6655
      %v6658 = vmul.f32 %v6644, %v6656
      %v6659 = vmul.f32 %v6645, %v6656
      %v6660 = vmul.f32 %v6646, %v6656
      %v6661 = vmul.f32 %v6647, %v6656
      %v6662 = vmul.f32 %v6648, %v6656
      %v6663 = vmul.f32 %v6649, %v6656
      %v6664 = vmul.f32 %v6650, %v6656
      %v6665 = vmul.f32 %v6651, %v6656
      %v6667 = vlaneseq
      %v6668 = vshrl.u32 %v6667, 7
      %v6669 = vsub.s32 0, %v6668
      %v6670 = vrot.slane %v3827, %v6669
      %v6672 = vadd.f32 %v6658, %v6670
      %v6673 = vadd.f32 %v6659, %v6670
      %v6674 = vadd.f32 %v6660, %v6670
      %v6675 = vadd.f32 %v6661, %v6670
      %v6676 = vadd.f32 %v6662, %v6670
      %v6677 = vadd.f32 %v6663, %v6670
      %v6678 = vadd.f32 %v6664, %v6670
      %v6679 = vadd.f32 %v6665, %v6670
      %v6680 = vadd.f32 %v3870, %v6672
      %v6681 = vadd.f32 %v3873, %v6673
      %v6682 = vadd.f32 %v3876, %v6674
      %v6683 = vadd.f32 %v3879, %v6675
      %v6684 = vadd.f32 %v3882, %v6676
      %v6685 = vadd.f32 %v3885, %v6677
      %v6686 = vadd.f32 %v3888, %v6678
      %v6687 = vadd.f32 %v4421, %v6679
      %v6688 = vmul.f32 %v6680, 0.5
      %v6689 = vmul.f32 %v6681, 0.5
      %v6690 = vmul.f32 %v6682, 0.5
      %v6691 = vmul.f32 %v6683, 0.5
      %v6692 = vmul.f32 %v6684, 0.5
      %v6693 = vmul.f32 %v6685, 0.5
      %v6694 = vmul.f32 %v6686, 0.5
      %v6695 = vmul.f32 %v6687, 0.5
      %v6696 = vmul.f32 %v6680, 0.70710677
      %v6697 = vmul.f32 %v6681, 0.70710677
      %v6698 = vmul.f32 %v6682, 0.70710677
      %v6699 = vmul.f32 %v6683, 0.70710677
      %v6700 = vmul.f32 %v6684, 0.70710677
      %v6701 = vmul.f32 %v6685, 0.70710677
      %v6702 = vmul.f32 %v6686, 0.70710677
      %v6703 = vmul.f32 %v6687, 0.70710677
      %vm6704 = vcmp.ge.f32.partialorder %v6696, 0.0
      %vm6705 = vcmp.ge.f32.partialorder %v6697, 0.0
      %vm6706 = vcmp.ge.f32.partialorder %v6698, 0.0
      %vm6707 = vcmp.ge.f32.partialorder %v6699, 0.0
      %vm6708 = vcmp.ge.f32.partialorder %v6700, 0.0
      %vm6709 = vcmp.ge.f32.partialorder %v6701, 0.0
      %vm6710 = vcmp.ge.f32.partialorder %v6702, 0.0
      %vm6711 = vcmp.ge.f32.partialorder %v6703, 0.0
      %v6712 = vsel %vm6704, 1.0, -1.0
      %v6713 = vsel %vm6705, 1.0, -1.0
      %v6714 = vsel %vm6706, 1.0, -1.0
      %v6715 = vsel %vm6707, 1.0, -1.0
      %v6716 = vsel %vm6708, 1.0, -1.0
      %v6717 = vsel %vm6709, 1.0, -1.0
      %v6718 = vsel %vm6710, 1.0, -1.0
      %v6719 = vsel %vm6711, 1.0, -1.0
      %v6720 = vand.u32 2147483647, %v6696
      %v6721 = vand.u32 2147483647, %v6697
      %v6722 = vand.u32 2147483647, %v6698
      %v6723 = vand.u32 2147483647, %v6699
      %v6724 = vand.u32 2147483647, %v6700
      %v6725 = vand.u32 2147483647, %v6701
      %v6726 = vand.u32 2147483647, %v6702
      %v6727 = vand.u32 2147483647, %v6703
      %v6728 = vmul.f32 %v6720, 0.3275911
      %v6729 = vmul.f32 %v6721, 0.3275911
      %v6730 = vmul.f32 %v6722, 0.3275911
      %v6731 = vmul.f32 %v6723, 0.3275911
      %v6732 = vmul.f32 %v6724, 0.3275911
      %v6733 = vmul.f32 %v6725, 0.3275911
      %v6734 = vmul.f32 %v6726, 0.3275911
      %v6735 = vmul.f32 %v6727, 0.3275911
      %v6736 = vadd.f32 %v6728, 1.0
      %v6737 = vadd.f32 %v6729, 1.0
      %v6738 = vadd.f32 %v6730, 1.0
      %v6739 = vadd.f32 %v6731, 1.0
      %v6740 = vadd.f32 %v6732, 1.0
      %v6741 = vadd.f32 %v6733, 1.0
      %v6742 = vadd.f32 %v6734, 1.0
      %v6743 = vadd.f32 %v6735, 1.0
      %v6744 = vrcp.pop %v6736
      %v6745 = vrcp.pop %v6737
      %v6746 = vrcp.pop %v6738
      %v6747 = vrcp.pop %v6739
      %v6748 = vrcp.pop %v6740
      %v6749 = vrcp.pop %v6741
      %v6750 = vrcp.pop %v6742
      %v6751 = vrcp.pop %v6743
      %v6752 = vmul.f32 %v6744, 1.0614054
      %v6753 = vmul.f32 %v6745, 1.0614054
      %v6754 = vmul.f32 %v6746, 1.0614054
      %v6755 = vmul.f32 %v6747, 1.0614054
      %v6756 = vmul.f32 %v6748, 1.0614054
      %v6757 = vmul.f32 %v6749, 1.0614054
      %v6758 = vmul.f32 %v6750, 1.0614054
      %v6759 = vmul.f32 %v6751, 1.0614054
      %v6760 = vadd.f32 %v6752, -1.4531521
      %v6761 = vadd.f32 %v6753, -1.4531521
      %v6762 = vadd.f32 %v6754, -1.4531521
      %v6763 = vadd.f32 %v6755, -1.4531521
      %v6764 = vadd.f32 %v6756, -1.4531521
      %v6765 = vadd.f32 %v6757, -1.4531521
      %v6766 = vadd.f32 %v6758, -1.4531521
      %v6767 = vadd.f32 %v6759, -1.4531521
      %v6768 = vmul.f32 %v6760, %v6744
      %v6769 = vmul.f32 %v6761, %v6745
      %v6770 = vmul.f32 %v6762, %v6746
      %v6771 = vmul.f32 %v6763, %v6747
      %v6772 = vmul.f32 %v6764, %v6748
      %v6773 = vmul.f32 %v6765, %v6749
      %v6774 = vmul.f32 %v6766, %v6750
      %v6775 = vmul.f32 %v6767, %v6751
      %v6776 = vadd.f32 %v6768, 1.4214138
      %v6777 = vadd.f32 %v6769, 1.4214138
      %v6778 = vadd.f32 %v6770, 1.4214138
      %v6779 = vadd.f32 %v6771, 1.4214138
      %v6780 = vadd.f32 %v6772, 1.4214138
      %v6781 = vadd.f32 %v6773, 1.4214138
      %v6782 = vadd.f32 %v6774, 1.4214138
      %v6783 = vadd.f32 %v6775, 1.4214138
      %v6784 = vmul.f32 %v6776, %v6744
      %v6785 = vmul.f32 %v6777, %v6745
      %v6786 = vmul.f32 %v6778, %v6746
      %v6787 = vmul.f32 %v6779, %v6747
      %v6788 = vmul.f32 %v6780, %v6748
      %v6789 = vmul.f32 %v6781, %v6749
      %v6790 = vmul.f32 %v6782, %v6750
      %v6791 = vmul.f32 %v6783, %v6751
      %v6792 = vadd.f32 %v6784, -0.28449672
      %v6793 = vadd.f32 %v6785, -0.28449672
      %v6794 = vadd.f32 %v6786, -0.28449672
      %v6795 = vadd.f32 %v6787, -0.28449672
      %v6796 = vadd.f32 %v6788, -0.28449672
      %v6797 = vadd.f32 %v6789, -0.28449672
      %v6798 = vadd.f32 %v6790, -0.28449672
      %v6799 = vadd.f32 %v6791, -0.28449672
      %v6800 = vmul.f32 %v6792, %v6744
      %v6801 = vmul.f32 %v6793, %v6745
      %v6802 = vmul.f32 %v6794, %v6746
      %v6803 = vmul.f32 %v6795, %v6747
      %v6804 = vmul.f32 %v6796, %v6748
      %v6805 = vmul.f32 %v6797, %v6749
      %v6806 = vmul.f32 %v6798, %v6750
      %v6807 = vmul.f32 %v6799, %v6751
      %v6808 = vadd.f32 %v6800, 0.2548296
      %v6809 = vadd.f32 %v6801, 0.2548296
      %v6810 = vadd.f32 %v6802, 0.2548296
      %v6811 = vadd.f32 %v6803, 0.2548296
      %v6812 = vadd.f32 %v6804, 0.2548296
      %v6813 = vadd.f32 %v6805, 0.2548296
      %v6814 = vadd.f32 %v6806, 0.2548296
      %v6815 = vadd.f32 %v6807, 0.2548296
      %v6816 = vmul.f32 %v6808, %v6744
      %v6817 = vmul.f32 %v6809, %v6745
      %v6818 = vmul.f32 %v6810, %v6746
      %v6819 = vmul.f32 %v6811, %v6747
      %v6820 = vmul.f32 %v6812, %v6748
      %v6821 = vmul.f32 %v6813, %v6749
      %v6822 = vmul.f32 %v6814, %v6750
      %v6823 = vmul.f32 %v6815, %v6751
      %v6824 = vsub.f32 0.0, %v6720
      %v6825 = vsub.f32 0.0, %v6721
      %v6826 = vsub.f32 0.0, %v6722
      %v6827 = vsub.f32 0.0, %v6723
      %v6828 = vsub.f32 0.0, %v6724
      %v6829 = vsub.f32 0.0, %v6725
      %v6830 = vsub.f32 0.0, %v6726
      %v6831 = vsub.f32 0.0, %v6727
      %v6832 = vmul.f32 %v6824, %v6720
      %v6833 = vmul.f32 %v6825, %v6721
      %v6834 = vmul.f32 %v6826, %v6722
      %v6835 = vmul.f32 %v6827, %v6723
      %v6836 = vmul.f32 %v6828, %v6724
      %v6837 = vmul.f32 %v6829, %v6725
      %v6838 = vmul.f32 %v6830, %v6726
      %v6839 = vmul.f32 %v6831, %v6727
      %v6840 = vmul.f32 %v6832, 1.442695
      %v6841 = vpow.pop %v6840
      %v6842 = vmul.f32 %v6833, 1.442695
      %v6843 = vpow.pop %v6842
      %v6844 = vmul.f32 %v6834, 1.442695
      %v6845 = vpow.pop %v6844
      %v6846 = vmul.f32 %v6835, 1.442695
      %v6847 = vpow.pop %v6846
      %v6848 = vmul.f32 %v6836, 1.442695
      %v6849 = vpow.pop %v6848
      %v6850 = vmul.f32 %v6837, 1.442695
      %v6851 = vpow.pop %v6850
      %v6852 = vmul.f32 %v6838, 1.442695
      %v6853 = vpow.pop %v6852
      %v6854 = vmul.f32 %v6839, 1.442695
      %v6855 = vpow.pop %v6854
      %v6856 = vmul.f32 %v6816, %v6841
      %v6857 = vmul.f32 %v6817, %v6843
      %v6858 = vmul.f32 %v6818, %v6845
      %v6859 = vmul.f32 %v6819, %v6847
      %v6860 = vmul.f32 %v6820, %v6849
      %v6861 = vmul.f32 %v6821, %v6851
      %v6862 = vmul.f32 %v6822, %v6853
      %v6863 = vmul.f32 %v6823, %v6855
      %v6864 = vsub.f32 1.0, %v6856
      %v6865 = vsub.f32 1.0, %v6857
      %v6866 = vsub.f32 1.0, %v6858
      %v6867 = vsub.f32 1.0, %v6859
      %v6868 = vsub.f32 1.0, %v6860
      %v6869 = vsub.f32 1.0, %v6861
      %v6870 = vsub.f32 1.0, %v6862
      %v6871 = vsub.f32 1.0, %v6863
      %v6872 = vmul.f32 %v6712, %v6864
      %v6873 = vmul.f32 %v6713, %v6865
      %v6874 = vmul.f32 %v6714, %v6866
      %v6875 = vmul.f32 %v6715, %v6867
      %v6876 = vmul.f32 %v6716, %v6868
      %v6877 = vmul.f32 %v6717, %v6869
      %v6878 = vmul.f32 %v6718, %v6870
      %v6879 = vmul.f32 %v6719, %v6871
      %v6880 = vadd.f32 %v6872, 1.0
      %v6881 = vadd.f32 %v6873, 1.0
      %v6882 = vadd.f32 %v6874, 1.0
      %v6883 = vadd.f32 %v6875, 1.0
      %v6884 = vadd.f32 %v6876, 1.0
      %v6885 = vadd.f32 %v6877, 1.0
      %v6886 = vadd.f32 %v6878, 1.0
      %v6887 = vadd.f32 %v6879, 1.0
      %v6888 = vmul.f32 %v6688, %v6880
      %v6889 = vmul.f32 %v6689, %v6881
      %v6890 = vmul.f32 %v6690, %v6882
      %v6891 = vmul.f32 %v6691, %v6883
      %v6892 = vmul.f32 %v6692, %v6884
      %v6893 = vmul.f32 %v6693, %v6885
      %v6894 = vmul.f32 %v6694, %v6886
      %v6895 = vmul.f32 %v6695, %v6887
      %6896 = vst.msk [vmem:[%s731 + $0x1] sm:$0xff] %vm603, %v6888
      %6897 = vst.msk [vmem:[%s731 + $0x11] sm:$0xff] %vm603, %v6889
      %6898 = vst.msk [vmem:[%s731 + $0x21] sm:$0xff] %vm603, %v6890
      %6899 = vst.msk [vmem:[%s731 + $0x31] sm:$0xff] %vm603, %v6891
      %6900 = vst.msk [vmem:[%s731 + $0x41] sm:$0xff] %vm603, %v6892
      %6901 = vst.msk [vmem:[%s731 + $0x51] sm:$0xff] %vm603, %v6893
      %6902 = vst.msk [vmem:[%s731 + $0x61] sm:$0xff] %vm603, %v6894
      %6903 = vst.msk [vmem:[%s731 + $0x71] sm:$0xff] %vm603, %v6895
      %v6904 = vld [vmem:[#allocation2] sm:$0xff]
      %v6905 = vld [vmem:[#allocation2 + $0x8] sm:$0x3]
      %v6906 = vld [vmem:[#allocation2 + $0x10] sm:$0xff]
      %v6907 = vld [vmem:[#allocation2 + $0x18] sm:$0x3]
      %v6908 = vld [vmem:[#allocation2 + $0x20] sm:$0xff]
      %v6909 = vld [vmem:[#allocation2 + $0x28] sm:$0x3]
      %v6910 = vld [vmem:[#allocation2 + $0x30] sm:$0xff]
      %v6911 = vld [vmem:[#allocation2 + $0x38] sm:$0x3]
      %v6912 = vld [vmem:[#allocation2 + $0x40] sm:$0xff]
      %v6913 = vld [vmem:[#allocation2 + $0x48] sm:$0x3]
      %v6914 = vld [vmem:[#allocation2 + $0x50] sm:$0xff]
      %v6915 = vld [vmem:[#allocation2 + $0x58] sm:$0x3]
      %v6916 = vld [vmem:[#allocation2 + $0x60] sm:$0xff]
      %v6917 = vld [vmem:[#allocation2 + $0x68] sm:$0x3]
      %v6918 = vld [vmem:[#allocation2 + $0x70] sm:$0xff]
      %v6919 = vld [vmem:[#allocation2 + $0x78] sm:$0x3]
      %v6920 = vld [vmem:[#allocation2 + $0x80] sm:$0xff]
      %v6921 = vld [vmem:[#allocation2 + $0x88] sm:$0x3]
      %v6922 = vld [vmem:[#allocation2 + $0x90] sm:$0xff]
      %v6923 = vld [vmem:[#allocation2 + $0x98] sm:$0x3]
      %v6924 = vld [vmem:[%s13] sm:$0xf]
      %v6941 = vrot.slane %v6904, 1
      %v6942 = vrot.slane %v6905, 1
      %v6943 = vsel %vm781, %v6941, %v6942
      %v6944 = vrot.slane %v6906, 1
      %v6945 = vrot.slane %v6907, 1
      %v6946 = vsel %vm781, %v6944, %v6945
      %v6947 = vrot.slane %v6908, 1
      %v6948 = vrot.slane %v6909, 1
      %v6949 = vsel %vm781, %v6947, %v6948
      %v6950 = vrot.slane %v6910, 1
      %v6951 = vrot.slane %v6911, 1
      %v6952 = vsel %vm781, %v6950, %v6951
      %v6953 = vrot.slane %v6912, 1
      %v6954 = vrot.slane %v6913, 1
      %v6955 = vsel %vm781, %v6953, %v6954
      %v6956 = vrot.slane %v6914, 1
      %v6957 = vrot.slane %v6915, 1
      %v6958 = vsel %vm781, %v6956, %v6957
      %v6959 = vrot.slane %v6916, 1
      %v6960 = vrot.slane %v6917, 1
      %v6961 = vsel %vm781, %v6959, %v6960
      %v6962 = vrot.slane %v6918, 1
      %v6963 = vrot.slane %v6919, 1
      %v6964 = vsel %vm781, %v6962, %v6963
      %s6965 = scalar_lea.vmem %s13, 4
      %v6966 = vld [vmem:[%s6965] sm:$0xf]
      %v6967 = vsel %vm603, %v6943, 0
      %v6969 = vsel %vm603, %v6946, 0
      %v6971 = vsel %vm603, %v6949, 0
      %v6973 = vsel %vm603, %v6952, 0
      %v6975 = vsel %vm603, %v6955, 0
      %v6977 = vsel %vm603, %v6958, 0
      %v6979 = vsel %vm603, %v6961, 0
      %v6981 = vsel %vm603, %v6964, 0
      %v6984 = vsel %vm824, %v6966, 0
      %6986 = vmatprep.subr.mxu0 0.0
      %6987 = vmatpush1.msra.mxu0 %v6984
      %6988 = vmatprep.subr.mxu0 0.0
      %6989 = vmatpush1.msra.mxu0 0.0
      %6990 = vmatprep.subr.mxu0 0.0
      %6991 = vmatpush1.msra.mxu0 0.0
      %6992 = vmatprep.subr.mxu0 0.0
      %6993 = vmatpush1.msra.mxu0 0.0
      %6994 = vmatprep.subr.mxu0 0.0
      %6995 = vmatpush1.msra.mxu0 0.0
      %6996 = vmatprep.subr.mxu0 0.0
      %6997 = vmatpush1.msra.mxu0 0.0
      %6998 = vmatprep.subr.mxu0 0.0
      %6999 = vmatpush1.msra.mxu0 0.0
      %7000 = vmatprep.subr.mxu0 0.0
      %7001 = vmatpush1.msra.mxu0 0.0
      %7002 = vmatprep.subr.mxu0 0.0
      %7003 = vmatpush1.msra.mxu0 0.0
      %7004 = vmatprep.subr.mxu0 0.0
      %7005 = vmatpush1.msra.mxu0 0.0
      %7006 = vmatprep.subr.mxu0 0.0
      %7007 = vmatpush1.msra.mxu0 0.0
      %7008 = vmatprep.subr.mxu0 0.0
      %7009 = vmatpush1.msra.mxu0 0.0
      %7010 = vmatprep.subr.mxu0 0.0
      %7011 = vmatpush1.msra.mxu0 0.0
      %7012 = vmatprep.subr.mxu0 0.0
      %7013 = vmatpush1.msra.mxu0 0.0
      %7014 = vmatprep.subr.mxu0 0.0
      %7015 = vmatpush1.msra.mxu0 0.0
      %7016 = vmatprep.subr.mxu0 0.0
      %7017 = vmatpush1.msra.mxu0 0.0
      %7018 = vmatprep.subr.mxu0 0.0
      %7019 = vmatpush1.msra.mxu0 0.0
      %7020 = vmatprep.subr.mxu0 0.0
      %7021 = vmatpush1.msra.mxu0 0.0
      %7022 = vmatprep.subr.mxu0 0.0
      %7023 = vmatpush1.msra.mxu0 0.0
      %7024 = vmatprep.subr.mxu0 0.0
      %7025 = vmatpush1.msra.mxu0 0.0
      %7026 = vmatprep.subr.mxu0 0.0
      %7027 = vmatpush1.msra.mxu0 0.0
      %7028 = vmatprep.subr.mxu0 0.0
      %7029 = vmatpush1.msra.mxu0 0.0
      %7030 = vmatprep.subr.mxu0 0.0
      %7031 = vmatpush1.msra.mxu0 0.0
      %7032 = vmatprep.subr.mxu0 0.0
      %7033 = vmatpush1.msra.mxu0 0.0
      %7034 = vmatprep.subr.mxu0 0.0
      %7035 = vmatpush1.msra.mxu0 0.0
      %7036 = vmatprep.subr.mxu0 0.0
      %7037 = vmatpush1.msra.mxu0 0.0
      %7038 = vmatprep.subr.mxu0 0.0
      %7039 = vmatpush1.msra.mxu0 0.0
      %7040 = vmatprep.subr.mxu0 0.0
      %7041 = vmatpush1.msra.mxu0 0.0
      %7042 = vmatprep.subr.mxu0 0.0
      %7043 = vmatpush1.msra.mxu0 0.0
      %7044 = vmatprep.subr.mxu0 0.0
      %7045 = vmatpush1.msra.mxu0 0.0
      %7046 = vmatprep.subr.mxu0 0.0
      %7047 = vmatpush1.msra.mxu0 0.0
      %7048 = vmatprep.subr.mxu0 0.0
      %7049 = vmatpush1.msra.mxu0 0.0
      %7050 = vmatprep.mubr.f32.mxu0 0.0
      %7051 = vmatmul.mubr.f32.gmra.mrb[0].mxu0 %v6967
      %v7052 = vpop.f32.mrb[0].mxu0
      %v7053 = vadd.f32 0.0, %v7052
      %v7054 = vpop.f32.mrb[0].mxu0
      %7055 = vmatprep.mubr.f32.mxu0 0.0
      %7056 = vmatmul.mubr.f32.gmra.mrb[0].mxu0 %v6969
      %v7057 = vpop.f32.mrb[0].mxu0
      %v7058 = vadd.f32 0.0, %v7057
      %v7059 = vpop.f32.mrb[0].mxu0
      %7060 = vmatprep.mubr.f32.mxu0 0.0
      %7061 = vmatmul.mubr.f32.gmra.mrb[0].mxu0 %v6971
      %v7062 = vpop.f32.mrb[0].mxu0
      %v7063 = vadd.f32 0.0, %v7062
      %v7064 = vpop.f32.mrb[0].mxu0
      %7065 = vmatprep.mubr.f32.mxu0 0.0
      %7066 = vmatmul.mubr.f32.gmra.mrb[0].mxu0 %v6973
      %v7067 = vpop.f32.mrb[0].mxu0
      %v7068 = vadd.f32 0.0, %v7067
      %v7069 = vpop.f32.mrb[0].mxu0
      %7070 = vmatprep.mubr.f32.mxu0 0.0
      %7071 = vmatmul.mubr.f32.gmra.mrb[0].mxu0 %v6975
      %v7072 = vpop.f32.mrb[0].mxu0
      %v7073 = vadd.f32 0.0, %v7072
      %v7074 = vpop.f32.mrb[0].mxu0
      %7075 = vmatprep.mubr.f32.mxu0 0.0
      %7076 = vmatmul.mubr.f32.gmra.mrb[0].mxu0 %v6977
      %v7077 = vpop.f32.mrb[0].mxu0
      %v7078 = vadd.f32 0.0, %v7077
      %v7079 = vpop.f32.mrb[0].mxu0
      %7080 = vmatprep.mubr.f32.mxu0 0.0
      %7081 = vmatmul.mubr.f32.gmra.mrb[0].mxu0 %v6979
      %v7082 = vpop.f32.mrb[0].mxu0
      %v7083 = vadd.f32 0.0, %v7082
      %v7084 = vpop.f32.mrb[0].mxu0
      %7085 = vmatprep.mubr.f32.mxu0 0.0
      %7086 = vmatmul.mubr.f32.gmra.mrb[0].mxu0 %v6981
      %v7087 = vpop.f32.mrb[0].mxu0
      %v7088 = vadd.f32 0.0, %v7087
      %v7089 = vpop.f32.mrb[0].mxu0
      %7090 = vdwg.mxu0
      %v7091 = vsel %vm603, %v6904, 0
      %v7093 = vsel %vm603, %v6906, 0
      %v7095 = vsel %vm603, %v6908, 0
      %v7097 = vsel %vm603, %v6910, 0
      %v7099 = vsel %vm603, %v6912, 0
      %v7101 = vsel %vm603, %v6914, 0
      %v7103 = vsel %vm603, %v6916, 0
      %v7105 = vsel %vm603, %v6918, 0
      %v7108 = vsel %vm824, %v6924, 0
      %7110 = vmatprep.subr.mxu0 0.0
      %7111 = vmatpush1.msra.mxu0 %v7108
      %7112 = vmatprep.subr.mxu0 0.0
      %7113 = vmatpush1.msra.mxu0 0.0
      %7114 = vmatprep.subr.mxu0 0.0
      %7115 = vmatpush1.msra.mxu0 0.0
      %7116 = vmatprep.subr.mxu0 0.0
      %7117 = vmatpush1.msra.mxu0 0.0
      %7118 = vmatprep.subr.mxu0 0.0
      %7119 = vmatpush1.msra.mxu0 0.0
      %7120 = vmatprep.subr.mxu0 0.0
      %7121 = vmatpush1.msra.mxu0 0.0
      %7122 = vmatprep.subr.mxu0 0.0
      %7123 = vmatpush1.msra.mxu0 0.0
      %7124 = vmatprep.subr.mxu0 0.0
      %7125 = vmatpush1.msra.mxu0 0.0
      %7126 = vmatprep.subr.mxu0 0.0
      %7127 = vmatpush1.msra.mxu0 0.0
      %7128 = vmatprep.subr.mxu0 0.0
      %7129 = vmatpush1.msra.mxu0 0.0
      %7130 = vmatprep.subr.mxu0 0.0
      %7131 = vmatpush1.msra.mxu0 0.0
      %7132 = vmatprep.subr.mxu0 0.0
      %7133 = vmatpush1.msra.mxu0 0.0
      %7134 = vmatprep.subr.mxu0 0.0
      %7135 = vmatpush1.msra.mxu0 0.0
      %7136 = vmatprep.subr.mxu0 0.0
      %7137 = vmatpush1.msra.mxu0 0.0
      %7138 = vmatprep.subr.mxu0 0.0
      %7139 = vmatpush1.msra.mxu0 0.0
      %7140 = vmatprep.subr.mxu0 0.0
      %7141 = vmatpush1.msra.mxu0 0.0
      %7142 = vmatprep.subr.mxu0 0.0
      %7143 = vmatpush1.msra.mxu0 0.0
      %7144 = vmatprep.subr.mxu0 0.0
      %7145 = vmatpush1.msra.mxu0 0.0
      %7146 = vmatprep.subr.mxu0 0.0
      %7147 = vmatpush1.msra.mxu0 0.0
      %7148 = vmatprep.subr.mxu0 0.0
      %7149 = vmatpush1.msra.mxu0 0.0
      %7150 = vmatprep.subr.mxu0 0.0
      %7151 = vmatpush1.msra.mxu0 0.0
      %7152 = vmatprep.subr.mxu0 0.0
      %7153 = vmatpush1.msra.mxu0 0.0
      %7154 = vmatprep.subr.mxu0 0.0
      %7155 = vmatpush1.msra.mxu0 0.0
      %7156 = vmatprep.subr.mxu0 0.0
      %7157 = vmatpush1.msra.mxu0 0.0
      %7158 = vmatprep.subr.mxu0 0.0
      %7159 = vmatpush1.msra.mxu0 0.0
      %7160 = vmatprep.subr.mxu0 0.0
      %7161 = vmatpush1.msra.mxu0 0.0
      %7162 = vmatprep.subr.mxu0 0.0
      %7163 = vmatpush1.msra.mxu0 0.0
      %7164 = vmatprep.subr.mxu0 0.0
      %7165 = vmatpush1.msra.mxu0 0.0
      %7166 = vmatprep.subr.mxu0 0.0
      %7167 = vmatpush1.msra.mxu0 0.0
      %7168 = vmatprep.subr.mxu0 0.0
      %7169 = vmatpush1.msra.mxu0 0.0
      %7170 = vmatprep.subr.mxu0 0.0
      %7171 = vmatpush1.msra.mxu0 0.0
      %7172 = vmatprep.subr.mxu0 0.0
      %7173 = vmatpush1.msra.mxu0 0.0
      %7174 = vmatprep.mubr.f32.mxu0 0.0
      %7175 = vmatmul.mubr.f32.gmra.mrb[0].mxu0 %v7091
      %v7176 = vpop.f32.mrb[0].mxu0
      %v7177 = vadd.f32 %v7053, %v7176
      %v7178 = vpop.f32.mrb[0].mxu0
      %7179 = vmatprep.mubr.f32.mxu0 0.0
      %7180 = vmatmul.mubr.f32.gmra.mrb[0].mxu0 %v7093
      %v7181 = vpop.f32.mrb[0].mxu0
      %v7182 = vadd.f32 %v7058, %v7181
      %v7183 = vpop.f32.mrb[0].mxu0
      %7184 = vmatprep.mubr.f32.mxu0 0.0
      %7185 = vmatmul.mubr.f32.gmra.mrb[0].mxu0 %v7095
      %v7186 = vpop.f32.mrb[0].mxu0
      %v7187 = vadd.f32 %v7063, %v7186
      %v7188 = vpop.f32.mrb[0].mxu0
      %7189 = vmatprep.mubr.f32.mxu0 0.0
      %7190 = vmatmul.mubr.f32.gmra.mrb[0].mxu0 %v7097
      %v7191 = vpop.f32.mrb[0].mxu0
      %v7192 = vadd.f32 %v7068, %v7191
      %v7193 = vpop.f32.mrb[0].mxu0
      %7194 = vmatprep.mubr.f32.mxu0 0.0
      %7195 = vmatmul.mubr.f32.gmra.mrb[0].mxu0 %v7099
      %v7196 = vpop.f32.mrb[0].mxu0
      %v7197 = vadd.f32 %v7073, %v7196
      %v7198 = vpop.f32.mrb[0].mxu0
      %7199 = vmatprep.mubr.f32.mxu0 0.0
      %7200 = vmatmul.mubr.f32.gmra.mrb[0].mxu0 %v7101
      %v7201 = vpop.f32.mrb[0].mxu0
      %v7202 = vadd.f32 %v7078, %v7201
      %v7203 = vpop.f32.mrb[0].mxu0
      %7204 = vmatprep.mubr.f32.mxu0 0.0
      %7205 = vmatmul.mubr.f32.gmra.mrb[0].mxu0 %v7103
      %v7206 = vpop.f32.mrb[0].mxu0
      %v7207 = vadd.f32 %v7083, %v7206
      %v7208 = vpop.f32.mrb[0].mxu0
      %7209 = vmatprep.mubr.f32.mxu0 0.0
      %7210 = vmatmul.mubr.f32.gmra.mrb[0].mxu0 %v7105
      %v7211 = vpop.f32.mrb[0].mxu0
      %v7212 = vadd.f32 %v7088, %v7211
      %v7213 = vpop.f32.mrb[0].mxu0
      %7214 = vdwg.mxu0
      %v7215 = vrot.slane %v6904, 2
      %v7216 = vrot.slane %v6905, 2
      %v7217 = vsel %vm1057, %v7215, %v7216
      %v7218 = vrot.slane %v6906, 2
      %v7219 = vrot.slane %v6907, 2
      %v7220 = vsel %vm1057, %v7218, %v7219
      %v7221 = vrot.slane %v6908, 2
      %v7222 = vrot.slane %v6909, 2
      %v7223 = vsel %vm1057, %v7221, %v7222
      %v7224 = vrot.slane %v6910, 2
      %v7225 = vrot.slane %v6911, 2
      %v7226 = vsel %vm1057, %v7224, %v7225
      %v7227 = vrot.slane %v6912, 2
      %v7228 = vrot.slane %v6913, 2
      %v7229 = vsel %vm1057, %v7227, %v7228
      %v7230 = vrot.slane %v6914, 2
      %v7231 = vrot.slane %v6915, 2
      %v7232 = vsel %vm1057, %v7230, %v7231
      %v7233 = vrot.slane %v6916, 2
      %v7234 = vrot.slane %v6917, 2
      %v7235 = vsel %vm1057, %v7233, %v7234
      %v7236 = vrot.slane %v6918, 2
      %v7237 = vrot.slane %v6919, 2
      %v7238 = vsel %vm1057, %v7236, %v7237
      %s7239 = scalar_lea.vmem %s13, 8
      %v7240 = vld [vmem:[%s7239] sm:$0xf]
      %v7241 = vsel %vm603, %v7217, 0
      %v7243 = vsel %vm603, %v7220, 0
      %v7245 = vsel %vm603, %v7223, 0
      %v7247 = vsel %vm603, %v7226, 0
      %v7249 = vsel %vm603, %v7229, 0
      %v7251 = vsel %vm603, %v7232, 0
      %v7253 = vsel %vm603, %v7235, 0
      %v7255 = vsel %vm603, %v7238, 0
      %v7258 = vsel %vm824, %v7240, 0
      %7260 = vmatprep.subr.mxu0 0.0
      %7261 = vmatpush1.msra.mxu0 %v7258
      %7262 = vmatprep.subr.mxu0 0.0
      %7263 = vmatpush1.msra.mxu0 0.0
      %7264 = vmatprep.subr.mxu0 0.0
      %7265 = vmatpush1.msra.mxu0 0.0
      %7266 = vmatprep.subr.mxu0 0.0
      %7267 = vmatpush1.msra.mxu0 0.0
      %7268 = vmatprep.subr.mxu0 0.0
      %7269 = vmatpush1.msra.mxu0 0.0
      %7270 = vmatprep.subr.mxu0 0.0
      %7271 = vmatpush1.msra.mxu0 0.0
      %7272 = vmatprep.subr.mxu0 0.0
      %7273 = vmatpush1.msra.mxu0 0.0
      %7274 = vmatprep.subr.mxu0 0.0
      %7275 = vmatpush1.msra.mxu0 0.0
      %7276 = vmatprep.subr.mxu0 0.0
      %7277 = vmatpush1.msra.mxu0 0.0
      %7278 = vmatprep.subr.mxu0 0.0
      %7279 = vmatpush1.msra.mxu0 0.0
      %7280 = vmatprep.subr.mxu0 0.0
      %7281 = vmatpush1.msra.mxu0 0.0
      %7282 = vmatprep.subr.mxu0 0.0
      %7283 = vmatpush1.msra.mxu0 0.0
      %7284 = vmatprep.subr.mxu0 0.0
      %7285 = vmatpush1.msra.mxu0 0.0
      %7286 = vmatprep.subr.mxu0 0.0
      %7287 = vmatpush1.msra.mxu0 0.0
      %7288 = vmatprep.subr.mxu0 0.0
      %7289 = vmatpush1.msra.mxu0 0.0
      %7290 = vmatprep.subr.mxu0 0.0
      %7291 = vmatpush1.msra.mxu0 0.0
      %7292 = vmatprep.subr.mxu0 0.0
      %7293 = vmatpush1.msra.mxu0 0.0
      %7294 = vmatprep.subr.mxu0 0.0
      %7295 = vmatpush1.msra.mxu0 0.0
      %7296 = vmatprep.subr.mxu0 0.0
      %7297 = vmatpush1.msra.mxu0 0.0
      %7298 = vmatprep.subr.mxu0 0.0
      %7299 = vmatpush1.msra.mxu0 0.0
      %7300 = vmatprep.subr.mxu0 0.0
      %7301 = vmatpush1.msra.mxu0 0.0
      %7302 = vmatprep.subr.mxu0 0.0
      %7303 = vmatpush1.msra.mxu0 0.0
      %7304 = vmatprep.subr.mxu0 0.0
      %7305 = vmatpush1.msra.mxu0 0.0
      %7306 = vmatprep.subr.mxu0 0.0
      %7307 = vmatpush1.msra.mxu0 0.0
      %7308 = vmatprep.subr.mxu0 0.0
      %7309 = vmatpush1.msra.mxu0 0.0
      %7310 = vmatprep.subr.mxu0 0.0
      %7311 = vmatpush1.msra.mxu0 0.0
      %7312 = vmatprep.subr.mxu0 0.0
      %7313 = vmatpush1.msra.mxu0 0.0
      %7314 = vmatprep.subr.mxu0 0.0
      %7315 = vmatpush1.msra.mxu0 0.0
      %7316 = vmatprep.subr.mxu0 0.0
      %7317 = vmatpush1.msra.mxu0 0.0
      %7318 = vmatprep.subr.mxu0 0.0
      %7319 = vmatpush1.msra.mxu0 0.0
      %7320 = vmatprep.subr.mxu0 0.0
      %7321 = vmatpush1.msra.mxu0 0.0
      %7322 = vmatprep.subr.mxu0 0.0
      %7323 = vmatpush1.msra.mxu0 0.0
      %7324 = vmatprep.mubr.f32.mxu0 0.0
      %7325 = vmatmul.mubr.f32.gmra.mrb[0].mxu0 %v7241
      %v7326 = vpop.f32.mrb[0].mxu0
      %v7327 = vadd.f32 0.0, %v7326
      %v7328 = vpop.f32.mrb[0].mxu0
      %7329 = vmatprep.mubr.f32.mxu0 0.0
      %7330 = vmatmul.mubr.f32.gmra.mrb[0].mxu0 %v7243
      %v7331 = vpop.f32.mrb[0].mxu0
      %v7332 = vadd.f32 0.0, %v7331
      %v7333 = vpop.f32.mrb[0].mxu0
      %7334 = vmatprep.mubr.f32.mxu0 0.0
      %7335 = vmatmul.mubr.f32.gmra.mrb[0].mxu0 %v7245
      %v7336 = vpop.f32.mrb[0].mxu0
      %v7337 = vadd.f32 0.0, %v7336
      %v7338 = vpop.f32.mrb[0].mxu0
      %7339 = vmatprep.mubr.f32.mxu0 0.0
      %7340 = vmatmul.mubr.f32.gmra.mrb[0].mxu0 %v7247
      %v7341 = vpop.f32.mrb[0].mxu0
      %v7342 = vadd.f32 0.0, %v7341
      %v7343 = vpop.f32.mrb[0].mxu0
      %7344 = vmatprep.mubr.f32.mxu0 0.0
      %7345 = vmatmul.mubr.f32.gmra.mrb[0].mxu0 %v7249
      %v7346 = vpop.f32.mrb[0].mxu0
      %v7347 = vadd.f32 0.0, %v7346
      %v7348 = vpop.f32.mrb[0].mxu0
      %7349 = vmatprep.mubr.f32.mxu0 0.0
      %7350 = vmatmul.mubr.f32.gmra.mrb[0].mxu0 %v7251
      %v7351 = vpop.f32.mrb[0].mxu0
      %v7352 = vadd.f32 0.0, %v7351
      %v7353 = vpop.f32.mrb[0].mxu0
      %7354 = vmatprep.mubr.f32.mxu0 0.0
      %7355 = vmatmul.mubr.f32.gmra.mrb[0].mxu0 %v7253
      %v7356 = vpop.f32.mrb[0].mxu0
      %v7357 = vadd.f32 0.0, %v7356
      %v7358 = vpop.f32.mrb[0].mxu0
      %7359 = vmatprep.mubr.f32.mxu0 0.0
      %7360 = vmatmul.mubr.f32.gmra.mrb[0].mxu0 %v7255
      %v7361 = vpop.f32.mrb[0].mxu0
      %v7362 = vadd.f32 0.0, %v7361
      %v7363 = vpop.f32.mrb[0].mxu0
      %7364 = vdwg.mxu0
      %v7365 = vadd.f32 %v7177, %v7327
      %v7366 = vadd.f32 %v7182, %v7332
      %v7367 = vadd.f32 %v7187, %v7337
      %v7368 = vadd.f32 %v7192, %v7342
      %v7369 = vadd.f32 %v7197, %v7347
      %v7370 = vadd.f32 %v7202, %v7352
      %v7371 = vadd.f32 %v7207, %v7357
      %v7372 = vadd.f32 %v7212, %v7362
      %s7373 = scalar_lea.vmem %s13, 12
      %v7374 = vld [vmem:[%s7373] sm:$0xf]
      %v7376 = vsel %vm603, %v6920, 0
      %v7379 = vsel %vm824, %v7374, 0
      %7381 = vmatprep.subr.mxu0 0.0
      %7382 = vmatpush1.msra.mxu0 %v7379
      %7383 = vmatprep.subr.mxu0 0.0
      %7384 = vmatpush1.msra.mxu0 0.0
      %7385 = vmatprep.subr.mxu0 0.0
      %7386 = vmatpush1.msra.mxu0 0.0
      %7387 = vmatprep.subr.mxu0 0.0
      %7388 = vmatpush1.msra.mxu0 0.0
      %7389 = vmatprep.subr.mxu0 0.0
      %7390 = vmatpush1.msra.mxu0 0.0
      %7391 = vmatprep.subr.mxu0 0.0
      %7392 = vmatpush1.msra.mxu0 0.0
      %7393 = vmatprep.subr.mxu0 0.0
      %7394 = vmatpush1.msra.mxu0 0.0
      %7395 = vmatprep.subr.mxu0 0.0
      %7396 = vmatpush1.msra.mxu0 0.0
      %7397 = vmatprep.subr.mxu0 0.0
      %7398 = vmatpush1.msra.mxu0 0.0
      %7399 = vmatprep.subr.mxu0 0.0
      %7400 = vmatpush1.msra.mxu0 0.0
      %7401 = vmatprep.subr.mxu0 0.0
      %7402 = vmatpush1.msra.mxu0 0.0
      %7403 = vmatprep.subr.mxu0 0.0
      %7404 = vmatpush1.msra.mxu0 0.0
      %7405 = vmatprep.subr.mxu0 0.0
      %7406 = vmatpush1.msra.mxu0 0.0
      %7407 = vmatprep.subr.mxu0 0.0
      %7408 = vmatpush1.msra.mxu0 0.0
      %7409 = vmatprep.subr.mxu0 0.0
      %7410 = vmatpush1.msra.mxu0 0.0
      %7411 = vmatprep.subr.mxu0 0.0
      %7412 = vmatpush1.msra.mxu0 0.0
      %7413 = vmatprep.subr.mxu0 0.0
      %7414 = vmatpush1.msra.mxu0 0.0
      %7415 = vmatprep.subr.mxu0 0.0
      %7416 = vmatpush1.msra.mxu0 0.0
      %7417 = vmatprep.subr.mxu0 0.0
      %7418 = vmatpush1.msra.mxu0 0.0
      %7419 = vmatprep.subr.mxu0 0.0
      %7420 = vmatpush1.msra.mxu0 0.0
      %7421 = vmatprep.subr.mxu0 0.0
      %7422 = vmatpush1.msra.mxu0 0.0
      %7423 = vmatprep.subr.mxu0 0.0
      %7424 = vmatpush1.msra.mxu0 0.0
      %7425 = vmatprep.subr.mxu0 0.0
      %7426 = vmatpush1.msra.mxu0 0.0
      %7427 = vmatprep.subr.mxu0 0.0
      %7428 = vmatpush1.msra.mxu0 0.0
      %7429 = vmatprep.subr.mxu0 0.0
      %7430 = vmatpush1.msra.mxu0 0.0
      %7431 = vmatprep.subr.mxu0 0.0
      %7432 = vmatpush1.msra.mxu0 0.0
      %7433 = vmatprep.subr.mxu0 0.0
      %7434 = vmatpush1.msra.mxu0 0.0
      %7435 = vmatprep.subr.mxu0 0.0
      %7436 = vmatpush1.msra.mxu0 0.0
      %7437 = vmatprep.subr.mxu0 0.0
      %7438 = vmatpush1.msra.mxu0 0.0
      %7439 = vmatprep.subr.mxu0 0.0
      %7440 = vmatpush1.msra.mxu0 0.0
      %7441 = vmatprep.subr.mxu0 0.0
      %7442 = vmatpush1.msra.mxu0 0.0
      %7443 = vmatprep.subr.mxu0 0.0
      %7444 = vmatpush1.msra.mxu0 0.0
      %7445 = vmatprep.mubr.f32.mxu0 0.0
      %7446 = vmatmul.mubr.f32.gmra.mrb[0].mxu0 %v7093
      %v7447 = vpop.f32.mrb[0].mxu0
      %v7448 = vadd.f32 0.0, %v7447
      %v7449 = vpop.f32.mrb[0].mxu0
      %7450 = vmatprep.mubr.f32.mxu0 0.0
      %7451 = vmatmul.mubr.f32.gmra.mrb[0].mxu0 %v7095
      %v7452 = vpop.f32.mrb[0].mxu0
      %v7453 = vadd.f32 0.0, %v7452
      %v7454 = vpop.f32.mrb[0].mxu0
      %7455 = vmatprep.mubr.f32.mxu0 0.0
      %7456 = vmatmul.mubr.f32.gmra.mrb[0].mxu0 %v7097
      %v7457 = vpop.f32.mrb[0].mxu0
      %v7458 = vadd.f32 0.0, %v7457
      %v7459 = vpop.f32.mrb[0].mxu0
      %7460 = vmatprep.mubr.f32.mxu0 0.0
      %7461 = vmatmul.mubr.f32.gmra.mrb[0].mxu0 %v7099
      %v7462 = vpop.f32.mrb[0].mxu0
      %v7463 = vadd.f32 0.0, %v7462
      %v7464 = vpop.f32.mrb[0].mxu0
      %7465 = vmatprep.mubr.f32.mxu0 0.0
      %7466 = vmatmul.mubr.f32.gmra.mrb[0].mxu0 %v7101
      %v7467 = vpop.f32.mrb[0].mxu0
      %v7468 = vadd.f32 0.0, %v7467
      %v7469 = vpop.f32.mrb[0].mxu0
      %7470 = vmatprep.mubr.f32.mxu0 0.0
      %7471 = vmatmul.mubr.f32.gmra.mrb[0].mxu0 %v7103
      %v7472 = vpop.f32.mrb[0].mxu0
      %v7473 = vadd.f32 0.0, %v7472
      %v7474 = vpop.f32.mrb[0].mxu0
      %7475 = vmatprep.mubr.f32.mxu0 0.0
      %7476 = vmatmul.mubr.f32.gmra.mrb[0].mxu0 %v7105
      %v7477 = vpop.f32.mrb[0].mxu0
      %v7478 = vadd.f32 0.0, %v7477
      %v7479 = vpop.f32.mrb[0].mxu0
      %7480 = vmatprep.mubr.f32.mxu0 0.0
      %7481 = vmatmul.mubr.f32.gmra.mrb[0].mxu0 %v7376
      %v7482 = vpop.f32.mrb[0].mxu0
      %v7483 = vadd.f32 0.0, %v7482
      %v7484 = vpop.f32.mrb[0].mxu0
      %7485 = vdwg.mxu0
      %v7486 = vadd.f32 %v7365, %v7448
      %v7487 = vadd.f32 %v7366, %v7453
      %v7488 = vadd.f32 %v7367, %v7458
      %v7489 = vadd.f32 %v7368, %v7463
      %v7490 = vadd.f32 %v7369, %v7468
      %v7491 = vadd.f32 %v7370, %v7473
      %v7492 = vadd.f32 %v7371, %v7478
      %v7493 = vadd.f32 %v7372, %v7483
      %v7495 = vrot.slane %v6920, 1
      %v7496 = vrot.slane %v6921, 1
      %v7497 = vsel %vm781, %v7495, %v7496
      %s7498 = scalar_lea.vmem %s13, 16
      %v7499 = vld [vmem:[%s7498] sm:$0xf]
      %v7500 = vsel %vm603, %v7497, 0
      %v7503 = vsel %vm824, %v7499, 0
      %7505 = vmatprep.subr.mxu0 0.0
      %7506 = vmatpush1.msra.mxu0 %v7503
      %7507 = vmatprep.subr.mxu0 0.0
      %7508 = vmatpush1.msra.mxu0 0.0
      %7509 = vmatprep.subr.mxu0 0.0
      %7510 = vmatpush1.msra.mxu0 0.0
      %7511 = vmatprep.subr.mxu0 0.0
      %7512 = vmatpush1.msra.mxu0 0.0
      %7513 = vmatprep.subr.mxu0 0.0
      %7514 = vmatpush1.msra.mxu0 0.0
      %7515 = vmatprep.subr.mxu0 0.0
      %7516 = vmatpush1.msra.mxu0 0.0
      %7517 = vmatprep.subr.mxu0 0.0
      %7518 = vmatpush1.msra.mxu0 0.0
      %7519 = vmatprep.subr.mxu0 0.0
      %7520 = vmatpush1.msra.mxu0 0.0
      %7521 = vmatprep.subr.mxu0 0.0
      %7522 = vmatpush1.msra.mxu0 0.0
      %7523 = vmatprep.subr.mxu0 0.0
      %7524 = vmatpush1.msra.mxu0 0.0
      %7525 = vmatprep.subr.mxu0 0.0
      %7526 = vmatpush1.msra.mxu0 0.0
      %7527 = vmatprep.subr.mxu0 0.0
      %7528 = vmatpush1.msra.mxu0 0.0
      %7529 = vmatprep.subr.mxu0 0.0
      %7530 = vmatpush1.msra.mxu0 0.0
      %7531 = vmatprep.subr.mxu0 0.0
      %7532 = vmatpush1.msra.mxu0 0.0
      %7533 = vmatprep.subr.mxu0 0.0
      %7534 = vmatpush1.msra.mxu0 0.0
      %7535 = vmatprep.subr.mxu0 0.0
      %7536 = vmatpush1.msra.mxu0 0.0
      %7537 = vmatprep.subr.mxu0 0.0
      %7538 = vmatpush1.msra.mxu0 0.0
      %7539 = vmatprep.subr.mxu0 0.0
      %7540 = vmatpush1.msra.mxu0 0.0
      %7541 = vmatprep.subr.mxu0 0.0
      %7542 = vmatpush1.msra.mxu0 0.0
      %7543 = vmatprep.subr.mxu0 0.0
      %7544 = vmatpush1.msra.mxu0 0.0
      %7545 = vmatprep.subr.mxu0 0.0
      %7546 = vmatpush1.msra.mxu0 0.0
      %7547 = vmatprep.subr.mxu0 0.0
      %7548 = vmatpush1.msra.mxu0 0.0
      %7549 = vmatprep.subr.mxu0 0.0
      %7550 = vmatpush1.msra.mxu0 0.0
      %7551 = vmatprep.subr.mxu0 0.0
      %7552 = vmatpush1.msra.mxu0 0.0
      %7553 = vmatprep.subr.mxu0 0.0
      %7554 = vmatpush1.msra.mxu0 0.0
      %7555 = vmatprep.subr.mxu0 0.0
      %7556 = vmatpush1.msra.mxu0 0.0
      %7557 = vmatprep.subr.mxu0 0.0
      %7558 = vmatpush1.msra.mxu0 0.0
      %7559 = vmatprep.subr.mxu0 0.0
      %7560 = vmatpush1.msra.mxu0 0.0
      %7561 = vmatprep.subr.mxu0 0.0
      %7562 = vmatpush1.msra.mxu0 0.0
      %7563 = vmatprep.subr.mxu0 0.0
      %7564 = vmatpush1.msra.mxu0 0.0
      %7565 = vmatprep.subr.mxu0 0.0
      %7566 = vmatpush1.msra.mxu0 0.0
      %7567 = vmatprep.subr.mxu0 0.0
      %7568 = vmatpush1.msra.mxu0 0.0
      %7569 = vmatprep.mubr.f32.mxu0 0.0
      %7570 = vmatmul.mubr.f32.gmra.mrb[0].mxu0 %v6969
      %v7571 = vpop.f32.mrb[0].mxu0
      %v7572 = vadd.f32 0.0, %v7571
      %v7573 = vpop.f32.mrb[0].mxu0
      %7574 = vmatprep.mubr.f32.mxu0 0.0
      %7575 = vmatmul.mubr.f32.gmra.mrb[0].mxu0 %v6971
      %v7576 = vpop.f32.mrb[0].mxu0
      %v7577 = vadd.f32 0.0, %v7576
      %v7578 = vpop.f32.mrb[0].mxu0
      %7579 = vmatprep.mubr.f32.mxu0 0.0
      %7580 = vmatmul.mubr.f32.gmra.mrb[0].mxu0 %v6973
      %v7581 = vpop.f32.mrb[0].mxu0
      %v7582 = vadd.f32 0.0, %v7581
      %v7583 = vpop.f32.mrb[0].mxu0
      %7584 = vmatprep.mubr.f32.mxu0 0.0
      %7585 = vmatmul.mubr.f32.gmra.mrb[0].mxu0 %v6975
      %v7586 = vpop.f32.mrb[0].mxu0
      %v7587 = vadd.f32 0.0, %v7586
      %v7588 = vpop.f32.mrb[0].mxu0
      %7589 = vmatprep.mubr.f32.mxu0 0.0
      %7590 = vmatmul.mubr.f32.gmra.mrb[0].mxu0 %v6977
      %v7591 = vpop.f32.mrb[0].mxu0
      %v7592 = vadd.f32 0.0, %v7591
      %v7593 = vpop.f32.mrb[0].mxu0
      %7594 = vmatprep.mubr.f32.mxu0 0.0
      %7595 = vmatmul.mubr.f32.gmra.mrb[0].mxu0 %v6979
      %v7596 = vpop.f32.mrb[0].mxu0
      %v7597 = vadd.f32 0.0, %v7596
      %v7598 = vpop.f32.mrb[0].mxu0
      %7599 = vmatprep.mubr.f32.mxu0 0.0
      %7600 = vmatmul.mubr.f32.gmra.mrb[0].mxu0 %v6981
      %v7601 = vpop.f32.mrb[0].mxu0
      %v7602 = vadd.f32 0.0, %v7601
      %v7603 = vpop.f32.mrb[0].mxu0
      %7604 = vmatprep.mubr.f32.mxu0 0.0
      %7605 = vmatmul.mubr.f32.gmra.mrb[0].mxu0 %v7500
      %v7606 = vpop.f32.mrb[0].mxu0
      %v7607 = vadd.f32 0.0, %v7606
      %v7608 = vpop.f32.mrb[0].mxu0
      %7609 = vdwg.mxu0
      %v7610 = vadd.f32 %v7486, %v7572
      %v7611 = vadd.f32 %v7487, %v7577
      %v7612 = vadd.f32 %v7488, %v7582
      %v7613 = vadd.f32 %v7489, %v7587
      %v7614 = vadd.f32 %v7490, %v7592
      %v7615 = vadd.f32 %v7491, %v7597
      %v7616 = vadd.f32 %v7492, %v7602
      %v7617 = vadd.f32 %v7493, %v7607
      %v7618 = vrot.slane %v6920, 2
      %v7619 = vrot.slane %v6921, 2
      %v7620 = vsel %vm1057, %v7618, %v7619
      %s7621 = scalar_lea.vmem %s13, 20
      %v7622 = vld [vmem:[%s7621] sm:$0xf]
      %v7623 = vsel %vm603, %v7620, 0
      %v7626 = vsel %vm824, %v7622, 0
      %7628 = vmatprep.subr.mxu0 0.0
      %7629 = vmatpush1.msra.mxu0 %v7626
      %7630 = vmatprep.subr.mxu0 0.0
      %7631 = vmatpush1.msra.mxu0 0.0
      %7632 = vmatprep.subr.mxu0 0.0
      %7633 = vmatpush1.msra.mxu0 0.0
      %7634 = vmatprep.subr.mxu0 0.0
      %7635 = vmatpush1.msra.mxu0 0.0
      %7636 = vmatprep.subr.mxu0 0.0
      %7637 = vmatpush1.msra.mxu0 0.0
      %7638 = vmatprep.subr.mxu0 0.0
      %7639 = vmatpush1.msra.mxu0 0.0
      %7640 = vmatprep.subr.mxu0 0.0
      %7641 = vmatpush1.msra.mxu0 0.0
      %7642 = vmatprep.subr.mxu0 0.0
      %7643 = vmatpush1.msra.mxu0 0.0
      %7644 = vmatprep.subr.mxu0 0.0
      %7645 = vmatpush1.msra.mxu0 0.0
      %7646 = vmatprep.subr.mxu0 0.0
      %7647 = vmatpush1.msra.mxu0 0.0
      %7648 = vmatprep.subr.mxu0 0.0
      %7649 = vmatpush1.msra.mxu0 0.0
      %7650 = vmatprep.subr.mxu0 0.0
      %7651 = vmatpush1.msra.mxu0 0.0
      %7652 = vmatprep.subr.mxu0 0.0
      %7653 = vmatpush1.msra.mxu0 0.0
      %7654 = vmatprep.subr.mxu0 0.0
      %7655 = vmatpush1.msra.mxu0 0.0
      %7656 = vmatprep.subr.mxu0 0.0
      %7657 = vmatpush1.msra.mxu0 0.0
      %7658 = vmatprep.subr.mxu0 0.0
      %7659 = vmatpush1.msra.mxu0 0.0
      %7660 = vmatprep.subr.mxu0 0.0
      %7661 = vmatpush1.msra.mxu0 0.0
      %7662 = vmatprep.subr.mxu0 0.0
      %7663 = vmatpush1.msra.mxu0 0.0
      %7664 = vmatprep.subr.mxu0 0.0
      %7665 = vmatpush1.msra.mxu0 0.0
      %7666 = vmatprep.subr.mxu0 0.0
      %7667 = vmatpush1.msra.mxu0 0.0
      %7668 = vmatprep.subr.mxu0 0.0
      %7669 = vmatpush1.msra.mxu0 0.0
      %7670 = vmatprep.subr.mxu0 0.0
      %7671 = vmatpush1.msra.mxu0 0.0
      %7672 = vmatprep.subr.mxu0 0.0
      %7673 = vmatpush1.msra.mxu0 0.0
      %7674 = vmatprep.subr.mxu0 0.0
      %7675 = vmatpush1.msra.mxu0 0.0
      %7676 = vmatprep.subr.mxu0 0.0
      %7677 = vmatpush1.msra.mxu0 0.0
      %7678 = vmatprep.subr.mxu0 0.0
      %7679 = vmatpush1.msra.mxu0 0.0
      %7680 = vmatprep.subr.mxu0 0.0
      %7681 = vmatpush1.msra.mxu0 0.0
      %7682 = vmatprep.subr.mxu0 0.0
      %7683 = vmatpush1.msra.mxu0 0.0
      %7684 = vmatprep.subr.mxu0 0.0
      %7685 = vmatpush1.msra.mxu0 0.0
      %7686 = vmatprep.subr.mxu0 0.0
      %7687 = vmatpush1.msra.mxu0 0.0
      %7688 = vmatprep.subr.mxu0 0.0
      %7689 = vmatpush1.msra.mxu0 0.0
      %7690 = vmatprep.subr.mxu0 0.0
      %7691 = vmatpush1.msra.mxu0 0.0
      %7692 = vmatprep.mubr.f32.mxu0 0.0
      %7693 = vmatmul.mubr.f32.gmra.mrb[0].mxu0 %v7243
      %v7694 = vpop.f32.mrb[0].mxu0
      %v7695 = vadd.f32 0.0, %v7694
      %v7696 = vpop.f32.mrb[0].mxu0
      %7697 = vmatprep.mubr.f32.mxu0 0.0
      %7698 = vmatmul.mubr.f32.gmra.mrb[0].mxu0 %v7245
      %v7699 = vpop.f32.mrb[0].mxu0
      %v7700 = vadd.f32 0.0, %v7699
      %v7701 = vpop.f32.mrb[0].mxu0
      %7702 = vmatprep.mubr.f32.mxu0 0.0
      %7703 = vmatmul.mubr.f32.gmra.mrb[0].mxu0 %v7247
      %v7704 = vpop.f32.mrb[0].mxu0
      %v7705 = vadd.f32 0.0, %v7704
      %v7706 = vpop.f32.mrb[0].mxu0
      %7707 = vmatprep.mubr.f32.mxu0 0.0
      %7708 = vmatmul.mubr.f32.gmra.mrb[0].mxu0 %v7249
      %v7709 = vpop.f32.mrb[0].mxu0
      %v7710 = vadd.f32 0.0, %v7709
      %v7711 = vpop.f32.mrb[0].mxu0
      %7712 = vmatprep.mubr.f32.mxu0 0.0
      %7713 = vmatmul.mubr.f32.gmra.mrb[0].mxu0 %v7251
      %v7714 = vpop.f32.mrb[0].mxu0
      %v7715 = vadd.f32 0.0, %v7714
      %v7716 = vpop.f32.mrb[0].mxu0
      %7717 = vmatprep.mubr.f32.mxu0 0.0
      %7718 = vmatmul.mubr.f32.gmra.mrb[0].mxu0 %v7253
      %v7719 = vpop.f32.mrb[0].mxu0
      %v7720 = vadd.f32 0.0, %v7719
      %v7721 = vpop.f32.mrb[0].mxu0
      %7722 = vmatprep.mubr.f32.mxu0 0.0
      %7723 = vmatmul.mubr.f32.gmra.mrb[0].mxu0 %v7255
      %v7724 = vpop.f32.mrb[0].mxu0
      %v7725 = vadd.f32 0.0, %v7724
      %v7726 = vpop.f32.mrb[0].mxu0
      %7727 = vmatprep.mubr.f32.mxu0 0.0
      %7728 = vmatmul.mubr.f32.gmra.mrb[0].mxu0 %v7623
      %v7729 = vpop.f32.mrb[0].mxu0
      %v7730 = vadd.f32 0.0, %v7729
      %v7731 = vpop.f32.mrb[0].mxu0
      %7732 = vdwg.mxu0
      %v7733 = vadd.f32 %v7610, %v7695
      %v7734 = vadd.f32 %v7611, %v7700
      %v7735 = vadd.f32 %v7612, %v7705
      %v7736 = vadd.f32 %v7613, %v7710
      %v7737 = vadd.f32 %v7614, %v7715
      %v7738 = vadd.f32 %v7615, %v7720
      %v7739 = vadd.f32 %v7616, %v7725
      %v7740 = vadd.f32 %v7617, %v7730
      %s7741 = scalar_lea.vmem %s13, 24
      %v7742 = vld [vmem:[%s7741] sm:$0xf]
      %v7744 = vsel %vm603, %v6922, 0
      %v7747 = vsel %vm824, %v7742, 0
      %7749 = vmatprep.subr.mxu0 0.0
      %7750 = vmatpush1.msra.mxu0 %v7747
      %7751 = vmatprep.subr.mxu0 0.0
      %7752 = vmatpush1.msra.mxu0 0.0
      %7753 = vmatprep.subr.mxu0 0.0
      %7754 = vmatpush1.msra.mxu0 0.0
      %7755 = vmatprep.subr.mxu0 0.0
      %7756 = vmatpush1.msra.mxu0 0.0
      %7757 = vmatprep.subr.mxu0 0.0
      %7758 = vmatpush1.msra.mxu0 0.0
      %7759 = vmatprep.subr.mxu0 0.0
      %7760 = vmatpush1.msra.mxu0 0.0
      %7761 = vmatprep.subr.mxu0 0.0
      %7762 = vmatpush1.msra.mxu0 0.0
      %7763 = vmatprep.subr.mxu0 0.0
      %7764 = vmatpush1.msra.mxu0 0.0
      %7765 = vmatprep.subr.mxu0 0.0
      %7766 = vmatpush1.msra.mxu0 0.0
      %7767 = vmatprep.subr.mxu0 0.0
      %7768 = vmatpush1.msra.mxu0 0.0
      %7769 = vmatprep.subr.mxu0 0.0
      %7770 = vmatpush1.msra.mxu0 0.0
      %7771 = vmatprep.subr.mxu0 0.0
      %7772 = vmatpush1.msra.mxu0 0.0
      %7773 = vmatprep.subr.mxu0 0.0
      %7774 = vmatpush1.msra.mxu0 0.0
      %7775 = vmatprep.subr.mxu0 0.0
      %7776 = vmatpush1.msra.mxu0 0.0
      %7777 = vmatprep.subr.mxu0 0.0
      %7778 = vmatpush1.msra.mxu0 0.0
      %7779 = vmatprep.subr.mxu0 0.0
      %7780 = vmatpush1.msra.mxu0 0.0
      %7781 = vmatprep.subr.mxu0 0.0
      %7782 = vmatpush1.msra.mxu0 0.0
      %7783 = vmatprep.subr.mxu0 0.0
      %7784 = vmatpush1.msra.mxu0 0.0
      %7785 = vmatprep.subr.mxu0 0.0
      %7786 = vmatpush1.msra.mxu0 0.0
      %7787 = vmatprep.subr.mxu0 0.0
      %7788 = vmatpush1.msra.mxu0 0.0
      %7789 = vmatprep.subr.mxu0 0.0
      %7790 = vmatpush1.msra.mxu0 0.0
      %7791 = vmatprep.subr.mxu0 0.0
      %7792 = vmatpush1.msra.mxu0 0.0
      %7793 = vmatprep.subr.mxu0 0.0
      %7794 = vmatpush1.msra.mxu0 0.0
      %7795 = vmatprep.subr.mxu0 0.0
      %7796 = vmatpush1.msra.mxu0 0.0
      %7797 = vmatprep.subr.mxu0 0.0
      %7798 = vmatpush1.msra.mxu0 0.0
      %7799 = vmatprep.subr.mxu0 0.0
      %7800 = vmatpush1.msra.mxu0 0.0
      %7801 = vmatprep.subr.mxu0 0.0
      %7802 = vmatpush1.msra.mxu0 0.0
      %7803 = vmatprep.subr.mxu0 0.0
      %7804 = vmatpush1.msra.mxu0 0.0
      %7805 = vmatprep.subr.mxu0 0.0
      %7806 = vmatpush1.msra.mxu0 0.0
      %7807 = vmatprep.subr.mxu0 0.0
      %7808 = vmatpush1.msra.mxu0 0.0
      %7809 = vmatprep.subr.mxu0 0.0
      %7810 = vmatpush1.msra.mxu0 0.0
      %7811 = vmatprep.subr.mxu0 0.0
      %7812 = vmatpush1.msra.mxu0 0.0
      %7813 = vmatprep.mubr.f32.mxu0 0.0
      %7814 = vmatmul.mubr.f32.gmra.mrb[0].mxu0 %v7095
      %v7815 = vpop.f32.mrb[0].mxu0
      %v7816 = vadd.f32 0.0, %v7815
      %v7817 = vpop.f32.mrb[0].mxu0
      %7818 = vmatprep.mubr.f32.mxu0 0.0
      %7819 = vmatmul.mubr.f32.gmra.mrb[0].mxu0 %v7097
      %v7820 = vpop.f32.mrb[0].mxu0
      %v7821 = vadd.f32 0.0, %v7820
      %v7822 = vpop.f32.mrb[0].mxu0
      %7823 = vmatprep.mubr.f32.mxu0 0.0
      %7824 = vmatmul.mubr.f32.gmra.mrb[0].mxu0 %v7099
      %v7825 = vpop.f32.mrb[0].mxu0
      %v7826 = vadd.f32 0.0, %v7825
      %v7827 = vpop.f32.mrb[0].mxu0
      %7828 = vmatprep.mubr.f32.mxu0 0.0
      %7829 = vmatmul.mubr.f32.gmra.mrb[0].mxu0 %v7101
      %v7830 = vpop.f32.mrb[0].mxu0
      %v7831 = vadd.f32 0.0, %v7830
      %v7832 = vpop.f32.mrb[0].mxu0
      %7833 = vmatprep.mubr.f32.mxu0 0.0
      %7834 = vmatmul.mubr.f32.gmra.mrb[0].mxu0 %v7103
      %v7835 = vpop.f32.mrb[0].mxu0
      %v7836 = vadd.f32 0.0, %v7835
      %v7837 = vpop.f32.mrb[0].mxu0
      %7838 = vmatprep.mubr.f32.mxu0 0.0
      %7839 = vmatmul.mubr.f32.gmra.mrb[0].mxu0 %v7105
      %v7840 = vpop.f32.mrb[0].mxu0
      %v7841 = vadd.f32 0.0, %v7840
      %v7842 = vpop.f32.mrb[0].mxu0
      %7843 = vmatprep.mubr.f32.mxu0 0.0
      %7844 = vmatmul.mubr.f32.gmra.mrb[0].mxu0 %v7376
      %v7845 = vpop.f32.mrb[0].mxu0
      %v7846 = vadd.f32 0.0, %v7845
      %v7847 = vpop.f32.mrb[0].mxu0
      %7848 = vmatprep.mubr.f32.mxu0 0.0
      %7849 = vmatmul.mubr.f32.gmra.mrb[0].mxu0 %v7744
      %v7850 = vpop.f32.mrb[0].mxu0
      %v7851 = vadd.f32 0.0, %v7850
      %v7852 = vpop.f32.mrb[0].mxu0
      %7853 = vdwg.mxu0
      %v7854 = vadd.f32 %v7733, %v7816
      %v7855 = vadd.f32 %v7734, %v7821
      %v7856 = vadd.f32 %v7735, %v7826
      %v7857 = vadd.f32 %v7736, %v7831
      %v7858 = vadd.f32 %v7737, %v7836
      %v7859 = vadd.f32 %v7738, %v7841
      %v7860 = vadd.f32 %v7739, %v7846
      %v7861 = vadd.f32 %v7740, %v7851
      %v7863 = vrot.slane %v6922, 1
      %v7864 = vrot.slane %v6923, 1
      %v7865 = vsel %vm781, %v7863, %v7864
      %s7866 = scalar_lea.vmem %s13, 28
      %v7867 = vld [vmem:[%s7866] sm:$0xf]
      %v7868 = vsel %vm603, %v7865, 0
      %v7871 = vsel %vm824, %v7867, 0
      %7873 = vmatprep.subr.mxu0 0.0
      %7874 = vmatpush1.msra.mxu0 %v7871
      %7875 = vmatprep.subr.mxu0 0.0
      %7876 = vmatpush1.msra.mxu0 0.0
      %7877 = vmatprep.subr.mxu0 0.0
      %7878 = vmatpush1.msra.mxu0 0.0
      %7879 = vmatprep.subr.mxu0 0.0
      %7880 = vmatpush1.msra.mxu0 0.0
      %7881 = vmatprep.subr.mxu0 0.0
      %7882 = vmatpush1.msra.mxu0 0.0
      %7883 = vmatprep.subr.mxu0 0.0
      %7884 = vmatpush1.msra.mxu0 0.0
      %7885 = vmatprep.subr.mxu0 0.0
      %7886 = vmatpush1.msra.mxu0 0.0
      %7887 = vmatprep.subr.mxu0 0.0
      %7888 = vmatpush1.msra.mxu0 0.0
      %7889 = vmatprep.subr.mxu0 0.0
      %7890 = vmatpush1.msra.mxu0 0.0
      %7891 = vmatprep.subr.mxu0 0.0
      %7892 = vmatpush1.msra.mxu0 0.0
      %7893 = vmatprep.subr.mxu0 0.0
      %7894 = vmatpush1.msra.mxu0 0.0
      %7895 = vmatprep.subr.mxu0 0.0
      %7896 = vmatpush1.msra.mxu0 0.0
      %7897 = vmatprep.subr.mxu0 0.0
      %7898 = vmatpush1.msra.mxu0 0.0
      %7899 = vmatprep.subr.mxu0 0.0
      %7900 = vmatpush1.msra.mxu0 0.0
      %7901 = vmatprep.subr.mxu0 0.0
      %7902 = vmatpush1.msra.mxu0 0.0
      %7903 = vmatprep.subr.mxu0 0.0
      %7904 = vmatpush1.msra.mxu0 0.0
      %7905 = vmatprep.subr.mxu0 0.0
      %7906 = vmatpush1.msra.mxu0 0.0
      %7907 = vmatprep.subr.mxu0 0.0
      %7908 = vmatpush1.msra.mxu0 0.0
      %7909 = vmatprep.subr.mxu0 0.0
      %7910 = vmatpush1.msra.mxu0 0.0
      %7911 = vmatprep.subr.mxu0 0.0
      %7912 = vmatpush1.msra.mxu0 0.0
      %7913 = vmatprep.subr.mxu0 0.0
      %7914 = vmatpush1.msra.mxu0 0.0
      %7915 = vmatprep.subr.mxu0 0.0
      %7916 = vmatpush1.msra.mxu0 0.0
      %7917 = vmatprep.subr.mxu0 0.0
      %7918 = vmatpush1.msra.mxu0 0.0
      %7919 = vmatprep.subr.mxu0 0.0
      %7920 = vmatpush1.msra.mxu0 0.0
      %7921 = vmatprep.subr.mxu0 0.0
      %7922 = vmatpush1.msra.mxu0 0.0
      %7923 = vmatprep.subr.mxu0 0.0
      %7924 = vmatpush1.msra.mxu0 0.0
      %7925 = vmatprep.subr.mxu0 0.0
      %7926 = vmatpush1.msra.mxu0 0.0
      %7927 = vmatprep.subr.mxu0 0.0
      %7928 = vmatpush1.msra.mxu0 0.0
      %7929 = vmatprep.subr.mxu0 0.0
      %7930 = vmatpush1.msra.mxu0 0.0
      %7931 = vmatprep.subr.mxu0 0.0
      %7932 = vmatpush1.msra.mxu0 0.0
      %7933 = vmatprep.subr.mxu0 0.0
      %7934 = vmatpush1.msra.mxu0 0.0
      %7935 = vmatprep.subr.mxu0 0.0
      %7936 = vmatpush1.msra.mxu0 0.0
      %7937 = vmatprep.mubr.f32.mxu0 0.0
      %7938 = vmatmul.mubr.f32.gmra.mrb[0].mxu0 %v6971
      %v7939 = vpop.f32.mrb[0].mxu0
      %v7940 = vadd.f32 0.0, %v7939
      %v7941 = vpop.f32.mrb[0].mxu0
      %7942 = vmatprep.mubr.f32.mxu0 0.0
      %7943 = vmatmul.mubr.f32.gmra.mrb[0].mxu0 %v6973
      %v7944 = vpop.f32.mrb[0].mxu0
      %v7945 = vadd.f32 0.0, %v7944
      %v7946 = vpop.f32.mrb[0].mxu0
      %7947 = vmatprep.mubr.f32.mxu0 0.0
      %7948 = vmatmul.mubr.f32.gmra.mrb[0].mxu0 %v6975
      %v7949 = vpop.f32.mrb[0].mxu0
      %v7950 = vadd.f32 0.0, %v7949
      %v7951 = vpop.f32.mrb[0].mxu0
      %7952 = vmatprep.mubr.f32.mxu0 0.0
      %7953 = vmatmul.mubr.f32.gmra.mrb[0].mxu0 %v6977
      %v7954 = vpop.f32.mrb[0].mxu0
      %v7955 = vadd.f32 0.0, %v7954
      %v7956 = vpop.f32.mrb[0].mxu0
      %7957 = vmatprep.mubr.f32.mxu0 0.0
      %7958 = vmatmul.mubr.f32.gmra.mrb[0].mxu0 %v6979
      %v7959 = vpop.f32.mrb[0].mxu0
      %v7960 = vadd.f32 0.0, %v7959
      %v7961 = vpop.f32.mrb[0].mxu0
      %7962 = vmatprep.mubr.f32.mxu0 0.0
      %7963 = vmatmul.mubr.f32.gmra.mrb[0].mxu0 %v6981
      %v7964 = vpop.f32.mrb[0].mxu0
      %v7965 = vadd.f32 0.0, %v7964
      %v7966 = vpop.f32.mrb[0].mxu0
      %7967 = vmatprep.mubr.f32.mxu0 0.0
      %7968 = vmatmul.mubr.f32.gmra.mrb[0].mxu0 %v7500
      %v7969 = vpop.f32.mrb[0].mxu0
      %v7970 = vadd.f32 0.0, %v7969
      %v7971 = vpop.f32.mrb[0].mxu0
      %7972 = vmatprep.mubr.f32.mxu0 0.0
      %7973 = vmatmul.mubr.f32.gmra.mrb[0].mxu0 %v7868
      %v7974 = vpop.f32.mrb[0].mxu0
      %v7975 = vadd.f32 0.0, %v7974
      %v7976 = vpop.f32.mrb[0].mxu0
      %7977 = vdwg.mxu0
      %v7978 = vadd.f32 %v7854, %v7940
      %v7979 = vadd.f32 %v7855, %v7945
      %v7980 = vadd.f32 %v7856, %v7950
      %v7981 = vadd.f32 %v7857, %v7955
      %v7982 = vadd.f32 %v7858, %v7960
      %v7983 = vadd.f32 %v7859, %v7965
      %v7984 = vadd.f32 %v7860, %v7970
      %v7985 = vadd.f32 %v7861, %v7975
      %v7986 = vrot.slane %v6922, 2
      %v7987 = vrot.slane %v6923, 2
      %v7988 = vsel %vm1057, %v7986, %v7987
      %s7989 = scalar_lea.vmem %s13, 32
      %v7990 = vld [vmem:[%s7989] sm:$0xf]
      %v7991 = vsel %vm603, %v7988, 0
      %v7994 = vsel %vm824, %v7990, 0
      %7996 = vmatprep.subr.mxu0 0.0
      %7997 = vmatpush1.msra.mxu0 %v7994
      %7998 = vmatprep.subr.mxu0 0.0
      %7999 = vmatpush1.msra.mxu0 0.0
      %8000 = vmatprep.subr.mxu0 0.0
      %8001 = vmatpush1.msra.mxu0 0.0
      %8002 = vmatprep.subr.mxu0 0.0
      %8003 = vmatpush1.msra.mxu0 0.0
      %8004 = vmatprep.subr.mxu0 0.0
      %8005 = vmatpush1.msra.mxu0 0.0
      %8006 = vmatprep.subr.mxu0 0.0
      %8007 = vmatpush1.msra.mxu0 0.0
      %8008 = vmatprep.subr.mxu0 0.0
      %8009 = vmatpush1.msra.mxu0 0.0
      %8010 = vmatprep.subr.mxu0 0.0
      %8011 = vmatpush1.msra.mxu0 0.0
      %8012 = vmatprep.subr.mxu0 0.0
      %8013 = vmatpush1.msra.mxu0 0.0
      %8014 = vmatprep.subr.mxu0 0.0
      %8015 = vmatpush1.msra.mxu0 0.0
      %8016 = vmatprep.subr.mxu0 0.0
      %8017 = vmatpush1.msra.mxu0 0.0
      %8018 = vmatprep.subr.mxu0 0.0
      %8019 = vmatpush1.msra.mxu0 0.0
      %8020 = vmatprep.subr.mxu0 0.0
      %8021 = vmatpush1.msra.mxu0 0.0
      %8022 = vmatprep.subr.mxu0 0.0
      %8023 = vmatpush1.msra.mxu0 0.0
      %8024 = vmatprep.subr.mxu0 0.0
      %8025 = vmatpush1.msra.mxu0 0.0
      %8026 = vmatprep.subr.mxu0 0.0
      %8027 = vmatpush1.msra.mxu0 0.0
      %8028 = vmatprep.subr.mxu0 0.0
      %8029 = vmatpush1.msra.mxu0 0.0
      %8030 = vmatprep.subr.mxu0 0.0
      %8031 = vmatpush1.msra.mxu0 0.0
      %8032 = vmatprep.subr.mxu0 0.0
      %8033 = vmatpush1.msra.mxu0 0.0
      %8034 = vmatprep.subr.mxu0 0.0
      %8035 = vmatpush1.msra.mxu0 0.0
      %8036 = vmatprep.subr.mxu0 0.0
      %8037 = vmatpush1.msra.mxu0 0.0
      %8038 = vmatprep.subr.mxu0 0.0
      %8039 = vmatpush1.msra.mxu0 0.0
      %8040 = vmatprep.subr.mxu0 0.0
      %8041 = vmatpush1.msra.mxu0 0.0
      %8042 = vmatprep.subr.mxu0 0.0
      %8043 = vmatpush1.msra.mxu0 0.0
      %8044 = vmatprep.subr.mxu0 0.0
      %8045 = vmatpush1.msra.mxu0 0.0
      %8046 = vmatprep.subr.mxu0 0.0
      %8047 = vmatpush1.msra.mxu0 0.0
      %8048 = vmatprep.subr.mxu0 0.0
      %8049 = vmatpush1.msra.mxu0 0.0
      %8050 = vmatprep.subr.mxu0 0.0
      %8051 = vmatpush1.msra.mxu0 0.0
      %8052 = vmatprep.subr.mxu0 0.0
      %8053 = vmatpush1.msra.mxu0 0.0
      %8054 = vmatprep.subr.mxu0 0.0
      %8055 = vmatpush1.msra.mxu0 0.0
      %8056 = vmatprep.subr.mxu0 0.0
      %8057 = vmatpush1.msra.mxu0 0.0
      %8058 = vmatprep.subr.mxu0 0.0
      %8059 = vmatpush1.msra.mxu0 0.0
      %8060 = vmatprep.mubr.f32.mxu0 0.0
      %8061 = vmatmul.mubr.f32.gmra.mrb[0].mxu0 %v7245
      %v8062 = vpop.f32.mrb[0].mxu0
      %v8063 = vadd.f32 0.0, %v8062
      %v8064 = vpop.f32.mrb[0].mxu0
      %8065 = vmatprep.mubr.f32.mxu0 0.0
      %8066 = vmatmul.mubr.f32.gmra.mrb[0].mxu0 %v7247
      %v8067 = vpop.f32.mrb[0].mxu0
      %v8068 = vadd.f32 0.0, %v8067
      %v8069 = vpop.f32.mrb[0].mxu0
      %8070 = vmatprep.mubr.f32.mxu0 0.0
      %8071 = vmatmul.mubr.f32.gmra.mrb[0].mxu0 %v7249
      %v8072 = vpop.f32.mrb[0].mxu0
      %v8073 = vadd.f32 0.0, %v8072
      %v8074 = vpop.f32.mrb[0].mxu0
      %8075 = vmatprep.mubr.f32.mxu0 0.0
      %8076 = vmatmul.mubr.f32.gmra.mrb[0].mxu0 %v7251
      %v8077 = vpop.f32.mrb[0].mxu0
      %v8078 = vadd.f32 0.0, %v8077
      %v8079 = vpop.f32.mrb[0].mxu0
      %8080 = vmatprep.mubr.f32.mxu0 0.0
      %8081 = vmatmul.mubr.f32.gmra.mrb[0].mxu0 %v7253
      %v8082 = vpop.f32.mrb[0].mxu0
      %v8083 = vadd.f32 0.0, %v8082
      %v8084 = vpop.f32.mrb[0].mxu0
      %8085 = vmatprep.mubr.f32.mxu0 0.0
      %8086 = vmatmul.mubr.f32.gmra.mrb[0].mxu0 %v7255
      %v8087 = vpop.f32.mrb[0].mxu0
      %v8088 = vadd.f32 0.0, %v8087
      %v8089 = vpop.f32.mrb[0].mxu0
      %8090 = vmatprep.mubr.f32.mxu0 0.0
      %8091 = vmatmul.mubr.f32.gmra.mrb[0].mxu0 %v7623
      %v8092 = vpop.f32.mrb[0].mxu0
      %v8093 = vadd.f32 0.0, %v8092
      %v8094 = vpop.f32.mrb[0].mxu0
      %8095 = vmatprep.mubr.f32.mxu0 0.0
      %8096 = vmatmul.mubr.f32.gmra.mrb[0].mxu0 %v7991
      %v8097 = vpop.f32.mrb[0].mxu0
      %v8098 = vadd.f32 0.0, %v8097
      %v8099 = vpop.f32.mrb[0].mxu0
      %8100 = vdwg.mxu0
      %v8101 = vadd.f32 %v7978, %v8063
      %v8102 = vadd.f32 %v7979, %v8068
      %v8103 = vadd.f32 %v7980, %v8073
      %v8104 = vadd.f32 %v7981, %v8078
      %v8105 = vadd.f32 %v7982, %v8083
      %v8106 = vadd.f32 %v7983, %v8088
      %v8107 = vadd.f32 %v7984, %v8093
      %v8108 = vadd.f32 %v7985, %v8098
      %v8109 = vld [vmem:[%s14] sm:$0x1]
      %v8110 = vld [vmem:[%s15] sm:$0x1]
      %v8111 = vsel %vm645, %v8101, 0.0
      %v8112 = vsel %vm645, %v8102, 0.0
      %v8113 = vadd.f32 %v8111, %v8112
      %v8114 = vsel %vm645, %v8103, 0.0
      %v8115 = vadd.f32 %v8113, %v8114
      %v8116 = vsel %vm645, %v8104, 0.0
      %v8117 = vadd.f32 %v8115, %v8116
      %v8118 = vsel %vm645, %v8105, 0.0
      %v8119 = vadd.f32 %v8117, %v8118
      %v8120 = vsel %vm645, %v8106, 0.0
      %v8121 = vadd.f32 %v8119, %v8120
      %v8122 = vsel %vm645, %v8107, 0.0
      %v8123 = vadd.f32 %v8121, %v8122
      %v8124 = vsel %vm645, %v8108, 0.0
      %v8125 = vadd.f32 %v8123, %v8124
      %8126 = vadd.xlane.f32.xlu0 %v8125
      %v8127 = vpop.xlane.xlu0 %8126
      %v8128 = vrot.slane %v8127, 4
      %v8129 = vadd.f32 %v8127, %v8128
      %v8130 = vrot.slane %v8129, 2
      %v8131 = vadd.f32 %v8129, %v8130
      %v8132 = vrot.slane %v8131, 1
      %v8133 = vadd.f32 %v8131, %v8132
      %s8134 = vtos %v8133
      %v8135 = vstv %s8134
      %v8136 = vmul.f32 %v8101, %v8101
      %v8137 = vmul.f32 %v8102, %v8102
      %v8138 = vmul.f32 %v8103, %v8103
      %v8139 = vmul.f32 %v8104, %v8104
      %v8140 = vmul.f32 %v8105, %v8105
      %v8141 = vmul.f32 %v8106, %v8106
      %v8142 = vmul.f32 %v8107, %v8107
      %v8143 = vmul.f32 %v8108, %v8108
      %v8144 = vsel %vm645, %v8136, 0.0
      %v8145 = vsel %vm645, %v8137, 0.0
      %v8146 = vadd.f32 %v8144, %v8145
      %v8147 = vsel %vm645, %v8138, 0.0
      %v8148 = vadd.f32 %v8146, %v8147
      %v8149 = vsel %vm645, %v8139, 0.0
      %v8150 = vadd.f32 %v8148, %v8149
      %v8151 = vsel %vm645, %v8140, 0.0
      %v8152 = vadd.f32 %v8150, %v8151
      %v8153 = vsel %vm645, %v8141, 0.0
      %v8154 = vadd.f32 %v8152, %v8153
      %v8155 = vsel %vm645, %v8142, 0.0
      %v8156 = vadd.f32 %v8154, %v8155
      %v8157 = vsel %vm645, %v8143, 0.0
      %v8158 = vadd.f32 %v8156, %v8157
      %8159 = vadd.xlane.f32.xlu0 %v8158
      %v8160 = vpop.xlane.xlu0 %8159
      %v8161 = vrot.slane %v8160, 4
      %v8162 = vadd.f32 %v8160, %v8161
      %v8163 = vrot.slane %v8162, 2
      %v8164 = vadd.f32 %v8162, %v8163
      %v8165 = vrot.slane %v8164, 1
      %v8166 = vadd.f32 %v8164, %v8165
      %s8167 = vtos %v8166
      %v8168 = vstv %s8167
      %v8169 = vmul.f32 %v8135, 0.001953125
      %v8170 = vmul.f32 %v8168, 0.001953125
      %v8171 = vmul.f32 %v8169, %v8169
      %v8172 = vsub.f32 %v8170, %v8171
      %v8173 = vmax.f32 %v8172, 0.0
      %v8174 = vsub.f32 %v8101, %v8169
      %v8175 = vsub.f32 %v8102, %v8169
      %v8176 = vsub.f32 %v8103, %v8169
      %v8177 = vsub.f32 %v8104, %v8169
      %v8178 = vsub.f32 %v8105, %v8169
      %v8179 = vsub.f32 %v8106, %v8169
      %v8180 = vsub.f32 %v8107, %v8169
      %v8181 = vsub.f32 %v8108, %v8169
      %v8182 = vadd.f32 %v8173, 1e-05
      %v8183 = vrsqrt.pop %v8182
      %v8184 = vmul.f32 %v8174, %v8183
      %v8185 = vmul.f32 %v8175, %v8183
      %v8186 = vmul.f32 %v8176, %v8183
      %v8187 = vmul.f32 %v8177, %v8183
      %v8188 = vmul.f32 %v8178, %v8183
      %v8189 = vmul.f32 %v8179, %v8183
      %v8190 = vmul.f32 %v8180, %v8183
      %v8191 = vmul.f32 %v8181, %v8183
      %v8193 = vlaneseq
      %v8194 = vshrl.u32 %v8193, 7
      %v8195 = vsub.s32 0, %v8194
      %v8196 = vrot.slane %v8109, %v8195
      %v8198 = vmul.f32 %v8184, %v8196
      %v8199 = vmul.f32 %v8185, %v8196
      %v8200 = vmul.f32 %v8186, %v8196
      %v8201 = vmul.f32 %v8187, %v8196
      %v8202 = vmul.f32 %v8188, %v8196
      %v8203 = vmul.f32 %v8189, %v8196
      %v8204 = vmul.f32 %v8190, %v8196
      %v8205 = vmul.f32 %v8191, %v8196
      %v8207 = vlaneseq
      %v8208 = vshrl.u32 %v8207, 7
      %v8209 = vsub.s32 0, %v8208
      %v8210 = vrot.slane %v8110, %v8209
      %v8212 = vadd.f32 %v8198, %v8210
      %v8213 = vadd.f32 %v8199, %v8210
      %v8214 = vadd.f32 %v8200, %v8210
      %v8215 = vadd.f32 %v8201, %v8210
      %v8216 = vadd.f32 %v8202, %v8210
      %v8217 = vadd.f32 %v8203, %v8210
      %v8218 = vadd.f32 %v8204, %v8210
      %v8219 = vadd.f32 %v8205, %v8210
      %v8220 = vmul.f32 %v8212, 0.5
      %v8221 = vmul.f32 %v8213, 0.5
      %v8222 = vmul.f32 %v8214, 0.5
      %v8223 = vmul.f32 %v8215, 0.5
      %v8224 = vmul.f32 %v8216, 0.5
      %v8225 = vmul.f32 %v8217, 0.5
      %v8226 = vmul.f32 %v8218, 0.5
      %v8227 = vmul.f32 %v8219, 0.5
      %v8228 = vmul.f32 %v8212, 0.70710677
      %v8229 = vmul.f32 %v8213, 0.70710677
      %v8230 = vmul.f32 %v8214, 0.70710677
      %v8231 = vmul.f32 %v8215, 0.70710677
      %v8232 = vmul.f32 %v8216, 0.70710677
      %v8233 = vmul.f32 %v8217, 0.70710677
      %v8234 = vmul.f32 %v8218, 0.70710677
      %v8235 = vmul.f32 %v8219, 0.70710677
      %vm8236 = vcmp.ge.f32.partialorder %v8228, 0.0
      %vm8237 = vcmp.ge.f32.partialorder %v8229, 0.0
      %vm8238 = vcmp.ge.f32.partialorder %v8230, 0.0
      %vm8239 = vcmp.ge.f32.partialorder %v8231, 0.0
      %vm8240 = vcmp.ge.f32.partialorder %v8232, 0.0
      %vm8241 = vcmp.ge.f32.partialorder %v8233, 0.0
      %vm8242 = vcmp.ge.f32.partialorder %v8234, 0.0
      %vm8243 = vcmp.ge.f32.partialorder %v8235, 0.0
      %v8244 = vsel %vm8236, 1.0, -1.0
      %v8245 = vsel %vm8237, 1.0, -1.0
      %v8246 = vsel %vm8238, 1.0, -1.0
      %v8247 = vsel %vm8239, 1.0, -1.0
      %v8248 = vsel %vm8240, 1.0, -1.0
      %v8249 = vsel %vm8241, 1.0, -1.0
      %v8250 = vsel %vm8242, 1.0, -1.0
      %v8251 = vsel %vm8243, 1.0, -1.0
      %v8252 = vand.u32 2147483647, %v8228
      %v8253 = vand.u32 2147483647, %v8229
      %v8254 = vand.u32 2147483647, %v8230
      %v8255 = vand.u32 2147483647, %v8231
      %v8256 = vand.u32 2147483647, %v8232
      %v8257 = vand.u32 2147483647, %v8233
      %v8258 = vand.u32 2147483647, %v8234
      %v8259 = vand.u32 2147483647, %v8235
      %v8260 = vmul.f32 %v8252, 0.3275911
      %v8261 = vmul.f32 %v8253, 0.3275911
      %v8262 = vmul.f32 %v8254, 0.3275911
      %v8263 = vmul.f32 %v8255, 0.3275911
      %v8264 = vmul.f32 %v8256, 0.3275911
      %v8265 = vmul.f32 %v8257, 0.3275911
      %v8266 = vmul.f32 %v8258, 0.3275911
      %v8267 = vmul.f32 %v8259, 0.3275911
      %v8268 = vadd.f32 %v8260, 1.0
      %v8269 = vadd.f32 %v8261, 1.0
      %v8270 = vadd.f32 %v8262, 1.0
      %v8271 = vadd.f32 %v8263, 1.0
      %v8272 = vadd.f32 %v8264, 1.0
      %v8273 = vadd.f32 %v8265, 1.0
      %v8274 = vadd.f32 %v8266, 1.0
      %v8275 = vadd.f32 %v8267, 1.0
      %v8276 = vrcp.pop %v8268
      %v8277 = vrcp.pop %v8269
      %v8278 = vrcp.pop %v8270
      %v8279 = vrcp.pop %v8271
      %v8280 = vrcp.pop %v8272
      %v8281 = vrcp.pop %v8273
      %v8282 = vrcp.pop %v8274
      %v8283 = vrcp.pop %v8275
      %v8284 = vmul.f32 %v8276, 1.0614054
      %v8285 = vmul.f32 %v8277, 1.0614054
      %v8286 = vmul.f32 %v8278, 1.0614054
      %v8287 = vmul.f32 %v8279, 1.0614054
      %v8288 = vmul.f32 %v8280, 1.0614054
      %v8289 = vmul.f32 %v8281, 1.0614054
      %v8290 = vmul.f32 %v8282, 1.0614054
      %v8291 = vmul.f32 %v8283, 1.0614054
      %v8292 = vadd.f32 %v8284, -1.4531521
      %v8293 = vadd.f32 %v8285, -1.4531521
      %v8294 = vadd.f32 %v8286, -1.4531521
      %v8295 = vadd.f32 %v8287, -1.4531521
      %v8296 = vadd.f32 %v8288, -1.4531521
      %v8297 = vadd.f32 %v8289, -1.4531521
      %v8298 = vadd.f32 %v8290, -1.4531521
      %v8299 = vadd.f32 %v8291, -1.4531521
      %v8300 = vmul.f32 %v8292, %v8276
      %v8301 = vmul.f32 %v8293, %v8277
      %v8302 = vmul.f32 %v8294, %v8278
      %v8303 = vmul.f32 %v8295, %v8279
      %v8304 = vmul.f32 %v8296, %v8280
      %v8305 = vmul.f32 %v8297, %v8281
      %v8306 = vmul.f32 %v8298, %v8282
      %v8307 = vmul.f32 %v8299, %v8283
      %v8308 = vadd.f32 %v8300, 1.4214138
      %v8309 = vadd.f32 %v8301, 1.4214138
      %v8310 = vadd.f32 %v8302, 1.4214138
      %v8311 = vadd.f32 %v8303, 1.4214138
      %v8312 = vadd.f32 %v8304, 1.4214138
      %v8313 = vadd.f32 %v8305, 1.4214138
      %v8314 = vadd.f32 %v8306, 1.4214138
      %v8315 = vadd.f32 %v8307, 1.4214138
      %v8316 = vmul.f32 %v8308, %v8276
      %v8317 = vmul.f32 %v8309, %v8277
      %v8318 = vmul.f32 %v8310, %v8278
      %v8319 = vmul.f32 %v8311, %v8279
      %v8320 = vmul.f32 %v8312, %v8280
      %v8321 = vmul.f32 %v8313, %v8281
      %v8322 = vmul.f32 %v8314, %v8282
      %v8323 = vmul.f32 %v8315, %v8283
      %v8324 = vadd.f32 %v8316, -0.28449672
      %v8325 = vadd.f32 %v8317, -0.28449672
      %v8326 = vadd.f32 %v8318, -0.28449672
      %v8327 = vadd.f32 %v8319, -0.28449672
      %v8328 = vadd.f32 %v8320, -0.28449672
      %v8329 = vadd.f32 %v8321, -0.28449672
      %v8330 = vadd.f32 %v8322, -0.28449672
      %v8331 = vadd.f32 %v8323, -0.28449672
      %v8332 = vmul.f32 %v8324, %v8276
      %v8333 = vmul.f32 %v8325, %v8277
      %v8334 = vmul.f32 %v8326, %v8278
      %v8335 = vmul.f32 %v8327, %v8279
      %v8336 = vmul.f32 %v8328, %v8280
      %v8337 = vmul.f32 %v8329, %v8281
      %v8338 = vmul.f32 %v8330, %v8282
      %v8339 = vmul.f32 %v8331, %v8283
      %v8340 = vadd.f32 %v8332, 0.2548296
      %v8341 = vadd.f32 %v8333, 0.2548296
      %v8342 = vadd.f32 %v8334, 0.2548296
      %v8343 = vadd.f32 %v8335, 0.2548296
      %v8344 = vadd.f32 %v8336, 0.2548296
      %v8345 = vadd.f32 %v8337, 0.2548296
      %v8346 = vadd.f32 %v8338, 0.2548296
      %v8347 = vadd.f32 %v8339, 0.2548296
      %v8348 = vmul.f32 %v8340, %v8276
      %v8349 = vmul.f32 %v8341, %v8277
      %v8350 = vmul.f32 %v8342, %v8278
      %v8351 = vmul.f32 %v8343, %v8279
      %v8352 = vmul.f32 %v8344, %v8280
      %v8353 = vmul.f32 %v8345, %v8281
      %v8354 = vmul.f32 %v8346, %v8282
      %v8355 = vmul.f32 %v8347, %v8283
      %v8356 = vsub.f32 0.0, %v8252
      %v8357 = vsub.f32 0.0, %v8253
      %v8358 = vsub.f32 0.0, %v8254
      %v8359 = vsub.f32 0.0, %v8255
      %v8360 = vsub.f32 0.0, %v8256
      %v8361 = vsub.f32 0.0, %v8257
      %v8362 = vsub.f32 0.0, %v8258
      %v8363 = vsub.f32 0.0, %v8259
      %v8364 = vmul.f32 %v8356, %v8252
      %v8365 = vmul.f32 %v8357, %v8253
      %v8366 = vmul.f32 %v8358, %v8254
      %v8367 = vmul.f32 %v8359, %v8255
      %v8368 = vmul.f32 %v8360, %v8256
      %v8369 = vmul.f32 %v8361, %v8257
      %v8370 = vmul.f32 %v8362, %v8258
      %v8371 = vmul.f32 %v8363, %v8259
      %v8372 = vmul.f32 %v8364, 1.442695
      %v8373 = vpow.pop %v8372
      %v8374 = vmul.f32 %v8365, 1.442695
      %v8375 = vpow.pop %v8374
      %v8376 = vmul.f32 %v8366, 1.442695
      %v8377 = vpow.pop %v8376
      %v8378 = vmul.f32 %v8367, 1.442695
      %v8379 = vpow.pop %v8378
      %v8380 = vmul.f32 %v8368, 1.442695
      %v8381 = vpow.pop %v8380
      %v8382 = vmul.f32 %v8369, 1.442695
      %v8383 = vpow.pop %v8382
      %v8384 = vmul.f32 %v8370, 1.442695
      %v8385 = vpow.pop %v8384
      %v8386 = vmul.f32 %v8371, 1.442695
      %v8387 = vpow.pop %v8386
      %v8388 = vmul.f32 %v8348, %v8373
      %v8389 = vmul.f32 %v8349, %v8375
      %v8390 = vmul.f32 %v8350, %v8377
      %v8391 = vmul.f32 %v8351, %v8379
      %v8392 = vmul.f32 %v8352, %v8381
      %v8393 = vmul.f32 %v8353, %v8383
      %v8394 = vmul.f32 %v8354, %v8385
      %v8395 = vmul.f32 %v8355, %v8387
      %v8396 = vsub.f32 1.0, %v8388
      %v8397 = vsub.f32 1.0, %v8389
      %v8398 = vsub.f32 1.0, %v8390
      %v8399 = vsub.f32 1.0, %v8391
      %v8400 = vsub.f32 1.0, %v8392
      %v8401 = vsub.f32 1.0, %v8393
      %v8402 = vsub.f32 1.0, %v8394
      %v8403 = vsub.f32 1.0, %v8395
      %v8404 = vmul.f32 %v8244, %v8396
      %v8405 = vmul.f32 %v8245, %v8397
      %v8406 = vmul.f32 %v8246, %v8398
      %v8407 = vmul.f32 %v8247, %v8399
      %v8408 = vmul.f32 %v8248, %v8400
      %v8409 = vmul.f32 %v8249, %v8401
      %v8410 = vmul.f32 %v8250, %v8402
      %v8411 = vmul.f32 %v8251, %v8403
      %v8412 = vadd.f32 %v8404, 1.0
      %v8413 = vadd.f32 %v8405, 1.0
      %v8414 = vadd.f32 %v8406, 1.0
      %v8415 = vadd.f32 %v8407, 1.0
      %v8416 = vadd.f32 %v8408, 1.0
      %v8417 = vadd.f32 %v8409, 1.0
      %v8418 = vadd.f32 %v8410, 1.0
      %v8419 = vadd.f32 %v8411, 1.0
      %v8420 = vmul.f32 %v8220, %v8412
      %v8421 = vmul.f32 %v8221, %v8413
      %v8422 = vmul.f32 %v8222, %v8414
      %v8423 = vmul.f32 %v8223, %v8415
      %v8424 = vmul.f32 %v8224, %v8416
      %v8425 = vmul.f32 %v8225, %v8417
      %v8426 = vmul.f32 %v8226, %v8418
      %v8427 = vmul.f32 %v8227, %v8419
      %s8428 = scalar_lea.vmem [#allocation4], 16
      %8429 = vst.msk [vmem:[%s8428 + $0x1] sm:$0xff] %vm645, %v8420
      %8430 = vst.msk [vmem:[%s8428 + $0x11] sm:$0xff] %vm645, %v8421
      %8431 = vst.msk [vmem:[%s8428 + $0x21] sm:$0xff] %vm645, %v8422
      %8432 = vst.msk [vmem:[%s8428 + $0x31] sm:$0xff] %vm645, %v8423
      %8433 = vst.msk [vmem:[%s8428 + $0x41] sm:$0xff] %vm645, %v8424
      %8434 = vst.msk [vmem:[%s8428 + $0x51] sm:$0xff] %vm645, %v8425
      %8435 = vst.msk [vmem:[%s8428 + $0x61] sm:$0xff] %vm645, %v8426
      %8436 = vst.msk [vmem:[%s8428 + $0x71] sm:$0xff] %vm645, %v8427
      %v8437 = vld [vmem:[#allocation4] sm:$0xff]
      %v8438 = vld [vmem:[#allocation4 + $0x8] sm:$0x3]
      %v8439 = vld [vmem:[#allocation4 + $0x10] sm:$0xff]
      %v8440 = vld [vmem:[#allocation4 + $0x18] sm:$0x3]
      %v8441 = vld [vmem:[#allocation4 + $0x20] sm:$0xff]
      %v8442 = vld [vmem:[#allocation4 + $0x28] sm:$0x3]
      %v8443 = vld [vmem:[#allocation4 + $0x30] sm:$0xff]
      %v8444 = vld [vmem:[#allocation4 + $0x38] sm:$0x3]
      %v8445 = vld [vmem:[#allocation4 + $0x40] sm:$0xff]
      %v8446 = vld [vmem:[#allocation4 + $0x48] sm:$0x3]
      %v8447 = vld [vmem:[#allocation4 + $0x50] sm:$0xff]
      %v8448 = vld [vmem:[#allocation4 + $0x58] sm:$0x3]
      %v8449 = vld [vmem:[#allocation4 + $0x60] sm:$0xff]
      %v8450 = vld [vmem:[#allocation4 + $0x68] sm:$0x3]
      %v8451 = vld [vmem:[#allocation4 + $0x70] sm:$0xff]
      %v8452 = vld [vmem:[#allocation4 + $0x78] sm:$0x3]
      %v8453 = vld [vmem:[#allocation4 + $0x80] sm:$0xff]
      %v8454 = vld [vmem:[#allocation4 + $0x88] sm:$0x3]
      %v8455 = vld [vmem:[#allocation4 + $0x90] sm:$0xff]
      %v8456 = vld [vmem:[#allocation4 + $0x98] sm:$0x3]
      %v8457 = vld [vmem:[%s16] sm:$0xff]
      %v8474 = vrot.slane %v8437, 1
      %v8475 = vrot.slane %v8438, 1
      %v8476 = vsel %vm781, %v8474, %v8475
      %v8477 = vrot.slane %v8439, 1
      %v8478 = vrot.slane %v8440, 1
      %v8479 = vsel %vm781, %v8477, %v8478
      %v8480 = vrot.slane %v8441, 1
      %v8481 = vrot.slane %v8442, 1
      %v8482 = vsel %vm781, %v8480, %v8481
      %v8483 = vrot.slane %v8443, 1
      %v8484 = vrot.slane %v8444, 1
      %v8485 = vsel %vm781, %v8483, %v8484
      %v8486 = vrot.slane %v8445, 1
      %v8487 = vrot.slane %v8446, 1
      %v8488 = vsel %vm781, %v8486, %v8487
      %v8489 = vrot.slane %v8447, 1
      %v8490 = vrot.slane %v8448, 1
      %v8491 = vsel %vm781, %v8489, %v8490
      %v8492 = vrot.slane %v8449, 1
      %v8493 = vrot.slane %v8450, 1
      %v8494 = vsel %vm781, %v8492, %v8493
      %v8495 = vrot.slane %v8451, 1
      %v8496 = vrot.slane %v8452, 1
      %v8497 = vsel %vm781, %v8495, %v8496
      %s8498 = scalar_lea.vmem %s16, 8
      %v8499 = vld [vmem:[%s8498] sm:$0xff]
      %v8500 = vsel %vm645, %v8476, 0
      %v8502 = vsel %vm645, %v8479, 0
      %v8504 = vsel %vm645, %v8482, 0
      %v8506 = vsel %vm645, %v8485, 0
      %v8508 = vsel %vm645, %v8488, 0
      %v8510 = vsel %vm645, %v8491, 0
      %v8512 = vsel %vm645, %v8494, 0
      %v8514 = vsel %vm645, %v8497, 0
      %8516 = vmatprep.subr.mxu0 0.0
      %8517 = vmatpush1.msra.mxu0 %v8499
      %8518 = vmatprep.subr.mxu0 0.0
      %8519 = vmatpush1.msra.mxu0 0.0
      %8520 = vmatprep.subr.mxu0 0.0
      %8521 = vmatpush1.msra.mxu0 0.0
      %8522 = vmatprep.subr.mxu0 0.0
      %8523 = vmatpush1.msra.mxu0 0.0
      %8524 = vmatprep.subr.mxu0 0.0
      %8525 = vmatpush1.msra.mxu0 0.0
      %8526 = vmatprep.subr.mxu0 0.0
      %8527 = vmatpush1.msra.mxu0 0.0
      %8528 = vmatprep.subr.mxu0 0.0
      %8529 = vmatpush1.msra.mxu0 0.0
      %8530 = vmatprep.subr.mxu0 0.0
      %8531 = vmatpush1.msra.mxu0 0.0
      %8532 = vmatprep.subr.mxu0 0.0
      %8533 = vmatpush1.msra.mxu0 0.0
      %8534 = vmatprep.subr.mxu0 0.0
      %8535 = vmatpush1.msra.mxu0 0.0
      %8536 = vmatprep.subr.mxu0 0.0
      %8537 = vmatpush1.msra.mxu0 0.0
      %8538 = vmatprep.subr.mxu0 0.0
      %8539 = vmatpush1.msra.mxu0 0.0
      %8540 = vmatprep.subr.mxu0 0.0
      %8541 = vmatpush1.msra.mxu0 0.0
      %8542 = vmatprep.subr.mxu0 0.0
      %8543 = vmatpush1.msra.mxu0 0.0
      %8544 = vmatprep.subr.mxu0 0.0
      %8545 = vmatpush1.msra.mxu0 0.0
      %8546 = vmatprep.subr.mxu0 0.0
      %8547 = vmatpush1.msra.mxu0 0.0
      %8548 = vmatprep.subr.mxu0 0.0
      %8549 = vmatpush1.msra.mxu0 0.0
      %8550 = vmatprep.subr.mxu0 0.0
      %8551 = vmatpush1.msra.mxu0 0.0
      %8552 = vmatprep.subr.mxu0 0.0
      %8553 = vmatpush1.msra.mxu0 0.0
      %8554 = vmatprep.subr.mxu0 0.0
      %8555 = vmatpush1.msra.mxu0 0.0
      %8556 = vmatprep.subr.mxu0 0.0
      %8557 = vmatpush1.msra.mxu0 0.0
      %8558 = vmatprep.subr.mxu0 0.0
      %8559 = vmatpush1.msra.mxu0 0.0
      %8560 = vmatprep.subr.mxu0 0.0
      %8561 = vmatpush1.msra.mxu0 0.0
      %8562 = vmatprep.subr.mxu0 0.0
      %8563 = vmatpush1.msra.mxu0 0.0
      %8564 = vmatprep.subr.mxu0 0.0
      %8565 = vmatpush1.msra.mxu0 0.0
      %8566 = vmatprep.subr.mxu0 0.0
      %8567 = vmatpush1.msra.mxu0 0.0
      %8568 = vmatprep.subr.mxu0 0.0
      %8569 = vmatpush1.msra.mxu0 0.0
      %8570 = vmatprep.subr.mxu0 0.0
      %8571 = vmatpush1.msra.mxu0 0.0
      %8572 = vmatprep.subr.mxu0 0.0
      %8573 = vmatpush1.msra.mxu0 0.0
      %8574 = vmatprep.subr.mxu0 0.0
      %8575 = vmatpush1.msra.mxu0 0.0
      %8576 = vmatprep.subr.mxu0 0.0
      %8577 = vmatpush1.msra.mxu0 0.0
      %8578 = vmatprep.subr.mxu0 0.0
      %8579 = vmatpush1.msra.mxu0 0.0
      %8580 = vmatprep.mubr.f32.mxu0 0.0
      %8581 = vmatmul.mubr.f32.gmra.mrb[0].mxu0 %v8500
      %v8582 = vpop.f32.mrb[0].mxu0
      %v8583 = vadd.f32 0.0, %v8582
      %v8584 = vpop.f32.mrb[0].mxu0
      %8585 = vmatprep.mubr.f32.mxu0 0.0
      %8586 = vmatmul.mubr.f32.gmra.mrb[0].mxu0 %v8502
      %v8587 = vpop.f32.mrb[0].mxu0
      %v8588 = vadd.f32 0.0, %v8587
      %v8589 = vpop.f32.mrb[0].mxu0
      %8590 = vmatprep.mubr.f32.mxu0 0.0
      %8591 = vmatmul.mubr.f32.gmra.mrb[0].mxu0 %v8504
      %v8592 = vpop.f32.mrb[0].mxu0
      %v8593 = vadd.f32 0.0, %v8592
      %v8594 = vpop.f32.mrb[0].mxu0
      %8595 = vmatprep.mubr.f32.mxu0 0.0
      %8596 = vmatmul.mubr.f32.gmra.mrb[0].mxu0 %v8506
      %v8597 = vpop.f32.mrb[0].mxu0
      %v8598 = vadd.f32 0.0, %v8597
      %v8599 = vpop.f32.mrb[0].mxu0
      %8600 = vmatprep.mubr.f32.mxu0 0.0
      %8601 = vmatmul.mubr.f32.gmra.mrb[0].mxu0 %v8508
      %v8602 = vpop.f32.mrb[0].mxu0
      %v8603 = vadd.f32 0.0, %v8602
      %v8604 = vpop.f32.mrb[0].mxu0
      %8605 = vmatprep.mubr.f32.mxu0 0.0
      %8606 = vmatmul.mubr.f32.gmra.mrb[0].mxu0 %v8510
      %v8607 = vpop.f32.mrb[0].mxu0
      %v8608 = vadd.f32 0.0, %v8607
      %v8609 = vpop.f32.mrb[0].mxu0
      %8610 = vmatprep.mubr.f32.mxu0 0.0
      %8611 = vmatmul.mubr.f32.gmra.mrb[0].mxu0 %v8512
      %v8612 = vpop.f32.mrb[0].mxu0
      %v8613 = vadd.f32 0.0, %v8612
      %v8614 = vpop.f32.mrb[0].mxu0
      %8615 = vmatprep.mubr.f32.mxu0 0.0
      %8616 = vmatmul.mubr.f32.gmra.mrb[0].mxu0 %v8514
      %v8617 = vpop.f32.mrb[0].mxu0
      %v8618 = vadd.f32 0.0, %v8617
      %v8619 = vpop.f32.mrb[0].mxu0
      %8620 = vdwg.mxu0
      %v8621 = vsel %vm645, %v8437, 0
      %v8623 = vsel %vm645, %v8439, 0
      %v8625 = vsel %vm645, %v8441, 0
      %v8627 = vsel %vm645, %v8443, 0
      %v8629 = vsel %vm645, %v8445, 0
      %v8631 = vsel %vm645, %v8447, 0
      %v8633 = vsel %vm645, %v8449, 0
      %v8635 = vsel %vm645, %v8451, 0
      %8637 = vmatprep.subr.mxu0 0.0
      %8638 = vmatpush1.msra.mxu0 %v8457
      %8639 = vmatprep.subr.mxu0 0.0
      %8640 = vmatpush1.msra.mxu0 0.0
      %8641 = vmatprep.subr.mxu0 0.0
      %8642 = vmatpush1.msra.mxu0 0.0
      %8643 = vmatprep.subr.mxu0 0.0
      %8644 = vmatpush1.msra.mxu0 0.0
      %8645 = vmatprep.subr.mxu0 0.0
      %8646 = vmatpush1.msra.mxu0 0.0
      %8647 = vmatprep.subr.mxu0 0.0
      %8648 = vmatpush1.msra.mxu0 0.0
      %8649 = vmatprep.subr.mxu0 0.0
      %8650 = vmatpush1.msra.mxu0 0.0
      %8651 = vmatprep.subr.mxu0 0.0
      %8652 = vmatpush1.msra.mxu0 0.0
      %8653 = vmatprep.subr.mxu0 0.0
      %8654 = vmatpush1.msra.mxu0 0.0
      %8655 = vmatprep.subr.mxu0 0.0
      %8656 = vmatpush1.msra.mxu0 0.0
      %8657 = vmatprep.subr.mxu0 0.0
      %8658 = vmatpush1.msra.mxu0 0.0
      %8659 = vmatprep.subr.mxu0 0.0
      %8660 = vmatpush1.msra.mxu0 0.0
      %8661 = vmatprep.subr.mxu0 0.0
      %8662 = vmatpush1.msra.mxu0 0.0
      %8663 = vmatprep.subr.mxu0 0.0
      %8664 = vmatpush1.msra.mxu0 0.0
      %8665 = vmatprep.subr.mxu0 0.0
      %8666 = vmatpush1.msra.mxu0 0.0
      %8667 = vmatprep.subr.mxu0 0.0
      %8668 = vmatpush1.msra.mxu0 0.0
      %8669 = vmatprep.subr.mxu0 0.0
      %8670 = vmatpush1.msra.mxu0 0.0
      %8671 = vmatprep.subr.mxu0 0.0
      %8672 = vmatpush1.msra.mxu0 0.0
      %8673 = vmatprep.subr.mxu0 0.0
      %8674 = vmatpush1.msra.mxu0 0.0
      %8675 = vmatprep.subr.mxu0 0.0
      %8676 = vmatpush1.msra.mxu0 0.0
      %8677 = vmatprep.subr.mxu0 0.0
      %8678 = vmatpush1.msra.mxu0 0.0
      %8679 = vmatprep.subr.mxu0 0.0
      %8680 = vmatpush1.msra.mxu0 0.0
      %8681 = vmatprep.subr.mxu0 0.0
      %8682 = vmatpush1.msra.mxu0 0.0
      %8683 = vmatprep.subr.mxu0 0.0
      %8684 = vmatpush1.msra.mxu0 0.0
      %8685 = vmatprep.subr.mxu0 0.0
      %8686 = vmatpush1.msra.mxu0 0.0
      %8687 = vmatprep.subr.mxu0 0.0
      %8688 = vmatpush1.msra.mxu0 0.0
      %8689 = vmatprep.subr.mxu0 0.0
      %8690 = vmatpush1.msra.mxu0 0.0
      %8691 = vmatprep.subr.mxu0 0.0
      %8692 = vmatpush1.msra.mxu0 0.0
      %8693 = vmatprep.subr.mxu0 0.0
      %8694 = vmatpush1.msra.mxu0 0.0
      %8695 = vmatprep.subr.mxu0 0.0
      %8696 = vmatpush1.msra.mxu0 0.0
      %8697 = vmatprep.subr.mxu0 0.0
      %8698 = vmatpush1.msra.mxu0 0.0
      %8699 = vmatprep.subr.mxu0 0.0
      %8700 = vmatpush1.msra.mxu0 0.0
      %8701 = vmatprep.mubr.f32.mxu0 0.0
      %8702 = vmatmul.mubr.f32.gmra.mrb[0].mxu0 %v8621
      %v8703 = vpop.f32.mrb[0].mxu0
      %v8704 = vadd.f32 %v8583, %v8703
      %v8705 = vpop.f32.mrb[0].mxu0
      %8706 = vmatprep.mubr.f32.mxu0 0.0
      %8707 = vmatmul.mubr.f32.gmra.mrb[0].mxu0 %v8623
      %v8708 = vpop.f32.mrb[0].mxu0
      %v8709 = vadd.f32 %v8588, %v8708
      %v8710 = vpop.f32.mrb[0].mxu0
      %8711 = vmatprep.mubr.f32.mxu0 0.0
      %8712 = vmatmul.mubr.f32.gmra.mrb[0].mxu0 %v8625
      %v8713 = vpop.f32.mrb[0].mxu0
      %v8714 = vadd.f32 %v8593, %v8713
      %v8715 = vpop.f32.mrb[0].mxu0
      %8716 = vmatprep.mubr.f32.mxu0 0.0
      %8717 = vmatmul.mubr.f32.gmra.mrb[0].mxu0 %v8627
      %v8718 = vpop.f32.mrb[0].mxu0
      %v8719 = vadd.f32 %v8598, %v8718
      %v8720 = vpop.f32.mrb[0].mxu0
      %8721 = vmatprep.mubr.f32.mxu0 0.0
      %8722 = vmatmul.mubr.f32.gmra.mrb[0].mxu0 %v8629
      %v8723 = vpop.f32.mrb[0].mxu0
      %v8724 = vadd.f32 %v8603, %v8723
      %v8725 = vpop.f32.mrb[0].mxu0
      %8726 = vmatprep.mubr.f32.mxu0 0.0
      %8727 = vmatmul.mubr.f32.gmra.mrb[0].mxu0 %v8631
      %v8728 = vpop.f32.mrb[0].mxu0
      %v8729 = vadd.f32 %v8608, %v8728
      %v8730 = vpop.f32.mrb[0].mxu0
      %8731 = vmatprep.mubr.f32.mxu0 0.0
      %8732 = vmatmul.mubr.f32.gmra.mrb[0].mxu0 %v8633
      %v8733 = vpop.f32.mrb[0].mxu0
      %v8734 = vadd.f32 %v8613, %v8733
      %v8735 = vpop.f32.mrb[0].mxu0
      %8736 = vmatprep.mubr.f32.mxu0 0.0
      %8737 = vmatmul.mubr.f32.gmra.mrb[0].mxu0 %v8635
      %v8738 = vpop.f32.mrb[0].mxu0
      %v8739 = vadd.f32 %v8618, %v8738
      %v8740 = vpop.f32.mrb[0].mxu0
      %8741 = vdwg.mxu0
      %v8742 = vrot.slane %v8437, 2
      %v8743 = vrot.slane %v8438, 2
      %v8744 = vsel %vm1057, %v8742, %v8743
      %v8745 = vrot.slane %v8439, 2
      %v8746 = vrot.slane %v8440, 2
      %v8747 = vsel %vm1057, %v8745, %v8746
      %v8748 = vrot.slane %v8441, 2
      %v8749 = vrot.slane %v8442, 2
      %v8750 = vsel %vm1057, %v8748, %v8749
      %v8751 = vrot.slane %v8443, 2
      %v8752 = vrot.slane %v8444, 2
      %v8753 = vsel %vm1057, %v8751, %v8752
      %v8754 = vrot.slane %v8445, 2
      %v8755 = vrot.slane %v8446, 2
      %v8756 = vsel %vm1057, %v8754, %v8755
      %v8757 = vrot.slane %v8447, 2
      %v8758 = vrot.slane %v8448, 2
      %v8759 = vsel %vm1057, %v8757, %v8758
      %v8760 = vrot.slane %v8449, 2
      %v8761 = vrot.slane %v8450, 2
      %v8762 = vsel %vm1057, %v8760, %v8761
      %v8763 = vrot.slane %v8451, 2
      %v8764 = vrot.slane %v8452, 2
      %v8765 = vsel %vm1057, %v8763, %v8764
      %s8766 = scalar_lea.vmem %s16, 16
      %v8767 = vld [vmem:[%s8766] sm:$0xff]
      %v8768 = vsel %vm645, %v8744, 0
      %v8770 = vsel %vm645, %v8747, 0
      %v8772 = vsel %vm645, %v8750, 0
      %v8774 = vsel %vm645, %v8753, 0
      %v8776 = vsel %vm645, %v8756, 0
      %v8778 = vsel %vm645, %v8759, 0
      %v8780 = vsel %vm645, %v8762, 0
      %v8782 = vsel %vm645, %v8765, 0
      %8784 = vmatprep.subr.mxu0 0.0
      %8785 = vmatpush1.msra.mxu0 %v8767
      %8786 = vmatprep.subr.mxu0 0.0
      %8787 = vmatpush1.msra.mxu0 0.0
      %8788 = vmatprep.subr.mxu0 0.0
      %8789 = vmatpush1.msra.mxu0 0.0
      %8790 = vmatprep.subr.mxu0 0.0
      %8791 = vmatpush1.msra.mxu0 0.0
      %8792 = vmatprep.subr.mxu0 0.0
      %8793 = vmatpush1.msra.mxu0 0.0
      %8794 = vmatprep.subr.mxu0 0.0
      %8795 = vmatpush1.msra.mxu0 0.0
      %8796 = vmatprep.subr.mxu0 0.0
      %8797 = vmatpush1.msra.mxu0 0.0
      %8798 = vmatprep.subr.mxu0 0.0
      %8799 = vmatpush1.msra.mxu0 0.0
      %8800 = vmatprep.subr.mxu0 0.0
      %8801 = vmatpush1.msra.mxu0 0.0
      %8802 = vmatprep.subr.mxu0 0.0
      %8803 = vmatpush1.msra.mxu0 0.0
      %8804 = vmatprep.subr.mxu0 0.0
      %8805 = vmatpush1.msra.mxu0 0.0
      %8806 = vmatprep.subr.mxu0 0.0
      %8807 = vmatpush1.msra.mxu0 0.0
      %8808 = vmatprep.subr.mxu0 0.0
      %8809 = vmatpush1.msra.mxu0 0.0
      %8810 = vmatprep.subr.mxu0 0.0
      %8811 = vmatpush1.msra.mxu0 0.0
      %8812 = vmatprep.subr.mxu0 0.0
      %8813 = vmatpush1.msra.mxu0 0.0
      %8814 = vmatprep.subr.mxu0 0.0
      %8815 = vmatpush1.msra.mxu0 0.0
      %8816 = vmatprep.subr.mxu0 0.0
      %8817 = vmatpush1.msra.mxu0 0.0
      %8818 = vmatprep.subr.mxu0 0.0
      %8819 = vmatpush1.msra.mxu0 0.0
      %8820 = vmatprep.subr.mxu0 0.0
      %8821 = vmatpush1.msra.mxu0 0.0
      %8822 = vmatprep.subr.mxu0 0.0
      %8823 = vmatpush1.msra.mxu0 0.0
      %8824 = vmatprep.subr.mxu0 0.0
      %8825 = vmatpush1.msra.mxu0 0.0
      %8826 = vmatprep.subr.mxu0 0.0
      %8827 = vmatpush1.msra.mxu0 0.0
      %8828 = vmatprep.subr.mxu0 0.0
      %8829 = vmatpush1.msra.mxu0 0.0
      %8830 = vmatprep.subr.mxu0 0.0
      %8831 = vmatpush1.msra.mxu0 0.0
      %8832 = vmatprep.subr.mxu0 0.0
      %8833 = vmatpush1.msra.mxu0 0.0
      %8834 = vmatprep.subr.mxu0 0.0
      %8835 = vmatpush1.msra.mxu0 0.0
      %8836 = vmatprep.subr.mxu0 0.0
      %8837 = vmatpush1.msra.mxu0 0.0
      %8838 = vmatprep.subr.mxu0 0.0
      %8839 = vmatpush1.msra.mxu0 0.0
      %8840 = vmatprep.subr.mxu0 0.0
      %8841 = vmatpush1.msra.mxu0 0.0
      %8842 = vmatprep.subr.mxu0 0.0
      %8843 = vmatpush1.msra.mxu0 0.0
      %8844 = vmatprep.subr.mxu0 0.0
      %8845 = vmatpush1.msra.mxu0 0.0
      %8846 = vmatprep.subr.mxu0 0.0
      %8847 = vmatpush1.msra.mxu0 0.0
      %8848 = vmatprep.mubr.f32.mxu0 0.0
      %8849 = vmatmul.mubr.f32.gmra.mrb[0].mxu0 %v8768
      %v8850 = vpop.f32.mrb[0].mxu0
      %v8851 = vadd.f32 0.0, %v8850
      %v8852 = vpop.f32.mrb[0].mxu0
      %8853 = vmatprep.mubr.f32.mxu0 0.0
      %8854 = vmatmul.mubr.f32.gmra.mrb[0].mxu0 %v8770
      %v8855 = vpop.f32.mrb[0].mxu0
      %v8856 = vadd.f32 0.0, %v8855
      %v8857 = vpop.f32.mrb[0].mxu0
      %8858 = vmatprep.mubr.f32.mxu0 0.0
      %8859 = vmatmul.mubr.f32.gmra.mrb[0].mxu0 %v8772
      %v8860 = vpop.f32.mrb[0].mxu0
      %v8861 = vadd.f32 0.0, %v8860
      %v8862 = vpop.f32.mrb[0].mxu0
      %8863 = vmatprep.mubr.f32.mxu0 0.0
      %8864 = vmatmul.mubr.f32.gmra.mrb[0].mxu0 %v8774
      %v8865 = vpop.f32.mrb[0].mxu0
      %v8866 = vadd.f32 0.0, %v8865
      %v8867 = vpop.f32.mrb[0].mxu0
      %8868 = vmatprep.mubr.f32.mxu0 0.0
      %8869 = vmatmul.mubr.f32.gmra.mrb[0].mxu0 %v8776
      %v8870 = vpop.f32.mrb[0].mxu0
      %v8871 = vadd.f32 0.0, %v8870
      %v8872 = vpop.f32.mrb[0].mxu0
      %8873 = vmatprep.mubr.f32.mxu0 0.0
      %8874 = vmatmul.mubr.f32.gmra.mrb[0].mxu0 %v8778
      %v8875 = vpop.f32.mrb[0].mxu0
      %v8876 = vadd.f32 0.0, %v8875
      %v8877 = vpop.f32.mrb[0].mxu0
      %8878 = vmatprep.mubr.f32.mxu0 0.0
      %8879 = vmatmul.mubr.f32.gmra.mrb[0].mxu0 %v8780
      %v8880 = vpop.f32.mrb[0].mxu0
      %v8881 = vadd.f32 0.0, %v8880
      %v8882 = vpop.f32.mrb[0].mxu0
      %8883 = vmatprep.mubr.f32.mxu0 0.0
      %8884 = vmatmul.mubr.f32.gmra.mrb[0].mxu0 %v8782
      %v8885 = vpop.f32.mrb[0].mxu0
      %v8886 = vadd.f32 0.0, %v8885
      %v8887 = vpop.f32.mrb[0].mxu0
      %8888 = vdwg.mxu0
      %v8889 = vadd.f32 %v8704, %v8851
      %v8890 = vadd.f32 %v8709, %v8856
      %v8891 = vadd.f32 %v8714, %v8861
      %v8892 = vadd.f32 %v8719, %v8866
      %v8893 = vadd.f32 %v8724, %v8871
      %v8894 = vadd.f32 %v8729, %v8876
      %v8895 = vadd.f32 %v8734, %v8881
      %v8896 = vadd.f32 %v8739, %v8886
      %s8897 = scalar_lea.vmem %s16, 24
      %v8898 = vld [vmem:[%s8897] sm:$0xff]
      %v8900 = vsel %vm645, %v8453, 0
      %8902 = vmatprep.subr.mxu0 0.0
      %8903 = vmatpush1.msra.mxu0 %v8898
      %8904 = vmatprep.subr.mxu0 0.0
      %8905 = vmatpush1.msra.mxu0 0.0
      %8906 = vmatprep.subr.mxu0 0.0
      %8907 = vmatpush1.msra.mxu0 0.0
      %8908 = vmatprep.subr.mxu0 0.0
      %8909 = vmatpush1.msra.mxu0 0.0
      %8910 = vmatprep.subr.mxu0 0.0
      %8911 = vmatpush1.msra.mxu0 0.0
      %8912 = vmatprep.subr.mxu0 0.0
      %8913 = vmatpush1.msra.mxu0 0.0
      %8914 = vmatprep.subr.mxu0 0.0
      %8915 = vmatpush1.msra.mxu0 0.0
      %8916 = vmatprep.subr.mxu0 0.0
      %8917 = vmatpush1.msra.mxu0 0.0
      %8918 = vmatprep.subr.mxu0 0.0
      %8919 = vmatpush1.msra.mxu0 0.0
      %8920 = vmatprep.subr.mxu0 0.0
      %8921 = vmatpush1.msra.mxu0 0.0
      %8922 = vmatprep.subr.mxu0 0.0
      %8923 = vmatpush1.msra.mxu0 0.0
      %8924 = vmatprep.subr.mxu0 0.0
      %8925 = vmatpush1.msra.mxu0 0.0
      %8926 = vmatprep.subr.mxu0 0.0
      %8927 = vmatpush1.msra.mxu0 0.0
      %8928 = vmatprep.subr.mxu0 0.0
      %8929 = vmatpush1.msra.mxu0 0.0
      %8930 = vmatprep.subr.mxu0 0.0
      %8931 = vmatpush1.msra.mxu0 0.0
      %8932 = vmatprep.subr.mxu0 0.0
      %8933 = vmatpush1.msra.mxu0 0.0
      %8934 = vmatprep.subr.mxu0 0.0
      %8935 = vmatpush1.msra.mxu0 0.0
      %8936 = vmatprep.subr.mxu0 0.0
      %8937 = vmatpush1.msra.mxu0 0.0
      %8938 = vmatprep.subr.mxu0 0.0
      %8939 = vmatpush1.msra.mxu0 0.0
      %8940 = vmatprep.subr.mxu0 0.0
      %8941 = vmatpush1.msra.mxu0 0.0
      %8942 = vmatprep.subr.mxu0 0.0
      %8943 = vmatpush1.msra.mxu0 0.0
      %8944 = vmatprep.subr.mxu0 0.0
      %8945 = vmatpush1.msra.mxu0 0.0
      %8946 = vmatprep.subr.mxu0 0.0
      %8947 = vmatpush1.msra.mxu0 0.0
      %8948 = vmatprep.subr.mxu0 0.0
      %8949 = vmatpush1.msra.mxu0 0.0
      %8950 = vmatprep.subr.mxu0 0.0
      %8951 = vmatpush1.msra.mxu0 0.0
      %8952 = vmatprep.subr.mxu0 0.0
      %8953 = vmatpush1.msra.mxu0 0.0
      %8954 = vmatprep.subr.mxu0 0.0
      %8955 = vmatpush1.msra.mxu0 0.0
      %8956 = vmatprep.subr.mxu0 0.0
      %8957 = vmatpush1.msra.mxu0 0.0
      %8958 = vmatprep.subr.mxu0 0.0
      %8959 = vmatpush1.msra.mxu0 0.0
      %8960 = vmatprep.subr.mxu0 0.0
      %8961 = vmatpush1.msra.mxu0 0.0
      %8962 = vmatprep.subr.mxu0 0.0
      %8963 = vmatpush1.msra.mxu0 0.0
      %8964 = vmatprep.subr.mxu0 0.0
      %8965 = vmatpush1.msra.mxu0 0.0
      %8966 = vmatprep.mubr.f32.mxu0 0.0
      %8967 = vmatmul.mubr.f32.gmra.mrb[0].mxu0 %v8623
      %v8968 = vpop.f32.mrb[0].mxu0
      %v8969 = vadd.f32 0.0, %v8968
      %v8970 = vpop.f32.mrb[0].mxu0
      %8971 = vmatprep.mubr.f32.mxu0 0.0
      %8972 = vmatmul.mubr.f32.gmra.mrb[0].mxu0 %v8625
      %v8973 = vpop.f32.mrb[0].mxu0
      %v8974 = vadd.f32 0.0, %v8973
      %v8975 = vpop.f32.mrb[0].mxu0
      %8976 = vmatprep.mubr.f32.mxu0 0.0
      %8977 = vmatmul.mubr.f32.gmra.mrb[0].mxu0 %v8627
      %v8978 = vpop.f32.mrb[0].mxu0
      %v8979 = vadd.f32 0.0, %v8978
      %v8980 = vpop.f32.mrb[0].mxu0
      %8981 = vmatprep.mubr.f32.mxu0 0.0
      %8982 = vmatmul.mubr.f32.gmra.mrb[0].mxu0 %v8629
      %v8983 = vpop.f32.mrb[0].mxu0
      %v8984 = vadd.f32 0.0, %v8983
      %v8985 = vpop.f32.mrb[0].mxu0
      %8986 = vmatprep.mubr.f32.mxu0 0.0
      %8987 = vmatmul.mubr.f32.gmra.mrb[0].mxu0 %v8631
      %v8988 = vpop.f32.mrb[0].mxu0
      %v8989 = vadd.f32 0.0, %v8988
      %v8990 = vpop.f32.mrb[0].mxu0
      %8991 = vmatprep.mubr.f32.mxu0 0.0
      %8992 = vmatmul.mubr.f32.gmra.mrb[0].mxu0 %v8633
      %v8993 = vpop.f32.mrb[0].mxu0
      %v8994 = vadd.f32 0.0, %v8993
      %v8995 = vpop.f32.mrb[0].mxu0
      %8996 = vmatprep.mubr.f32.mxu0 0.0
      %8997 = vmatmul.mubr.f32.gmra.mrb[0].mxu0 %v8635
      %v8998 = vpop.f32.mrb[0].mxu0
      %v8999 = vadd.f32 0.0, %v8998
      %v9000 = vpop.f32.mrb[0].mxu0
      %9001 = vmatprep.mubr.f32.mxu0 0.0
      %9002 = vmatmul.mubr.f32.gmra.mrb[0].mxu0 %v8900
      %v9003 = vpop.f32.mrb[0].mxu0
      %v9004 = vadd.f32 0.0, %v9003
      %v9005 = vpop.f32.mrb[0].mxu0
      %9006 = vdwg.mxu0
      %v9007 = vadd.f32 %v8889, %v8969
      %v9008 = vadd.f32 %v8890, %v8974
      %v9009 = vadd.f32 %v8891, %v8979
      %v9010 = vadd.f32 %v8892, %v8984
      %v9011 = vadd.f32 %v8893, %v8989
      %v9012 = vadd.f32 %v8894, %v8994
      %v9013 = vadd.f32 %v8895, %v8999
      %v9014 = vadd.f32 %v8896, %v9004
      %v9016 = vrot.slane %v8453, 1
      %v9017 = vrot.slane %v8454, 1
      %v9018 = vsel %vm781, %v9016, %v9017
      %s9019 = scalar_lea.vmem %s16, 32
      %v9020 = vld [vmem:[%s9019] sm:$0xff]
      %v9021 = vsel %vm645, %v9018, 0
      %9023 = vmatprep.subr.mxu0 0.0
      %9024 = vmatpush1.msra.mxu0 %v9020
      %9025 = vmatprep.subr.mxu0 0.0
      %9026 = vmatpush1.msra.mxu0 0.0
      %9027 = vmatprep.subr.mxu0 0.0
      %9028 = vmatpush1.msra.mxu0 0.0
      %9029 = vmatprep.subr.mxu0 0.0
      %9030 = vmatpush1.msra.mxu0 0.0
      %9031 = vmatprep.subr.mxu0 0.0
      %9032 = vmatpush1.msra.mxu0 0.0
      %9033 = vmatprep.subr.mxu0 0.0
      %9034 = vmatpush1.msra.mxu0 0.0
      %9035 = vmatprep.subr.mxu0 0.0
      %9036 = vmatpush1.msra.mxu0 0.0
      %9037 = vmatprep.subr.mxu0 0.0
      %9038 = vmatpush1.msra.mxu0 0.0
      %9039 = vmatprep.subr.mxu0 0.0
      %9040 = vmatpush1.msra.mxu0 0.0
      %9041 = vmatprep.subr.mxu0 0.0
      %9042 = vmatpush1.msra.mxu0 0.0
      %9043 = vmatprep.subr.mxu0 0.0
      %9044 = vmatpush1.msra.mxu0 0.0
      %9045 = vmatprep.subr.mxu0 0.0
      %9046 = vmatpush1.msra.mxu0 0.0
      %9047 = vmatprep.subr.mxu0 0.0
      %9048 = vmatpush1.msra.mxu0 0.0
      %9049 = vmatprep.subr.mxu0 0.0
      %9050 = vmatpush1.msra.mxu0 0.0
      %9051 = vmatprep.subr.mxu0 0.0
      %9052 = vmatpush1.msra.mxu0 0.0
      %9053 = vmatprep.subr.mxu0 0.0
      %9054 = vmatpush1.msra.mxu0 0.0
      %9055 = vmatprep.subr.mxu0 0.0
      %9056 = vmatpush1.msra.mxu0 0.0
      %9057 = vmatprep.subr.mxu0 0.0
      %9058 = vmatpush1.msra.mxu0 0.0
      %9059 = vmatprep.subr.mxu0 0.0
      %9060 = vmatpush1.msra.mxu0 0.0
      %9061 = vmatprep.subr.mxu0 0.0
      %9062 = vmatpush1.msra.mxu0 0.0
      %9063 = vmatprep.subr.mxu0 0.0
      %9064 = vmatpush1.msra.mxu0 0.0
      %9065 = vmatprep.subr.mxu0 0.0
      %9066 = vmatpush1.msra.mxu0 0.0
      %9067 = vmatprep.subr.mxu0 0.0
      %9068 = vmatpush1.msra.mxu0 0.0
      %9069 = vmatprep.subr.mxu0 0.0
      %9070 = vmatpush1.msra.mxu0 0.0
      %9071 = vmatprep.subr.mxu0 0.0
      %9072 = vmatpush1.msra.mxu0 0.0
      %9073 = vmatprep.subr.mxu0 0.0
      %9074 = vmatpush1.msra.mxu0 0.0
      %9075 = vmatprep.subr.mxu0 0.0
      %9076 = vmatpush1.msra.mxu0 0.0
      %9077 = vmatprep.subr.mxu0 0.0
      %9078 = vmatpush1.msra.mxu0 0.0
      %9079 = vmatprep.subr.mxu0 0.0
      %9080 = vmatpush1.msra.mxu0 0.0
      %9081 = vmatprep.subr.mxu0 0.0
      %9082 = vmatpush1.msra.mxu0 0.0
      %9083 = vmatprep.subr.mxu0 0.0
      %9084 = vmatpush1.msra.mxu0 0.0
      %9085 = vmatprep.subr.mxu0 0.0
      %9086 = vmatpush1.msra.mxu0 0.0
      %9087 = vmatprep.mubr.f32.mxu0 0.0
      %9088 = vmatmul.mubr.f32.gmra.mrb[0].mxu0 %v8502
      %v9089 = vpop.f32.mrb[0].mxu0
      %v9090 = vadd.f32 0.0, %v9089
      %v9091 = vpop.f32.mrb[0].mxu0
      %9092 = vmatprep.mubr.f32.mxu0 0.0
      %9093 = vmatmul.mubr.f32.gmra.mrb[0].mxu0 %v8504
      %v9094 = vpop.f32.mrb[0].mxu0
      %v9095 = vadd.f32 0.0, %v9094
      %v9096 = vpop.f32.mrb[0].mxu0
      %9097 = vmatprep.mubr.f32.mxu0 0.0
      %9098 = vmatmul.mubr.f32.gmra.mrb[0].mxu0 %v8506
      %v9099 = vpop.f32.mrb[0].mxu0
      %v9100 = vadd.f32 0.0, %v9099
      %v9101 = vpop.f32.mrb[0].mxu0
      %9102 = vmatprep.mubr.f32.mxu0 0.0
      %9103 = vmatmul.mubr.f32.gmra.mrb[0].mxu0 %v8508
      %v9104 = vpop.f32.mrb[0].mxu0
      %v9105 = vadd.f32 0.0, %v9104
      %v9106 = vpop.f32.mrb[0].mxu0
      %9107 = vmatprep.mubr.f32.mxu0 0.0
      %9108 = vmatmul.mubr.f32.gmra.mrb[0].mxu0 %v8510
      %v9109 = vpop.f32.mrb[0].mxu0
      %v9110 = vadd.f32 0.0, %v9109
      %v9111 = vpop.f32.mrb[0].mxu0
      %9112 = vmatprep.mubr.f32.mxu0 0.0
      %9113 = vmatmul.mubr.f32.gmra.mrb[0].mxu0 %v8512
      %v9114 = vpop.f32.mrb[0].mxu0
      %v9115 = vadd.f32 0.0, %v9114
      %v9116 = vpop.f32.mrb[0].mxu0
      %9117 = vmatprep.mubr.f32.mxu0 0.0
      %9118 = vmatmul.mubr.f32.gmra.mrb[0].mxu0 %v8514
      %v9119 = vpop.f32.mrb[0].mxu0
      %v9120 = vadd.f32 0.0, %v9119
      %v9121 = vpop.f32.mrb[0].mxu0
      %9122 = vmatprep.mubr.f32.mxu0 0.0
      %9123 = vmatmul.mubr.f32.gmra.mrb[0].mxu0 %v9021
      %v9124 = vpop.f32.mrb[0].mxu0
      %v9125 = vadd.f32 0.0, %v9124
      %v9126 = vpop.f32.mrb[0].mxu0
      %9127 = vdwg.mxu0
      %v9128 = vadd.f32 %v9007, %v9090
      %v9129 = vadd.f32 %v9008, %v9095
      %v9130 = vadd.f32 %v9009, %v9100
      %v9131 = vadd.f32 %v9010, %v9105
      %v9132 = vadd.f32 %v9011, %v9110
      %v9133 = vadd.f32 %v9012, %v9115
      %v9134 = vadd.f32 %v9013, %v9120
      %v9135 = vadd.f32 %v9014, %v9125
      %v9136 = vrot.slane %v8453, 2
      %v9137 = vrot.slane %v8454, 2
      %v9138 = vsel %vm1057, %v9136, %v9137
      %s9139 = scalar_lea.vmem %s16, 40
      %v9140 = vld [vmem:[%s9139] sm:$0xff]
      %v9141 = vsel %vm645, %v9138, 0
      %9143 = vmatprep.subr.mxu0 0.0
      %9144 = vmatpush1.msra.mxu0 %v9140
      %9145 = vmatprep.subr.mxu0 0.0
      %9146 = vmatpush1.msra.mxu0 0.0
      %9147 = vmatprep.subr.mxu0 0.0
      %9148 = vmatpush1.msra.mxu0 0.0
      %9149 = vmatprep.subr.mxu0 0.0
      %9150 = vmatpush1.msra.mxu0 0.0
      %9151 = vmatprep.subr.mxu0 0.0
      %9152 = vmatpush1.msra.mxu0 0.0
      %9153 = vmatprep.subr.mxu0 0.0
      %9154 = vmatpush1.msra.mxu0 0.0
      %9155 = vmatprep.subr.mxu0 0.0
      %9156 = vmatpush1.msra.mxu0 0.0
      %9157 = vmatprep.subr.mxu0 0.0
      %9158 = vmatpush1.msra.mxu0 0.0
      %9159 = vmatprep.subr.mxu0 0.0
      %9160 = vmatpush1.msra.mxu0 0.0
      %9161 = vmatprep.subr.mxu0 0.0
      %9162 = vmatpush1.msra.mxu0 0.0
      %9163 = vmatprep.subr.mxu0 0.0
      %9164 = vmatpush1.msra.mxu0 0.0
      %9165 = vmatprep.subr.mxu0 0.0
      %9166 = vmatpush1.msra.mxu0 0.0
      %9167 = vmatprep.subr.mxu0 0.0
      %9168 = vmatpush1.msra.mxu0 0.0
      %9169 = vmatprep.subr.mxu0 0.0
      %9170 = vmatpush1.msra.mxu0 0.0
      %9171 = vmatprep.subr.mxu0 0.0
      %9172 = vmatpush1.msra.mxu0 0.0
      %9173 = vmatprep.subr.mxu0 0.0
      %9174 = vmatpush1.msra.mxu0 0.0
      %9175 = vmatprep.subr.mxu0 0.0
      %9176 = vmatpush1.msra.mxu0 0.0
      %9177 = vmatprep.subr.mxu0 0.0
      %9178 = vmatpush1.msra.mxu0 0.0
      %9179 = vmatprep.subr.mxu0 0.0
      %9180 = vmatpush1.msra.mxu0 0.0
      %9181 = vmatprep.subr.mxu0 0.0
      %9182 = vmatpush1.msra.mxu0 0.0
      %9183 = vmatprep.subr.mxu0 0.0
      %9184 = vmatpush1.msra.mxu0 0.0
      %9185 = vmatprep.subr.mxu0 0.0
      %9186 = vmatpush1.msra.mxu0 0.0
      %9187 = vmatprep.subr.mxu0 0.0
      %9188 = vmatpush1.msra.mxu0 0.0
      %9189 = vmatprep.subr.mxu0 0.0
      %9190 = vmatpush1.msra.mxu0 0.0
      %9191 = vmatprep.subr.mxu0 0.0
      %9192 = vmatpush1.msra.mxu0 0.0
      %9193 = vmatprep.subr.mxu0 0.0
      %9194 = vmatpush1.msra.mxu0 0.0
      %9195 = vmatprep.subr.mxu0 0.0
      %9196 = vmatpush1.msra.mxu0 0.0
      %9197 = vmatprep.subr.mxu0 0.0
      %9198 = vmatpush1.msra.mxu0 0.0
      %9199 = vmatprep.subr.mxu0 0.0
      %9200 = vmatpush1.msra.mxu0 0.0
      %9201 = vmatprep.subr.mxu0 0.0
      %9202 = vmatpush1.msra.mxu0 0.0
      %9203 = vmatprep.subr.mxu0 0.0
      %9204 = vmatpush1.msra.mxu0 0.0
      %9205 = vmatprep.subr.mxu0 0.0
      %9206 = vmatpush1.msra.mxu0 0.0
      %9207 = vmatprep.mubr.f32.mxu0 0.0
      %9208 = vmatmul.mubr.f32.gmra.mrb[0].mxu0 %v8770
      %v9209 = vpop.f32.mrb[0].mxu0
      %v9210 = vadd.f32 0.0, %v9209
      %v9211 = vpop.f32.mrb[0].mxu0
      %9212 = vmatprep.mubr.f32.mxu0 0.0
      %9213 = vmatmul.mubr.f32.gmra.mrb[0].mxu0 %v8772
      %v9214 = vpop.f32.mrb[0].mxu0
      %v9215 = vadd.f32 0.0, %v9214
      %v9216 = vpop.f32.mrb[0].mxu0
      %9217 = vmatprep.mubr.f32.mxu0 0.0
      %9218 = vmatmul.mubr.f32.gmra.mrb[0].mxu0 %v8774
      %v9219 = vpop.f32.mrb[0].mxu0
      %v9220 = vadd.f32 0.0, %v9219
      %v9221 = vpop.f32.mrb[0].mxu0
      %9222 = vmatprep.mubr.f32.mxu0 0.0
      %9223 = vmatmul.mubr.f32.gmra.mrb[0].mxu0 %v8776
      %v9224 = vpop.f32.mrb[0].mxu0
      %v9225 = vadd.f32 0.0, %v9224
      %v9226 = vpop.f32.mrb[0].mxu0
      %9227 = vmatprep.mubr.f32.mxu0 0.0
      %9228 = vmatmul.mubr.f32.gmra.mrb[0].mxu0 %v8778
      %v9229 = vpop.f32.mrb[0].mxu0
      %v9230 = vadd.f32 0.0, %v9229
      %v9231 = vpop.f32.mrb[0].mxu0
      %9232 = vmatprep.mubr.f32.mxu0 0.0
      %9233 = vmatmul.mubr.f32.gmra.mrb[0].mxu0 %v8780
      %v9234 = vpop.f32.mrb[0].mxu0
      %v9235 = vadd.f32 0.0, %v9234
      %v9236 = vpop.f32.mrb[0].mxu0
      %9237 = vmatprep.mubr.f32.mxu0 0.0
      %9238 = vmatmul.mubr.f32.gmra.mrb[0].mxu0 %v8782
      %v9239 = vpop.f32.mrb[0].mxu0
      %v9240 = vadd.f32 0.0, %v9239
      %v9241 = vpop.f32.mrb[0].mxu0
      %9242 = vmatprep.mubr.f32.mxu0 0.0
      %9243 = vmatmul.mubr.f32.gmra.mrb[0].mxu0 %v9141
      %v9244 = vpop.f32.mrb[0].mxu0
      %v9245 = vadd.f32 0.0, %v9244
      %v9246 = vpop.f32.mrb[0].mxu0
      %9247 = vdwg.mxu0
      %v9248 = vadd.f32 %v9128, %v9210
      %v9249 = vadd.f32 %v9129, %v9215
      %v9250 = vadd.f32 %v9130, %v9220
      %v9251 = vadd.f32 %v9131, %v9225
      %v9252 = vadd.f32 %v9132, %v9230
      %v9253 = vadd.f32 %v9133, %v9235
      %v9254 = vadd.f32 %v9134, %v9240
      %v9255 = vadd.f32 %v9135, %v9245
      %s9256 = scalar_lea.vmem %s16, 48
      %v9257 = vld [vmem:[%s9256] sm:$0xff]
      %v9259 = vsel %vm645, %v8455, 0
      %9261 = vmatprep.subr.mxu0 0.0
      %9262 = vmatpush1.msra.mxu0 %v9257
      %9263 = vmatprep.subr.mxu0 0.0
      %9264 = vmatpush1.msra.mxu0 0.0
      %9265 = vmatprep.subr.mxu0 0.0
      %9266 = vmatpush1.msra.mxu0 0.0
      %9267 = vmatprep.subr.mxu0 0.0
      %9268 = vmatpush1.msra.mxu0 0.0
      %9269 = vmatprep.subr.mxu0 0.0
      %9270 = vmatpush1.msra.mxu0 0.0
      %9271 = vmatprep.subr.mxu0 0.0
      %9272 = vmatpush1.msra.mxu0 0.0
      %9273 = vmatprep.subr.mxu0 0.0
      %9274 = vmatpush1.msra.mxu0 0.0
      %9275 = vmatprep.subr.mxu0 0.0
      %9276 = vmatpush1.msra.mxu0 0.0
      %9277 = vmatprep.subr.mxu0 0.0
      %9278 = vmatpush1.msra.mxu0 0.0
      %9279 = vmatprep.subr.mxu0 0.0
      %9280 = vmatpush1.msra.mxu0 0.0
      %9281 = vmatprep.subr.mxu0 0.0
      %9282 = vmatpush1.msra.mxu0 0.0
      %9283 = vmatprep.subr.mxu0 0.0
      %9284 = vmatpush1.msra.mxu0 0.0
      %9285 = vmatprep.subr.mxu0 0.0
      %9286 = vmatpush1.msra.mxu0 0.0
      %9287 = vmatprep.subr.mxu0 0.0
      %9288 = vmatpush1.msra.mxu0 0.0
      %9289 = vmatprep.subr.mxu0 0.0
      %9290 = vmatpush1.msra.mxu0 0.0
      %9291 = vmatprep.subr.mxu0 0.0
      %9292 = vmatpush1.msra.mxu0 0.0
      %9293 = vmatprep.subr.mxu0 0.0
      %9294 = vmatpush1.msra.mxu0 0.0
      %9295 = vmatprep.subr.mxu0 0.0
      %9296 = vmatpush1.msra.mxu0 0.0
      %9297 = vmatprep.subr.mxu0 0.0
      %9298 = vmatpush1.msra.mxu0 0.0
      %9299 = vmatprep.subr.mxu0 0.0
      %9300 = vmatpush1.msra.mxu0 0.0
      %9301 = vmatprep.subr.mxu0 0.0
      %9302 = vmatpush1.msra.mxu0 0.0
      %9303 = vmatprep.subr.mxu0 0.0
      %9304 = vmatpush1.msra.mxu0 0.0
      %9305 = vmatprep.subr.mxu0 0.0
      %9306 = vmatpush1.msra.mxu0 0.0
      %9307 = vmatprep.subr.mxu0 0.0
      %9308 = vmatpush1.msra.mxu0 0.0
      %9309 = vmatprep.subr.mxu0 0.0
      %9310 = vmatpush1.msra.mxu0 0.0
      %9311 = vmatprep.subr.mxu0 0.0
      %9312 = vmatpush1.msra.mxu0 0.0
      %9313 = vmatprep.subr.mxu0 0.0
      %9314 = vmatpush1.msra.mxu0 0.0
      %9315 = vmatprep.subr.mxu0 0.0
      %9316 = vmatpush1.msra.mxu0 0.0
      %9317 = vmatprep.subr.mxu0 0.0
      %9318 = vmatpush1.msra.mxu0 0.0
      %9319 = vmatprep.subr.mxu0 0.0
      %9320 = vmatpush1.msra.mxu0 0.0
      %9321 = vmatprep.subr.mxu0 0.0
      %9322 = vmatpush1.msra.mxu0 0.0
      %9323 = vmatprep.subr.mxu0 0.0
      %9324 = vmatpush1.msra.mxu0 0.0
      %9325 = vmatprep.mubr.f32.mxu0 0.0
      %9326 = vmatmul.mubr.f32.gmra.mrb[0].mxu0 %v8625
      %v9327 = vpop.f32.mrb[0].mxu0
      %v9328 = vadd.f32 0.0, %v9327
      %v9329 = vpop.f32.mrb[0].mxu0
      %9330 = vmatprep.mubr.f32.mxu0 0.0
      %9331 = vmatmul.mubr.f32.gmra.mrb[0].mxu0 %v8627
      %v9332 = vpop.f32.mrb[0].mxu0
      %v9333 = vadd.f32 0.0, %v9332
      %v9334 = vpop.f32.mrb[0].mxu0
      %9335 = vmatprep.mubr.f32.mxu0 0.0
      %9336 = vmatmul.mubr.f32.gmra.mrb[0].mxu0 %v8629
      %v9337 = vpop.f32.mrb[0].mxu0
      %v9338 = vadd.f32 0.0, %v9337
      %v9339 = vpop.f32.mrb[0].mxu0
      %9340 = vmatprep.mubr.f32.mxu0 0.0
      %9341 = vmatmul.mubr.f32.gmra.mrb[0].mxu0 %v8631
      %v9342 = vpop.f32.mrb[0].mxu0
      %v9343 = vadd.f32 0.0, %v9342
      %v9344 = vpop.f32.mrb[0].mxu0
      %9345 = vmatprep.mubr.f32.mxu0 0.0
      %9346 = vmatmul.mubr.f32.gmra.mrb[0].mxu0 %v8633
      %v9347 = vpop.f32.mrb[0].mxu0
      %v9348 = vadd.f32 0.0, %v9347
      %v9349 = vpop.f32.mrb[0].mxu0
      %9350 = vmatprep.mubr.f32.mxu0 0.0
      %9351 = vmatmul.mubr.f32.gmra.mrb[0].mxu0 %v8635
      %v9352 = vpop.f32.mrb[0].mxu0
      %v9353 = vadd.f32 0.0, %v9352
      %v9354 = vpop.f32.mrb[0].mxu0
      %9355 = vmatprep.mubr.f32.mxu0 0.0
      %9356 = vmatmul.mubr.f32.gmra.mrb[0].mxu0 %v8900
      %v9357 = vpop.f32.mrb[0].mxu0
      %v9358 = vadd.f32 0.0, %v9357
      %v9359 = vpop.f32.mrb[0].mxu0
      %9360 = vmatprep.mubr.f32.mxu0 0.0
      %9361 = vmatmul.mubr.f32.gmra.mrb[0].mxu0 %v9259
      %v9362 = vpop.f32.mrb[0].mxu0
      %v9363 = vadd.f32 0.0, %v9362
      %v9364 = vpop.f32.mrb[0].mxu0
      %9365 = vdwg.mxu0
      %v9366 = vadd.f32 %v9248, %v9328
      %v9367 = vadd.f32 %v9249, %v9333
      %v9368 = vadd.f32 %v9250, %v9338
      %v9369 = vadd.f32 %v9251, %v9343
      %v9370 = vadd.f32 %v9252, %v9348
      %v9371 = vadd.f32 %v9253, %v9353
      %v9372 = vadd.f32 %v9254, %v9358
      %v9373 = vadd.f32 %v9255, %v9363
      %v9375 = vrot.slane %v8455, 1
      %v9376 = vrot.slane %v8456, 1
      %v9377 = vsel %vm781, %v9375, %v9376
      %s9378 = scalar_lea.vmem %s16, 56
      %v9379 = vld [vmem:[%s9378] sm:$0xff]
      %v9380 = vsel %vm645, %v9377, 0
      %9382 = vmatprep.subr.mxu0 0.0
      %9383 = vmatpush1.msra.mxu0 %v9379
      %9384 = vmatprep.subr.mxu0 0.0
      %9385 = vmatpush1.msra.mxu0 0.0
      %9386 = vmatprep.subr.mxu0 0.0
      %9387 = vmatpush1.msra.mxu0 0.0
      %9388 = vmatprep.subr.mxu0 0.0
      %9389 = vmatpush1.msra.mxu0 0.0
      %9390 = vmatprep.subr.mxu0 0.0
      %9391 = vmatpush1.msra.mxu0 0.0
      %9392 = vmatprep.subr.mxu0 0.0
      %9393 = vmatpush1.msra.mxu0 0.0
      %9394 = vmatprep.subr.mxu0 0.0
      %9395 = vmatpush1.msra.mxu0 0.0
      %9396 = vmatprep.subr.mxu0 0.0
      %9397 = vmatpush1.msra.mxu0 0.0
      %9398 = vmatprep.subr.mxu0 0.0
      %9399 = vmatpush1.msra.mxu0 0.0
      %9400 = vmatprep.subr.mxu0 0.0
      %9401 = vmatpush1.msra.mxu0 0.0
      %9402 = vmatprep.subr.mxu0 0.0
      %9403 = vmatpush1.msra.mxu0 0.0
      %9404 = vmatprep.subr.mxu0 0.0
      %9405 = vmatpush1.msra.mxu0 0.0
      %9406 = vmatprep.subr.mxu0 0.0
      %9407 = vmatpush1.msra.mxu0 0.0
      %9408 = vmatprep.subr.mxu0 0.0
      %9409 = vmatpush1.msra.mxu0 0.0
      %9410 = vmatprep.subr.mxu0 0.0
      %9411 = vmatpush1.msra.mxu0 0.0
      %9412 = vmatprep.subr.mxu0 0.0
      %9413 = vmatpush1.msra.mxu0 0.0
      %9414 = vmatprep.subr.mxu0 0.0
      %9415 = vmatpush1.msra.mxu0 0.0
      %9416 = vmatprep.subr.mxu0 0.0
      %9417 = vmatpush1.msra.mxu0 0.0
      %9418 = vmatprep.subr.mxu0 0.0
      %9419 = vmatpush1.msra.mxu0 0.0
      %9420 = vmatprep.subr.mxu0 0.0
      %9421 = vmatpush1.msra.mxu0 0.0
      %9422 = vmatprep.subr.mxu0 0.0
      %9423 = vmatpush1.msra.mxu0 0.0
      %9424 = vmatprep.subr.mxu0 0.0
      %9425 = vmatpush1.msra.mxu0 0.0
      %9426 = vmatprep.subr.mxu0 0.0
      %9427 = vmatpush1.msra.mxu0 0.0
      %9428 = vmatprep.subr.mxu0 0.0
      %9429 = vmatpush1.msra.mxu0 0.0
      %9430 = vmatprep.subr.mxu0 0.0
      %9431 = vmatpush1.msra.mxu0 0.0
      %9432 = vmatprep.subr.mxu0 0.0
      %9433 = vmatpush1.msra.mxu0 0.0
      %9434 = vmatprep.subr.mxu0 0.0
      %9435 = vmatpush1.msra.mxu0 0.0
      %9436 = vmatprep.subr.mxu0 0.0
      %9437 = vmatpush1.msra.mxu0 0.0
      %9438 = vmatprep.subr.mxu0 0.0
      %9439 = vmatpush1.msra.mxu0 0.0
      %9440 = vmatprep.subr.mxu0 0.0
      %9441 = vmatpush1.msra.mxu0 0.0
      %9442 = vmatprep.subr.mxu0 0.0
      %9443 = vmatpush1.msra.mxu0 0.0
      %9444 = vmatprep.subr.mxu0 0.0
      %9445 = vmatpush1.msra.mxu0 0.0
      %9446 = vmatprep.mubr.f32.mxu0 0.0
      %9447 = vmatmul.mubr.f32.gmra.mrb[0].mxu0 %v8504
      %v9448 = vpop.f32.mrb[0].mxu0
      %v9449 = vadd.f32 0.0, %v9448
      %v9450 = vpop.f32.mrb[0].mxu0
      %9451 = vmatprep.mubr.f32.mxu0 0.0
      %9452 = vmatmul.mubr.f32.gmra.mrb[0].mxu0 %v8506
      %v9453 = vpop.f32.mrb[0].mxu0
      %v9454 = vadd.f32 0.0, %v9453
      %v9455 = vpop.f32.mrb[0].mxu0
      %9456 = vmatprep.mubr.f32.mxu0 0.0
      %9457 = vmatmul.mubr.f32.gmra.mrb[0].mxu0 %v8508
      %v9458 = vpop.f32.mrb[0].mxu0
      %v9459 = vadd.f32 0.0, %v9458
      %v9460 = vpop.f32.mrb[0].mxu0
      %9461 = vmatprep.mubr.f32.mxu0 0.0
      %9462 = vmatmul.mubr.f32.gmra.mrb[0].mxu0 %v8510
      %v9463 = vpop.f32.mrb[0].mxu0
      %v9464 = vadd.f32 0.0, %v9463
      %v9465 = vpop.f32.mrb[0].mxu0
      %9466 = vmatprep.mubr.f32.mxu0 0.0
      %9467 = vmatmul.mubr.f32.gmra.mrb[0].mxu0 %v8512
      %v9468 = vpop.f32.mrb[0].mxu0
      %v9469 = vadd.f32 0.0, %v9468
      %v9470 = vpop.f32.mrb[0].mxu0
      %9471 = vmatprep.mubr.f32.mxu0 0.0
      %9472 = vmatmul.mubr.f32.gmra.mrb[0].mxu0 %v8514
      %v9473 = vpop.f32.mrb[0].mxu0
      %v9474 = vadd.f32 0.0, %v9473
      %v9475 = vpop.f32.mrb[0].mxu0
      %9476 = vmatprep.mubr.f32.mxu0 0.0
      %9477 = vmatmul.mubr.f32.gmra.mrb[0].mxu0 %v9021
      %v9478 = vpop.f32.mrb[0].mxu0
      %v9479 = vadd.f32 0.0, %v9478
      %v9480 = vpop.f32.mrb[0].mxu0
      %9481 = vmatprep.mubr.f32.mxu0 0.0
      %9482 = vmatmul.mubr.f32.gmra.mrb[0].mxu0 %v9380
      %v9483 = vpop.f32.mrb[0].mxu0
      %v9484 = vadd.f32 0.0, %v9483
      %v9485 = vpop.f32.mrb[0].mxu0
      %9486 = vdwg.mxu0
      %v9487 = vadd.f32 %v9366, %v9449
      %v9488 = vadd.f32 %v9367, %v9454
      %v9489 = vadd.f32 %v9368, %v9459
      %v9490 = vadd.f32 %v9369, %v9464
      %v9491 = vadd.f32 %v9370, %v9469
      %v9492 = vadd.f32 %v9371, %v9474
      %v9493 = vadd.f32 %v9372, %v9479
      %v9494 = vadd.f32 %v9373, %v9484
      %v9495 = vrot.slane %v8455, 2
      %v9496 = vrot.slane %v8456, 2
      %v9497 = vsel %vm1057, %v9495, %v9496
      %s9498 = scalar_lea.vmem %s16, 64
      %v9499 = vld [vmem:[%s9498] sm:$0xff]
      %v9500 = vsel %vm645, %v9497, 0
      %9502 = vmatprep.subr.mxu0 0.0
      %9503 = vmatpush1.msra.mxu0 %v9499
      %9504 = vmatprep.subr.mxu0 0.0
      %9505 = vmatpush1.msra.mxu0 0.0
      %9506 = vmatprep.subr.mxu0 0.0
      %9507 = vmatpush1.msra.mxu0 0.0
      %9508 = vmatprep.subr.mxu0 0.0
      %9509 = vmatpush1.msra.mxu0 0.0
      %9510 = vmatprep.subr.mxu0 0.0
      %9511 = vmatpush1.msra.mxu0 0.0
      %9512 = vmatprep.subr.mxu0 0.0
      %9513 = vmatpush1.msra.mxu0 0.0
      %9514 = vmatprep.subr.mxu0 0.0
      %9515 = vmatpush1.msra.mxu0 0.0
      %9516 = vmatprep.subr.mxu0 0.0
      %9517 = vmatpush1.msra.mxu0 0.0
      %9518 = vmatprep.subr.mxu0 0.0
      %9519 = vmatpush1.msra.mxu0 0.0
      %9520 = vmatprep.subr.mxu0 0.0
      %9521 = vmatpush1.msra.mxu0 0.0
      %9522 = vmatprep.subr.mxu0 0.0
      %9523 = vmatpush1.msra.mxu0 0.0
      %9524 = vmatprep.subr.mxu0 0.0
      %9525 = vmatpush1.msra.mxu0 0.0
      %9526 = vmatprep.subr.mxu0 0.0
      %9527 = vmatpush1.msra.mxu0 0.0
      %9528 = vmatprep.subr.mxu0 0.0
      %9529 = vmatpush1.msra.mxu0 0.0
      %9530 = vmatprep.subr.mxu0 0.0
      %9531 = vmatpush1.msra.mxu0 0.0
      %9532 = vmatprep.subr.mxu0 0.0
      %9533 = vmatpush1.msra.mxu0 0.0
      %9534 = vmatprep.subr.mxu0 0.0
      %9535 = vmatpush1.msra.mxu0 0.0
      %9536 = vmatprep.subr.mxu0 0.0
      %9537 = vmatpush1.msra.mxu0 0.0
      %9538 = vmatprep.subr.mxu0 0.0
      %9539 = vmatpush1.msra.mxu0 0.0
      %9540 = vmatprep.subr.mxu0 0.0
      %9541 = vmatpush1.msra.mxu0 0.0
      %9542 = vmatprep.subr.mxu0 0.0
      %9543 = vmatpush1.msra.mxu0 0.0
      %9544 = vmatprep.subr.mxu0 0.0
      %9545 = vmatpush1.msra.mxu0 0.0
      %9546 = vmatprep.subr.mxu0 0.0
      %9547 = vmatpush1.msra.mxu0 0.0
      %9548 = vmatprep.subr.mxu0 0.0
      %9549 = vmatpush1.msra.mxu0 0.0
      %9550 = vmatprep.subr.mxu0 0.0
      %9551 = vmatpush1.msra.mxu0 0.0
      %9552 = vmatprep.subr.mxu0 0.0
      %9553 = vmatpush1.msra.mxu0 0.0
      %9554 = vmatprep.subr.mxu0 0.0
      %9555 = vmatpush1.msra.mxu0 0.0
      %9556 = vmatprep.subr.mxu0 0.0
      %9557 = vmatpush1.msra.mxu0 0.0
      %9558 = vmatprep.subr.mxu0 0.0
      %9559 = vmatpush1.msra.mxu0 0.0
      %9560 = vmatprep.subr.mxu0 0.0
      %9561 = vmatpush1.msra.mxu0 0.0
      %9562 = vmatprep.subr.mxu0 0.0
      %9563 = vmatpush1.msra.mxu0 0.0
      %9564 = vmatprep.subr.mxu0 0.0
      %9565 = vmatpush1.msra.mxu0 0.0
      %9566 = vmatprep.mubr.f32.mxu0 0.0
      %9567 = vmatmul.mubr.f32.gmra.mrb[0].mxu0 %v8772
      %v9568 = vpop.f32.mrb[0].mxu0
      %v9569 = vadd.f32 0.0, %v9568
      %v9570 = vpop.f32.mrb[0].mxu0
      %9571 = vmatprep.mubr.f32.mxu0 0.0
      %9572 = vmatmul.mubr.f32.gmra.mrb[0].mxu0 %v8774
      %v9573 = vpop.f32.mrb[0].mxu0
      %v9574 = vadd.f32 0.0, %v9573
      %v9575 = vpop.f32.mrb[0].mxu0
      %9576 = vmatprep.mubr.f32.mxu0 0.0
      %9577 = vmatmul.mubr.f32.gmra.mrb[0].mxu0 %v8776
      %v9578 = vpop.f32.mrb[0].mxu0
      %v9579 = vadd.f32 0.0, %v9578
      %v9580 = vpop.f32.mrb[0].mxu0
      %9581 = vmatprep.mubr.f32.mxu0 0.0
      %9582 = vmatmul.mubr.f32.gmra.mrb[0].mxu0 %v8778
      %v9583 = vpop.f32.mrb[0].mxu0
      %v9584 = vadd.f32 0.0, %v9583
      %v9585 = vpop.f32.mrb[0].mxu0
      %9586 = vmatprep.mubr.f32.mxu0 0.0
      %9587 = vmatmul.mubr.f32.gmra.mrb[0].mxu0 %v8780
      %v9588 = vpop.f32.mrb[0].mxu0
      %v9589 = vadd.f32 0.0, %v9588
      %v9590 = vpop.f32.mrb[0].mxu0
      %9591 = vmatprep.mubr.f32.mxu0 0.0
      %9592 = vmatmul.mubr.f32.gmra.mrb[0].mxu0 %v8782
      %v9593 = vpop.f32.mrb[0].mxu0
      %v9594 = vadd.f32 0.0, %v9593
      %v9595 = vpop.f32.mrb[0].mxu0
      %9596 = vmatprep.mubr.f32.mxu0 0.0
      %9597 = vmatmul.mubr.f32.gmra.mrb[0].mxu0 %v9141
      %v9598 = vpop.f32.mrb[0].mxu0
      %v9599 = vadd.f32 0.0, %v9598
      %v9600 = vpop.f32.mrb[0].mxu0
      %9601 = vmatprep.mubr.f32.mxu0 0.0
      %9602 = vmatmul.mubr.f32.gmra.mrb[0].mxu0 %v9500
      %v9603 = vpop.f32.mrb[0].mxu0
      %v9604 = vadd.f32 0.0, %v9603
      %v9605 = vpop.f32.mrb[0].mxu0
      %9606 = vdwg.mxu0
      %v9607 = vadd.f32 %v9487, %v9569
      %v9608 = vadd.f32 %v9488, %v9574
      %v9609 = vadd.f32 %v9489, %v9579
      %v9610 = vadd.f32 %v9490, %v9584
      %v9611 = vadd.f32 %v9491, %v9589
      %v9612 = vadd.f32 %v9492, %v9594
      %v9613 = vadd.f32 %v9493, %v9599
      %v9614 = vadd.f32 %v9494, %v9604
      %v9615 = vld [vmem:[%s17] sm:$0x1]
      %v9616 = vld [vmem:[%s18] sm:$0x1]
      %v9617 = vsel %vm645, %v9607, 0.0
      %v9618 = vsel %vm645, %v9608, 0.0
      %v9619 = vadd.f32 %v9617, %v9618
      %v9620 = vsel %vm645, %v9609, 0.0
      %v9621 = vadd.f32 %v9619, %v9620
      %v9622 = vsel %vm645, %v9610, 0.0
      %v9623 = vadd.f32 %v9621, %v9622
      %v9624 = vsel %vm645, %v9611, 0.0
      %v9625 = vadd.f32 %v9623, %v9624
      %v9626 = vsel %vm645, %v9612, 0.0
      %v9627 = vadd.f32 %v9625, %v9626
      %v9628 = vsel %vm645, %v9613, 0.0
      %v9629 = vadd.f32 %v9627, %v9628
      %v9630 = vsel %vm645, %v9614, 0.0
      %v9631 = vadd.f32 %v9629, %v9630
      %9632 = vadd.xlane.f32.xlu0 %v9631
      %v9633 = vpop.xlane.xlu0 %9632
      %v9634 = vrot.slane %v9633, 4
      %v9635 = vadd.f32 %v9633, %v9634
      %v9636 = vrot.slane %v9635, 2
      %v9637 = vadd.f32 %v9635, %v9636
      %v9638 = vrot.slane %v9637, 1
      %v9639 = vadd.f32 %v9637, %v9638
      %s9640 = vtos %v9639
      %v9641 = vstv %s9640
      %v9642 = vmul.f32 %v9607, %v9607
      %v9643 = vmul.f32 %v9608, %v9608
      %v9644 = vmul.f32 %v9609, %v9609
      %v9645 = vmul.f32 %v9610, %v9610
      %v9646 = vmul.f32 %v9611, %v9611
      %v9647 = vmul.f32 %v9612, %v9612
      %v9648 = vmul.f32 %v9613, %v9613
      %v9649 = vmul.f32 %v9614, %v9614
      %v9650 = vsel %vm645, %v9642, 0.0
      %v9651 = vsel %vm645, %v9643, 0.0
      %v9652 = vadd.f32 %v9650, %v9651
      %v9653 = vsel %vm645, %v9644, 0.0
      %v9654 = vadd.f32 %v9652, %v9653
      %v9655 = vsel %vm645, %v9645, 0.0
      %v9656 = vadd.f32 %v9654, %v9655
      %v9657 = vsel %vm645, %v9646, 0.0
      %v9658 = vadd.f32 %v9656, %v9657
      %v9659 = vsel %vm645, %v9647, 0.0
      %v9660 = vadd.f32 %v9658, %v9659
      %v9661 = vsel %vm645, %v9648, 0.0
      %v9662 = vadd.f32 %v9660, %v9661
      %v9663 = vsel %vm645, %v9649, 0.0
      %v9664 = vadd.f32 %v9662, %v9663
      %9665 = vadd.xlane.f32.xlu0 %v9664
      %v9666 = vpop.xlane.xlu0 %9665
      %v9667 = vrot.slane %v9666, 4
      %v9668 = vadd.f32 %v9666, %v9667
      %v9669 = vrot.slane %v9668, 2
      %v9670 = vadd.f32 %v9668, %v9669
      %v9671 = vrot.slane %v9670, 1
      %v9672 = vadd.f32 %v9670, %v9671
      %s9673 = vtos %v9672
      %v9674 = vstv %s9673
      %v9675 = vmul.f32 %v9641, 0.001953125
      %v9676 = vmul.f32 %v9674, 0.001953125
      %v9677 = vmul.f32 %v9675, %v9675
      %v9678 = vsub.f32 %v9676, %v9677
      %v9679 = vmax.f32 %v9678, 0.0
      %v9680 = vsub.f32 %v9607, %v9675
      %v9681 = vsub.f32 %v9608, %v9675
      %v9682 = vsub.f32 %v9609, %v9675
      %v9683 = vsub.f32 %v9610, %v9675
      %v9684 = vsub.f32 %v9611, %v9675
      %v9685 = vsub.f32 %v9612, %v9675
      %v9686 = vsub.f32 %v9613, %v9675
      %v9687 = vsub.f32 %v9614, %v9675
      %v9688 = vadd.f32 %v9679, 1e-05
      %v9689 = vrsqrt.pop %v9688
      %v9690 = vmul.f32 %v9680, %v9689
      %v9691 = vmul.f32 %v9681, %v9689
      %v9692 = vmul.f32 %v9682, %v9689
      %v9693 = vmul.f32 %v9683, %v9689
      %v9694 = vmul.f32 %v9684, %v9689
      %v9695 = vmul.f32 %v9685, %v9689
      %v9696 = vmul.f32 %v9686, %v9689
      %v9697 = vmul.f32 %v9687, %v9689
      %v9699 = vlaneseq
      %v9700 = vshrl.u32 %v9699, 7
      %v9701 = vsub.s32 0, %v9700
      %v9702 = vrot.slane %v9615, %v9701
      %v9704 = vmul.f32 %v9690, %v9702
      %v9705 = vmul.f32 %v9691, %v9702
      %v9706 = vmul.f32 %v9692, %v9702
      %v9707 = vmul.f32 %v9693, %v9702
      %v9708 = vmul.f32 %v9694, %v9702
      %v9709 = vmul.f32 %v9695, %v9702
      %v9710 = vmul.f32 %v9696, %v9702
      %v9711 = vmul.f32 %v9697, %v9702
      %v9713 = vlaneseq
      %v9714 = vshrl.u32 %v9713, 7
      %v9715 = vsub.s32 0, %v9714
      %v9716 = vrot.slane %v9616, %v9715
      %v9718 = vadd.f32 %v9704, %v9716
      %v9719 = vadd.f32 %v9705, %v9716
      %v9720 = vadd.f32 %v9706, %v9716
      %v9721 = vadd.f32 %v9707, %v9716
      %v9722 = vadd.f32 %v9708, %v9716
      %v9723 = vadd.f32 %v9709, %v9716
      %v9724 = vadd.f32 %v9710, %v9716
      %v9725 = vadd.f32 %v9711, %v9716
      %9726 = vst.msk [vmem:[%s602] sm:$0xff] %vm645, %v9718
      %9727 = vst.msk [vmem:[%s602 + $0x8] sm:$0xff] %vm645, %v9719
      %9728 = vst.msk [vmem:[%s602 + $0x10] sm:$0xff] %vm645, %v9720
      %9729 = vst.msk [vmem:[%s602 + $0x18] sm:$0xff] %vm645, %v9721
      %9730 = vst.msk [vmem:[%s602 + $0x20] sm:$0xff] %vm645, %v9722
      %9731 = vst.msk [vmem:[%s602 + $0x28] sm:$0xff] %vm645, %v9723
      %9732 = vst.msk [vmem:[%s602 + $0x30] sm:$0xff] %vm645, %v9724
      %9733 = vst.msk [vmem:[%s602 + $0x38] sm:$0xff] %vm645, %v9725
      %p9734 = scmp.lt.s32.totalorder %s30, 1
      %s9735 = scalar_select %p9734, %s30, 1
      %s9736 = smul.addr %s9735, 8
      %s9737 = smul.addr %s9736, 8
      %s9738 = scalar_lea.vmem %s19, %s9737
      // Predicated region
      $region97: #{down_forward.1} parent=95 // pred_check
        %p9739 = pneg %p452
      $region98: #{down_forward.1} parent=95 // pred_check_branch
        %9741 = sbr.rel (%p9739) target = $region100
      $region99: #{down_forward.1} parent=95 // pred_region
        _
      $region100: #{down_forward.1} parent=95 // pred_fallthru
        _
    $region96: #{down_forward.1} parent=5 // pred_fallthru
      _
    %p9742 = scmp.le.s32.totalorder 2, %s25
    // Predicated region
    $region101: #{down_forward.1} parent=5 // pred_check
      %p9743 = pneg %p9742
    $region102: #{down_forward.1} parent=5 // pred_check_branch
      %9745 = sbr.rel (%p9743) target = $region104
    $region103: #{down_forward.1} parent=5 // pred_region
      %s9746 = ssub.s32 %s25, 2
      // Predicated region
      $region105: #{down_forward.1} parent=103 // pred_check
        %p9747 = pneg %p458
      $region106: #{down_forward.1} parent=103 // pred_check_branch
        %9749 = sbr.rel (%p9747) target = $region108
      $region107: #{down_forward.1} parent=103 // pred_region
        %p9750 = scmp.lt.s32.totalorder %s31, 1
        %s9751 = scalar_select %p9750, %s31, 1
        %s9752 = smul.addr %s9751, 8
        %s9753 = smul.addr %s9752, 8
        %s9754 = scalar_lea.vmem %s19, %s9753
      $region108: #{down_forward.1} parent=103 // pred_fallthru
        _
    $region104: #{down_forward.1} parent=5 // pred_fallthru
      _
  $region6: #{down_forward.1} parent=0 // loop_footer
    %s29 = sadd.s32 1, %s25
  $region7: #{down_forward.1} parent=0 // loop_footer_branch
    %24 = sbr.rel target = $region3
  $region8: #{down_forward.1} parent=0 // loop_exit
    _

</llo_original>
